<compile_context>
chip_gen: v5e
topology: v5e:2x2
jax: 0.10.0
libtpu: 0.0.40
codegen_flags: <defaults>
</compile_context>

<pallas_src>
import jax
import jax.numpy as jnp
from jax.experimental import pallas as pl
from jax.experimental.pallas import tpu as pltpu

# ---- small, module-consistent hyperparameters -------------------------------
B = 2
ENC_HIDDEN = 32        # encoder_hidden_size == dec_s in/hidden channels
GIN = 16               # hps.model.gin_channels
MEL = 80               # mel_size
TIME = 200             # time_dim
KSIZE = 5              # dec_s kernel_size
NLAYERS = 8            # dec_s n_layers
PAD = (KSIZE - 1) // 2
FRAME = 80             # stub framing for the basic-pitch stand-in
TP = 50                # basic-pitch time frames before nearest interpolation


# ---- Pallas kernel: full Decoder(pre -> WN -> proj), (C, time-on-lanes) -----
def _decoder_kernel(f0_ref, mask_ref, bias_ref,
                    w_pre_ref, b_pre_ref,
                    w_in_ref, w_rs_ref, b_rs_ref,
                    w_proj_ref, b_proj_ref,
                    out_ref, taps_ref):
    H = w_pre_ref.shape[0]             # 32
    N = f0_ref.shape[2]                # lanes = bpb * t_pad (multiple of 128)
    NL = w_in_ref.shape[0]             # 8

    mask = mask_ref[0]                                     # (1, N) f32

    # Decoder.pre : Conv1d(in, hidden, 1)  (bf16 operands, f32 accumulate)
    x = (jnp.dot(w_pre_ref[...], (f0_ref[0] * mask).astype(jnp.bfloat16),
                 preferred_element_type=jnp.float32)
         + b_pre_ref[...]) * mask                          # (H, N) f32

    output = jnp.zeros((H, N), jnp.float32)
    for i in range(NL):
        # WN.in_layers[i] : Conv1d(H, 2H, 5, padding=2) as one K=KSIZE*H MXU
        # matmul fed from a VMEM im2col scratch. Tap k needs x[:, t + k - PAD];
        # the circular lane-roll is safe because every folded batch keeps
        # >= PAD masked (zero) tail columns and x is re-masked each layer
        # (that per-layer mask is load-bearing for this trick).
        for k in range(KSIZE):
            tap = x if k == PAD else pltpu.roll(x, (PAD - k) % N, axis=1)
            taps_ref[k * H:(k + 1) * H, :] = tap.astype(jnp.bfloat16)
        # TODO(synk): on v5e a K=128 + K=32 split keeps MXU pushes aligned.
        x_in = (jnp.dot(w_in_ref[i], taps_ref[...],
                        preferred_element_type=jnp.float32)
                + bias_ref[0, i])                          # (2H, N) f32

        # commons.fused_add_tanh_sigmoid_multiply (f32 VPU/EUP math)
        acts = jnp.tanh(x_in[:H]) * jax.nn.sigmoid(x_in[H:])   # (H, N) f32
        acts_b = acts.astype(jnp.bfloat16)

        if i < NL - 1:
            # WN.res_skip_layers[i] : Conv1d(H, 2H, 1)
            rs = (jnp.dot(w_rs_ref[i], acts_b,
                          preferred_element_type=jnp.float32)
                  + b_rs_ref[i])                           # (2H, N)
            x = (x + rs[:H]) * mask
            output = output + rs[H:]
        else:
            # last layer is Conv1d(H, H, 1): packed into rows [:H]
            rs = (jnp.dot(w_rs_ref[i][:H, :], acts_b,
                          preferred_element_type=jnp.float32)
                  + b_rs_ref[i][:H, :])                    # (H, N)
            output = output + rs

    output = output * mask
    # Decoder.proj : Conv1d(H, 80, 1) -- output last dim is lane-dense (N)
    y = (jnp.dot(w_proj_ref[...], output.astype(jnp.bfloat16),
                 preferred_element_type=jnp.float32)
         + b_proj_ref[...]) * mask
    out_ref[0] = y


def _device_kind():
    try:
        return jax.devices()[0].device_kind.lower()
    except Exception:
        return ""


def _preferred_num_blocks(batch):
    """v7x has 2 TensorCores -> 2-way block split; single-TC chips (v5e/v6e)
    fold the whole batch into the lane axis (one grid step, no serial loop)."""
    kind = _device_kind()
    if ("v7" in kind or "tpu7" in kind) and batch % 2 == 0 and batch >= 2:
        return 2
    return 1


def decoder_pallas(f0_nct, x_mask_n1t, g_vec, p, num_blocks=None):
    """f0_nct: (B, Cin, T), x_mask_n1t: (B, 1, T), g_vec: (B, GIN) -> (B, 80, T)"""
    Bn, Cin, T = f0_nct.shape
    H = ENC_HIDDEN
    if num_blocks is None:
        num_blocks = _preferred_num_blocks(Bn)
    bpb = Bn // num_blocks
    assert num_blocks * bpb == Bn

    # pad time to a lane-dense multiple of 128 with >= PAD zero halo columns
    t_pad = ((T + PAD + 127) // 128) * 128
    assert t_pad - T >= PAD, "circular-roll conv needs >= PAD masked tail cols"
    N = bpb * t_pad

    f0p = jnp.pad(f0_nct.astype(jnp.float32),
                  ((0, 0), (0, 0), (0, t_pad - T)))
    mkp = jnp.pad(x_mask_n1t.astype(jnp.float32),
                  ((0, 0), (0, 0), (0, t_pad - T)))

    def fold(a):   # (B, C, t_pad) -> (num_blocks, C, bpb * t_pad)
        C = a.shape[1]
        a = a.reshape(num_blocks, bpb, C, t_pad)
        return jnp.transpose(a, (0, 2, 1, 3)).reshape(num_blocks, C, bpb * t_pad)

    f0b, mkb = fold(f0p), fold(mkp)

    # WN.cond_layer : Conv1d(gin, 2*H*n_layers, 1) on g (time-length 1), merged
    # with the in_layer biases and replicated lane-dense to match the fold.
    cond = (g_vec @ p['w_cond'] + p['b_cond']).reshape(Bn, NLAYERS, 2 * H)
    bias = (cond + p['b_in'][None]).astype(jnp.float32)          # (B, NL, 2H)
    bias = jnp.broadcast_to(bias[..., None], (Bn, NLAYERS, 2 * H, t_pad))
    bias = bias.reshape(num_blocks, bpb, NLAYERS, 2 * H, t_pad)
    bias = jnp.transpose(bias, (0, 2, 3, 1, 4)).reshape(
        num_blocks, NLAYERS, 2 * H, N)

    # bf16 matmul operands (accumulation stays f32 inside the kernel)
    w_pre = p['w_pre'].astype(jnp.bfloat16)
    w_in = p['w_in'].astype(jnp.bfloat16)
    w_rs = p['w_rs'].astype(jnp.bfloat16)
    w_proj = p['w_proj'].astype(jnp.bfloat16)
    weights = [w_pre, p['b_pre'], w_in, w_rs, p['b_rs'], w_proj, p['b_proj']]

    def wspec(arr):
        nd = arr.ndim
        return pl.BlockSpec(arr.shape, lambda b, _nd=nd: (0,) * _nd)

    in_specs = [
        pl.BlockSpec((1, Cin, N), lambda b: (b, 0, 0)),
        pl.BlockSpec((1, 1, N), lambda b: (b, 0, 0)),
        pl.BlockSpec((1, NLAYERS, 2 * H, N), lambda b: (b, 0, 0, 0)),
    ] + [wspec(w) for w in weights]

    flops_per_block = 2 * N * (H * Cin
                               + NLAYERS * (2 * H * KSIZE * H + 2 * H * H)
                               + MEL * H)
    cost = pl.CostEstimate(
        flops=int(num_blocks * flops_per_block),
        transcendentals=int(num_blocks * NLAYERS * 2 * H * N),
        bytes_accessed=int(sum(a.size * a.dtype.itemsize
                               for a in [f0b, mkb, bias] + weights)
                           + num_blocks * MEL * N * 4))

    kind = _device_kind()
    if num_blocks > 1 and ("v7" in kind or "tpu7" in kind):
        # make the block axis land on both TensorCores
        dim_sem = (getattr(pltpu, "CORE_PARALLEL", "parallel"),)
    else:
        dim_sem = ("arbitrary",)

    out = pl.pallas_call(
        _decoder_kernel,
        out_shape=jax.ShapeDtypeStruct((num_blocks, MEL, N), jnp.float32),
        grid=(num_blocks,),
        in_specs=in_specs,
        out_specs=pl.BlockSpec((1, MEL, N), lambda b: (b, 0, 0)),
        scratch_shapes=[pltpu.VMEM((KSIZE * H, N), jnp.bfloat16)],
        compiler_params=pltpu.CompilerParams(dimension_semantics=dim_sem),
        cost_estimate=cost,
    )(f0b, mkb, bias, *weights)

    # unfold lanes back to (B, 80, T)
    out = out.reshape(num_blocks, MEL, bpb, t_pad)
    out = jnp.transpose(out, (0, 2, 1, 3)).reshape(Bn, MEL, t_pad)
    return out[:, :, :T]


# ---- plain-JAX reference of the Decoder (for a sanity check) ----------------
def decoder_reference(f0_nct, x_mask_n1t, g_vec, p):
    Bn, _, T = f0_nct.shape
    H = ENC_HIDDEN
    hp = jax.lax.Precision.HIGHEST
    mask = x_mask_n1t
    x = jnp.einsum('oc,bct->bot', p['w_pre'], f0_nct * mask, precision=hp)
    x = (x + p['b_pre'][None]) * mask
    cond = (g_vec @ p['w_cond'] + p['b_cond']).reshape(Bn, NLAYERS, 2 * H)
    output = jnp.zeros_like(x)
    for i in range(NLAYERS):
        xpad = jnp.pad(x, ((0, 0), (0, 0), (PAD, PAD)))
        x_in = jnp.zeros((Bn, 2 * H, T), jnp.float32)
        for k in range(KSIZE):
            wk = p['w_in'][i][:, k * H:(k + 1) * H]
            x_in = x_in + jnp.einsum('oc,bct->bot', wk, xpad[:, :, k:k + T],
                                     precision=hp)
        x_in = x_in + p['b_in'][i][None, :, None] + cond[:, i][:, :, None]
        acts = jnp.tanh(x_in[:, :H]) * jax.nn.sigmoid(x_in[:, H:])
        rs = jnp.einsum('oc,bct->bot', p['w_rs'][i], acts, precision=hp)
        rs = rs + p['b_rs'][i][None]
        if i < NLAYERS - 1:
            x = (x + rs[:, :H]) * mask
            output = output + rs[:, H:]
        else:
            output = output + rs[:, :H]
    output = output * mask
    y = jnp.einsum('oc,bct->bot', p['w_proj'], output, precision=hp)
    return (y + p['b_proj'][None]) * mask


# ---- deterministic synthetic parameters -------------------------------------
def init_params(key):
    ks = jax.random.split(key, 9)
    s = 0.1
    H = ENC_HIDDEN
    p = {}
    p['emb_p_w'] = jax.random.normal(ks[0], (FRAME, H), jnp.float32) * s
    p['emb_p_b'] = jnp.zeros((H,), jnp.float32)
    p['emb_g_w'] = jax.random.normal(ks[1], (MEL, GIN), jnp.float32) * s
    p['emb_g_b'] = jnp.zeros((GIN,), jnp.float32)
    # Decoder.pre : PyTorch Conv1d(H, H, 1).weight[:, :, 0] -> (H_out, H_in)
    p['w_pre'] = jax.random.normal(ks[2], (H, H), jnp.float32) * s
    p['b_pre'] = jnp.zeros((H, 1), jnp.float32)
    # WN.cond_layer : Conv1d(GIN, NL*2H, 1) -> used as g_vec @ w_cond
    p['w_cond'] = jax.random.normal(ks[3], (GIN, NLAYERS * 2 * H), jnp.float32) * s
    p['b_cond'] = jnp.zeros((NLAYERS * 2 * H,), jnp.float32)
    # WN.in_layers[i] : Conv1d(H, 2H, 5, padding=2); a real PyTorch weight
    # (2H, H, K) packs as w.transpose(0, 2, 1).reshape(2H, K*H).
    p['w_in'] = jax.random.normal(
        ks[4], (NLAYERS, 2 * H, KSIZE * H), jnp.float32) * s
    p['b_in'] = jax.random.normal(ks[5], (NLAYERS, 2 * H), jnp.float32) * s
    # WN.res_skip_layers[i] : Conv1d(H, 2H, 1); the last layer Conv1d(H, H, 1)
    # is packed into rows [:H] (rows [H:] are never read by kernel/reference).
    p['w_rs'] = jax.random.normal(ks[6], (NLAYERS, 2 * H, H), jnp.float32) * s
    p['b_rs'] = jax.random.normal(ks[7], (NLAYERS, 2 * H, 1), jnp.float32) * s
    p['w_proj'] = jax.random.normal(ks[8], (MEL, H), jnp.float32) * s
    p['b_proj'] = jnp.zeros((MEL, 1), jnp.float32)
    return p


# ---- SynthesizerTrn.forward (glue in plain JAX, hot path in Pallas) ----------
def _frontend(params, x, x_mel, mel_fn_x, length, time_dim=TIME):
    Bn = x.shape[0]
    # TODO(synk): emb_p is an externally loaded basic-pitch model (no in-module
    # architecture); replaced by deterministic framing + linear + sigmoid.
    tp = x.shape[1] // FRAME
    frames = x[:, :tp * FRAME].reshape(Bn, tp, FRAME)
    note = jax.nn.sigmoid(frames @ params['emb_p_w'] + params['emb_p_b'])
    f0 = jnp.transpose(note, (0, 2, 1))                         # (B, H, Tp)

    # F.interpolate(f0, size=time_dim, mode='nearest') along time
    idx = (jnp.arange(time_dim) * tp // time_dim).astype(jnp.int32)
    f0 = f0[:, :, idx]                                          # (B, H, T)

    # commons.sequence_mask(length, mel_fn_x.size(2)).unsqueeze(1)
    t_mask = mel_fn_x.shape[2]
    x_mask = (jnp.arange(t_mask)[None, :] < length[:, None]).astype(mel_fn_x.dtype)
    x_mask = x_mask[:, None, :]                                 # (B, 1, T)

    # TODO(synk): emb_g is an externally loaded pretrained timbre encoder;
    # replaced by deterministic mean-pool over time + linear + tanh embedding.
    g_vec = jnp.tanh(jnp.mean(x_mel, axis=2) @ params['emb_g_w'] + params['emb_g_b'])
    return f0, x_mask, g_vec


def synthesizer_trn_forward(params, x, x_mel, mel_fn_x, length,
                            mixup=False, time_dim=TIME):
    f0, x_mask, g_vec = _frontend(params, x, x_mel, mel_fn_x, length, time_dim)
    g = g_vec[:, :, None]                                       # (B, GIN, 1)
    if mixup:
        perm = jax.random.permutation(jax.random.PRNGKey(1), x.shape[0])
        g_vec2 = jnp.concatenate([g_vec, g_vec[perm]], axis=0)
        x_mask2 = jnp.concatenate([x_mask, x_mask], axis=0)
        f02 = jnp.concatenate([f0, f0], axis=0)
        y_s = decoder_pallas(f02, x_mask2, g_vec2, params)
    else:
        y_s = decoder_pallas(f0, x_mask, g_vec, params)
    return g, y_s


if __name__ == "__main__":
    key = jax.random.PRNGKey(0)
    pkey, k1, k2, k3 = jax.random.split(key, 4)
    params = init_params(pkey)

    x = jax.random.normal(k1, (B, TP * FRAME), jnp.float32)       # raw-audio stand-in
    x_mel = jax.random.normal(k2, (B, MEL, TIME), jnp.float32)    # timbre-encoder input
    mel_fn_x = jax.random.normal(k3, (B, MEL, TIME), jnp.float32)
    length = jnp.array([TIME, 150], dtype=jnp.int32)

    fwd = jax.jit(synthesizer_trn_forward, static_argnames=("mixup", "time_dim"))
    g, y_s = fwd(params, x, x_mel, mel_fn_x, length, mixup=False)
    jax.block_until_ready((g, y_s))
    assert g.shape == (B, GIN, 1)
    assert y_s.shape == (B, MEL, TIME)

    # sanity check against a plain-JAX reference of the Decoder
    f0, x_mask, g_vec = _frontend(params, x, x_mel, mel_fn_x, length, TIME)
    y_ref = decoder_reference(f0, x_mask, g_vec, params)
    assert bool(jnp.isfinite(y_s).all())
    assert bool(jnp.allclose(y_s, y_ref, atol=5e-2, rtol=5e-2))
    print("KERNEL_OK")
</pallas_src>

<mosaic_0001>
module attributes {stable_mosaic.version = 11 : i64} {
  func.func @_decoder_kernel(%arg0: i32, %arg1: memref<1x32x512xf32, #tpu.memory_space<vmem>>, %arg2: memref<1x1x512xf32, #tpu.memory_space<vmem>>, %arg3: memref<1x8x64x512xf32, #tpu.memory_space<vmem>>, %arg4: memref<32x32xbf16, #tpu.memory_space<vmem>>, %arg5: memref<32x1xf32, #tpu.memory_space<vmem>>, %arg6: memref<8x64x160xbf16, #tpu.memory_space<vmem>>, %arg7: memref<8x64x32xbf16, #tpu.memory_space<vmem>>, %arg8: memref<8x64x1xf32, #tpu.memory_space<vmem>>, %arg9: memref<80x32xbf16, #tpu.memory_space<vmem>>, %arg10: memref<80x1xf32, #tpu.memory_space<vmem>>, %arg11: memref<1x80x512xf32, #tpu.memory_space<vmem>>, %arg12: memref<160x512xbf16, #tpu.memory_space<vmem>>) attributes {dimension_semantics = [#tpu.dimension_semantics<arbitrary>], iteration_bounds = array<i64: 1>, scalar_prefetch = 0 : i64, scratch_operands = 1 : i64, tpu.core_type = #tpu.core_type<tc>, window_params = [{transform_indices = @transform_0, window_bounds = array<i64: 1, 32, 512>}, {transform_indices = @transform_1, window_bounds = array<i64: 1, 1, 512>}, {transform_indices = @transform_2, window_bounds = array<i64: 1, 8, 64, 512>}, {pipeline_mode = #tpu.pipeline_mode<synchronous>, transform_indices = @transform_3, window_bounds = array<i64: 32, 32>}, {pipeline_mode = #tpu.pipeline_mode<synchronous>, transform_indices = @transform_4, window_bounds = array<i64: 32, 1>}, {pipeline_mode = #tpu.pipeline_mode<synchronous>, transform_indices = @transform_5, window_bounds = array<i64: 8, 64, 160>}, {pipeline_mode = #tpu.pipeline_mode<synchronous>, transform_indices = @transform_6, window_bounds = array<i64: 8, 64, 32>}, {pipeline_mode = #tpu.pipeline_mode<synchronous>, transform_indices = @transform_7, window_bounds = array<i64: 8, 64, 1>}, {pipeline_mode = #tpu.pipeline_mode<synchronous>, transform_indices = @transform_8, window_bounds = array<i64: 80, 32>}, {pipeline_mode = #tpu.pipeline_mode<synchronous>, transform_indices = @transform_9, window_bounds = array<i64: 80, 1>}, {transform_indices = @transform_10, window_bounds = array<i64: 1, 80, 512>}]} {
    %c0 = arith.constant 0 : index
    %c0_0 = arith.constant 0 : index
    %c0_1 = arith.constant 0 : index
    %0 = vector.load %arg2[%c0, %c0_0, %c0_1] : memref<1x1x512xf32, #tpu.memory_space<vmem>>, vector<1x1x512xf32>
    %1 = vector.shape_cast %0 : vector<1x1x512xf32> to vector<1x512xf32>
    %c0_2 = arith.constant 0 : index
    %c0_3 = arith.constant 0 : index
    %2 = vector.load %arg4[%c0_2, %c0_3] : memref<32x32xbf16, #tpu.memory_space<vmem>>, vector<32x32xbf16>
    %c0_4 = arith.constant 0 : index
    %c0_5 = arith.constant 0 : index
    %c0_6 = arith.constant 0 : index
    %3 = vector.load %arg1[%c0_4, %c0_5, %c0_6] : memref<1x32x512xf32, #tpu.memory_space<vmem>>, vector<1x32x512xf32>
    %4 = vector.shape_cast %3 : vector<1x32x512xf32> to vector<32x512xf32>
    %5 = vector.broadcast %1 : vector<1x512xf32> to vector<32x512xf32>
    %6 = arith.mulf %4, %5 : vector<32x512xf32>
    %7 = arith.truncf %6 : vector<32x512xf32> to vector<32x512xbf16>
    %cst = arith.constant dense<0.000000e+00> : vector<32x512xf32>
    %8 = tpu.matmul %2, %7, %cst {dimension_numbers = #tpu.dot_dimension_numbers<[1], [0], [0], [1], [0, 0, 1, 1], [], []>} : vector<32x32xbf16>, vector<32x512xbf16>, vector<32x512xf32> -> vector<32x512xf32>
    %c0_7 = arith.constant 0 : index
    %c0_8 = arith.constant 0 : index
    %9 = vector.load %arg5[%c0_7, %c0_8] : memref<32x1xf32, #tpu.memory_space<vmem>>, vector<32x1xf32>
    %10 = vector.broadcast %9 : vector<32x1xf32> to vector<32x512xf32>
    %11 = arith.addf %8, %10 : vector<32x512xf32>
    %12 = vector.broadcast %1 : vector<1x512xf32> to vector<32x512xf32>
    %13 = arith.mulf %11, %12 : vector<32x512xf32>
    %cst_9 = arith.constant 0.000000e+00 : f32
    %14 = vector.broadcast %cst_9 : f32 to vector<32x512xf32>
    %c2_i32 = arith.constant 2 : i32
    %15 = tpu.dynamic_rotate %13 by %c2_i32 dim 1 : vector<32x512xf32>, i32 -> vector<32x512xf32>
    %16 = arith.truncf %15 : vector<32x512xf32> to vector<32x512xbf16>
    %c0_10 = arith.constant 0 : index
    %c0_11 = arith.constant 0 : index
    %17 = vector.load %arg12[%c0_10, %c0_11] : memref<160x512xbf16, #tpu.memory_space<vmem>>, vector<32x512xbf16>
    tpu.vector_store %arg12[%c0_10, %c0_11], %16 {strides = array<i32>} : memref<160x512xbf16, #tpu.memory_space<vmem>>, vector<32x512xbf16>,
    %c1_i32 = arith.constant 1 : i32
    %18 = tpu.dynamic_rotate %13 by %c1_i32 dim 1 : vector<32x512xf32>, i32 -> vector<32x512xf32>
    %19 = arith.truncf %18 : vector<32x512xf32> to vector<32x512xbf16>
    %c32 = arith.constant 32 : index
    %c0_12 = arith.constant 0 : index
    %20 = vector.load %arg12[%c32, %c0_12] : memref<160x512xbf16, #tpu.memory_space<vmem>>, vector<32x512xbf16>
    tpu.vector_store %arg12[%c32, %c0_12], %19 {strides = array<i32>} : memref<160x512xbf16, #tpu.memory_space<vmem>>, vector<32x512xbf16>,
    %21 = arith.truncf %13 : vector<32x512xf32> to vector<32x512xbf16>
    %c64 = arith.constant 64 : index
    %c0_13 = arith.constant 0 : index
    %22 = vector.load %arg12[%c64, %c0_13] : memref<160x512xbf16, #tpu.memory_space<vmem>>, vector<32x512xbf16>
    tpu.vector_store %arg12[%c64, %c0_13], %21 {strides = array<i32>} : memref<160x512xbf16, #tpu.memory_space<vmem>>, vector<32x512xbf16>,
    %c511_i32 = arith.constant 511 : i32
    %23 = tpu.dynamic_rotate %13 by %c511_i32 dim 1 : vector<32x512xf32>, i32 -> vector<32x512xf32>
    %24 = arith.truncf %23 : vector<32x512xf32> to vector<32x512xbf16>
    %c96 = arith.constant 96 : index
    %c0_14 = arith.constant 0 : index
    %25 = vector.load %arg12[%c96, %c0_14] : memref<160x512xbf16, #tpu.memory_space<vmem>>, vector<32x512xbf16>
    tpu.vector_store %arg12[%c96, %c0_14], %24 {strides = array<i32>} : memref<160x512xbf16, #tpu.memory_space<vmem>>, vector<32x512xbf16>,
    %c510_i32 = arith.constant 510 : i32
    %26 = tpu.dynamic_rotate %13 by %c510_i32 dim 1 : vector<32x512xf32>, i32 -> vector<32x512xf32>
    %27 = arith.truncf %26 : vector<32x512xf32> to vector<32x512xbf16>
    %c128 = arith.constant 128 : index
    %c0_15 = arith.constant 0 : index
    %28 = vector.load %arg12[%c128, %c0_15] : memref<160x512xbf16, #tpu.memory_space<vmem>>, vector<32x512xbf16>
    tpu.vector_store %arg12[%c128, %c0_15], %27 {strides = array<i32>} : memref<160x512xbf16, #tpu.memory_space<vmem>>, vector<32x512xbf16>,
    %c0_16 = arith.constant 0 : index
    %c0_17 = arith.constant 0 : index
    %c0_18 = arith.constant 0 : index
    %29 = vector.load %arg6[%c0_16, %c0_17, %c0_18] : memref<8x64x160xbf16, #tpu.memory_space<vmem>>, vector<1x64x160xbf16>
    %30 = vector.shape_cast %29 : vector<1x64x160xbf16> to vector<64x160xbf16>
    %c0_19 = arith.constant 0 : index
    %c0_20 = arith.constant 0 : index
    %31 = vector.load %arg12[%c0_19, %c0_20] : memref<160x512xbf16, #tpu.memory_space<vmem>>, vector<160x512xbf16>
    %cst_21 = arith.constant dense<0.000000e+00> : vector<64x512xf32>
    %32 = tpu.matmul %30, %31, %cst_21 {dimension_numbers = #tpu.dot_dimension_numbers<[1], [0], [0], [1], [0, 0, 1, 1], [], []>} : vector<64x160xbf16>, vector<160x512xbf16>, vector<64x512xf32> -> vector<64x512xf32>
    %c0_22 = arith.constant 0 : index
    %c0_23 = arith.constant 0 : index
    %c0_24 = arith.constant 0 : index
    %c0_25 = arith.constant 0 : index
    %33 = vector.load %arg3[%c0_22, %c0_23, %c0_24, %c0_25] : memref<1x8x64x512xf32, #tpu.memory_space<vmem>>, vector<1x1x64x512xf32>
    %34 = vector.shape_cast %33 : vector<1x1x64x512xf32> to vector<64x512xf32>
    %35 = arith.addf %32, %34 : vector<64x512xf32>
    %36 = vector.extract_strided_slice %35 {offsets = [0, 0], sizes = [32, 512], strides = [1, 1]} : vector<64x512xf32> to vector<32x512xf32>
    %37 = math.tanh %36 : vector<32x512xf32>
    %38 = vector.extract_strided_slice %35 {offsets = [32, 0], sizes = [32, 512], strides = [1, 1]} : vector<64x512xf32> to vector<32x512xf32>
    %39 = arith.negf %38 : vector<32x512xf32>
    %40 = math.exp %39 : vector<32x512xf32>
    %cst_26 = arith.constant 1.000000e+00 : f32
    %41 = vector.broadcast %cst_26 : f32 to vector<32x512xf32>
    %42 = arith.addf %41, %40 : vector<32x512xf32>
    %43 = arith.divf %41, %42 : vector<32x512xf32>
    %44 = arith.mulf %37, %43 : vector<32x512xf32>
    %45 = arith.truncf %44 : vector<32x512xf32> to vector<32x512xbf16>
    %c0_27 = arith.constant 0 : index
    %c0_28 = arith.constant 0 : index
    %c0_29 = arith.constant 0 : index
    %46 = vector.load %arg7[%c0_27, %c0_28, %c0_29] : memref<8x64x32xbf16, #tpu.memory_space<vmem>>, vector<1x64x32xbf16>
    %47 = vector.shape_cast %46 : vector<1x64x32xbf16> to vector<64x32xbf16>
    %cst_30 = arith.constant dense<0.000000e+00> : vector<64x512xf32>
    %48 = tpu.matmul %47, %45, %cst_30 {dimension_numbers = #tpu.dot_dimension_numbers<[1], [0], [0], [1], [0, 0, 1, 1], [], []>} : vector<64x32xbf16>, vector<32x512xbf16>, vector<64x512xf32> -> vector<64x512xf32>
    %c0_31 = arith.constant 0 : index
    %c0_32 = arith.constant 0 : index
    %c0_33 = arith.constant 0 : index
    %49 = vector.load %arg8[%c0_31, %c0_32, %c0_33] : memref<8x64x1xf32, #tpu.memory_space<vmem>>, vector<1x64x1xf32>
    %50 = vector.shape_cast %49 : vector<1x64x1xf32> to vector<64x1xf32>
    %51 = vector.broadcast %50 : vector<64x1xf32> to vector<64x512xf32>
    %52 = arith.addf %48, %51 : vector<64x512xf32>
    %53 = vector.extract_strided_slice %52 {offsets = [0, 0], sizes = [32, 512], strides = [1, 1]} : vector<64x512xf32> to vector<32x512xf32>
    %54 = arith.addf %13, %53 : vector<32x512xf32>
    %55 = vector.broadcast %1 : vector<1x512xf32> to vector<32x512xf32>
    %56 = arith.mulf %54, %55 : vector<32x512xf32>
    %57 = vector.extract_strided_slice %52 {offsets = [32, 0], sizes = [32, 512], strides = [1, 1]} : vector<64x512xf32> to vector<32x512xf32>
    %58 = arith.addf %14, %57 : vector<32x512xf32>
    %c2_i32_34 = arith.constant 2 : i32
    %59 = tpu.dynamic_rotate %56 by %c2_i32_34 dim 1 : vector<32x512xf32>, i32 -> vector<32x512xf32>
    %60 = arith.truncf %59 : vector<32x512xf32> to vector<32x512xbf16>
    %c0_35 = arith.constant 0 : index
    %c0_36 = arith.constant 0 : index
    %61 = vector.load %arg12[%c0_35, %c0_36] : memref<160x512xbf16, #tpu.memory_space<vmem>>, vector<32x512xbf16>
    tpu.vector_store %arg12[%c0_35, %c0_36], %60 {strides = array<i32>} : memref<160x512xbf16, #tpu.memory_space<vmem>>, vector<32x512xbf16>,
    %c1_i32_37 = arith.constant 1 : i32
    %62 = tpu.dynamic_rotate %56 by %c1_i32_37 dim 1 : vector<32x512xf32>, i32 -> vector<32x512xf32>
    %63 = arith.truncf %62 : vector<32x512xf32> to vector<32x512xbf16>
    %c32_38 = arith.constant 32 : index
    %c0_39 = arith.constant 0 : index
    %64 = vector.load %arg12[%c32_38, %c0_39] : memref<160x512xbf16, #tpu.memory_space<vmem>>, vector<32x512xbf16>
    tpu.vector_store %arg12[%c32_38, %c0_39], %63 {strides = array<i32>} : memref<160x512xbf16, #tpu.memory_space<vmem>>, vector<32x512xbf16>,
    %65 = arith.truncf %56 : vector<32x512xf32> to vector<32x512xbf16>
    %c64_40 = arith.constant 64 : index
    %c0_41 = arith.constant 0 : index
    %66 = vector.load %arg12[%c64_40, %c0_41] : memref<160x512xbf16, #tpu.memory_space<vmem>>, vector<32x512xbf16>
    tpu.vector_store %arg12[%c64_40, %c0_41], %65 {strides = array<i32>} : memref<160x512xbf16, #tpu.memory_space<vmem>>, vector<32x512xbf16>,
    %c511_i32_42 = arith.constant 511 : i32
    %67 = tpu.dynamic_rotate %56 by %c511_i32_42 dim 1 : vector<32x512xf32>, i32 -> vector<32x512xf32>
    %68 = arith.truncf %67 : vector<32x512xf32> to vector<32x512xbf16>
    %c96_43 = arith.constant 96 : index
    %c0_44 = arith.constant 0 : index
    %69 = vector.load %arg12[%c96_43, %c0_44] : memref<160x512xbf16, #tpu.memory_space<vmem>>, vector<32x512xbf16>
    tpu.vector_store %arg12[%c96_43, %c0_44], %68 {strides = array<i32>} : memref<160x512xbf16, #tpu.memory_space<vmem>>, vector<32x512xbf16>,
    %c510_i32_45 = arith.constant 510 : i32
    %70 = tpu.dynamic_rotate %56 by %c510_i32_45 dim 1 : vector<32x512xf32>, i32 -> vector<32x512xf32>
    %71 = arith.truncf %70 : vector<32x512xf32> to vector<32x512xbf16>
    %c128_46 = arith.constant 128 : index
    %c0_47 = arith.constant 0 : index
    %72 = vector.load %arg12[%c128_46, %c0_47] : memref<160x512xbf16, #tpu.memory_space<vmem>>, vector<32x512xbf16>
    tpu.vector_store %arg12[%c128_46, %c0_47], %71 {strides = array<i32>} : memref<160x512xbf16, #tpu.memory_space<vmem>>, vector<32x512xbf16>,
    %c1 = arith.constant 1 : index
    %c0_48 = arith.constant 0 : index
    %c0_49 = arith.constant 0 : index
    %73 = vector.load %arg6[%c1, %c0_48, %c0_49] : memref<8x64x160xbf16, #tpu.memory_space<vmem>>, vector<1x64x160xbf16>
    %74 = vector.shape_cast %73 : vector<1x64x160xbf16> to vector<64x160xbf16>
    %c0_50 = arith.constant 0 : index
    %c0_51 = arith.constant 0 : index
    %75 = vector.load %arg12[%c0_50, %c0_51] : memref<160x512xbf16, #tpu.memory_space<vmem>>, vector<160x512xbf16>
    %cst_52 = arith.constant dense<0.000000e+00> : vector<64x512xf32>
    %76 = tpu.matmul %74, %75, %cst_52 {dimension_numbers = #tpu.dot_dimension_numbers<[1], [0], [0], [1], [0, 0, 1, 1], [], []>} : vector<64x160xbf16>, vector<160x512xbf16>, vector<64x512xf32> -> vector<64x512xf32>
    %c0_53 = arith.constant 0 : index
    %c1_54 = arith.constant 1 : index
    %c0_55 = arith.constant 0 : index
    %c0_56 = arith.constant 0 : index
    %77 = vector.load %arg3[%c0_53, %c1_54, %c0_55, %c0_56] : memref<1x8x64x512xf32, #tpu.memory_space<vmem>>, vector<1x1x64x512xf32>
    %78 = vector.shape_cast %77 : vector<1x1x64x512xf32> to vector<64x512xf32>
    %79 = arith.addf %76, %78 : vector<64x512xf32>
    %80 = vector.extract_strided_slice %79 {offsets = [0, 0], sizes = [32, 512], strides = [1, 1]} : vector<64x512xf32> to vector<32x512xf32>
    %81 = math.tanh %80 : vector<32x512xf32>
    %82 = vector.extract_strided_slice %79 {offsets = [32, 0], sizes = [32, 512], strides = [1, 1]} : vector<64x512xf32> to vector<32x512xf32>
    %83 = arith.negf %82 : vector<32x512xf32>
    %84 = math.exp %83 : vector<32x512xf32>
    %cst_57 = arith.constant 1.000000e+00 : f32
    %85 = vector.broadcast %cst_57 : f32 to vector<32x512xf32>
    %86 = arith.addf %85, %84 : vector<32x512xf32>
    %87 = arith.divf %85, %86 : vector<32x512xf32>
    %88 = arith.mulf %81, %87 : vector<32x512xf32>
    %89 = arith.truncf %88 : vector<32x512xf32> to vector<32x512xbf16>
    %c1_58 = arith.constant 1 : index
    %c0_59 = arith.constant 0 : index
    %c0_60 = arith.constant 0 : index
    %90 = vector.load %arg7[%c1_58, %c0_59, %c0_60] : memref<8x64x32xbf16, #tpu.memory_space<vmem>>, vector<1x64x32xbf16>
    %91 = vector.shape_cast %90 : vector<1x64x32xbf16> to vector<64x32xbf16>
    %cst_61 = arith.constant dense<0.000000e+00> : vector<64x512xf32>
    %92 = tpu.matmul %91, %89, %cst_61 {dimension_numbers = #tpu.dot_dimension_numbers<[1], [0], [0], [1], [0, 0, 1, 1], [], []>} : vector<64x32xbf16>, vector<32x512xbf16>, vector<64x512xf32> -> vector<64x512xf32>
    %c1_62 = arith.constant 1 : index
    %c0_63 = arith.constant 0 : index
    %c0_64 = arith.constant 0 : index
    %93 = vector.load %arg8[%c1_62, %c0_63, %c0_64] : memref<8x64x1xf32, #tpu.memory_space<vmem>>, vector<1x64x1xf32>
    %94 = vector.shape_cast %93 : vector<1x64x1xf32> to vector<64x1xf32>
    %95 = vector.broadcast %94 : vector<64x1xf32> to vector<64x512xf32>
    %96 = arith.addf %92, %95 : vector<64x512xf32>
    %97 = vector.extract_strided_slice %96 {offsets = [0, 0], sizes = [32, 512], strides = [1, 1]} : vector<64x512xf32> to vector<32x512xf32>
    %98 = arith.addf %56, %97 : vector<32x512xf32>
    %99 = vector.broadcast %1 : vector<1x512xf32> to vector<32x512xf32>
    %100 = arith.mulf %98, %99 : vector<32x512xf32>
    %101 = vector.extract_strided_slice %96 {offsets = [32, 0], sizes = [32, 512], strides = [1, 1]} : vector<64x512xf32> to vector<32x512xf32>
    %102 = arith.addf %58, %101 : vector<32x512xf32>
    %c2_i32_65 = arith.constant 2 : i32
    %103 = tpu.dynamic_rotate %100 by %c2_i32_65 dim 1 : vector<32x512xf32>, i32 -> vector<32x512xf32>
    %104 = arith.truncf %103 : vector<32x512xf32> to vector<32x512xbf16>
    %c0_66 = arith.constant 0 : index
    %c0_67 = arith.constant 0 : index
    %105 = vector.load %arg12[%c0_66, %c0_67] : memref<160x512xbf16, #tpu.memory_space<vmem>>, vector<32x512xbf16>
    tpu.vector_store %arg12[%c0_66, %c0_67], %104 {strides = array<i32>} : memref<160x512xbf16, #tpu.memory_space<vmem>>, vector<32x512xbf16>,
    %c1_i32_68 = arith.constant 1 : i32
    %106 = tpu.dynamic_rotate %100 by %c1_i32_68 dim 1 : vector<32x512xf32>, i32 -> vector<32x512xf32>
    %107 = arith.truncf %106 : vector<32x512xf32> to vector<32x512xbf16>
    %c32_69 = arith.constant 32 : index
    %c0_70 = arith.constant 0 : index
    %108 = vector.load %arg12[%c32_69, %c0_70] : memref<160x512xbf16, #tpu.memory_space<vmem>>, vector<32x512xbf16>
    tpu.vector_store %arg12[%c32_69, %c0_70], %107 {strides = array<i32>} : memref<160x512xbf16, #tpu.memory_space<vmem>>, vector<32x512xbf16>,
    %109 = arith.truncf %100 : vector<32x512xf32> to vector<32x512xbf16>
    %c64_71 = arith.constant 64 : index
    %c0_72 = arith.constant 0 : index
    %110 = vector.load %arg12[%c64_71, %c0_72] : memref<160x512xbf16, #tpu.memory_space<vmem>>, vector<32x512xbf16>
    tpu.vector_store %arg12[%c64_71, %c0_72], %109 {strides = array<i32>} : memref<160x512xbf16, #tpu.memory_space<vmem>>, vector<32x512xbf16>,
    %c511_i32_73 = arith.constant 511 : i32
    %111 = tpu.dynamic_rotate %100 by %c511_i32_73 dim 1 : vector<32x512xf32>, i32 -> vector<32x512xf32>
    %112 = arith.truncf %111 : vector<32x512xf32> to vector<32x512xbf16>
    %c96_74 = arith.constant 96 : index
    %c0_75 = arith.constant 0 : index
    %113 = vector.load %arg12[%c96_74, %c0_75] : memref<160x512xbf16, #tpu.memory_space<vmem>>, vector<32x512xbf16>
    tpu.vector_store %arg12[%c96_74, %c0_75], %112 {strides = array<i32>} : memref<160x512xbf16, #tpu.memory_space<vmem>>, vector<32x512xbf16>,
    %c510_i32_76 = arith.constant 510 : i32
    %114 = tpu.dynamic_rotate %100 by %c510_i32_76 dim 1 : vector<32x512xf32>, i32 -> vector<32x512xf32>
    %115 = arith.truncf %114 : vector<32x512xf32> to vector<32x512xbf16>
    %c128_77 = arith.constant 128 : index
    %c0_78 = arith.constant 0 : index
    %116 = vector.load %arg12[%c128_77, %c0_78] : memref<160x512xbf16, #tpu.memory_space<vmem>>, vector<32x512xbf16>
    tpu.vector_store %arg12[%c128_77, %c0_78], %115 {strides = array<i32>} : memref<160x512xbf16, #tpu.memory_space<vmem>>, vector<32x512xbf16>,
    %c2 = arith.constant 2 : index
    %c0_79 = arith.constant 0 : index
    %c0_80 = arith.constant 0 : index
    %117 = vector.load %arg6[%c2, %c0_79, %c0_80] : memref<8x64x160xbf16, #tpu.memory_space<vmem>>, vector<1x64x160xbf16>
    %118 = vector.shape_cast %117 : vector<1x64x160xbf16> to vector<64x160xbf16>
    %c0_81 = arith.constant 0 : index
    %c0_82 = arith.constant 0 : index
    %119 = vector.load %arg12[%c0_81, %c0_82] : memref<160x512xbf16, #tpu.memory_space<vmem>>, vector<160x512xbf16>
    %cst_83 = arith.constant dense<0.000000e+00> : vector<64x512xf32>
    %120 = tpu.matmul %118, %119, %cst_83 {dimension_numbers = #tpu.dot_dimension_numbers<[1], [0], [0], [1], [0, 0, 1, 1], [], []>} : vector<64x160xbf16>, vector<160x512xbf16>, vector<64x512xf32> -> vector<64x512xf32>
    %c0_84 = arith.constant 0 : index
    %c2_85 = arith.constant 2 : index
    %c0_86 = arith.constant 0 : index
    %c0_87 = arith.constant 0 : index
    %121 = vector.load %arg3[%c0_84, %c2_85, %c0_86, %c0_87] : memref<1x8x64x512xf32, #tpu.memory_space<vmem>>, vector<1x1x64x512xf32>
    %122 = vector.shape_cast %121 : vector<1x1x64x512xf32> to vector<64x512xf32>
    %123 = arith.addf %120, %122 : vector<64x512xf32>
    %124 = vector.extract_strided_slice %123 {offsets = [0, 0], sizes = [32, 512], strides = [1, 1]} : vector<64x512xf32> to vector<32x512xf32>
    %125 = math.tanh %124 : vector<32x512xf32>
    %126 = vector.extract_strided_slice %123 {offsets = [32, 0], sizes = [32, 512], strides = [1, 1]} : vector<64x512xf32> to vector<32x512xf32>
    %127 = arith.negf %126 : vector<32x512xf32>
    %128 = math.exp %127 : vector<32x512xf32>
    %cst_88 = arith.constant 1.000000e+00 : f32
    %129 = vector.broadcast %cst_88 : f32 to vector<32x512xf32>
    %130 = arith.addf %129, %128 : vector<32x512xf32>
    %131 = arith.divf %129, %130 : vector<32x512xf32>
    %132 = arith.mulf %125, %131 : vector<32x512xf32>
    %133 = arith.truncf %132 : vector<32x512xf32> to vector<32x512xbf16>
    %c2_89 = arith.constant 2 : index
    %c0_90 = arith.constant 0 : index
    %c0_91 = arith.constant 0 : index
    %134 = vector.load %arg7[%c2_89, %c0_90, %c0_91] : memref<8x64x32xbf16, #tpu.memory_space<vmem>>, vector<1x64x32xbf16>
    %135 = vector.shape_cast %134 : vector<1x64x32xbf16> to vector<64x32xbf16>
    %cst_92 = arith.constant dense<0.000000e+00> : vector<64x512xf32>
    %136 = tpu.matmul %135, %133, %cst_92 {dimension_numbers = #tpu.dot_dimension_numbers<[1], [0], [0], [1], [0, 0, 1, 1], [], []>} : vector<64x32xbf16>, vector<32x512xbf16>, vector<64x512xf32> -> vector<64x512xf32>
    %c2_93 = arith.constant 2 : index
    %c0_94 = arith.constant 0 : index
    %c0_95 = arith.constant 0 : index
    %137 = vector.load %arg8[%c2_93, %c0_94, %c0_95] : memref<8x64x1xf32, #tpu.memory_space<vmem>>, vector<1x64x1xf32>
    %138 = vector.shape_cast %137 : vector<1x64x1xf32> to vector<64x1xf32>
    %139 = vector.broadcast %138 : vector<64x1xf32> to vector<64x512xf32>
    %140 = arith.addf %136, %139 : vector<64x512xf32>
    %141 = vector.extract_strided_slice %140 {offsets = [0, 0], sizes = [32, 512], strides = [1, 1]} : vector<64x512xf32> to vector<32x512xf32>
    %142 = arith.addf %100, %141 : vector<32x512xf32>
    %143 = vector.broadcast %1 : vector<1x512xf32> to vector<32x512xf32>
    %144 = arith.mulf %142, %143 : vector<32x512xf32>
    %145 = vector.extract_strided_slice %140 {offsets = [32, 0], sizes = [32, 512], strides = [1, 1]} : vector<64x512xf32> to vector<32x512xf32>
    %146 = arith.addf %102, %145 : vector<32x512xf32>
    %c2_i32_96 = arith.constant 2 : i32
    %147 = tpu.dynamic_rotate %144 by %c2_i32_96 dim 1 : vector<32x512xf32>, i32 -> vector<32x512xf32>
    %148 = arith.truncf %147 : vector<32x512xf32> to vector<32x512xbf16>
    %c0_97 = arith.constant 0 : index
    %c0_98 = arith.constant 0 : index
    %149 = vector.load %arg12[%c0_97, %c0_98] : memref<160x512xbf16, #tpu.memory_space<vmem>>, vector<32x512xbf16>
    tpu.vector_store %arg12[%c0_97, %c0_98], %148 {strides = array<i32>} : memref<160x512xbf16, #tpu.memory_space<vmem>>, vector<32x512xbf16>,
    %c1_i32_99 = arith.constant 1 : i32
    %150 = tpu.dynamic_rotate %144 by %c1_i32_99 dim 1 : vector<32x512xf32>, i32 -> vector<32x512xf32>
    %151 = arith.truncf %150 : vector<32x512xf32> to vector<32x512xbf16>
    %c32_100 = arith.constant 32 : index
    %c0_101 = arith.constant 0 : index
    %152 = vector.load %arg12[%c32_100, %c0_101] : memref<160x512xbf16, #tpu.memory_space<vmem>>, vector<32x512xbf16>
    tpu.vector_store %arg12[%c32_100, %c0_101], %151 {strides = array<i32>} : memref<160x512xbf16, #tpu.memory_space<vmem>>, vector<32x512xbf16>,
    %153 = arith.truncf %144 : vector<32x512xf32> to vector<32x512xbf16>
    %c64_102 = arith.constant 64 : index
    %c0_103 = arith.constant 0 : index
    %154 = vector.load %arg12[%c64_102, %c0_103] : memref<160x512xbf16, #tpu.memory_space<vmem>>, vector<32x512xbf16>
    tpu.vector_store %arg12[%c64_102, %c0_103], %153 {strides = array<i32>} : memref<160x512xbf16, #tpu.memory_space<vmem>>, vector<32x512xbf16>,
    %c511_i32_104 = arith.constant 511 : i32
    %155 = tpu.dynamic_rotate %144 by %c511_i32_104 dim 1 : vector<32x512xf32>, i32 -> vector<32x512xf32>
    %156 = arith.truncf %155 : vector<32x512xf32> to vector<32x512xbf16>
    %c96_105 = arith.constant 96 : index
    %c0_106 = arith.constant 0 : index
    %157 = vector.load %arg12[%c96_105, %c0_106] : memref<160x512xbf16, #tpu.memory_space<vmem>>, vector<32x512xbf16>
    tpu.vector_store %arg12[%c96_105, %c0_106], %156 {strides = array<i32>} : memref<160x512xbf16, #tpu.memory_space<vmem>>, vector<32x512xbf16>,
    %c510_i32_107 = arith.constant 510 : i32
    %158 = tpu.dynamic_rotate %144 by %c510_i32_107 dim 1 : vector<32x512xf32>, i32 -> vector<32x512xf32>
    %159 = arith.truncf %158 : vector<32x512xf32> to vector<32x512xbf16>
    %c128_108 = arith.constant 128 : index
    %c0_109 = arith.constant 0 : index
    %160 = vector.load %arg12[%c128_108, %c0_109] : memref<160x512xbf16, #tpu.memory_space<vmem>>, vector<32x512xbf16>
    tpu.vector_store %arg12[%c128_108, %c0_109], %159 {strides = array<i32>} : memref<160x512xbf16, #tpu.memory_space<vmem>>, vector<32x512xbf16>,
    %c3 = arith.constant 3 : index
    %c0_110 = arith.constant 0 : index
    %c0_111 = arith.constant 0 : index
    %161 = vector.load %arg6[%c3, %c0_110, %c0_111] : memref<8x64x160xbf16, #tpu.memory_space<vmem>>, vector<1x64x160xbf16>
    %162 = vector.shape_cast %161 : vector<1x64x160xbf16> to vector<64x160xbf16>
    %c0_112 = arith.constant 0 : index
    %c0_113 = arith.constant 0 : index
    %163 = vector.load %arg12[%c0_112, %c0_113] : memref<160x512xbf16, #tpu.memory_space<vmem>>, vector<160x512xbf16>
    %cst_114 = arith.constant dense<0.000000e+00> : vector<64x512xf32>
    %164 = tpu.matmul %162, %163, %cst_114 {dimension_numbers = #tpu.dot_dimension_numbers<[1], [0], [0], [1], [0, 0, 1, 1], [], []>} : vector<64x160xbf16>, vector<160x512xbf16>, vector<64x512xf32> -> vector<64x512xf32>
    %c0_115 = arith.constant 0 : index
    %c3_116 = arith.constant 3 : index
    %c0_117 = arith.constant 0 : index
    %c0_118 = arith.constant 0 : index
    %165 = vector.load %arg3[%c0_115, %c3_116, %c0_117, %c0_118] : memref<1x8x64x512xf32, #tpu.memory_space<vmem>>, vector<1x1x64x512xf32>
    %166 = vector.shape_cast %165 : vector<1x1x64x512xf32> to vector<64x512xf32>
    %167 = arith.addf %164, %166 : vector<64x512xf32>
    %168 = vector.extract_strided_slice %167 {offsets = [0, 0], sizes = [32, 512], strides = [1, 1]} : vector<64x512xf32> to vector<32x512xf32>
    %169 = math.tanh %168 : vector<32x512xf32>
    %170 = vector.extract_strided_slice %167 {offsets = [32, 0], sizes = [32, 512], strides = [1, 1]} : vector<64x512xf32> to vector<32x512xf32>
    %171 = arith.negf %170 : vector<32x512xf32>
    %172 = math.exp %171 : vector<32x512xf32>
    %cst_119 = arith.constant 1.000000e+00 : f32
    %173 = vector.broadcast %cst_119 : f32 to vector<32x512xf32>
    %174 = arith.addf %173, %172 : vector<32x512xf32>
    %175 = arith.divf %173, %174 : vector<32x512xf32>
    %176 = arith.mulf %169, %175 : vector<32x512xf32>
    %177 = arith.truncf %176 : vector<32x512xf32> to vector<32x512xbf16>
    %c3_120 = arith.constant 3 : index
    %c0_121 = arith.constant 0 : index
    %c0_122 = arith.constant 0 : index
    %178 = vector.load %arg7[%c3_120, %c0_121, %c0_122] : memref<8x64x32xbf16, #tpu.memory_space<vmem>>, vector<1x64x32xbf16>
    %179 = vector.shape_cast %178 : vector<1x64x32xbf16> to vector<64x32xbf16>
    %cst_123 = arith.constant dense<0.000000e+00> : vector<64x512xf32>
    %180 = tpu.matmul %179, %177, %cst_123 {dimension_numbers = #tpu.dot_dimension_numbers<[1], [0], [0], [1], [0, 0, 1, 1], [], []>} : vector<64x32xbf16>, vector<32x512xbf16>, vector<64x512xf32> -> vector<64x512xf32>
    %c3_124 = arith.constant 3 : index
    %c0_125 = arith.constant 0 : index
    %c0_126 = arith.constant 0 : index
    %181 = vector.load %arg8[%c3_124, %c0_125, %c0_126] : memref<8x64x1xf32, #tpu.memory_space<vmem>>, vector<1x64x1xf32>
    %182 = vector.shape_cast %181 : vector<1x64x1xf32> to vector<64x1xf32>
    %183 = vector.broadcast %182 : vector<64x1xf32> to vector<64x512xf32>
    %184 = arith.addf %180, %183 : vector<64x512xf32>
    %185 = vector.extract_strided_slice %184 {offsets = [0, 0], sizes = [32, 512], strides = [1, 1]} : vector<64x512xf32> to vector<32x512xf32>
    %186 = arith.addf %144, %185 : vector<32x512xf32>
    %187 = vector.broadcast %1 : vector<1x512xf32> to vector<32x512xf32>
    %188 = arith.mulf %186, %187 : vector<32x512xf32>
    %189 = vector.extract_strided_slice %184 {offsets = [32, 0], sizes = [32, 512], strides = [1, 1]} : vector<64x512xf32> to vector<32x512xf32>
    %190 = arith.addf %146, %189 : vector<32x512xf32>
    %c2_i32_127 = arith.constant 2 : i32
    %191 = tpu.dynamic_rotate %188 by %c2_i32_127 dim 1 : vector<32x512xf32>, i32 -> vector<32x512xf32>
    %192 = arith.truncf %191 : vector<32x512xf32> to vector<32x512xbf16>
    %c0_128 = arith.constant 0 : index
    %c0_129 = arith.constant 0 : index
    %193 = vector.load %arg12[%c0_128, %c0_129] : memref<160x512xbf16, #tpu.memory_space<vmem>>, vector<32x512xbf16>
    tpu.vector_store %arg12[%c0_128, %c0_129], %192 {strides = array<i32>} : memref<160x512xbf16, #tpu.memory_space<vmem>>, vector<32x512xbf16>,
    %c1_i32_130 = arith.constant 1 : i32
    %194 = tpu.dynamic_rotate %188 by %c1_i32_130 dim 1 : vector<32x512xf32>, i32 -> vector<32x512xf32>
    %195 = arith.truncf %194 : vector<32x512xf32> to vector<32x512xbf16>
    %c32_131 = arith.constant 32 : index
    %c0_132 = arith.constant 0 : index
    %196 = vector.load %arg12[%c32_131, %c0_132] : memref<160x512xbf16, #tpu.memory_space<vmem>>, vector<32x512xbf16>
    tpu.vector_store %arg12[%c32_131, %c0_132], %195 {strides = array<i32>} : memref<160x512xbf16, #tpu.memory_space<vmem>>, vector<32x512xbf16>,
    %197 = arith.truncf %188 : vector<32x512xf32> to vector<32x512xbf16>
    %c64_133 = arith.constant 64 : index
    %c0_134 = arith.constant 0 : index
    %198 = vector.load %arg12[%c64_133, %c0_134] : memref<160x512xbf16, #tpu.memory_space<vmem>>, vector<32x512xbf16>
    tpu.vector_store %arg12[%c64_133, %c0_134], %197 {strides = array<i32>} : memref<160x512xbf16, #tpu.memory_space<vmem>>, vector<32x512xbf16>,
    %c511_i32_135 = arith.constant 511 : i32
    %199 = tpu.dynamic_rotate %188 by %c511_i32_135 dim 1 : vector<32x512xf32>, i32 -> vector<32x512xf32>
    %200 = arith.truncf %199 : vector<32x512xf32> to vector<32x512xbf16>
    %c96_136 = arith.constant 96 : index
    %c0_137 = arith.constant 0 : index
    %201 = vector.load %arg12[%c96_136, %c0_137] : memref<160x512xbf16, #tpu.memory_space<vmem>>, vector<32x512xbf16>
    tpu.vector_store %arg12[%c96_136, %c0_137], %200 {strides = array<i32>} : memref<160x512xbf16, #tpu.memory_space<vmem>>, vector<32x512xbf16>,
    %c510_i32_138 = arith.constant 510 : i32
    %202 = tpu.dynamic_rotate %188 by %c510_i32_138 dim 1 : vector<32x512xf32>, i32 -> vector<32x512xf32>
    %203 = arith.truncf %202 : vector<32x512xf32> to vector<32x512xbf16>
    %c128_139 = arith.constant 128 : index
    %c0_140 = arith.constant 0 : index
    %204 = vector.load %arg12[%c128_139, %c0_140] : memref<160x512xbf16, #tpu.memory_space<vmem>>, vector<32x512xbf16>
    tpu.vector_store %arg12[%c128_139, %c0_140], %203 {strides = array<i32>} : memref<160x512xbf16, #tpu.memory_space<vmem>>, vector<32x512xbf16>,
    %c4 = arith.constant 4 : index
    %c0_141 = arith.constant 0 : index
    %c0_142 = arith.constant 0 : index
    %205 = vector.load %arg6[%c4, %c0_141, %c0_142] : memref<8x64x160xbf16, #tpu.memory_space<vmem>>, vector<1x64x160xbf16>
    %206 = vector.shape_cast %205 : vector<1x64x160xbf16> to vector<64x160xbf16>
    %c0_143 = arith.constant 0 : index
    %c0_144 = arith.constant 0 : index
    %207 = vector.load %arg12[%c0_143, %c0_144] : memref<160x512xbf16, #tpu.memory_space<vmem>>, vector<160x512xbf16>
    %cst_145 = arith.constant dense<0.000000e+00> : vector<64x512xf32>
    %208 = tpu.matmul %206, %207, %cst_145 {dimension_numbers = #tpu.dot_dimension_numbers<[1], [0], [0], [1], [0, 0, 1, 1], [], []>} : vector<64x160xbf16>, vector<160x512xbf16>, vector<64x512xf32> -> vector<64x512xf32>
    %c0_146 = arith.constant 0 : index
    %c4_147 = arith.constant 4 : index
    %c0_148 = arith.constant 0 : index
    %c0_149 = arith.constant 0 : index
    %209 = vector.load %arg3[%c0_146, %c4_147, %c0_148, %c0_149] : memref<1x8x64x512xf32, #tpu.memory_space<vmem>>, vector<1x1x64x512xf32>
    %210 = vector.shape_cast %209 : vector<1x1x64x512xf32> to vector<64x512xf32>
    %211 = arith.addf %208, %210 : vector<64x512xf32>
    %212 = vector.extract_strided_slice %211 {offsets = [0, 0], sizes = [32, 512], strides = [1, 1]} : vector<64x512xf32> to vector<32x512xf32>
    %213 = math.tanh %212 : vector<32x512xf32>
    %214 = vector.extract_strided_slice %211 {offsets = [32, 0], sizes = [32, 512], strides = [1, 1]} : vector<64x512xf32> to vector<32x512xf32>
    %215 = arith.negf %214 : vector<32x512xf32>
    %216 = math.exp %215 : vector<32x512xf32>
    %cst_150 = arith.constant 1.000000e+00 : f32
    %217 = vector.broadcast %cst_150 : f32 to vector<32x512xf32>
    %218 = arith.addf %217, %216 : vector<32x512xf32>
    %219 = arith.divf %217, %218 : vector<32x512xf32>
    %220 = arith.mulf %213, %219 : vector<32x512xf32>
    %221 = arith.truncf %220 : vector<32x512xf32> to vector<32x512xbf16>
    %c4_151 = arith.constant 4 : index
    %c0_152 = arith.constant 0 : index
    %c0_153 = arith.constant 0 : index
    %222 = vector.load %arg7[%c4_151, %c0_152, %c0_153] : memref<8x64x32xbf16, #tpu.memory_space<vmem>>, vector<1x64x32xbf16>
    %223 = vector.shape_cast %222 : vector<1x64x32xbf16> to vector<64x32xbf16>
    %cst_154 = arith.constant dense<0.000000e+00> : vector<64x512xf32>
    %224 = tpu.matmul %223, %221, %cst_154 {dimension_numbers = #tpu.dot_dimension_numbers<[1], [0], [0], [1], [0, 0, 1, 1], [], []>} : vector<64x32xbf16>, vector<32x512xbf16>, vector<64x512xf32> -> vector<64x512xf32>
    %c4_155 = arith.constant 4 : index
    %c0_156 = arith.constant 0 : index
    %c0_157 = arith.constant 0 : index
    %225 = vector.load %arg8[%c4_155, %c0_156, %c0_157] : memref<8x64x1xf32, #tpu.memory_space<vmem>>, vector<1x64x1xf32>
    %226 = vector.shape_cast %225 : vector<1x64x1xf32> to vector<64x1xf32>
    %227 = vector.broadcast %226 : vector<64x1xf32> to vector<64x512xf32>
    %228 = arith.addf %224, %227 : vector<64x512xf32>
    %229 = vector.extract_strided_slice %228 {offsets = [0, 0], sizes = [32, 512], strides = [1, 1]} : vector<64x512xf32> to vector<32x512xf32>
    %230 = arith.addf %188, %229 : vector<32x512xf32>
    %231 = vector.broadcast %1 : vector<1x512xf32> to vector<32x512xf32>
    %232 = arith.mulf %230, %231 : vector<32x512xf32>
    %233 = vector.extract_strided_slice %228 {offsets = [32, 0], sizes = [32, 512], strides = [1, 1]} : vector<64x512xf32> to vector<32x512xf32>
    %234 = arith.addf %190, %233 : vector<32x512xf32>
    %c2_i32_158 = arith.constant 2 : i32
    %235 = tpu.dynamic_rotate %232 by %c2_i32_158 dim 1 : vector<32x512xf32>, i32 -> vector<32x512xf32>
    %236 = arith.truncf %235 : vector<32x512xf32> to vector<32x512xbf16>
    %c0_159 = arith.constant 0 : index
    %c0_160 = arith.constant 0 : index
    %237 = vector.load %arg12[%c0_159, %c0_160] : memref<160x512xbf16, #tpu.memory_space<vmem>>, vector<32x512xbf16>
    tpu.vector_store %arg12[%c0_159, %c0_160], %236 {strides = array<i32>} : memref<160x512xbf16, #tpu.memory_space<vmem>>, vector<32x512xbf16>,
    %c1_i32_161 = arith.constant 1 : i32
    %238 = tpu.dynamic_rotate %232 by %c1_i32_161 dim 1 : vector<32x512xf32>, i32 -> vector<32x512xf32>
    %239 = arith.truncf %238 : vector<32x512xf32> to vector<32x512xbf16>
    %c32_162 = arith.constant 32 : index
    %c0_163 = arith.constant 0 : index
    %240 = vector.load %arg12[%c32_162, %c0_163] : memref<160x512xbf16, #tpu.memory_space<vmem>>, vector<32x512xbf16>
    tpu.vector_store %arg12[%c32_162, %c0_163], %239 {strides = array<i32>} : memref<160x512xbf16, #tpu.memory_space<vmem>>, vector<32x512xbf16>,
    %241 = arith.truncf %232 : vector<32x512xf32> to vector<32x512xbf16>
    %c64_164 = arith.constant 64 : index
    %c0_165 = arith.constant 0 : index
    %242 = vector.load %arg12[%c64_164, %c0_165] : memref<160x512xbf16, #tpu.memory_space<vmem>>, vector<32x512xbf16>
    tpu.vector_store %arg12[%c64_164, %c0_165], %241 {strides = array<i32>} : memref<160x512xbf16, #tpu.memory_space<vmem>>, vector<32x512xbf16>,
    %c511_i32_166 = arith.constant 511 : i32
    %243 = tpu.dynamic_rotate %232 by %c511_i32_166 dim 1 : vector<32x512xf32>, i32 -> vector<32x512xf32>
    %244 = arith.truncf %243 : vector<32x512xf32> to vector<32x512xbf16>
    %c96_167 = arith.constant 96 : index
    %c0_168 = arith.constant 0 : index
    %245 = vector.load %arg12[%c96_167, %c0_168] : memref<160x512xbf16, #tpu.memory_space<vmem>>, vector<32x512xbf16>
    tpu.vector_store %arg12[%c96_167, %c0_168], %244 {strides = array<i32>} : memref<160x512xbf16, #tpu.memory_space<vmem>>, vector<32x512xbf16>,
    %c510_i32_169 = arith.constant 510 : i32
    %246 = tpu.dynamic_rotate %232 by %c510_i32_169 dim 1 : vector<32x512xf32>, i32 -> vector<32x512xf32>
    %247 = arith.truncf %246 : vector<32x512xf32> to vector<32x512xbf16>
    %c128_170 = arith.constant 128 : index
    %c0_171 = arith.constant 0 : index
    %248 = vector.load %arg12[%c128_170, %c0_171] : memref<160x512xbf16, #tpu.memory_space<vmem>>, vector<32x512xbf16>
    tpu.vector_store %arg12[%c128_170, %c0_171], %247 {strides = array<i32>} : memref<160x512xbf16, #tpu.memory_space<vmem>>, vector<32x512xbf16>,
    %c5 = arith.constant 5 : index
    %c0_172 = arith.constant 0 : index
    %c0_173 = arith.constant 0 : index
    %249 = vector.load %arg6[%c5, %c0_172, %c0_173] : memref<8x64x160xbf16, #tpu.memory_space<vmem>>, vector<1x64x160xbf16>
    %250 = vector.shape_cast %249 : vector<1x64x160xbf16> to vector<64x160xbf16>
    %c0_174 = arith.constant 0 : index
    %c0_175 = arith.constant 0 : index
    %251 = vector.load %arg12[%c0_174, %c0_175] : memref<160x512xbf16, #tpu.memory_space<vmem>>, vector<160x512xbf16>
    %cst_176 = arith.constant dense<0.000000e+00> : vector<64x512xf32>
    %252 = tpu.matmul %250, %251, %cst_176 {dimension_numbers = #tpu.dot_dimension_numbers<[1], [0], [0], [1], [0, 0, 1, 1], [], []>} : vector<64x160xbf16>, vector<160x512xbf16>, vector<64x512xf32> -> vector<64x512xf32>
    %c0_177 = arith.constant 0 : index
    %c5_178 = arith.constant 5 : index
    %c0_179 = arith.constant 0 : index
    %c0_180 = arith.constant 0 : index
    %253 = vector.load %arg3[%c0_177, %c5_178, %c0_179, %c0_180] : memref<1x8x64x512xf32, #tpu.memory_space<vmem>>, vector<1x1x64x512xf32>
    %254 = vector.shape_cast %253 : vector<1x1x64x512xf32> to vector<64x512xf32>
    %255 = arith.addf %252, %254 : vector<64x512xf32>
    %256 = vector.extract_strided_slice %255 {offsets = [0, 0], sizes = [32, 512], strides = [1, 1]} : vector<64x512xf32> to vector<32x512xf32>
    %257 = math.tanh %256 : vector<32x512xf32>
    %258 = vector.extract_strided_slice %255 {offsets = [32, 0], sizes = [32, 512], strides = [1, 1]} : vector<64x512xf32> to vector<32x512xf32>
    %259 = arith.negf %258 : vector<32x512xf32>
    %260 = math.exp %259 : vector<32x512xf32>
    %cst_181 = arith.constant 1.000000e+00 : f32
    %261 = vector.broadcast %cst_181 : f32 to vector<32x512xf32>
    %262 = arith.addf %261, %260 : vector<32x512xf32>
    %263 = arith.divf %261, %262 : vector<32x512xf32>
    %264 = arith.mulf %257, %263 : vector<32x512xf32>
    %265 = arith.truncf %264 : vector<32x512xf32> to vector<32x512xbf16>
    %c5_182 = arith.constant 5 : index
    %c0_183 = arith.constant 0 : index
    %c0_184 = arith.constant 0 : index
    %266 = vector.load %arg7[%c5_182, %c0_183, %c0_184] : memref<8x64x32xbf16, #tpu.memory_space<vmem>>, vector<1x64x32xbf16>
    %267 = vector.shape_cast %266 : vector<1x64x32xbf16> to vector<64x32xbf16>
    %cst_185 = arith.constant dense<0.000000e+00> : vector<64x512xf32>
    %268 = tpu.matmul %267, %265, %cst_185 {dimension_numbers = #tpu.dot_dimension_numbers<[1], [0], [0], [1], [0, 0, 1, 1], [], []>} : vector<64x32xbf16>, vector<32x512xbf16>, vector<64x512xf32> -> vector<64x512xf32>
    %c5_186 = arith.constant 5 : index
    %c0_187 = arith.constant 0 : index
    %c0_188 = arith.constant 0 : index
    %269 = vector.load %arg8[%c5_186, %c0_187, %c0_188] : memref<8x64x1xf32, #tpu.memory_space<vmem>>, vector<1x64x1xf32>
    %270 = vector.shape_cast %269 : vector<1x64x1xf32> to vector<64x1xf32>
    %271 = vector.broadcast %270 : vector<64x1xf32> to vector<64x512xf32>
    %272 = arith.addf %268, %271 : vector<64x512xf32>
    %273 = vector.extract_strided_slice %272 {offsets = [0, 0], sizes = [32, 512], strides = [1, 1]} : vector<64x512xf32> to vector<32x512xf32>
    %274 = arith.addf %232, %273 : vector<32x512xf32>
    %275 = vector.broadcast %1 : vector<1x512xf32> to vector<32x512xf32>
    %276 = arith.mulf %274, %275 : vector<32x512xf32>
    %277 = vector.extract_strided_slice %272 {offsets = [32, 0], sizes = [32, 512], strides = [1, 1]} : vector<64x512xf32> to vector<32x512xf32>
    %278 = arith.addf %234, %277 : vector<32x512xf32>
    %c2_i32_189 = arith.constant 2 : i32
    %279 = tpu.dynamic_rotate %276 by %c2_i32_189 dim 1 : vector<32x512xf32>, i32 -> vector<32x512xf32>
    %280 = arith.truncf %279 : vector<32x512xf32> to vector<32x512xbf16>
    %c0_190 = arith.constant 0 : index
    %c0_191 = arith.constant 0 : index
    %281 = vector.load %arg12[%c0_190, %c0_191] : memref<160x512xbf16, #tpu.memory_space<vmem>>, vector<32x512xbf16>
    tpu.vector_store %arg12[%c0_190, %c0_191], %280 {strides = array<i32>} : memref<160x512xbf16, #tpu.memory_space<vmem>>, vector<32x512xbf16>,
    %c1_i32_192 = arith.constant 1 : i32
    %282 = tpu.dynamic_rotate %276 by %c1_i32_192 dim 1 : vector<32x512xf32>, i32 -> vector<32x512xf32>
    %283 = arith.truncf %282 : vector<32x512xf32> to vector<32x512xbf16>
    %c32_193 = arith.constant 32 : index
    %c0_194 = arith.constant 0 : index
    %284 = vector.load %arg12[%c32_193, %c0_194] : memref<160x512xbf16, #tpu.memory_space<vmem>>, vector<32x512xbf16>
    tpu.vector_store %arg12[%c32_193, %c0_194], %283 {strides = array<i32>} : memref<160x512xbf16, #tpu.memory_space<vmem>>, vector<32x512xbf16>,
    %285 = arith.truncf %276 : vector<32x512xf32> to vector<32x512xbf16>
    %c64_195 = arith.constant 64 : index
    %c0_196 = arith.constant 0 : index
    %286 = vector.load %arg12[%c64_195, %c0_196] : memref<160x512xbf16, #tpu.memory_space<vmem>>, vector<32x512xbf16>
    tpu.vector_store %arg12[%c64_195, %c0_196], %285 {strides = array<i32>} : memref<160x512xbf16, #tpu.memory_space<vmem>>, vector<32x512xbf16>,
    %c511_i32_197 = arith.constant 511 : i32
    %287 = tpu.dynamic_rotate %276 by %c511_i32_197 dim 1 : vector<32x512xf32>, i32 -> vector<32x512xf32>
    %288 = arith.truncf %287 : vector<32x512xf32> to vector<32x512xbf16>
    %c96_198 = arith.constant 96 : index
    %c0_199 = arith.constant 0 : index
    %289 = vector.load %arg12[%c96_198, %c0_199] : memref<160x512xbf16, #tpu.memory_space<vmem>>, vector<32x512xbf16>
    tpu.vector_store %arg12[%c96_198, %c0_199], %288 {strides = array<i32>} : memref<160x512xbf16, #tpu.memory_space<vmem>>, vector<32x512xbf16>,
    %c510_i32_200 = arith.constant 510 : i32
    %290 = tpu.dynamic_rotate %276 by %c510_i32_200 dim 1 : vector<32x512xf32>, i32 -> vector<32x512xf32>
    %291 = arith.truncf %290 : vector<32x512xf32> to vector<32x512xbf16>
    %c128_201 = arith.constant 128 : index
    %c0_202 = arith.constant 0 : index
    %292 = vector.load %arg12[%c128_201, %c0_202] : memref<160x512xbf16, #tpu.memory_space<vmem>>, vector<32x512xbf16>
    tpu.vector_store %arg12[%c128_201, %c0_202], %291 {strides = array<i32>} : memref<160x512xbf16, #tpu.memory_space<vmem>>, vector<32x512xbf16>,
    %c6 = arith.constant 6 : index
    %c0_203 = arith.constant 0 : index
    %c0_204 = arith.constant 0 : index
    %293 = vector.load %arg6[%c6, %c0_203, %c0_204] : memref<8x64x160xbf16, #tpu.memory_space<vmem>>, vector<1x64x160xbf16>
    %294 = vector.shape_cast %293 : vector<1x64x160xbf16> to vector<64x160xbf16>
    %c0_205 = arith.constant 0 : index
    %c0_206 = arith.constant 0 : index
    %295 = vector.load %arg12[%c0_205, %c0_206] : memref<160x512xbf16, #tpu.memory_space<vmem>>, vector<160x512xbf16>
    %cst_207 = arith.constant dense<0.000000e+00> : vector<64x512xf32>
    %296 = tpu.matmul %294, %295, %cst_207 {dimension_numbers = #tpu.dot_dimension_numbers<[1], [0], [0], [1], [0, 0, 1, 1], [], []>} : vector<64x160xbf16>, vector<160x512xbf16>, vector<64x512xf32> -> vector<64x512xf32>
    %c0_208 = arith.constant 0 : index
    %c6_209 = arith.constant 6 : index
    %c0_210 = arith.constant 0 : index
    %c0_211 = arith.constant 0 : index
    %297 = vector.load %arg3[%c0_208, %c6_209, %c0_210, %c0_211] : memref<1x8x64x512xf32, #tpu.memory_space<vmem>>, vector<1x1x64x512xf32>
    %298 = vector.shape_cast %297 : vector<1x1x64x512xf32> to vector<64x512xf32>
    %299 = arith.addf %296, %298 : vector<64x512xf32>
    %300 = vector.extract_strided_slice %299 {offsets = [0, 0], sizes = [32, 512], strides = [1, 1]} : vector<64x512xf32> to vector<32x512xf32>
    %301 = math.tanh %300 : vector<32x512xf32>
    %302 = vector.extract_strided_slice %299 {offsets = [32, 0], sizes = [32, 512], strides = [1, 1]} : vector<64x512xf32> to vector<32x512xf32>
    %303 = arith.negf %302 : vector<32x512xf32>
    %304 = math.exp %303 : vector<32x512xf32>
    %cst_212 = arith.constant 1.000000e+00 : f32
    %305 = vector.broadcast %cst_212 : f32 to vector<32x512xf32>
    %306 = arith.addf %305, %304 : vector<32x512xf32>
    %307 = arith.divf %305, %306 : vector<32x512xf32>
    %308 = arith.mulf %301, %307 : vector<32x512xf32>
    %309 = arith.truncf %308 : vector<32x512xf32> to vector<32x512xbf16>
    %c6_213 = arith.constant 6 : index
    %c0_214 = arith.constant 0 : index
    %c0_215 = arith.constant 0 : index
    %310 = vector.load %arg7[%c6_213, %c0_214, %c0_215] : memref<8x64x32xbf16, #tpu.memory_space<vmem>>, vector<1x64x32xbf16>
    %311 = vector.shape_cast %310 : vector<1x64x32xbf16> to vector<64x32xbf16>
    %cst_216 = arith.constant dense<0.000000e+00> : vector<64x512xf32>
    %312 = tpu.matmul %311, %309, %cst_216 {dimension_numbers = #tpu.dot_dimension_numbers<[1], [0], [0], [1], [0, 0, 1, 1], [], []>} : vector<64x32xbf16>, vector<32x512xbf16>, vector<64x512xf32> -> vector<64x512xf32>
    %c6_217 = arith.constant 6 : index
    %c0_218 = arith.constant 0 : index
    %c0_219 = arith.constant 0 : index
    %313 = vector.load %arg8[%c6_217, %c0_218, %c0_219] : memref<8x64x1xf32, #tpu.memory_space<vmem>>, vector<1x64x1xf32>
    %314 = vector.shape_cast %313 : vector<1x64x1xf32> to vector<64x1xf32>
    %315 = vector.broadcast %314 : vector<64x1xf32> to vector<64x512xf32>
    %316 = arith.addf %312, %315 : vector<64x512xf32>
    %317 = vector.extract_strided_slice %316 {offsets = [0, 0], sizes = [32, 512], strides = [1, 1]} : vector<64x512xf32> to vector<32x512xf32>
    %318 = arith.addf %276, %317 : vector<32x512xf32>
    %319 = vector.broadcast %1 : vector<1x512xf32> to vector<32x512xf32>
    %320 = arith.mulf %318, %319 : vector<32x512xf32>
    %321 = vector.extract_strided_slice %316 {offsets = [32, 0], sizes = [32, 512], strides = [1, 1]} : vector<64x512xf32> to vector<32x512xf32>
    %322 = arith.addf %278, %321 : vector<32x512xf32>
    %c2_i32_220 = arith.constant 2 : i32
    %323 = tpu.dynamic_rotate %320 by %c2_i32_220 dim 1 : vector<32x512xf32>, i32 -> vector<32x512xf32>
    %324 = arith.truncf %323 : vector<32x512xf32> to vector<32x512xbf16>
    %c0_221 = arith.constant 0 : index
    %c0_222 = arith.constant 0 : index
    %325 = vector.load %arg12[%c0_221, %c0_222] : memref<160x512xbf16, #tpu.memory_space<vmem>>, vector<32x512xbf16>
    tpu.vector_store %arg12[%c0_221, %c0_222], %324 {strides = array<i32>} : memref<160x512xbf16, #tpu.memory_space<vmem>>, vector<32x512xbf16>,
    %c1_i32_223 = arith.constant 1 : i32
    %326 = tpu.dynamic_rotate %320 by %c1_i32_223 dim 1 : vector<32x512xf32>, i32 -> vector<32x512xf32>
    %327 = arith.truncf %326 : vector<32x512xf32> to vector<32x512xbf16>
    %c32_224 = arith.constant 32 : index
    %c0_225 = arith.constant 0 : index
    %328 = vector.load %arg12[%c32_224, %c0_225] : memref<160x512xbf16, #tpu.memory_space<vmem>>, vector<32x512xbf16>
    tpu.vector_store %arg12[%c32_224, %c0_225], %327 {strides = array<i32>} : memref<160x512xbf16, #tpu.memory_space<vmem>>, vector<32x512xbf16>,
    %329 = arith.truncf %320 : vector<32x512xf32> to vector<32x512xbf16>
    %c64_226 = arith.constant 64 : index
    %c0_227 = arith.constant 0 : index
    %330 = vector.load %arg12[%c64_226, %c0_227] : memref<160x512xbf16, #tpu.memory_space<vmem>>, vector<32x512xbf16>
    tpu.vector_store %arg12[%c64_226, %c0_227], %329 {strides = array<i32>} : memref<160x512xbf16, #tpu.memory_space<vmem>>, vector<32x512xbf16>,
    %c511_i32_228 = arith.constant 511 : i32
    %331 = tpu.dynamic_rotate %320 by %c511_i32_228 dim 1 : vector<32x512xf32>, i32 -> vector<32x512xf32>
    %332 = arith.truncf %331 : vector<32x512xf32> to vector<32x512xbf16>
    %c96_229 = arith.constant 96 : index
    %c0_230 = arith.constant 0 : index
    %333 = vector.load %arg12[%c96_229, %c0_230] : memref<160x512xbf16, #tpu.memory_space<vmem>>, vector<32x512xbf16>
    tpu.vector_store %arg12[%c96_229, %c0_230], %332 {strides = array<i32>} : memref<160x512xbf16, #tpu.memory_space<vmem>>, vector<32x512xbf16>,
    %c510_i32_231 = arith.constant 510 : i32
    %334 = tpu.dynamic_rotate %320 by %c510_i32_231 dim 1 : vector<32x512xf32>, i32 -> vector<32x512xf32>
    %335 = arith.truncf %334 : vector<32x512xf32> to vector<32x512xbf16>
    %c128_232 = arith.constant 128 : index
    %c0_233 = arith.constant 0 : index
    %336 = vector.load %arg12[%c128_232, %c0_233] : memref<160x512xbf16, #tpu.memory_space<vmem>>, vector<32x512xbf16>
    tpu.vector_store %arg12[%c128_232, %c0_233], %335 {strides = array<i32>} : memref<160x512xbf16, #tpu.memory_space<vmem>>, vector<32x512xbf16>,
    %c7 = arith.constant 7 : index
    %c0_234 = arith.constant 0 : index
    %c0_235 = arith.constant 0 : index
    %337 = vector.load %arg6[%c7, %c0_234, %c0_235] : memref<8x64x160xbf16, #tpu.memory_space<vmem>>, vector<1x64x160xbf16>
    %338 = vector.shape_cast %337 : vector<1x64x160xbf16> to vector<64x160xbf16>
    %c0_236 = arith.constant 0 : index
    %c0_237 = arith.constant 0 : index
    %339 = vector.load %arg12[%c0_236, %c0_237] : memref<160x512xbf16, #tpu.memory_space<vmem>>, vector<160x512xbf16>
    %cst_238 = arith.constant dense<0.000000e+00> : vector<64x512xf32>
    %340 = tpu.matmul %338, %339, %cst_238 {dimension_numbers = #tpu.dot_dimension_numbers<[1], [0], [0], [1], [0, 0, 1, 1], [], []>} : vector<64x160xbf16>, vector<160x512xbf16>, vector<64x512xf32> -> vector<64x512xf32>
    %c0_239 = arith.constant 0 : index
    %c7_240 = arith.constant 7 : index
    %c0_241 = arith.constant 0 : index
    %c0_242 = arith.constant 0 : index
    %341 = vector.load %arg3[%c0_239, %c7_240, %c0_241, %c0_242] : memref<1x8x64x512xf32, #tpu.memory_space<vmem>>, vector<1x1x64x512xf32>
    %342 = vector.shape_cast %341 : vector<1x1x64x512xf32> to vector<64x512xf32>
    %343 = arith.addf %340, %342 : vector<64x512xf32>
    %344 = vector.extract_strided_slice %343 {offsets = [0, 0], sizes = [32, 512], strides = [1, 1]} : vector<64x512xf32> to vector<32x512xf32>
    %345 = math.tanh %344 : vector<32x512xf32>
    %346 = vector.extract_strided_slice %343 {offsets = [32, 0], sizes = [32, 512], strides = [1, 1]} : vector<64x512xf32> to vector<32x512xf32>
    %347 = arith.negf %346 : vector<32x512xf32>
    %348 = math.exp %347 : vector<32x512xf32>
    %cst_243 = arith.constant 1.000000e+00 : f32
    %349 = vector.broadcast %cst_243 : f32 to vector<32x512xf32>
    %350 = arith.addf %349, %348 : vector<32x512xf32>
    %351 = arith.divf %349, %350 : vector<32x512xf32>
    %352 = arith.mulf %345, %351 : vector<32x512xf32>
    %353 = arith.truncf %352 : vector<32x512xf32> to vector<32x512xbf16>
    %c7_244 = arith.constant 7 : index
    %c0_245 = arith.constant 0 : index
    %c0_246 = arith.constant 0 : index
    %354 = vector.load %arg7[%c7_244, %c0_245, %c0_246] : memref<8x64x32xbf16, #tpu.memory_space<vmem>>, vector<1x64x32xbf16>
    %355 = vector.shape_cast %354 : vector<1x64x32xbf16> to vector<64x32xbf16>
    %356 = vector.extract_strided_slice %355 {offsets = [0, 0], sizes = [32, 32], strides = [1, 1]} : vector<64x32xbf16> to vector<32x32xbf16>
    %cst_247 = arith.constant dense<0.000000e+00> : vector<32x512xf32>
    %357 = tpu.matmul %356, %353, %cst_247 {dimension_numbers = #tpu.dot_dimension_numbers<[1], [0], [0], [1], [0, 0, 1, 1], [], []>} : vector<32x32xbf16>, vector<32x512xbf16>, vector<32x512xf32> -> vector<32x512xf32>
    %c7_248 = arith.constant 7 : index
    %c0_249 = arith.constant 0 : index
    %c0_250 = arith.constant 0 : index
    %358 = vector.load %arg8[%c7_248, %c0_249, %c0_250] : memref<8x64x1xf32, #tpu.memory_space<vmem>>, vector<1x64x1xf32>
    %359 = vector.shape_cast %358 : vector<1x64x1xf32> to vector<64x1xf32>
    %360 = vector.extract_strided_slice %359 {offsets = [0, 0], sizes = [32, 1], strides = [1, 1]} : vector<64x1xf32> to vector<32x1xf32>
    %361 = vector.broadcast %360 : vector<32x1xf32> to vector<32x512xf32>
    %362 = arith.addf %357, %361 : vector<32x512xf32>
    %363 = arith.addf %322, %362 : vector<32x512xf32>
    %364 = vector.broadcast %1 : vector<1x512xf32> to vector<32x512xf32>
    %365 = arith.mulf %363, %364 : vector<32x512xf32>
    %c0_251 = arith.constant 0 : index
    %c0_252 = arith.constant 0 : index
    %366 = vector.load %arg9[%c0_251, %c0_252] : memref<80x32xbf16, #tpu.memory_space<vmem>>, vector<80x32xbf16>
    %367 = arith.truncf %365 : vector<32x512xf32> to vector<32x512xbf16>
    %cst_253 = arith.constant dense<0.000000e+00> : vector<80x512xf32>
    %368 = tpu.matmul %366, %367, %cst_253 {dimension_numbers = #tpu.dot_dimension_numbers<[1], [0], [0], [1], [0, 0, 1, 1], [], []>} : vector<80x32xbf16>, vector<32x512xbf16>, vector<80x512xf32> -> vector<80x512xf32>
    %c0_254 = arith.constant 0 : index
    %c0_255 = arith.constant 0 : index
    %369 = vector.load %arg10[%c0_254, %c0_255] : memref<80x1xf32, #tpu.memory_space<vmem>>, vector<80x1xf32>
    %370 = vector.broadcast %369 : vector<80x1xf32> to vector<80x512xf32>
    %371 = arith.addf %368, %370 : vector<80x512xf32>
    %372 = vector.broadcast %1 : vector<1x512xf32> to vector<80x512xf32>
    %373 = arith.mulf %371, %372 : vector<80x512xf32>
    %c0_256 = arith.constant 0 : index
    %c0_257 = arith.constant 0 : index
    %c0_258 = arith.constant 0 : index
    %374 = vector.load %arg11[%c0_256, %c0_257, %c0_258] : memref<1x80x512xf32, #tpu.memory_space<vmem>>, vector<1x80x512xf32>
    %375 = vector.shape_cast %374 : vector<1x80x512xf32> to vector<80x512xf32>
    %376 = vector.shape_cast %373 : vector<80x512xf32> to vector<1x80x512xf32>
    tpu.vector_store %arg11[%c0_256, %c0_257, %c0_258], %376 {strides = array<i32>} : memref<1x80x512xf32, #tpu.memory_space<vmem>>, vector<1x80x512xf32>,
    return
  }
  func.func @transform_0(%arg0: i32) -> (i32, i32, i32) {
    %c0_i32 = arith.constant 0 : i32
    %c0_i32_0 = arith.constant 0 : i32
    %c0_i32_1 = arith.constant 0 : i32
    return %arg0, %c0_i32, %c0_i32_0 : i32, i32, i32
  }
  func.func @transform_1(%arg0: i32) -> (i32, i32, i32) {
    %c0_i32 = arith.constant 0 : i32
    %c0_i32_0 = arith.constant 0 : i32
    %c0_i32_1 = arith.constant 0 : i32
    return %arg0, %c0_i32, %c0_i32_0 : i32, i32, i32
  }
  func.func @transform_2(%arg0: i32) -> (i32, i32, i32, i32) {
    %c0_i32 = arith.constant 0 : i32
    %c0_i32_0 = arith.constant 0 : i32
    %c0_i32_1 = arith.constant 0 : i32
    %c0_i32_2 = arith.constant 0 : i32
    return %arg0, %c0_i32, %c0_i32_0, %c0_i32_1 : i32, i32, i32, i32
  }
  func.func @transform_3(%arg0: i32) -> (i32, i32) {
    %c0_i32 = arith.constant 0 : i32
    %c0_i32_0 = arith.constant 0 : i32
    %c0_i32_1 = arith.constant 0 : i32
    return %c0_i32, %c0_i32_0 : i32, i32
  }
  func.func @transform_4(%arg0: i32) -> (i32, i32) {
    %c0_i32 = arith.constant 0 : i32
    %c0_i32_0 = arith.constant 0 : i32
    %c0_i32_1 = arith.constant 0 : i32
    return %c0_i32, %c0_i32_0 : i32, i32
  }
  func.func @transform_5(%arg0: i32) -> (i32, i32, i32) {
    %c0_i32 = arith.constant 0 : i32
    %c0_i32_0 = arith.constant 0 : i32
    %c0_i32_1 = arith.constant 0 : i32
    %c0_i32_2 = arith.constant 0 : i32
    return %c0_i32, %c0_i32_0, %c0_i32_1 : i32, i32, i32
  }
  func.func @transform_6(%arg0: i32) -> (i32, i32, i32) {
    %c0_i32 = arith.constant 0 : i32
    %c0_i32_0 = arith.constant 0 : i32
    %c0_i32_1 = arith.constant 0 : i32
    %c0_i32_2 = arith.constant 0 : i32
    return %c0_i32, %c0_i32_0, %c0_i32_1 : i32, i32, i32
  }
  func.func @transform_7(%arg0: i32) -> (i32, i32, i32) {
    %c0_i32 = arith.constant 0 : i32
    %c0_i32_0 = arith.constant 0 : i32
    %c0_i32_1 = arith.constant 0 : i32
    %c0_i32_2 = arith.constant 0 : i32
    return %c0_i32, %c0_i32_0, %c0_i32_1 : i32, i32, i32
  }
  func.func @transform_8(%arg0: i32) -> (i32, i32) {
    %c0_i32 = arith.constant 0 : i32
    %c0_i32_0 = arith.constant 0 : i32
    %c0_i32_1 = arith.constant 0 : i32
    return %c0_i32, %c0_i32_0 : i32, i32
  }
  func.func @transform_9(%arg0: i32) -> (i32, i32) {
    %c0_i32 = arith.constant 0 : i32
    %c0_i32_0 = arith.constant 0 : i32
    %c0_i32_1 = arith.constant 0 : i32
    return %c0_i32, %c0_i32_0 : i32, i32
  }
  func.func @transform_10(%arg0: i32) -> (i32, i32, i32) {
    %c0_i32 = arith.constant 0 : i32
    %c0_i32_0 = arith.constant 0 : i32
    %c0_i32_1 = arith.constant 0 : i32
    return %arg0, %c0_i32, %c0_i32_0 : i32, i32, i32
  }
}

</mosaic_0001>

<llo_original>
// kernel: synthesizer_trn_forward.1
$region0: #{synthesizer_trn_forward.1}
  #allocation0 [shape = 'u32[]', space=smem, size = 0x4, offset = 0x4, fixed_abs, tag = 'smem constant byte address 0x4 - core index']
  #allocation1 [shape = 'u32[72,128]{1,0:T(1,128)}', space=vmem, size = 0x9000, scoped, tag = 'internal scratch']
  #allocation2 [shape = 'bf16[160,512]{1,0:T(8,128)(2,1)}', space=vmem, size = 0x28000, scoped, tag = 'scratch operand']
  %s0 = inlined_call_operand.vmem [shape: f32[1,32,512], index: 0, kind: input, shape index: {}]
  %s1 = inlined_call_operand.vmem [shape: f32[1,1,512], index: 1, kind: input, shape index: {}]
  %s2 = inlined_call_operand.vmem [shape: f32[1,8,64,512], index: 2, kind: input, shape index: {}]
  %s3 = inlined_call_operand.vmem [shape: bf16[32,32], index: 3, kind: input, shape index: {}]
  %s4 = inlined_call_operand.vmem [shape: f32[32,1], index: 4, kind: input, shape index: {}]
  %s5 = inlined_call_operand.vmem [shape: bf16[8,64,160], index: 5, kind: input, shape index: {}]
  %s6 = inlined_call_operand.vmem [shape: bf16[8,64,32], index: 6, kind: input, shape index: {}]
  %s7 = inlined_call_operand.vmem [shape: f32[8,64,1], index: 7, kind: input, shape index: {}]
  %s8 = inlined_call_operand.vmem [shape: bf16[80,32], index: 8, kind: input, shape index: {}]
  %s9 = inlined_call_operand.vmem [shape: f32[80,1], index: 9, kind: input, shape index: {}]
  %s10 = inlined_call_operand.vmem [shape: f32[1,80,512], index: 10, kind: output, shape index: {}]
  %s11 = sld [smem:[#allocation0]]
  $region50: #{synthesizer_trn_forward.1} parent=0
    _
  %s13 = ssub.s32 1, %s11
  %s14 = scalar_select 0, %s13, %s11
  // Predicated region
  $region2: #{synthesizer_trn_forward.1} parent=0 // pred_check
    _
  $region3: #{synthesizer_trn_forward.1} parent=0 // pred_check_branch
    %16 = sbr.rel (0) target = $region5
  $region4: #{synthesizer_trn_forward.1} parent=0 // pred_region
    _
  $region5: #{synthesizer_trn_forward.1} parent=0 // pred_fallthru
    _
  // Predicated region
  $region6: #{synthesizer_trn_forward.1} parent=0 // pred_check
    _
  $region7: #{synthesizer_trn_forward.1} parent=0 // pred_check_branch
    %18 = sbr.rel (0) target = $region9
  $region8: #{synthesizer_trn_forward.1} parent=0 // pred_region
    _
  $region9: #{synthesizer_trn_forward.1} parent=0 // pred_fallthru
    _
  // Predicated region
  $region10: #{synthesizer_trn_forward.1} parent=0 // pred_check
    _
  $region11: #{synthesizer_trn_forward.1} parent=0 // pred_check_branch
    %20 = sbr.rel (0) target = $region13
  $region12: #{synthesizer_trn_forward.1} parent=0 // pred_region
    _
  $region13: #{synthesizer_trn_forward.1} parent=0 // pred_fallthru
    _
  // Predicated region
  $region14: #{synthesizer_trn_forward.1} parent=0 // pred_check
    _
  $region15: #{synthesizer_trn_forward.1} parent=0 // pred_check_branch
    %22 = sbr.rel (0) target = $region17
  $region16: #{synthesizer_trn_forward.1} parent=0 // pred_region
    _
  $region17: #{synthesizer_trn_forward.1} parent=0 // pred_fallthru
    _
  // Predicated region
  $region18: #{synthesizer_trn_forward.1} parent=0 // pred_check
    _
  $region19: #{synthesizer_trn_forward.1} parent=0 // pred_check_branch
    %24 = sbr.rel (0) target = $region21
  $region20: #{synthesizer_trn_forward.1} parent=0 // pred_region
    _
  $region21: #{synthesizer_trn_forward.1} parent=0 // pred_fallthru
    _
  // Predicated region
  $region22: #{synthesizer_trn_forward.1} parent=0 // pred_check
    _
  $region23: #{synthesizer_trn_forward.1} parent=0 // pred_check_branch
    %26 = sbr.rel (0) target = $region25
  $region24: #{synthesizer_trn_forward.1} parent=0 // pred_region
    _
  $region25: #{synthesizer_trn_forward.1} parent=0 // pred_fallthru
    _
  // Predicated region
  $region26: #{synthesizer_trn_forward.1} parent=0 // pred_check
    _
  $region27: #{synthesizer_trn_forward.1} parent=0 // pred_check_branch
    %28 = sbr.rel (0) target = $region29
  $region28: #{synthesizer_trn_forward.1} parent=0 // pred_region
    _
  $region29: #{synthesizer_trn_forward.1} parent=0 // pred_fallthru
    _
  // Predicated region
  $region30: #{synthesizer_trn_forward.1} parent=0 // pred_check
    _
  $region31: #{synthesizer_trn_forward.1} parent=0 // pred_check_branch
    %30 = sbr.rel (0) target = $region33
  $region32: #{synthesizer_trn_forward.1} parent=0 // pred_region
    _
  $region33: #{synthesizer_trn_forward.1} parent=0 // pred_fallthru
    _
  // Predicated region
  $region34: #{synthesizer_trn_forward.1} parent=0 // pred_check
    _
  $region35: #{synthesizer_trn_forward.1} parent=0 // pred_check_branch
    %32 = sbr.rel (0) target = $region37
  $region36: #{synthesizer_trn_forward.1} parent=0 // pred_region
    _
  $region37: #{synthesizer_trn_forward.1} parent=0 // pred_fallthru
    _
  // Predicated region
  $region38: #{synthesizer_trn_forward.1} parent=0 // pred_check
    _
  $region39: #{synthesizer_trn_forward.1} parent=0 // pred_check_branch
    %34 = sbr.rel (0) target = $region41
  $region40: #{synthesizer_trn_forward.1} parent=0 // pred_region
    _
  $region41: #{synthesizer_trn_forward.1} parent=0 // pred_fallthru
    _
  %v36 = vld [vmem:[%s1] sm:$0xf]
  %v37 = vld [vmem:[%s3] sm:$0xf]
  %v38 = vld [vmem:[%s3 + $0x4] sm:$0xf]
  %v39 = vld [vmem:[%s3 + $0x8] sm:$0xf]
  %v40 = vld [vmem:[%s3 + $0xc] sm:$0xf]
  %v41 = vld [vmem:[%s0] sm:$0xff]
  %v42 = vld [vmem:[%s0 + $0x8] sm:$0xff]
  %v43 = vld [vmem:[%s0 + $0x10] sm:$0xff]
  %v44 = vld [vmem:[%s0 + $0x18] sm:$0xff]
  %v45 = vld [vmem:[%s0 + $0x20] sm:$0xff]
  %v46 = vld [vmem:[%s0 + $0x28] sm:$0xff]
  %v47 = vld [vmem:[%s0 + $0x30] sm:$0xff]
  %v48 = vld [vmem:[%s0 + $0x38] sm:$0xff]
  %v49 = vld [vmem:[%s0 + $0x40] sm:$0xff]
  %v50 = vld [vmem:[%s0 + $0x48] sm:$0xff]
  %v51 = vld [vmem:[%s0 + $0x50] sm:$0xff]
  %v52 = vld [vmem:[%s0 + $0x58] sm:$0xff]
  %v53 = vld [vmem:[%s0 + $0x60] sm:$0xff]
  %v54 = vld [vmem:[%s0 + $0x68] sm:$0xff]
  %v55 = vld [vmem:[%s0 + $0x70] sm:$0xff]
  %v56 = vld [vmem:[%s0 + $0x78] sm:$0xff]
  %v58 = vperm.slane %v36, 0
  %v59 = vperm.slane %v36, 1
  %v60 = vperm.slane %v36, 2
  %v61 = vperm.slane %v36, 3
  %v66 = vmul.f32 %v41, %v58
  %v67 = vmul.f32 %v42, %v59
  %v68 = vmul.f32 %v43, %v60
  %v69 = vmul.f32 %v44, %v61
  %v70 = vmul.f32 %v45, %v58
  %v71 = vmul.f32 %v46, %v59
  %v72 = vmul.f32 %v47, %v60
  %v73 = vmul.f32 %v48, %v61
  %v74 = vmul.f32 %v49, %v58
  %v75 = vmul.f32 %v50, %v59
  %v76 = vmul.f32 %v51, %v60
  %v77 = vmul.f32 %v52, %v61
  %v78 = vmul.f32 %v53, %v58
  %v79 = vmul.f32 %v54, %v59
  %v80 = vmul.f32 %v55, %v60
  %v81 = vmul.f32 %v56, %v61
  %v82 = vpack.c.bf16 %v70, %v66
  %v83 = vpack.c.bf16 %v71, %v67
  %v84 = vpack.c.bf16 %v72, %v68
  %v85 = vpack.c.bf16 %v73, %v69
  %v86 = vpack.c.bf16 %v78, %v74
  %v87 = vpack.c.bf16 %v79, %v75
  %v88 = vpack.c.bf16 %v80, %v76
  %v89 = vpack.c.bf16 %v81, %v77
  %v90 = vld [vmem:[%s4] sm:$0xff]
  %v91 = vld [vmem:[%s4 + $0x8] sm:$0xff]
  %v92 = vld [vmem:[%s4 + $0x10] sm:$0xff]
  %v93 = vld [vmem:[%s4 + $0x18] sm:$0xff]
  %95 = vset.pattern.permute.xlu0 0
  %96 = vperm.xlu0 %95, %v90
  %v97 = vpop.permute.xlu0 %96
  %100 = vset.pattern.permute.xlu0 0
  %101 = vperm.xlu0 %100, %v91
  %v102 = vpop.permute.xlu0 %101
  %105 = vset.pattern.permute.xlu0 0
  %106 = vperm.xlu0 %105, %v92
  %v107 = vpop.permute.xlu0 %106
  %110 = vset.pattern.permute.xlu0 0
  %111 = vperm.xlu0 %110, %v93
  %v112 = vpop.permute.xlu0 %111
  %v118 = vunpack.c.l.b16 %v37
  %v119 = vunpack.c.l.b16 %v38
  %v120 = vunpack.c.l.b16 %v39
  %v121 = vunpack.c.l.b16 %v40
  %v122 = vpack.c.b16 %v119, %v118
  %v123 = vpack.c.b16 %v121, %v120
  %vm124 = vcmask 261120
  %v126 = vsel %vm124, %v122, 0
  %v129 = vsel %vm124, %v123, 0
  %131 = vmatpush.bf16.msra.mxu0 0
  %132 = vmatpush.bf16.msra.mxu0 0
  %133 = vmatpush.bf16.msra.mxu0 0
  %134 = vmatpush.bf16.msra.mxu0 0
  %135 = vmatpush.bf16.msra.mxu0 0
  %136 = vmatpush.bf16.msra.mxu0 0
  %137 = vmatpush.bf16.msra.mxu0 %v86
  %138 = vmatpush.bf16.msra.mxu0 %v82
  %139 = vmatmul.bf16.gmra.mxu0 %v126
  %v140 = vpop.f32.mrf.mxu0
  %v141 = vadd.f32 %v97, %v140
  %v142 = vpop.f32.mrf.mxu0
  %v143 = vadd.f32 %v102, %v142
  %144 = vmatmul.bf16.gmra.mxu0 %v129
  %v145 = vpop.f32.mrf.mxu0
  %v146 = vadd.f32 %v107, %v145
  %v147 = vpop.f32.mrf.mxu0
  %v148 = vadd.f32 %v112, %v147
  %149 = vdwg.mxu0
  %150 = vmatpush.bf16.msra.mxu0 0
  %151 = vmatpush.bf16.msra.mxu0 0
  %152 = vmatpush.bf16.msra.mxu0 0
  %153 = vmatpush.bf16.msra.mxu0 0
  %154 = vmatpush.bf16.msra.mxu0 0
  %155 = vmatpush.bf16.msra.mxu0 0
  %156 = vmatpush.bf16.msra.mxu0 %v87
  %157 = vmatpush.bf16.msra.mxu0 %v83
  %158 = vmatmul.bf16.gmra.mxu0 %v126
  %v159 = vpop.f32.mrf.mxu0
  %v160 = vadd.f32 %v97, %v159
  %v161 = vpop.f32.mrf.mxu0
  %v162 = vadd.f32 %v102, %v161
  %163 = vmatmul.bf16.gmra.mxu0 %v129
  %v164 = vpop.f32.mrf.mxu0
  %v165 = vadd.f32 %v107, %v164
  %v166 = vpop.f32.mrf.mxu0
  %v167 = vadd.f32 %v112, %v166
  %168 = vdwg.mxu0
  %169 = vmatpush.bf16.msra.mxu0 0
  %170 = vmatpush.bf16.msra.mxu0 0
  %171 = vmatpush.bf16.msra.mxu0 0
  %172 = vmatpush.bf16.msra.mxu0 0
  %173 = vmatpush.bf16.msra.mxu0 0
  %174 = vmatpush.bf16.msra.mxu0 0
  %175 = vmatpush.bf16.msra.mxu0 %v88
  %176 = vmatpush.bf16.msra.mxu0 %v84
  %177 = vmatmul.bf16.gmra.mxu0 %v126
  %v178 = vpop.f32.mrf.mxu0
  %v179 = vadd.f32 %v97, %v178
  %v180 = vpop.f32.mrf.mxu0
  %v181 = vadd.f32 %v102, %v180
  %182 = vmatmul.bf16.gmra.mxu0 %v129
  %v183 = vpop.f32.mrf.mxu0
  %v184 = vadd.f32 %v107, %v183
  %v185 = vpop.f32.mrf.mxu0
  %v186 = vadd.f32 %v112, %v185
  %187 = vdwg.mxu0
  %188 = vmatpush.bf16.msra.mxu0 0
  %189 = vmatpush.bf16.msra.mxu0 0
  %190 = vmatpush.bf16.msra.mxu0 0
  %191 = vmatpush.bf16.msra.mxu0 0
  %192 = vmatpush.bf16.msra.mxu0 0
  %193 = vmatpush.bf16.msra.mxu0 0
  %194 = vmatpush.bf16.msra.mxu0 %v89
  %195 = vmatpush.bf16.msra.mxu0 %v85
  %196 = vmatmul.bf16.gmra.mxu0 %v126
  %v197 = vpop.f32.mrf.mxu0
  %v198 = vadd.f32 %v97, %v197
  %v199 = vpop.f32.mrf.mxu0
  %v200 = vadd.f32 %v102, %v199
  %201 = vmatmul.bf16.gmra.mxu0 %v129
  %v202 = vpop.f32.mrf.mxu0
  %v203 = vadd.f32 %v107, %v202
  %v204 = vpop.f32.mrf.mxu0
  %v205 = vadd.f32 %v112, %v204
  %206 = vdwg.mxu0
  %v207 = vmul.f32 %v141, %v58
  %v208 = vmul.f32 %v160, %v59
  %v209 = vmul.f32 %v179, %v60
  %v210 = vmul.f32 %v198, %v61
  %v211 = vmul.f32 %v143, %v58
  %v212 = vmul.f32 %v162, %v59
  %v213 = vmul.f32 %v181, %v60
  %v214 = vmul.f32 %v200, %v61
  %v215 = vmul.f32 %v146, %v58
  %v216 = vmul.f32 %v165, %v59
  %v217 = vmul.f32 %v184, %v60
  %v218 = vmul.f32 %v203, %v61
  %v219 = vmul.f32 %v148, %v58
  %v220 = vmul.f32 %v167, %v59
  %v221 = vmul.f32 %v186, %v60
  %v222 = vmul.f32 %v205, %v61
  %223 = vrot.lane.b32.xlu0 %v207, 2
  %v224 = vpop.permute.xlu0 %223
  %225 = vrot.lane.b32.xlu0 %v211, 2
  %v226 = vpop.permute.xlu0 %225
  %227 = vrot.lane.b32.xlu0 %v215, 2
  %v228 = vpop.permute.xlu0 %227
  %229 = vrot.lane.b32.xlu0 %v219, 2
  %v230 = vpop.permute.xlu0 %229
  %231 = vrot.lane.b32.xlu0 %v208, 2
  %v232 = vpop.permute.xlu0 %231
  %233 = vrot.lane.b32.xlu0 %v212, 2
  %v234 = vpop.permute.xlu0 %233
  %235 = vrot.lane.b32.xlu0 %v216, 2
  %v236 = vpop.permute.xlu0 %235
  %237 = vrot.lane.b32.xlu0 %v220, 2
  %v238 = vpop.permute.xlu0 %237
  %239 = vrot.lane.b32.xlu0 %v209, 2
  %v240 = vpop.permute.xlu0 %239
  %241 = vrot.lane.b32.xlu0 %v213, 2
  %v242 = vpop.permute.xlu0 %241
  %243 = vrot.lane.b32.xlu0 %v217, 2
  %v244 = vpop.permute.xlu0 %243
  %245 = vrot.lane.b32.xlu0 %v221, 2
  %v246 = vpop.permute.xlu0 %245
  %247 = vrot.lane.b32.xlu0 %v210, 2
  %v248 = vpop.permute.xlu0 %247
  %249 = vrot.lane.b32.xlu0 %v214, 2
  %v250 = vpop.permute.xlu0 %249
  %251 = vrot.lane.b32.xlu0 %v218, 2
  %v252 = vpop.permute.xlu0 %251
  %253 = vrot.lane.b32.xlu0 %v222, 2
  %v254 = vpop.permute.xlu0 %253
  %v255 = vlaneseq
  %v256 = vand.u32 %v255, 127
  %vm257 = vcmp.lt.s32.totalorder %v256, 2
  %v258 = vsel %vm257, %v240, %v248
  %v259 = vsel %vm257, %v242, %v250
  %v260 = vsel %vm257, %v244, %v252
  %v261 = vsel %vm257, %v246, %v254
  %v262 = vsel %vm257, %v232, %v240
  %v263 = vsel %vm257, %v234, %v242
  %v264 = vsel %vm257, %v236, %v244
  %v265 = vsel %vm257, %v238, %v246
  %v266 = vsel %vm257, %v224, %v232
  %v267 = vsel %vm257, %v226, %v234
  %v268 = vsel %vm257, %v228, %v236
  %v269 = vsel %vm257, %v230, %v238
  %v270 = vsel %vm257, %v248, %v224
  %v271 = vsel %vm257, %v250, %v226
  %v272 = vsel %vm257, %v252, %v228
  %v273 = vsel %vm257, %v254, %v230
  %v274 = vpack.c.bf16 %v266, %v270
  %v275 = vpack.c.bf16 %v258, %v262
  %v276 = vpack.c.bf16 %v267, %v271
  %v277 = vpack.c.bf16 %v259, %v263
  %v278 = vpack.c.bf16 %v268, %v272
  %v279 = vpack.c.bf16 %v260, %v264
  %v280 = vpack.c.bf16 %v269, %v273
  %v281 = vpack.c.bf16 %v261, %v265
  %282 = vst [vmem:[#allocation2] sm:$0xff] %v274
  %283 = vst [vmem:[#allocation2 + $0x8] sm:$0xff] %v275
  %284 = vst [vmem:[#allocation2 + $0x10] sm:$0xff] %v276
  %285 = vst [vmem:[#allocation2 + $0x18] sm:$0xff] %v277
  %286 = vst [vmem:[#allocation2 + $0x20] sm:$0xff] %v278
  %287 = vst [vmem:[#allocation2 + $0x28] sm:$0xff] %v279
  %288 = vst [vmem:[#allocation2 + $0x30] sm:$0xff] %v280
  %289 = vst [vmem:[#allocation2 + $0x38] sm:$0xff] %v281
  %290 = vrot.lane.b32.xlu0 %v207, 1
  %v291 = vpop.permute.xlu0 %290
  %292 = vrot.lane.b32.xlu0 %v211, 1
  %v293 = vpop.permute.xlu0 %292
  %294 = vrot.lane.b32.xlu0 %v215, 1
  %v295 = vpop.permute.xlu0 %294
  %296 = vrot.lane.b32.xlu0 %v219, 1
  %v297 = vpop.permute.xlu0 %296
  %298 = vrot.lane.b32.xlu0 %v208, 1
  %v299 = vpop.permute.xlu0 %298
  %300 = vrot.lane.b32.xlu0 %v212, 1
  %v301 = vpop.permute.xlu0 %300
  %302 = vrot.lane.b32.xlu0 %v216, 1
  %v303 = vpop.permute.xlu0 %302
  %304 = vrot.lane.b32.xlu0 %v220, 1
  %v305 = vpop.permute.xlu0 %304
  %306 = vrot.lane.b32.xlu0 %v209, 1
  %v307 = vpop.permute.xlu0 %306
  %308 = vrot.lane.b32.xlu0 %v213, 1
  %v309 = vpop.permute.xlu0 %308
  %310 = vrot.lane.b32.xlu0 %v217, 1
  %v311 = vpop.permute.xlu0 %310
  %312 = vrot.lane.b32.xlu0 %v221, 1
  %v313 = vpop.permute.xlu0 %312
  %314 = vrot.lane.b32.xlu0 %v210, 1
  %v315 = vpop.permute.xlu0 %314
  %316 = vrot.lane.b32.xlu0 %v214, 1
  %v317 = vpop.permute.xlu0 %316
  %318 = vrot.lane.b32.xlu0 %v218, 1
  %v319 = vpop.permute.xlu0 %318
  %320 = vrot.lane.b32.xlu0 %v222, 1
  %v321 = vpop.permute.xlu0 %320
  %vm322 = vcmp.lt.s32.totalorder %v256, 1
  %v323 = vsel %vm322, %v307, %v315
  %v324 = vsel %vm322, %v309, %v317
  %v325 = vsel %vm322, %v311, %v319
  %v326 = vsel %vm322, %v313, %v321
  %v327 = vsel %vm322, %v299, %v307
  %v328 = vsel %vm322, %v301, %v309
  %v329 = vsel %vm322, %v303, %v311
  %v330 = vsel %vm322, %v305, %v313
  %v331 = vsel %vm322, %v291, %v299
  %v332 = vsel %vm322, %v293, %v301
  %v333 = vsel %vm322, %v295, %v303
  %v334 = vsel %vm322, %v297, %v305
  %v335 = vsel %vm322, %v315, %v291
  %v336 = vsel %vm322, %v317, %v293
  %v337 = vsel %vm322, %v319, %v295
  %v338 = vsel %vm322, %v321, %v297
  %v339 = vpack.c.bf16 %v331, %v335
  %v340 = vpack.c.bf16 %v323, %v327
  %v341 = vpack.c.bf16 %v332, %v336
  %v342 = vpack.c.bf16 %v324, %v328
  %v343 = vpack.c.bf16 %v333, %v337
  %v344 = vpack.c.bf16 %v325, %v329
  %v345 = vpack.c.bf16 %v334, %v338
  %v346 = vpack.c.bf16 %v326, %v330
  %347 = vst [vmem:[#allocation2 + $0x40] sm:$0xff] %v339
  %348 = vst [vmem:[#allocation2 + $0x48] sm:$0xff] %v340
  %349 = vst [vmem:[#allocation2 + $0x50] sm:$0xff] %v341
  %350 = vst [vmem:[#allocation2 + $0x58] sm:$0xff] %v342
  %351 = vst [vmem:[#allocation2 + $0x60] sm:$0xff] %v343
  %352 = vst [vmem:[#allocation2 + $0x68] sm:$0xff] %v344
  %353 = vst [vmem:[#allocation2 + $0x70] sm:$0xff] %v345
  %354 = vst [vmem:[#allocation2 + $0x78] sm:$0xff] %v346
  %v355 = vpack.c.bf16 %v208, %v207
  %v356 = vpack.c.bf16 %v210, %v209
  %v357 = vpack.c.bf16 %v212, %v211
  %v358 = vpack.c.bf16 %v214, %v213
  %v359 = vpack.c.bf16 %v216, %v215
  %v360 = vpack.c.bf16 %v218, %v217
  %v361 = vpack.c.bf16 %v220, %v219
  %v362 = vpack.c.bf16 %v222, %v221
  %363 = vst [vmem:[#allocation2 + $0x80] sm:$0xff] %v355
  %364 = vst [vmem:[#allocation2 + $0x88] sm:$0xff] %v356
  %365 = vst [vmem:[#allocation2 + $0x90] sm:$0xff] %v357
  %366 = vst [vmem:[#allocation2 + $0x98] sm:$0xff] %v358
  %367 = vst [vmem:[#allocation2 + $0xa0] sm:$0xff] %v359
  %368 = vst [vmem:[#allocation2 + $0xa8] sm:$0xff] %v360
  %369 = vst [vmem:[#allocation2 + $0xb0] sm:$0xff] %v361
  %370 = vst [vmem:[#allocation2 + $0xb8] sm:$0xff] %v362
  %371 = vrot.lane.b32.xlu0 %v207, 127
  %v372 = vpop.permute.xlu0 %371
  %373 = vrot.lane.b32.xlu0 %v211, 127
  %v374 = vpop.permute.xlu0 %373
  %375 = vrot.lane.b32.xlu0 %v215, 127
  %v376 = vpop.permute.xlu0 %375
  %377 = vrot.lane.b32.xlu0 %v219, 127
  %v378 = vpop.permute.xlu0 %377
  %379 = vrot.lane.b32.xlu0 %v208, 127
  %v380 = vpop.permute.xlu0 %379
  %381 = vrot.lane.b32.xlu0 %v212, 127
  %v382 = vpop.permute.xlu0 %381
  %383 = vrot.lane.b32.xlu0 %v216, 127
  %v384 = vpop.permute.xlu0 %383
  %385 = vrot.lane.b32.xlu0 %v220, 127
  %v386 = vpop.permute.xlu0 %385
  %387 = vrot.lane.b32.xlu0 %v209, 127
  %v388 = vpop.permute.xlu0 %387
  %389 = vrot.lane.b32.xlu0 %v213, 127
  %v390 = vpop.permute.xlu0 %389
  %391 = vrot.lane.b32.xlu0 %v217, 127
  %v392 = vpop.permute.xlu0 %391
  %393 = vrot.lane.b32.xlu0 %v221, 127
  %v394 = vpop.permute.xlu0 %393
  %395 = vrot.lane.b32.xlu0 %v210, 127
  %v396 = vpop.permute.xlu0 %395
  %397 = vrot.lane.b32.xlu0 %v214, 127
  %v398 = vpop.permute.xlu0 %397
  %399 = vrot.lane.b32.xlu0 %v218, 127
  %v400 = vpop.permute.xlu0 %399
  %401 = vrot.lane.b32.xlu0 %v222, 127
  %v402 = vpop.permute.xlu0 %401
  %vm403 = vcmp.lt.s32.totalorder %v256, 127
  %v404 = vsel %vm403, %v388, %v396
  %v405 = vsel %vm403, %v390, %v398
  %v406 = vsel %vm403, %v392, %v400
  %v407 = vsel %vm403, %v394, %v402
  %v408 = vsel %vm403, %v380, %v388
  %v409 = vsel %vm403, %v382, %v390
  %v410 = vsel %vm403, %v384, %v392
  %v411 = vsel %vm403, %v386, %v394
  %v412 = vsel %vm403, %v372, %v380
  %v413 = vsel %vm403, %v374, %v382
  %v414 = vsel %vm403, %v376, %v384
  %v415 = vsel %vm403, %v378, %v386
  %v416 = vsel %vm403, %v396, %v372
  %v417 = vsel %vm403, %v398, %v374
  %v418 = vsel %vm403, %v400, %v376
  %v419 = vsel %vm403, %v402, %v378
  %v420 = vpack.c.bf16 %v408, %v412
  %v421 = vpack.c.bf16 %v416, %v404
  %v422 = vpack.c.bf16 %v409, %v413
  %v423 = vpack.c.bf16 %v417, %v405
  %v424 = vpack.c.bf16 %v410, %v414
  %v425 = vpack.c.bf16 %v418, %v406
  %v426 = vpack.c.bf16 %v411, %v415
  %v427 = vpack.c.bf16 %v419, %v407
  %428 = vst [vmem:[#allocation2 + $0xc0] sm:$0xff] %v420
  %429 = vst [vmem:[#allocation2 + $0xc8] sm:$0xff] %v421
  %430 = vst [vmem:[#allocation2 + $0xd0] sm:$0xff] %v422
  %431 = vst [vmem:[#allocation2 + $0xd8] sm:$0xff] %v423
  %432 = vst [vmem:[#allocation2 + $0xe0] sm:$0xff] %v424
  %433 = vst [vmem:[#allocation2 + $0xe8] sm:$0xff] %v425
  %434 = vst [vmem:[#allocation2 + $0xf0] sm:$0xff] %v426
  %435 = vst [vmem:[#allocation2 + $0xf8] sm:$0xff] %v427
  %436 = vrot.lane.b32.xlu0 %v207, 126
  %v437 = vpop.permute.xlu0 %436
  %438 = vrot.lane.b32.xlu0 %v211, 126
  %v439 = vpop.permute.xlu0 %438
  %440 = vrot.lane.b32.xlu0 %v215, 126
  %v441 = vpop.permute.xlu0 %440
  %442 = vrot.lane.b32.xlu0 %v219, 126
  %v443 = vpop.permute.xlu0 %442
  %444 = vrot.lane.b32.xlu0 %v208, 126
  %v445 = vpop.permute.xlu0 %444
  %446 = vrot.lane.b32.xlu0 %v212, 126
  %v447 = vpop.permute.xlu0 %446
  %448 = vrot.lane.b32.xlu0 %v216, 126
  %v449 = vpop.permute.xlu0 %448
  %450 = vrot.lane.b32.xlu0 %v220, 126
  %v451 = vpop.permute.xlu0 %450
  %452 = vrot.lane.b32.xlu0 %v209, 126
  %v453 = vpop.permute.xlu0 %452
  %454 = vrot.lane.b32.xlu0 %v213, 126
  %v455 = vpop.permute.xlu0 %454
  %456 = vrot.lane.b32.xlu0 %v217, 126
  %v457 = vpop.permute.xlu0 %456
  %458 = vrot.lane.b32.xlu0 %v221, 126
  %v459 = vpop.permute.xlu0 %458
  %460 = vrot.lane.b32.xlu0 %v210, 126
  %v461 = vpop.permute.xlu0 %460
  %462 = vrot.lane.b32.xlu0 %v214, 126
  %v463 = vpop.permute.xlu0 %462
  %464 = vrot.lane.b32.xlu0 %v218, 126
  %v465 = vpop.permute.xlu0 %464
  %466 = vrot.lane.b32.xlu0 %v222, 126
  %v467 = vpop.permute.xlu0 %466
  %vm468 = vcmp.lt.s32.totalorder %v256, 126
  %v469 = vsel %vm468, %v453, %v461
  %v470 = vsel %vm468, %v455, %v463
  %v471 = vsel %vm468, %v457, %v465
  %v472 = vsel %vm468, %v459, %v467
  %v473 = vsel %vm468, %v445, %v453
  %v474 = vsel %vm468, %v447, %v455
  %v475 = vsel %vm468, %v449, %v457
  %v476 = vsel %vm468, %v451, %v459
  %v477 = vsel %vm468, %v437, %v445
  %v478 = vsel %vm468, %v439, %v447
  %v479 = vsel %vm468, %v441, %v449
  %v480 = vsel %vm468, %v443, %v451
  %v481 = vsel %vm468, %v461, %v437
  %v482 = vsel %vm468, %v463, %v439
  %v483 = vsel %vm468, %v465, %v441
  %v484 = vsel %vm468, %v467, %v443
  %v485 = vpack.c.bf16 %v473, %v477
  %v486 = vpack.c.bf16 %v481, %v469
  %v487 = vpack.c.bf16 %v474, %v478
  %v488 = vpack.c.bf16 %v482, %v470
  %v489 = vpack.c.bf16 %v475, %v479
  %v490 = vpack.c.bf16 %v483, %v471
  %v491 = vpack.c.bf16 %v476, %v480
  %v492 = vpack.c.bf16 %v484, %v472
  %493 = vst [vmem:[#allocation2 + $0x100] sm:$0xff] %v485
  %494 = vst [vmem:[#allocation2 + $0x108] sm:$0xff] %v486
  %495 = vst [vmem:[#allocation2 + $0x110] sm:$0xff] %v487
  %496 = vst [vmem:[#allocation2 + $0x118] sm:$0xff] %v488
  %497 = vst [vmem:[#allocation2 + $0x120] sm:$0xff] %v489
  %498 = vst [vmem:[#allocation2 + $0x128] sm:$0xff] %v490
  %499 = vst [vmem:[#allocation2 + $0x130] sm:$0xff] %v491
  %500 = vst [vmem:[#allocation2 + $0x138] sm:$0xff] %v492
  %v501 = vld [vmem:[%s5] sm:$0xff]
  %v502 = vld [vmem:[%s5 + $0x8] sm:$0xff]
  %v503 = vld [vmem:[%s5 + $0x10] sm:$0xff]
  %v504 = vld [vmem:[%s5 + $0x18] sm:$0xff]
  %v505 = vld [vmem:[%s5 + $0x20] sm:$0xff]
  %v506 = vld [vmem:[%s5 + $0x28] sm:$0xff]
  %v507 = vld [vmem:[%s5 + $0x30] sm:$0xff]
  %v508 = vld [vmem:[%s5 + $0x38] sm:$0xff]
  %v509 = vld [vmem:[#allocation2] sm:$0xff]
  %v510 = vld [vmem:[#allocation2 + $0x8] sm:$0xff]
  %v511 = vld [vmem:[#allocation2 + $0x10] sm:$0xff]
  %v512 = vld [vmem:[#allocation2 + $0x18] sm:$0xff]
  %v513 = vld [vmem:[#allocation2 + $0x20] sm:$0xff]
  %v514 = vld [vmem:[#allocation2 + $0x28] sm:$0xff]
  %v515 = vld [vmem:[#allocation2 + $0x30] sm:$0xff]
  %v516 = vld [vmem:[#allocation2 + $0x38] sm:$0xff]
  %v517 = vld [vmem:[#allocation2 + $0x40] sm:$0xff]
  %v518 = vld [vmem:[#allocation2 + $0x48] sm:$0xff]
  %v519 = vld [vmem:[#allocation2 + $0x50] sm:$0xff]
  %v520 = vld [vmem:[#allocation2 + $0x58] sm:$0xff]
  %v521 = vld [vmem:[#allocation2 + $0x60] sm:$0xff]
  %v522 = vld [vmem:[#allocation2 + $0x68] sm:$0xff]
  %v523 = vld [vmem:[#allocation2 + $0x70] sm:$0xff]
  %v524 = vld [vmem:[#allocation2 + $0x78] sm:$0xff]
  %v525 = vld [vmem:[#allocation2 + $0x80] sm:$0xff]
  %v526 = vld [vmem:[#allocation2 + $0x88] sm:$0xff]
  %v527 = vld [vmem:[#allocation2 + $0x90] sm:$0xff]
  %v528 = vld [vmem:[#allocation2 + $0x98] sm:$0xff]
  %v529 = vld [vmem:[#allocation2 + $0xa0] sm:$0xff]
  %v530 = vld [vmem:[#allocation2 + $0xa8] sm:$0xff]
  %v531 = vld [vmem:[#allocation2 + $0xb0] sm:$0xff]
  %v532 = vld [vmem:[#allocation2 + $0xb8] sm:$0xff]
  %v533 = vld [vmem:[#allocation2 + $0xc0] sm:$0xff]
  %v534 = vld [vmem:[#allocation2 + $0xc8] sm:$0xff]
  %v535 = vld [vmem:[#allocation2 + $0xd0] sm:$0xff]
  %v536 = vld [vmem:[#allocation2 + $0xd8] sm:$0xff]
  %v537 = vld [vmem:[#allocation2 + $0xe0] sm:$0xff]
  %v538 = vld [vmem:[#allocation2 + $0xe8] sm:$0xff]
  %v539 = vld [vmem:[#allocation2 + $0xf0] sm:$0xff]
  %v540 = vld [vmem:[#allocation2 + $0xf8] sm:$0xff]
  %v541 = vld [vmem:[#allocation2 + $0x100] sm:$0xff]
  %v542 = vld [vmem:[#allocation2 + $0x108] sm:$0xff]
  %v543 = vld [vmem:[#allocation2 + $0x110] sm:$0xff]
  %v544 = vld [vmem:[#allocation2 + $0x118] sm:$0xff]
  %v545 = vld [vmem:[#allocation2 + $0x120] sm:$0xff]
  %v546 = vld [vmem:[#allocation2 + $0x128] sm:$0xff]
  %v547 = vld [vmem:[#allocation2 + $0x130] sm:$0xff]
  %v548 = vld [vmem:[#allocation2 + $0x138] sm:$0xff]
  %v549 = vld [vmem:[%s2] sm:$0xff]
  %v550 = vld [vmem:[%s2 + $0x8] sm:$0xff]
  %v551 = vld [vmem:[%s2 + $0x10] sm:$0xff]
  %v552 = vld [vmem:[%s2 + $0x18] sm:$0xff]
  %v553 = vld [vmem:[%s2 + $0x20] sm:$0xff]
  %v554 = vld [vmem:[%s2 + $0x28] sm:$0xff]
  %v555 = vld [vmem:[%s2 + $0x30] sm:$0xff]
  %v556 = vld [vmem:[%s2 + $0x38] sm:$0xff]
  %v557 = vld [vmem:[%s2 + $0x40] sm:$0xff]
  %v558 = vld [vmem:[%s2 + $0x48] sm:$0xff]
  %v559 = vld [vmem:[%s2 + $0x50] sm:$0xff]
  %v560 = vld [vmem:[%s2 + $0x58] sm:$0xff]
  %v561 = vld [vmem:[%s2 + $0x60] sm:$0xff]
  %v562 = vld [vmem:[%s2 + $0x68] sm:$0xff]
  %v563 = vld [vmem:[%s2 + $0x70] sm:$0xff]
  %v564 = vld [vmem:[%s2 + $0x78] sm:$0xff]
  %v565 = vld [vmem:[%s2 + $0x80] sm:$0xff]
  %v566 = vld [vmem:[%s2 + $0x88] sm:$0xff]
  %v567 = vld [vmem:[%s2 + $0x90] sm:$0xff]
  %v568 = vld [vmem:[%s2 + $0x98] sm:$0xff]
  %v569 = vld [vmem:[%s2 + $0xa0] sm:$0xff]
  %v570 = vld [vmem:[%s2 + $0xa8] sm:$0xff]
  %v571 = vld [vmem:[%s2 + $0xb0] sm:$0xff]
  %v572 = vld [vmem:[%s2 + $0xb8] sm:$0xff]
  %v573 = vld [vmem:[%s2 + $0xc0] sm:$0xff]
  %v574 = vld [vmem:[%s2 + $0xc8] sm:$0xff]
  %v575 = vld [vmem:[%s2 + $0xd0] sm:$0xff]
  %v576 = vld [vmem:[%s2 + $0xd8] sm:$0xff]
  %v577 = vld [vmem:[%s2 + $0xe0] sm:$0xff]
  %v578 = vld [vmem:[%s2 + $0xe8] sm:$0xff]
  %v579 = vld [vmem:[%s2 + $0xf0] sm:$0xff]
  %v580 = vld [vmem:[%s2 + $0xf8] sm:$0xff]
  %v589 = vunpack.c.l.b16 %v501
  %v590 = vunpack.c.h.b16 %v501
  %v591 = vunpack.c.l.b16 %v502
  %v592 = vunpack.c.h.b16 %v502
  %v593 = vunpack.c.l.b16 %v503
  %v594 = vunpack.c.h.b16 %v503
  %v595 = vunpack.c.l.b16 %v504
  %v596 = vunpack.c.h.b16 %v504
  %v597 = vunpack.c.l.b16 %v505
  %v598 = vunpack.c.h.b16 %v505
  %v599 = vunpack.c.l.b16 %v506
  %v600 = vunpack.c.h.b16 %v506
  %v601 = vunpack.c.l.b16 %v507
  %v602 = vunpack.c.h.b16 %v507
  %v603 = vunpack.c.l.b16 %v508
  %v604 = vunpack.c.h.b16 %v508
  %v605 = vpack.c.b16 %v591, %v589
  %v606 = vpack.c.b16 %v592, %v590
  %v607 = vpack.c.b16 %v595, %v593
  %v608 = vpack.c.b16 %v596, %v594
  %v609 = vpack.c.b16 %v599, %v597
  %v610 = vpack.c.b16 %v600, %v598
  %v611 = vpack.c.b16 %v603, %v601
  %v612 = vpack.c.b16 %v604, %v602
  %v657 = vunpack.c.l.b16 %v509
  %v658 = vunpack.c.h.b16 %v509
  %v659 = vunpack.c.l.b16 %v510
  %v660 = vunpack.c.h.b16 %v510
  %v661 = vunpack.c.l.b16 %v511
  %v662 = vunpack.c.h.b16 %v511
  %v663 = vunpack.c.l.b16 %v512
  %v664 = vunpack.c.h.b16 %v512
  %v665 = vunpack.c.l.b16 %v513
  %v666 = vunpack.c.h.b16 %v513
  %v667 = vunpack.c.l.b16 %v514
  %v668 = vunpack.c.h.b16 %v514
  %v669 = vunpack.c.l.b16 %v515
  %v670 = vunpack.c.h.b16 %v515
  %v671 = vunpack.c.l.b16 %v516
  %v672 = vunpack.c.h.b16 %v516
  %v673 = vunpack.c.l.b16 %v517
  %v674 = vunpack.c.h.b16 %v517
  %v675 = vunpack.c.l.b16 %v518
  %v676 = vunpack.c.h.b16 %v518
  %v677 = vunpack.c.l.b16 %v519
  %v678 = vunpack.c.h.b16 %v519
  %v679 = vunpack.c.l.b16 %v520
  %v680 = vunpack.c.h.b16 %v520
  %v681 = vunpack.c.l.b16 %v521
  %v682 = vunpack.c.h.b16 %v521
  %v683 = vunpack.c.l.b16 %v522
  %v684 = vunpack.c.h.b16 %v522
  %v685 = vunpack.c.l.b16 %v523
  %v686 = vunpack.c.h.b16 %v523
  %v687 = vunpack.c.l.b16 %v524
  %v688 = vunpack.c.h.b16 %v524
  %v689 = vunpack.c.l.b16 %v525
  %v690 = vunpack.c.h.b16 %v525
  %v691 = vunpack.c.l.b16 %v526
  %v692 = vunpack.c.h.b16 %v526
  %v693 = vunpack.c.l.b16 %v527
  %v694 = vunpack.c.h.b16 %v527
  %v695 = vunpack.c.l.b16 %v528
  %v696 = vunpack.c.h.b16 %v528
  %v697 = vunpack.c.l.b16 %v529
  %v698 = vunpack.c.h.b16 %v529
  %v699 = vunpack.c.l.b16 %v530
  %v700 = vunpack.c.h.b16 %v530
  %v701 = vunpack.c.l.b16 %v531
  %v702 = vunpack.c.h.b16 %v531
  %v703 = vunpack.c.l.b16 %v532
  %v704 = vunpack.c.h.b16 %v532
  %v705 = vunpack.c.l.b16 %v533
  %v706 = vunpack.c.h.b16 %v533
  %v707 = vunpack.c.l.b16 %v534
  %v708 = vunpack.c.h.b16 %v534
  %v709 = vunpack.c.l.b16 %v535
  %v710 = vunpack.c.h.b16 %v535
  %v711 = vunpack.c.l.b16 %v536
  %v712 = vunpack.c.h.b16 %v536
  %v713 = vunpack.c.l.b16 %v537
  %v714 = vunpack.c.h.b16 %v537
  %v715 = vunpack.c.l.b16 %v538
  %v716 = vunpack.c.h.b16 %v538
  %v717 = vunpack.c.l.b16 %v539
  %v718 = vunpack.c.h.b16 %v539
  %v719 = vunpack.c.l.b16 %v540
  %v720 = vunpack.c.h.b16 %v540
  %v721 = vunpack.c.l.b16 %v541
  %v722 = vunpack.c.h.b16 %v541
  %v723 = vunpack.c.l.b16 %v542
  %v724 = vunpack.c.h.b16 %v542
  %v725 = vunpack.c.l.b16 %v543
  %v726 = vunpack.c.h.b16 %v543
  %v727 = vunpack.c.l.b16 %v544
  %v728 = vunpack.c.h.b16 %v544
  %v729 = vunpack.c.l.b16 %v545
  %v730 = vunpack.c.h.b16 %v545
  %v731 = vunpack.c.l.b16 %v546
  %v732 = vunpack.c.h.b16 %v546
  %v733 = vunpack.c.l.b16 %v547
  %v734 = vunpack.c.h.b16 %v547
  %v735 = vunpack.c.l.b16 %v548
  %v736 = vunpack.c.h.b16 %v548
  %v737 = vpack.c.b16 %v661, %v657
  %v738 = vpack.c.b16 %v662, %v658
  %v739 = vpack.c.b16 %v663, %v659
  %v740 = vpack.c.b16 %v664, %v660
  %v741 = vpack.c.b16 %v669, %v665
  %v742 = vpack.c.b16 %v670, %v666
  %v743 = vpack.c.b16 %v671, %v667
  %v744 = vpack.c.b16 %v672, %v668
  %v745 = vpack.c.b16 %v677, %v673
  %v746 = vpack.c.b16 %v678, %v674
  %v747 = vpack.c.b16 %v679, %v675
  %v748 = vpack.c.b16 %v680, %v676
  %v749 = vpack.c.b16 %v685, %v681
  %v750 = vpack.c.b16 %v686, %v682
  %v751 = vpack.c.b16 %v687, %v683
  %v752 = vpack.c.b16 %v688, %v684
  %v753 = vpack.c.b16 %v693, %v689
  %v754 = vpack.c.b16 %v694, %v690
  %v755 = vpack.c.b16 %v695, %v691
  %v756 = vpack.c.b16 %v696, %v692
  %v757 = vpack.c.b16 %v701, %v697
  %v758 = vpack.c.b16 %v702, %v698
  %v759 = vpack.c.b16 %v703, %v699
  %v760 = vpack.c.b16 %v704, %v700
  %v761 = vpack.c.b16 %v709, %v705
  %v762 = vpack.c.b16 %v710, %v706
  %v763 = vpack.c.b16 %v711, %v707
  %v764 = vpack.c.b16 %v712, %v708
  %v765 = vpack.c.b16 %v717, %v713
  %v766 = vpack.c.b16 %v718, %v714
  %v767 = vpack.c.b16 %v719, %v715
  %v768 = vpack.c.b16 %v720, %v716
  %v769 = vpack.c.b16 %v725, %v721
  %v770 = vpack.c.b16 %v726, %v722
  %v771 = vpack.c.b16 %v727, %v723
  %v772 = vpack.c.b16 %v728, %v724
  %v773 = vpack.c.b16 %v733, %v729
  %v774 = vpack.c.b16 %v734, %v730
  %v775 = vpack.c.b16 %v735, %v731
  %v776 = vpack.c.b16 %v736, %v732
  %v818 = vsel %vm124, %v606, 0
  %v821 = vsel %vm124, %v608, 0
  %v824 = vsel %vm124, %v610, 0
  %v827 = vsel %vm124, %v612, 0
  %829 = vmatpush.bf16.msra.mxu0 %v765
  %830 = vmatpush.bf16.msra.mxu0 %v761
  %831 = vmatpush.bf16.msra.mxu0 %v757
  %832 = vmatpush.bf16.msra.mxu0 %v753
  %833 = vmatpush.bf16.msra.mxu0 %v749
  %834 = vmatpush.bf16.msra.mxu0 %v745
  %835 = vmatpush.bf16.msra.mxu0 %v741
  %836 = vmatpush.bf16.msra.mxu0 %v737
  %837 = vmatmul.bf16.gmra.mxu0 %v605
  %v838 = vpop.f32.mrf.mxu0
  %v839 = vadd.f32 %v549, %v838
  %v840 = vpop.f32.mrf.mxu0
  %v841 = vadd.f32 %v553, %v840
  %842 = vmatmul.bf16.gmra.mxu0 %v607
  %v843 = vpop.f32.mrf.mxu0
  %v844 = vadd.f32 %v557, %v843
  %v845 = vpop.f32.mrf.mxu0
  %v846 = vadd.f32 %v561, %v845
  %847 = vmatmul.bf16.gmra.mxu0 %v609
  %v848 = vpop.f32.mrf.mxu0
  %v849 = vadd.f32 %v565, %v848
  %v850 = vpop.f32.mrf.mxu0
  %v851 = vadd.f32 %v569, %v850
  %852 = vmatmul.bf16.gmra.mxu0 %v611
  %v853 = vpop.f32.mrf.mxu0
  %v854 = vadd.f32 %v573, %v853
  %v855 = vpop.f32.mrf.mxu0
  %v856 = vadd.f32 %v577, %v855
  %857 = vdwg.mxu0
  %858 = vmatpush.bf16.msra.mxu0 0
  %859 = vmatpush.bf16.msra.mxu0 0
  %860 = vmatpush.bf16.msra.mxu0 0
  %861 = vmatpush.bf16.msra.mxu0 0
  %862 = vmatpush.bf16.msra.mxu0 0
  %863 = vmatpush.bf16.msra.mxu0 0
  %864 = vmatpush.bf16.msra.mxu0 %v773
  %865 = vmatpush.bf16.msra.mxu0 %v769
  %866 = vmatmul.bf16.gmra.mxu0 %v818
  %v867 = vpop.f32.mrf.mxu0
  %v868 = vadd.f32 %v839, %v867
  %v869 = vpop.f32.mrf.mxu0
  %v870 = vadd.f32 %v841, %v869
  %871 = vmatmul.bf16.gmra.mxu0 %v821
  %v872 = vpop.f32.mrf.mxu0
  %v873 = vadd.f32 %v844, %v872
  %v874 = vpop.f32.mrf.mxu0
  %v875 = vadd.f32 %v846, %v874
  %876 = vmatmul.bf16.gmra.mxu0 %v824
  %v877 = vpop.f32.mrf.mxu0
  %v878 = vadd.f32 %v849, %v877
  %v879 = vpop.f32.mrf.mxu0
  %v880 = vadd.f32 %v851, %v879
  %881 = vmatmul.bf16.gmra.mxu0 %v827
  %v882 = vpop.f32.mrf.mxu0
  %v883 = vadd.f32 %v854, %v882
  %v884 = vpop.f32.mrf.mxu0
  %v885 = vadd.f32 %v856, %v884
  %886 = vdwg.mxu0
  %887 = vmatpush.bf16.msra.mxu0 %v766
  %888 = vmatpush.bf16.msra.mxu0 %v762
  %889 = vmatpush.bf16.msra.mxu0 %v758
  %890 = vmatpush.bf16.msra.mxu0 %v754
  %891 = vmatpush.bf16.msra.mxu0 %v750
  %892 = vmatpush.bf16.msra.mxu0 %v746
  %893 = vmatpush.bf16.msra.mxu0 %v742
  %894 = vmatpush.bf16.msra.mxu0 %v738
  %895 = vmatmul.bf16.gmra.mxu0 %v605
  %v896 = vpop.f32.mrf.mxu0
  %v897 = vadd.f32 %v550, %v896
  %v898 = vpop.f32.mrf.mxu0
  %v899 = vadd.f32 %v554, %v898
  %900 = vmatmul.bf16.gmra.mxu0 %v607
  %v901 = vpop.f32.mrf.mxu0
  %v902 = vadd.f32 %v558, %v901
  %v903 = vpop.f32.mrf.mxu0
  %v904 = vadd.f32 %v562, %v903
  %905 = vmatmul.bf16.gmra.mxu0 %v609
  %v906 = vpop.f32.mrf.mxu0
  %v907 = vadd.f32 %v566, %v906
  %v908 = vpop.f32.mrf.mxu0
  %v909 = vadd.f32 %v570, %v908
  %910 = vmatmul.bf16.gmra.mxu0 %v611
  %v911 = vpop.f32.mrf.mxu0
  %v912 = vadd.f32 %v574, %v911
  %v913 = vpop.f32.mrf.mxu0
  %v914 = vadd.f32 %v578, %v913
  %915 = vdwg.mxu0
  %916 = vmatpush.bf16.msra.mxu0 0
  %917 = vmatpush.bf16.msra.mxu0 0
  %918 = vmatpush.bf16.msra.mxu0 0
  %919 = vmatpush.bf16.msra.mxu0 0
  %920 = vmatpush.bf16.msra.mxu0 0
  %921 = vmatpush.bf16.msra.mxu0 0
  %922 = vmatpush.bf16.msra.mxu0 %v774
  %923 = vmatpush.bf16.msra.mxu0 %v770
  %924 = vmatmul.bf16.gmra.mxu0 %v818
  %v925 = vpop.f32.mrf.mxu0
  %v926 = vadd.f32 %v897, %v925
  %v927 = vpop.f32.mrf.mxu0
  %v928 = vadd.f32 %v899, %v927
  %929 = vmatmul.bf16.gmra.mxu0 %v821
  %v930 = vpop.f32.mrf.mxu0
  %v931 = vadd.f32 %v902, %v930
  %v932 = vpop.f32.mrf.mxu0
  %v933 = vadd.f32 %v904, %v932
  %934 = vmatmul.bf16.gmra.mxu0 %v824
  %v935 = vpop.f32.mrf.mxu0
  %v936 = vadd.f32 %v907, %v935
  %v937 = vpop.f32.mrf.mxu0
  %v938 = vadd.f32 %v909, %v937
  %939 = vmatmul.bf16.gmra.mxu0 %v827
  %v940 = vpop.f32.mrf.mxu0
  %v941 = vadd.f32 %v912, %v940
  %v942 = vpop.f32.mrf.mxu0
  %v943 = vadd.f32 %v914, %v942
  %944 = vdwg.mxu0
  %945 = vmatpush.bf16.msra.mxu0 %v767
  %946 = vmatpush.bf16.msra.mxu0 %v763
  %947 = vmatpush.bf16.msra.mxu0 %v759
  %948 = vmatpush.bf16.msra.mxu0 %v755
  %949 = vmatpush.bf16.msra.mxu0 %v751
  %950 = vmatpush.bf16.msra.mxu0 %v747
  %951 = vmatpush.bf16.msra.mxu0 %v743
  %952 = vmatpush.bf16.msra.mxu0 %v739
  %953 = vmatmul.bf16.gmra.mxu0 %v605
  %v954 = vpop.f32.mrf.mxu0
  %v955 = vadd.f32 %v551, %v954
  %v956 = vpop.f32.mrf.mxu0
  %v957 = vadd.f32 %v555, %v956
  %958 = vmatmul.bf16.gmra.mxu0 %v607
  %v959 = vpop.f32.mrf.mxu0
  %v960 = vadd.f32 %v559, %v959
  %v961 = vpop.f32.mrf.mxu0
  %v962 = vadd.f32 %v563, %v961
  %963 = vmatmul.bf16.gmra.mxu0 %v609
  %v964 = vpop.f32.mrf.mxu0
  %v965 = vadd.f32 %v567, %v964
  %v966 = vpop.f32.mrf.mxu0
  %v967 = vadd.f32 %v571, %v966
  %968 = vmatmul.bf16.gmra.mxu0 %v611
  %v969 = vpop.f32.mrf.mxu0
  %v970 = vadd.f32 %v575, %v969
  %v971 = vpop.f32.mrf.mxu0
  %v972 = vadd.f32 %v579, %v971
  %973 = vdwg.mxu0
  %974 = vmatpush.bf16.msra.mxu0 0
  %975 = vmatpush.bf16.msra.mxu0 0
  %976 = vmatpush.bf16.msra.mxu0 0
  %977 = vmatpush.bf16.msra.mxu0 0
  %978 = vmatpush.bf16.msra.mxu0 0
  %979 = vmatpush.bf16.msra.mxu0 0
  %980 = vmatpush.bf16.msra.mxu0 %v775
  %981 = vmatpush.bf16.msra.mxu0 %v771
  %982 = vmatmul.bf16.gmra.mxu0 %v818
  %v983 = vpop.f32.mrf.mxu0
  %v984 = vadd.f32 %v955, %v983
  %v985 = vpop.f32.mrf.mxu0
  %v986 = vadd.f32 %v957, %v985
  %987 = vmatmul.bf16.gmra.mxu0 %v821
  %v988 = vpop.f32.mrf.mxu0
  %v989 = vadd.f32 %v960, %v988
  %v990 = vpop.f32.mrf.mxu0
  %v991 = vadd.f32 %v962, %v990
  %992 = vmatmul.bf16.gmra.mxu0 %v824
  %v993 = vpop.f32.mrf.mxu0
  %v994 = vadd.f32 %v965, %v993
  %v995 = vpop.f32.mrf.mxu0
  %v996 = vadd.f32 %v967, %v995
  %997 = vmatmul.bf16.gmra.mxu0 %v827
  %v998 = vpop.f32.mrf.mxu0
  %v999 = vadd.f32 %v970, %v998
  %v1000 = vpop.f32.mrf.mxu0
  %v1001 = vadd.f32 %v972, %v1000
  %1002 = vdwg.mxu0
  %1003 = vmatpush.bf16.msra.mxu0 %v768
  %1004 = vmatpush.bf16.msra.mxu0 %v764
  %1005 = vmatpush.bf16.msra.mxu0 %v760
  %1006 = vmatpush.bf16.msra.mxu0 %v756
  %1007 = vmatpush.bf16.msra.mxu0 %v752
  %1008 = vmatpush.bf16.msra.mxu0 %v748
  %1009 = vmatpush.bf16.msra.mxu0 %v744
  %1010 = vmatpush.bf16.msra.mxu0 %v740
  %1011 = vmatmul.bf16.gmra.mxu0 %v605
  %v1012 = vpop.f32.mrf.mxu0
  %v1013 = vadd.f32 %v552, %v1012
  %v1014 = vpop.f32.mrf.mxu0
  %v1015 = vadd.f32 %v556, %v1014
  %1016 = vmatmul.bf16.gmra.mxu0 %v607
  %v1017 = vpop.f32.mrf.mxu0
  %v1018 = vadd.f32 %v560, %v1017
  %v1019 = vpop.f32.mrf.mxu0
  %v1020 = vadd.f32 %v564, %v1019
  %1021 = vmatmul.bf16.gmra.mxu0 %v609
  %v1022 = vpop.f32.mrf.mxu0
  %v1023 = vadd.f32 %v568, %v1022
  %v1024 = vpop.f32.mrf.mxu0
  %v1025 = vadd.f32 %v572, %v1024
  %1026 = vmatmul.bf16.gmra.mxu0 %v611
  %v1027 = vpop.f32.mrf.mxu0
  %v1028 = vadd.f32 %v576, %v1027
  %v1029 = vpop.f32.mrf.mxu0
  %v1030 = vadd.f32 %v580, %v1029
  %1031 = vdwg.mxu0
  %1032 = vmatpush.bf16.msra.mxu0 0
  %1033 = vmatpush.bf16.msra.mxu0 0
  %1034 = vmatpush.bf16.msra.mxu0 0
  %1035 = vmatpush.bf16.msra.mxu0 0
  %1036 = vmatpush.bf16.msra.mxu0 0
  %1037 = vmatpush.bf16.msra.mxu0 0
  %1038 = vmatpush.bf16.msra.mxu0 %v776
  %1039 = vmatpush.bf16.msra.mxu0 %v772
  %1040 = vmatmul.bf16.gmra.mxu0 %v818
  %v1041 = vpop.f32.mrf.mxu0
  %v1042 = vadd.f32 %v1013, %v1041
  %v1043 = vpop.f32.mrf.mxu0
  %v1044 = vadd.f32 %v1015, %v1043
  %1045 = vmatmul.bf16.gmra.mxu0 %v821
  %v1046 = vpop.f32.mrf.mxu0
  %v1047 = vadd.f32 %v1018, %v1046
  %v1048 = vpop.f32.mrf.mxu0
  %v1049 = vadd.f32 %v1020, %v1048
  %1050 = vmatmul.bf16.gmra.mxu0 %v824
  %v1051 = vpop.f32.mrf.mxu0
  %v1052 = vadd.f32 %v1023, %v1051
  %v1053 = vpop.f32.mrf.mxu0
  %v1054 = vadd.f32 %v1025, %v1053
  %1055 = vmatmul.bf16.gmra.mxu0 %v827
  %v1056 = vpop.f32.mrf.mxu0
  %v1057 = vadd.f32 %v1028, %v1056
  %v1058 = vpop.f32.mrf.mxu0
  %v1059 = vadd.f32 %v1030, %v1058
  %1060 = vdwg.mxu0
  %v1061 = vtanh.pop %v868
  %v1062 = vtanh.pop %v926
  %v1063 = vtanh.pop %v984
  %v1064 = vtanh.pop %v1042
  %v1065 = vtanh.pop %v870
  %v1066 = vtanh.pop %v928
  %v1067 = vtanh.pop %v986
  %v1068 = vtanh.pop %v1044
  %v1069 = vtanh.pop %v873
  %v1070 = vtanh.pop %v931
  %v1071 = vtanh.pop %v989
  %v1072 = vtanh.pop %v1047
  %v1073 = vtanh.pop %v875
  %v1074 = vtanh.pop %v933
  %v1075 = vtanh.pop %v991
  %v1076 = vtanh.pop %v1049
  %v1077 = vxor.u32 %v878, 2147483648
  %v1078 = vxor.u32 %v936, 2147483648
  %v1079 = vxor.u32 %v994, 2147483648
  %v1080 = vxor.u32 %v1052, 2147483648
  %v1081 = vxor.u32 %v880, 2147483648
  %v1082 = vxor.u32 %v938, 2147483648
  %v1083 = vxor.u32 %v996, 2147483648
  %v1084 = vxor.u32 %v1054, 2147483648
  %v1085 = vxor.u32 %v883, 2147483648
  %v1086 = vxor.u32 %v941, 2147483648
  %v1087 = vxor.u32 %v999, 2147483648
  %v1088 = vxor.u32 %v1057, 2147483648
  %v1089 = vxor.u32 %v885, 2147483648
  %v1090 = vxor.u32 %v943, 2147483648
  %v1091 = vxor.u32 %v1001, 2147483648
  %v1092 = vxor.u32 %v1059, 2147483648
  %v1093 = vmul.f32 %v1077, 1.442695
  %v1094 = vpow.pop %v1093
  %v1095 = vmul.f32 %v1078, 1.442695
  %v1096 = vpow.pop %v1095
  %v1097 = vmul.f32 %v1079, 1.442695
  %v1098 = vpow.pop %v1097
  %v1099 = vmul.f32 %v1080, 1.442695
  %v1100 = vpow.pop %v1099
  %v1101 = vmul.f32 %v1081, 1.442695
  %v1102 = vpow.pop %v1101
  %v1103 = vmul.f32 %v1082, 1.442695
  %v1104 = vpow.pop %v1103
  %v1105 = vmul.f32 %v1083, 1.442695
  %v1106 = vpow.pop %v1105
  %v1107 = vmul.f32 %v1084, 1.442695
  %v1108 = vpow.pop %v1107
  %v1109 = vmul.f32 %v1085, 1.442695
  %v1110 = vpow.pop %v1109
  %v1111 = vmul.f32 %v1086, 1.442695
  %v1112 = vpow.pop %v1111
  %v1113 = vmul.f32 %v1087, 1.442695
  %v1114 = vpow.pop %v1113
  %v1115 = vmul.f32 %v1088, 1.442695
  %v1116 = vpow.pop %v1115
  %v1117 = vmul.f32 %v1089, 1.442695
  %v1118 = vpow.pop %v1117
  %v1119 = vmul.f32 %v1090, 1.442695
  %v1120 = vpow.pop %v1119
  %v1121 = vmul.f32 %v1091, 1.442695
  %v1122 = vpow.pop %v1121
  %v1123 = vmul.f32 %v1092, 1.442695
  %v1124 = vpow.pop %v1123
  %v1125 = vadd.f32 %v1094, 1.0
  %v1126 = vadd.f32 %v1096, 1.0
  %v1127 = vadd.f32 %v1098, 1.0
  %v1128 = vadd.f32 %v1100, 1.0
  %v1129 = vadd.f32 %v1102, 1.0
  %v1130 = vadd.f32 %v1104, 1.0
  %v1131 = vadd.f32 %v1106, 1.0
  %v1132 = vadd.f32 %v1108, 1.0
  %v1133 = vadd.f32 %v1110, 1.0
  %v1134 = vadd.f32 %v1112, 1.0
  %v1135 = vadd.f32 %v1114, 1.0
  %v1136 = vadd.f32 %v1116, 1.0
  %v1137 = vadd.f32 %v1118, 1.0
  %v1138 = vadd.f32 %v1120, 1.0
  %v1139 = vadd.f32 %v1122, 1.0
  %v1140 = vadd.f32 %v1124, 1.0
  %v1141 = vrcp.pop %v1125
  %v1142 = vmul.f32 %v1125, %v1141
  %v1143 = vsub.f32 1.0, %v1142
  %v1144 = vmul.f32 %v1141, %v1143
  %v1145 = vadd.f32 %v1141, %v1144
  %vm1146 = vweird.f32 %v1125
  %vm1147 = vweird.f32 %v1141
  %vm1148 = vmor %vm1146, %vm1147
  %v1149 = vsel %vm1148, %v1141, %v1145
  %v1150 = vand.u32 2147483647, %v1125
  %vm1151 = vcmp.eq.f32.partialorder %v1150, 8.507059e+37
  %v1152 = vand.u32 %v1125, 2147483648
  %v1153 = vor.u32 1.1754944e-38, %v1152
  %v1154 = vsel %vm1151, %v1153, %v1149
  %v1155 = vmul.f32 1.0, %v1154
  %v1156 = vrcp.pop %v1126
  %v1157 = vmul.f32 %v1126, %v1156
  %v1158 = vsub.f32 1.0, %v1157
  %v1159 = vmul.f32 %v1156, %v1158
  %v1160 = vadd.f32 %v1156, %v1159
  %vm1161 = vweird.f32 %v1126
  %vm1162 = vweird.f32 %v1156
  %vm1163 = vmor %vm1161, %vm1162
  %v1164 = vsel %vm1163, %v1156, %v1160
  %v1165 = vand.u32 2147483647, %v1126
  %vm1166 = vcmp.eq.f32.partialorder %v1165, 8.507059e+37
  %v1167 = vand.u32 %v1126, 2147483648
  %v1168 = vor.u32 1.1754944e-38, %v1167
  %v1169 = vsel %vm1166, %v1168, %v1164
  %v1170 = vmul.f32 1.0, %v1169
  %v1171 = vrcp.pop %v1127
  %v1172 = vmul.f32 %v1127, %v1171
  %v1173 = vsub.f32 1.0, %v1172
  %v1174 = vmul.f32 %v1171, %v1173
  %v1175 = vadd.f32 %v1171, %v1174
  %vm1176 = vweird.f32 %v1127
  %vm1177 = vweird.f32 %v1171
  %vm1178 = vmor %vm1176, %vm1177
  %v1179 = vsel %vm1178, %v1171, %v1175
  %v1180 = vand.u32 2147483647, %v1127
  %vm1181 = vcmp.eq.f32.partialorder %v1180, 8.507059e+37
  %v1182 = vand.u32 %v1127, 2147483648
  %v1183 = vor.u32 1.1754944e-38, %v1182
  %v1184 = vsel %vm1181, %v1183, %v1179
  %v1185 = vmul.f32 1.0, %v1184
  %v1186 = vrcp.pop %v1128
  %v1187 = vmul.f32 %v1128, %v1186
  %v1188 = vsub.f32 1.0, %v1187
  %v1189 = vmul.f32 %v1186, %v1188
  %v1190 = vadd.f32 %v1186, %v1189
  %vm1191 = vweird.f32 %v1128
  %vm1192 = vweird.f32 %v1186
  %vm1193 = vmor %vm1191, %vm1192
  %v1194 = vsel %vm1193, %v1186, %v1190
  %v1195 = vand.u32 2147483647, %v1128
  %vm1196 = vcmp.eq.f32.partialorder %v1195, 8.507059e+37
  %v1197 = vand.u32 %v1128, 2147483648
  %v1198 = vor.u32 1.1754944e-38, %v1197
  %v1199 = vsel %vm1196, %v1198, %v1194
  %v1200 = vmul.f32 1.0, %v1199
  %v1201 = vrcp.pop %v1129
  %v1202 = vmul.f32 %v1129, %v1201
  %v1203 = vsub.f32 1.0, %v1202
  %v1204 = vmul.f32 %v1201, %v1203
  %v1205 = vadd.f32 %v1201, %v1204
  %vm1206 = vweird.f32 %v1129
  %vm1207 = vweird.f32 %v1201
  %vm1208 = vmor %vm1206, %vm1207
  %v1209 = vsel %vm1208, %v1201, %v1205
  %v1210 = vand.u32 2147483647, %v1129
  %vm1211 = vcmp.eq.f32.partialorder %v1210, 8.507059e+37
  %v1212 = vand.u32 %v1129, 2147483648
  %v1213 = vor.u32 1.1754944e-38, %v1212
  %v1214 = vsel %vm1211, %v1213, %v1209
  %v1215 = vmul.f32 1.0, %v1214
  %v1216 = vrcp.pop %v1130
  %v1217 = vmul.f32 %v1130, %v1216
  %v1218 = vsub.f32 1.0, %v1217
  %v1219 = vmul.f32 %v1216, %v1218
  %v1220 = vadd.f32 %v1216, %v1219
  %vm1221 = vweird.f32 %v1130
  %vm1222 = vweird.f32 %v1216
  %vm1223 = vmor %vm1221, %vm1222
  %v1224 = vsel %vm1223, %v1216, %v1220
  %v1225 = vand.u32 2147483647, %v1130
  %vm1226 = vcmp.eq.f32.partialorder %v1225, 8.507059e+37
  %v1227 = vand.u32 %v1130, 2147483648
  %v1228 = vor.u32 1.1754944e-38, %v1227
  %v1229 = vsel %vm1226, %v1228, %v1224
  %v1230 = vmul.f32 1.0, %v1229
  %v1231 = vrcp.pop %v1131
  %v1232 = vmul.f32 %v1131, %v1231
  %v1233 = vsub.f32 1.0, %v1232
  %v1234 = vmul.f32 %v1231, %v1233
  %v1235 = vadd.f32 %v1231, %v1234
  %vm1236 = vweird.f32 %v1131
  %vm1237 = vweird.f32 %v1231
  %vm1238 = vmor %vm1236, %vm1237
  %v1239 = vsel %vm1238, %v1231, %v1235
  %v1240 = vand.u32 2147483647, %v1131
  %vm1241 = vcmp.eq.f32.partialorder %v1240, 8.507059e+37
  %v1242 = vand.u32 %v1131, 2147483648
  %v1243 = vor.u32 1.1754944e-38, %v1242
  %v1244 = vsel %vm1241, %v1243, %v1239
  %v1245 = vmul.f32 1.0, %v1244
  %v1246 = vrcp.pop %v1132
  %v1247 = vmul.f32 %v1132, %v1246
  %v1248 = vsub.f32 1.0, %v1247
  %v1249 = vmul.f32 %v1246, %v1248
  %v1250 = vadd.f32 %v1246, %v1249
  %vm1251 = vweird.f32 %v1132
  %vm1252 = vweird.f32 %v1246
  %vm1253 = vmor %vm1251, %vm1252
  %v1254 = vsel %vm1253, %v1246, %v1250
  %v1255 = vand.u32 2147483647, %v1132
  %vm1256 = vcmp.eq.f32.partialorder %v1255, 8.507059e+37
  %v1257 = vand.u32 %v1132, 2147483648
  %v1258 = vor.u32 1.1754944e-38, %v1257
  %v1259 = vsel %vm1256, %v1258, %v1254
  %v1260 = vmul.f32 1.0, %v1259
  %v1261 = vrcp.pop %v1133
  %v1262 = vmul.f32 %v1133, %v1261
  %v1263 = vsub.f32 1.0, %v1262
  %v1264 = vmul.f32 %v1261, %v1263
  %v1265 = vadd.f32 %v1261, %v1264
  %vm1266 = vweird.f32 %v1133
  %vm1267 = vweird.f32 %v1261
  %vm1268 = vmor %vm1266, %vm1267
  %v1269 = vsel %vm1268, %v1261, %v1265
  %v1270 = vand.u32 2147483647, %v1133
  %vm1271 = vcmp.eq.f32.partialorder %v1270, 8.507059e+37
  %v1272 = vand.u32 %v1133, 2147483648
  %v1273 = vor.u32 1.1754944e-38, %v1272
  %v1274 = vsel %vm1271, %v1273, %v1269
  %v1275 = vmul.f32 1.0, %v1274
  %v1276 = vrcp.pop %v1134
  %v1277 = vmul.f32 %v1134, %v1276
  %v1278 = vsub.f32 1.0, %v1277
  %v1279 = vmul.f32 %v1276, %v1278
  %v1280 = vadd.f32 %v1276, %v1279
  %vm1281 = vweird.f32 %v1134
  %vm1282 = vweird.f32 %v1276
  %vm1283 = vmor %vm1281, %vm1282
  %v1284 = vsel %vm1283, %v1276, %v1280
  %v1285 = vand.u32 2147483647, %v1134
  %vm1286 = vcmp.eq.f32.partialorder %v1285, 8.507059e+37
  %v1287 = vand.u32 %v1134, 2147483648
  %v1288 = vor.u32 1.1754944e-38, %v1287
  %v1289 = vsel %vm1286, %v1288, %v1284
  %v1290 = vmul.f32 1.0, %v1289
  %v1291 = vrcp.pop %v1135
  %v1292 = vmul.f32 %v1135, %v1291
  %v1293 = vsub.f32 1.0, %v1292
  %v1294 = vmul.f32 %v1291, %v1293
  %v1295 = vadd.f32 %v1291, %v1294
  %vm1296 = vweird.f32 %v1135
  %vm1297 = vweird.f32 %v1291
  %vm1298 = vmor %vm1296, %vm1297
  %v1299 = vsel %vm1298, %v1291, %v1295
  %v1300 = vand.u32 2147483647, %v1135
  %vm1301 = vcmp.eq.f32.partialorder %v1300, 8.507059e+37
  %v1302 = vand.u32 %v1135, 2147483648
  %v1303 = vor.u32 1.1754944e-38, %v1302
  %v1304 = vsel %vm1301, %v1303, %v1299
  %v1305 = vmul.f32 1.0, %v1304
  %v1306 = vrcp.pop %v1136
  %v1307 = vmul.f32 %v1136, %v1306
  %v1308 = vsub.f32 1.0, %v1307
  %v1309 = vmul.f32 %v1306, %v1308
  %v1310 = vadd.f32 %v1306, %v1309
  %vm1311 = vweird.f32 %v1136
  %vm1312 = vweird.f32 %v1306
  %vm1313 = vmor %vm1311, %vm1312
  %v1314 = vsel %vm1313, %v1306, %v1310
  %v1315 = vand.u32 2147483647, %v1136
  %vm1316 = vcmp.eq.f32.partialorder %v1315, 8.507059e+37
  %v1317 = vand.u32 %v1136, 2147483648
  %v1318 = vor.u32 1.1754944e-38, %v1317
  %v1319 = vsel %vm1316, %v1318, %v1314
  %v1320 = vmul.f32 1.0, %v1319
  %v1321 = vrcp.pop %v1137
  %v1322 = vmul.f32 %v1137, %v1321
  %v1323 = vsub.f32 1.0, %v1322
  %v1324 = vmul.f32 %v1321, %v1323
  %v1325 = vadd.f32 %v1321, %v1324
  %vm1326 = vweird.f32 %v1137
  %vm1327 = vweird.f32 %v1321
  %vm1328 = vmor %vm1326, %vm1327
  %v1329 = vsel %vm1328, %v1321, %v1325
  %v1330 = vand.u32 2147483647, %v1137
  %vm1331 = vcmp.eq.f32.partialorder %v1330, 8.507059e+37
  %v1332 = vand.u32 %v1137, 2147483648
  %v1333 = vor.u32 1.1754944e-38, %v1332
  %v1334 = vsel %vm1331, %v1333, %v1329
  %v1335 = vmul.f32 1.0, %v1334
  %v1336 = vrcp.pop %v1138
  %v1337 = vmul.f32 %v1138, %v1336
  %v1338 = vsub.f32 1.0, %v1337
  %v1339 = vmul.f32 %v1336, %v1338
  %v1340 = vadd.f32 %v1336, %v1339
  %vm1341 = vweird.f32 %v1138
  %vm1342 = vweird.f32 %v1336
  %vm1343 = vmor %vm1341, %vm1342
  %v1344 = vsel %vm1343, %v1336, %v1340
  %v1345 = vand.u32 2147483647, %v1138
  %vm1346 = vcmp.eq.f32.partialorder %v1345, 8.507059e+37
  %v1347 = vand.u32 %v1138, 2147483648
  %v1348 = vor.u32 1.1754944e-38, %v1347
  %v1349 = vsel %vm1346, %v1348, %v1344
  %v1350 = vmul.f32 1.0, %v1349
  %v1351 = vrcp.pop %v1139
  %v1352 = vmul.f32 %v1139, %v1351
  %v1353 = vsub.f32 1.0, %v1352
  %v1354 = vmul.f32 %v1351, %v1353
  %v1355 = vadd.f32 %v1351, %v1354
  %vm1356 = vweird.f32 %v1139
  %vm1357 = vweird.f32 %v1351
  %vm1358 = vmor %vm1356, %vm1357
  %v1359 = vsel %vm1358, %v1351, %v1355
  %v1360 = vand.u32 2147483647, %v1139
  %vm1361 = vcmp.eq.f32.partialorder %v1360, 8.507059e+37
  %v1362 = vand.u32 %v1139, 2147483648
  %v1363 = vor.u32 1.1754944e-38, %v1362
  %v1364 = vsel %vm1361, %v1363, %v1359
  %v1365 = vmul.f32 1.0, %v1364
  %v1366 = vrcp.pop %v1140
  %v1367 = vmul.f32 %v1140, %v1366
  %v1368 = vsub.f32 1.0, %v1367
  %v1369 = vmul.f32 %v1366, %v1368
  %v1370 = vadd.f32 %v1366, %v1369
  %vm1371 = vweird.f32 %v1140
  %vm1372 = vweird.f32 %v1366
  %vm1373 = vmor %vm1371, %vm1372
  %v1374 = vsel %vm1373, %v1366, %v1370
  %v1375 = vand.u32 2147483647, %v1140
  %vm1376 = vcmp.eq.f32.partialorder %v1375, 8.507059e+37
  %v1377 = vand.u32 %v1140, 2147483648
  %v1378 = vor.u32 1.1754944e-38, %v1377
  %v1379 = vsel %vm1376, %v1378, %v1374
  %v1380 = vmul.f32 1.0, %v1379
  %v1381 = vmul.f32 %v1061, %v1155
  %v1382 = vmul.f32 %v1062, %v1170
  %v1383 = vmul.f32 %v1063, %v1185
  %v1384 = vmul.f32 %v1064, %v1200
  %v1385 = vmul.f32 %v1065, %v1215
  %v1386 = vmul.f32 %v1066, %v1230
  %v1387 = vmul.f32 %v1067, %v1245
  %v1388 = vmul.f32 %v1068, %v1260
  %v1389 = vmul.f32 %v1069, %v1275
  %v1390 = vmul.f32 %v1070, %v1290
  %v1391 = vmul.f32 %v1071, %v1305
  %v1392 = vmul.f32 %v1072, %v1320
  %v1393 = vmul.f32 %v1073, %v1335
  %v1394 = vmul.f32 %v1074, %v1350
  %v1395 = vmul.f32 %v1075, %v1365
  %v1396 = vmul.f32 %v1076, %v1380
  %v1397 = vpack.c.bf16 %v1385, %v1381
  %v1398 = vpack.c.bf16 %v1386, %v1382
  %v1399 = vpack.c.bf16 %v1387, %v1383
  %v1400 = vpack.c.bf16 %v1388, %v1384
  %v1401 = vpack.c.bf16 %v1393, %v1389
  %v1402 = vpack.c.bf16 %v1394, %v1390
  %v1403 = vpack.c.bf16 %v1395, %v1391
  %v1404 = vpack.c.bf16 %v1396, %v1392
  %v1405 = vld [vmem:[%s6] sm:$0xf]
  %v1406 = vld [vmem:[%s6 + $0x4] sm:$0xf]
  %v1407 = vld [vmem:[%s6 + $0x8] sm:$0xf]
  %v1408 = vld [vmem:[%s6 + $0xc] sm:$0xf]
  %v1409 = vld [vmem:[%s6 + $0x10] sm:$0xf]
  %v1410 = vld [vmem:[%s6 + $0x14] sm:$0xf]
  %v1411 = vld [vmem:[%s6 + $0x18] sm:$0xf]
  %v1412 = vld [vmem:[%s6 + $0x1c] sm:$0xf]
  %v1413 = vld [vmem:[%s7] sm:$0xff]
  %v1414 = vld [vmem:[%s7 + $0x8] sm:$0xff]
  %v1415 = vld [vmem:[%s7 + $0x10] sm:$0xff]
  %v1416 = vld [vmem:[%s7 + $0x18] sm:$0xff]
  %v1417 = vld [vmem:[%s7 + $0x20] sm:$0xff]
  %v1418 = vld [vmem:[%s7 + $0x28] sm:$0xff]
  %v1419 = vld [vmem:[%s7 + $0x30] sm:$0xff]
  %v1420 = vld [vmem:[%s7 + $0x38] sm:$0xff]
  %1422 = vset.pattern.permute.xlu0 0
  %1423 = vperm.xlu0 %1422, %v1413
  %v1424 = vpop.permute.xlu0 %1423
  %1427 = vset.pattern.permute.xlu0 0
  %1428 = vperm.xlu0 %1427, %v1414
  %v1429 = vpop.permute.xlu0 %1428
  %1432 = vset.pattern.permute.xlu0 0
  %1433 = vperm.xlu0 %1432, %v1415
  %v1434 = vpop.permute.xlu0 %1433
  %1437 = vset.pattern.permute.xlu0 0
  %1438 = vperm.xlu0 %1437, %v1416
  %v1439 = vpop.permute.xlu0 %1438
  %1442 = vset.pattern.permute.xlu0 0
  %1443 = vperm.xlu0 %1442, %v1417
  %v1444 = vpop.permute.xlu0 %1443
  %1447 = vset.pattern.permute.xlu0 0
  %1448 = vperm.xlu0 %1447, %v1418
  %v1449 = vpop.permute.xlu0 %1448
  %1452 = vset.pattern.permute.xlu0 0
  %1453 = vperm.xlu0 %1452, %v1419
  %v1454 = vpop.permute.xlu0 %1453
  %1457 = vset.pattern.permute.xlu0 0
  %1458 = vperm.xlu0 %1457, %v1420
  %v1459 = vpop.permute.xlu0 %1458
  %v1469 = vunpack.c.l.b16 %v1405
  %v1470 = vunpack.c.l.b16 %v1406
  %v1471 = vunpack.c.l.b16 %v1407
  %v1472 = vunpack.c.l.b16 %v1408
  %v1473 = vunpack.c.l.b16 %v1409
  %v1474 = vunpack.c.l.b16 %v1410
  %v1475 = vunpack.c.l.b16 %v1411
  %v1476 = vunpack.c.l.b16 %v1412
  %v1477 = vpack.c.b16 %v1470, %v1469
  %v1478 = vpack.c.b16 %v1472, %v1471
  %v1479 = vpack.c.b16 %v1474, %v1473
  %v1480 = vpack.c.b16 %v1476, %v1475
  %v1482 = vsel %vm124, %v1477, 0
  %v1485 = vsel %vm124, %v1478, 0
  %v1488 = vsel %vm124, %v1479, 0
  %v1491 = vsel %vm124, %v1480, 0
  %1493 = vmatpush.bf16.msra.mxu0 0
  %1494 = vmatpush.bf16.msra.mxu0 0
  %1495 = vmatpush.bf16.msra.mxu0 0
  %1496 = vmatpush.bf16.msra.mxu0 0
  %1497 = vmatpush.bf16.msra.mxu0 0
  %1498 = vmatpush.bf16.msra.mxu0 0
  %1499 = vmatpush.bf16.msra.mxu0 %v1401
  %1500 = vmatpush.bf16.msra.mxu0 %v1397
  %1501 = vmatmul.bf16.gmra.mxu0 %v1482
  %v1502 = vpop.f32.mrf.mxu0
  %v1503 = vadd.f32 %v1424, %v1502
  %v1504 = vpop.f32.mrf.mxu0
  %v1505 = vadd.f32 %v1429, %v1504
  %1506 = vmatmul.bf16.gmra.mxu0 %v1485
  %v1507 = vpop.f32.mrf.mxu0
  %v1508 = vadd.f32 %v1434, %v1507
  %v1509 = vpop.f32.mrf.mxu0
  %v1510 = vadd.f32 %v1439, %v1509
  %1511 = vmatmul.bf16.gmra.mxu0 %v1488
  %v1512 = vpop.f32.mrf.mxu0
  %v1513 = vadd.f32 %v1444, %v1512
  %v1514 = vpop.f32.mrf.mxu0
  %v1515 = vadd.f32 %v1449, %v1514
  %1516 = vmatmul.bf16.gmra.mxu0 %v1491
  %v1517 = vpop.f32.mrf.mxu0
  %v1518 = vadd.f32 %v1454, %v1517
  %v1519 = vpop.f32.mrf.mxu0
  %v1520 = vadd.f32 %v1459, %v1519
  %1521 = vdwg.mxu0
  %1522 = vmatpush.bf16.msra.mxu0 0
  %1523 = vmatpush.bf16.msra.mxu0 0
  %1524 = vmatpush.bf16.msra.mxu0 0
  %1525 = vmatpush.bf16.msra.mxu0 0
  %1526 = vmatpush.bf16.msra.mxu0 0
  %1527 = vmatpush.bf16.msra.mxu0 0
  %1528 = vmatpush.bf16.msra.mxu0 %v1402
  %1529 = vmatpush.bf16.msra.mxu0 %v1398
  %1530 = vmatmul.bf16.gmra.mxu0 %v1482
  %v1531 = vpop.f32.mrf.mxu0
  %v1532 = vadd.f32 %v1424, %v1531
  %v1533 = vpop.f32.mrf.mxu0
  %v1534 = vadd.f32 %v1429, %v1533
  %1535 = vmatmul.bf16.gmra.mxu0 %v1485
  %v1536 = vpop.f32.mrf.mxu0
  %v1537 = vadd.f32 %v1434, %v1536
  %v1538 = vpop.f32.mrf.mxu0
  %v1539 = vadd.f32 %v1439, %v1538
  %1540 = vmatmul.bf16.gmra.mxu0 %v1488
  %v1541 = vpop.f32.mrf.mxu0
  %v1542 = vadd.f32 %v1444, %v1541
  %v1543 = vpop.f32.mrf.mxu0
  %v1544 = vadd.f32 %v1449, %v1543
  %1545 = vmatmul.bf16.gmra.mxu0 %v1491
  %v1546 = vpop.f32.mrf.mxu0
  %v1547 = vadd.f32 %v1454, %v1546
  %v1548 = vpop.f32.mrf.mxu0
  %v1549 = vadd.f32 %v1459, %v1548
  %1550 = vdwg.mxu0
  %1551 = vmatpush.bf16.msra.mxu0 0
  %1552 = vmatpush.bf16.msra.mxu0 0
  %1553 = vmatpush.bf16.msra.mxu0 0
  %1554 = vmatpush.bf16.msra.mxu0 0
  %1555 = vmatpush.bf16.msra.mxu0 0
  %1556 = vmatpush.bf16.msra.mxu0 0
  %1557 = vmatpush.bf16.msra.mxu0 %v1403
  %1558 = vmatpush.bf16.msra.mxu0 %v1399
  %1559 = vmatmul.bf16.gmra.mxu0 %v1482
  %v1560 = vpop.f32.mrf.mxu0
  %v1561 = vadd.f32 %v1424, %v1560
  %v1562 = vpop.f32.mrf.mxu0
  %v1563 = vadd.f32 %v1429, %v1562
  %1564 = vmatmul.bf16.gmra.mxu0 %v1485
  %v1565 = vpop.f32.mrf.mxu0
  %v1566 = vadd.f32 %v1434, %v1565
  %v1567 = vpop.f32.mrf.mxu0
  %v1568 = vadd.f32 %v1439, %v1567
  %1569 = vmatmul.bf16.gmra.mxu0 %v1488
  %v1570 = vpop.f32.mrf.mxu0
  %v1571 = vadd.f32 %v1444, %v1570
  %v1572 = vpop.f32.mrf.mxu0
  %v1573 = vadd.f32 %v1449, %v1572
  %1574 = vmatmul.bf16.gmra.mxu0 %v1491
  %v1575 = vpop.f32.mrf.mxu0
  %v1576 = vadd.f32 %v1454, %v1575
  %v1577 = vpop.f32.mrf.mxu0
  %v1578 = vadd.f32 %v1459, %v1577
  %1579 = vdwg.mxu0
  %1580 = vmatpush.bf16.msra.mxu0 0
  %1581 = vmatpush.bf16.msra.mxu0 0
  %1582 = vmatpush.bf16.msra.mxu0 0
  %1583 = vmatpush.bf16.msra.mxu0 0
  %1584 = vmatpush.bf16.msra.mxu0 0
  %1585 = vmatpush.bf16.msra.mxu0 0
  %1586 = vmatpush.bf16.msra.mxu0 %v1404
  %1587 = vmatpush.bf16.msra.mxu0 %v1400
  %1588 = vmatmul.bf16.gmra.mxu0 %v1482
  %v1589 = vpop.f32.mrf.mxu0
  %v1590 = vadd.f32 %v1424, %v1589
  %v1591 = vpop.f32.mrf.mxu0
  %v1592 = vadd.f32 %v1429, %v1591
  %1593 = vmatmul.bf16.gmra.mxu0 %v1485
  %v1594 = vpop.f32.mrf.mxu0
  %v1595 = vadd.f32 %v1434, %v1594
  %v1596 = vpop.f32.mrf.mxu0
  %v1597 = vadd.f32 %v1439, %v1596
  %1598 = vmatmul.bf16.gmra.mxu0 %v1488
  %v1599 = vpop.f32.mrf.mxu0
  %v1600 = vadd.f32 %v1444, %v1599
  %v1601 = vpop.f32.mrf.mxu0
  %v1602 = vadd.f32 %v1449, %v1601
  %1603 = vmatmul.bf16.gmra.mxu0 %v1491
  %v1604 = vpop.f32.mrf.mxu0
  %v1605 = vadd.f32 %v1454, %v1604
  %v1606 = vpop.f32.mrf.mxu0
  %v1607 = vadd.f32 %v1459, %v1606
  %1608 = vdwg.mxu0
  %v1609 = vadd.f32 %v207, %v1503
  %v1610 = vadd.f32 %v208, %v1532
  %v1611 = vadd.f32 %v209, %v1561
  %v1612 = vadd.f32 %v210, %v1590
  %v1613 = vadd.f32 %v211, %v1505
  %v1614 = vadd.f32 %v212, %v1534
  %v1615 = vadd.f32 %v213, %v1563
  %v1616 = vadd.f32 %v214, %v1592
  %v1617 = vadd.f32 %v215, %v1508
  %v1618 = vadd.f32 %v216, %v1537
  %v1619 = vadd.f32 %v217, %v1566
  %v1620 = vadd.f32 %v218, %v1595
  %v1621 = vadd.f32 %v219, %v1510
  %v1622 = vadd.f32 %v220, %v1539
  %v1623 = vadd.f32 %v221, %v1568
  %v1624 = vadd.f32 %v222, %v1597
  %v1625 = vmul.f32 %v1609, %v58
  %v1626 = vmul.f32 %v1610, %v59
  %v1627 = vmul.f32 %v1611, %v60
  %v1628 = vmul.f32 %v1612, %v61
  %v1629 = vmul.f32 %v1613, %v58
  %v1630 = vmul.f32 %v1614, %v59
  %v1631 = vmul.f32 %v1615, %v60
  %v1632 = vmul.f32 %v1616, %v61
  %v1633 = vmul.f32 %v1617, %v58
  %v1634 = vmul.f32 %v1618, %v59
  %v1635 = vmul.f32 %v1619, %v60
  %v1636 = vmul.f32 %v1620, %v61
  %v1637 = vmul.f32 %v1621, %v58
  %v1638 = vmul.f32 %v1622, %v59
  %v1639 = vmul.f32 %v1623, %v60
  %v1640 = vmul.f32 %v1624, %v61
  %v1641 = vadd.f32 %v1513, 0.0
  %v1642 = vadd.f32 %v1542, 0.0
  %v1643 = vadd.f32 %v1571, 0.0
  %v1644 = vadd.f32 %v1600, 0.0
  %v1645 = vadd.f32 %v1515, 0.0
  %v1646 = vadd.f32 %v1544, 0.0
  %v1647 = vadd.f32 %v1573, 0.0
  %v1648 = vadd.f32 %v1602, 0.0
  %v1649 = vadd.f32 %v1518, 0.0
  %v1650 = vadd.f32 %v1547, 0.0
  %v1651 = vadd.f32 %v1576, 0.0
  %v1652 = vadd.f32 %v1605, 0.0
  %v1653 = vadd.f32 %v1520, 0.0
  %v1654 = vadd.f32 %v1549, 0.0
  %v1655 = vadd.f32 %v1578, 0.0
  %v1656 = vadd.f32 %v1607, 0.0
  %1657 = vrot.lane.b32.xlu0 %v1625, 2
  %v1658 = vpop.permute.xlu0 %1657
  %1659 = vrot.lane.b32.xlu0 %v1629, 2
  %v1660 = vpop.permute.xlu0 %1659
  %1661 = vrot.lane.b32.xlu0 %v1633, 2
  %v1662 = vpop.permute.xlu0 %1661
  %1663 = vrot.lane.b32.xlu0 %v1637, 2
  %v1664 = vpop.permute.xlu0 %1663
  %1665 = vrot.lane.b32.xlu0 %v1626, 2
  %v1666 = vpop.permute.xlu0 %1665
  %1667 = vrot.lane.b32.xlu0 %v1630, 2
  %v1668 = vpop.permute.xlu0 %1667
  %1669 = vrot.lane.b32.xlu0 %v1634, 2
  %v1670 = vpop.permute.xlu0 %1669
  %1671 = vrot.lane.b32.xlu0 %v1638, 2
  %v1672 = vpop.permute.xlu0 %1671
  %1673 = vrot.lane.b32.xlu0 %v1627, 2
  %v1674 = vpop.permute.xlu0 %1673
  %1675 = vrot.lane.b32.xlu0 %v1631, 2
  %v1676 = vpop.permute.xlu0 %1675
  %1677 = vrot.lane.b32.xlu0 %v1635, 2
  %v1678 = vpop.permute.xlu0 %1677
  %1679 = vrot.lane.b32.xlu0 %v1639, 2
  %v1680 = vpop.permute.xlu0 %1679
  %1681 = vrot.lane.b32.xlu0 %v1628, 2
  %v1682 = vpop.permute.xlu0 %1681
  %1683 = vrot.lane.b32.xlu0 %v1632, 2
  %v1684 = vpop.permute.xlu0 %1683
  %1685 = vrot.lane.b32.xlu0 %v1636, 2
  %v1686 = vpop.permute.xlu0 %1685
  %1687 = vrot.lane.b32.xlu0 %v1640, 2
  %v1688 = vpop.permute.xlu0 %1687
  %v1689 = vsel %vm257, %v1674, %v1682
  %v1690 = vsel %vm257, %v1676, %v1684
  %v1691 = vsel %vm257, %v1678, %v1686
  %v1692 = vsel %vm257, %v1680, %v1688
  %v1693 = vsel %vm257, %v1666, %v1674
  %v1694 = vsel %vm257, %v1668, %v1676
  %v1695 = vsel %vm257, %v1670, %v1678
  %v1696 = vsel %vm257, %v1672, %v1680
  %v1697 = vsel %vm257, %v1658, %v1666
  %v1698 = vsel %vm257, %v1660, %v1668
  %v1699 = vsel %vm257, %v1662, %v1670
  %v1700 = vsel %vm257, %v1664, %v1672
  %v1701 = vsel %vm257, %v1682, %v1658
  %v1702 = vsel %vm257, %v1684, %v1660
  %v1703 = vsel %vm257, %v1686, %v1662
  %v1704 = vsel %vm257, %v1688, %v1664
  %v1705 = vpack.c.bf16 %v1697, %v1701
  %v1706 = vpack.c.bf16 %v1689, %v1693
  %v1707 = vpack.c.bf16 %v1698, %v1702
  %v1708 = vpack.c.bf16 %v1690, %v1694
  %v1709 = vpack.c.bf16 %v1699, %v1703
  %v1710 = vpack.c.bf16 %v1691, %v1695
  %v1711 = vpack.c.bf16 %v1700, %v1704
  %v1712 = vpack.c.bf16 %v1692, %v1696
  %1713 = vst [vmem:[#allocation2] sm:$0xff] %v1705
  %1714 = vst [vmem:[#allocation2 + $0x8] sm:$0xff] %v1706
  %1715 = vst [vmem:[#allocation2 + $0x10] sm:$0xff] %v1707
  %1716 = vst [vmem:[#allocation2 + $0x18] sm:$0xff] %v1708
  %1717 = vst [vmem:[#allocation2 + $0x20] sm:$0xff] %v1709
  %1718 = vst [vmem:[#allocation2 + $0x28] sm:$0xff] %v1710
  %1719 = vst [vmem:[#allocation2 + $0x30] sm:$0xff] %v1711
  %1720 = vst [vmem:[#allocation2 + $0x38] sm:$0xff] %v1712
  %1721 = vrot.lane.b32.xlu0 %v1625, 1
  %v1722 = vpop.permute.xlu0 %1721
  %1723 = vrot.lane.b32.xlu0 %v1629, 1
  %v1724 = vpop.permute.xlu0 %1723
  %1725 = vrot.lane.b32.xlu0 %v1633, 1
  %v1726 = vpop.permute.xlu0 %1725
  %1727 = vrot.lane.b32.xlu0 %v1637, 1
  %v1728 = vpop.permute.xlu0 %1727
  %1729 = vrot.lane.b32.xlu0 %v1626, 1
  %v1730 = vpop.permute.xlu0 %1729
  %1731 = vrot.lane.b32.xlu0 %v1630, 1
  %v1732 = vpop.permute.xlu0 %1731
  %1733 = vrot.lane.b32.xlu0 %v1634, 1
  %v1734 = vpop.permute.xlu0 %1733
  %1735 = vrot.lane.b32.xlu0 %v1638, 1
  %v1736 = vpop.permute.xlu0 %1735
  %1737 = vrot.lane.b32.xlu0 %v1627, 1
  %v1738 = vpop.permute.xlu0 %1737
  %1739 = vrot.lane.b32.xlu0 %v1631, 1
  %v1740 = vpop.permute.xlu0 %1739
  %1741 = vrot.lane.b32.xlu0 %v1635, 1
  %v1742 = vpop.permute.xlu0 %1741
  %1743 = vrot.lane.b32.xlu0 %v1639, 1
  %v1744 = vpop.permute.xlu0 %1743
  %1745 = vrot.lane.b32.xlu0 %v1628, 1
  %v1746 = vpop.permute.xlu0 %1745
  %1747 = vrot.lane.b32.xlu0 %v1632, 1
  %v1748 = vpop.permute.xlu0 %1747
  %1749 = vrot.lane.b32.xlu0 %v1636, 1
  %v1750 = vpop.permute.xlu0 %1749
  %1751 = vrot.lane.b32.xlu0 %v1640, 1
  %v1752 = vpop.permute.xlu0 %1751
  %v1753 = vsel %vm322, %v1738, %v1746
  %v1754 = vsel %vm322, %v1740, %v1748
  %v1755 = vsel %vm322, %v1742, %v1750
  %v1756 = vsel %vm322, %v1744, %v1752
  %v1757 = vsel %vm322, %v1730, %v1738
  %v1758 = vsel %vm322, %v1732, %v1740
  %v1759 = vsel %vm322, %v1734, %v1742
  %v1760 = vsel %vm322, %v1736, %v1744
  %v1761 = vsel %vm322, %v1722, %v1730
  %v1762 = vsel %vm322, %v1724, %v1732
  %v1763 = vsel %vm322, %v1726, %v1734
  %v1764 = vsel %vm322, %v1728, %v1736
  %v1765 = vsel %vm322, %v1746, %v1722
  %v1766 = vsel %vm322, %v1748, %v1724
  %v1767 = vsel %vm322, %v1750, %v1726
  %v1768 = vsel %vm322, %v1752, %v1728
  %v1769 = vpack.c.bf16 %v1761, %v1765
  %v1770 = vpack.c.bf16 %v1753, %v1757
  %v1771 = vpack.c.bf16 %v1762, %v1766
  %v1772 = vpack.c.bf16 %v1754, %v1758
  %v1773 = vpack.c.bf16 %v1763, %v1767
  %v1774 = vpack.c.bf16 %v1755, %v1759
  %v1775 = vpack.c.bf16 %v1764, %v1768
  %v1776 = vpack.c.bf16 %v1756, %v1760
  %1777 = vst [vmem:[#allocation2 + $0x40] sm:$0xff] %v1769
  %1778 = vst [vmem:[#allocation2 + $0x48] sm:$0xff] %v1770
  %1779 = vst [vmem:[#allocation2 + $0x50] sm:$0xff] %v1771
  %1780 = vst [vmem:[#allocation2 + $0x58] sm:$0xff] %v1772
  %1781 = vst [vmem:[#allocation2 + $0x60] sm:$0xff] %v1773
  %1782 = vst [vmem:[#allocation2 + $0x68] sm:$0xff] %v1774
  %1783 = vst [vmem:[#allocation2 + $0x70] sm:$0xff] %v1775
  %1784 = vst [vmem:[#allocation2 + $0x78] sm:$0xff] %v1776
  %v1785 = vpack.c.bf16 %v1626, %v1625
  %v1786 = vpack.c.bf16 %v1628, %v1627
  %v1787 = vpack.c.bf16 %v1630, %v1629
  %v1788 = vpack.c.bf16 %v1632, %v1631
  %v1789 = vpack.c.bf16 %v1634, %v1633
  %v1790 = vpack.c.bf16 %v1636, %v1635
  %v1791 = vpack.c.bf16 %v1638, %v1637
  %v1792 = vpack.c.bf16 %v1640, %v1639
  %1793 = vst [vmem:[#allocation2 + $0x80] sm:$0xff] %v1785
  %1794 = vst [vmem:[#allocation2 + $0x88] sm:$0xff] %v1786
  %1795 = vst [vmem:[#allocation2 + $0x90] sm:$0xff] %v1787
  %1796 = vst [vmem:[#allocation2 + $0x98] sm:$0xff] %v1788
  %1797 = vst [vmem:[#allocation2 + $0xa0] sm:$0xff] %v1789
  %1798 = vst [vmem:[#allocation2 + $0xa8] sm:$0xff] %v1790
  %1799 = vst [vmem:[#allocation2 + $0xb0] sm:$0xff] %v1791
  %1800 = vst [vmem:[#allocation2 + $0xb8] sm:$0xff] %v1792
  %1801 = vrot.lane.b32.xlu0 %v1625, 127
  %v1802 = vpop.permute.xlu0 %1801
  %1803 = vrot.lane.b32.xlu0 %v1629, 127
  %v1804 = vpop.permute.xlu0 %1803
  %1805 = vrot.lane.b32.xlu0 %v1633, 127
  %v1806 = vpop.permute.xlu0 %1805
  %1807 = vrot.lane.b32.xlu0 %v1637, 127
  %v1808 = vpop.permute.xlu0 %1807
  %1809 = vrot.lane.b32.xlu0 %v1626, 127
  %v1810 = vpop.permute.xlu0 %1809
  %1811 = vrot.lane.b32.xlu0 %v1630, 127
  %v1812 = vpop.permute.xlu0 %1811
  %1813 = vrot.lane.b32.xlu0 %v1634, 127
  %v1814 = vpop.permute.xlu0 %1813
  %1815 = vrot.lane.b32.xlu0 %v1638, 127
  %v1816 = vpop.permute.xlu0 %1815
  %1817 = vrot.lane.b32.xlu0 %v1627, 127
  %v1818 = vpop.permute.xlu0 %1817
  %1819 = vrot.lane.b32.xlu0 %v1631, 127
  %v1820 = vpop.permute.xlu0 %1819
  %1821 = vrot.lane.b32.xlu0 %v1635, 127
  %v1822 = vpop.permute.xlu0 %1821
  %1823 = vrot.lane.b32.xlu0 %v1639, 127
  %v1824 = vpop.permute.xlu0 %1823
  %1825 = vrot.lane.b32.xlu0 %v1628, 127
  %v1826 = vpop.permute.xlu0 %1825
  %1827 = vrot.lane.b32.xlu0 %v1632, 127
  %v1828 = vpop.permute.xlu0 %1827
  %1829 = vrot.lane.b32.xlu0 %v1636, 127
  %v1830 = vpop.permute.xlu0 %1829
  %1831 = vrot.lane.b32.xlu0 %v1640, 127
  %v1832 = vpop.permute.xlu0 %1831
  %v1833 = vsel %vm403, %v1818, %v1826
  %v1834 = vsel %vm403, %v1820, %v1828
  %v1835 = vsel %vm403, %v1822, %v1830
  %v1836 = vsel %vm403, %v1824, %v1832
  %v1837 = vsel %vm403, %v1810, %v1818
  %v1838 = vsel %vm403, %v1812, %v1820
  %v1839 = vsel %vm403, %v1814, %v1822
  %v1840 = vsel %vm403, %v1816, %v1824
  %v1841 = vsel %vm403, %v1802, %v1810
  %v1842 = vsel %vm403, %v1804, %v1812
  %v1843 = vsel %vm403, %v1806, %v1814
  %v1844 = vsel %vm403, %v1808, %v1816
  %v1845 = vsel %vm403, %v1826, %v1802
  %v1846 = vsel %vm403, %v1828, %v1804
  %v1847 = vsel %vm403, %v1830, %v1806
  %v1848 = vsel %vm403, %v1832, %v1808
  %v1849 = vpack.c.bf16 %v1837, %v1841
  %v1850 = vpack.c.bf16 %v1845, %v1833
  %v1851 = vpack.c.bf16 %v1838, %v1842
  %v1852 = vpack.c.bf16 %v1846, %v1834
  %v1853 = vpack.c.bf16 %v1839, %v1843
  %v1854 = vpack.c.bf16 %v1847, %v1835
  %v1855 = vpack.c.bf16 %v1840, %v1844
  %v1856 = vpack.c.bf16 %v1848, %v1836
  %1857 = vst [vmem:[#allocation2 + $0xc0] sm:$0xff] %v1849
  %1858 = vst [vmem:[#allocation2 + $0xc8] sm:$0xff] %v1850
  %1859 = vst [vmem:[#allocation2 + $0xd0] sm:$0xff] %v1851
  %1860 = vst [vmem:[#allocation2 + $0xd8] sm:$0xff] %v1852
  %1861 = vst [vmem:[#allocation2 + $0xe0] sm:$0xff] %v1853
  %1862 = vst [vmem:[#allocation2 + $0xe8] sm:$0xff] %v1854
  %1863 = vst [vmem:[#allocation2 + $0xf0] sm:$0xff] %v1855
  %1864 = vst [vmem:[#allocation2 + $0xf8] sm:$0xff] %v1856
  %1865 = vrot.lane.b32.xlu0 %v1625, 126
  %v1866 = vpop.permute.xlu0 %1865
  %1867 = vrot.lane.b32.xlu0 %v1629, 126
  %v1868 = vpop.permute.xlu0 %1867
  %1869 = vrot.lane.b32.xlu0 %v1633, 126
  %v1870 = vpop.permute.xlu0 %1869
  %1871 = vrot.lane.b32.xlu0 %v1637, 126
  %v1872 = vpop.permute.xlu0 %1871
  %1873 = vrot.lane.b32.xlu0 %v1626, 126
  %v1874 = vpop.permute.xlu0 %1873
  %1875 = vrot.lane.b32.xlu0 %v1630, 126
  %v1876 = vpop.permute.xlu0 %1875
  %1877 = vrot.lane.b32.xlu0 %v1634, 126
  %v1878 = vpop.permute.xlu0 %1877
  %1879 = vrot.lane.b32.xlu0 %v1638, 126
  %v1880 = vpop.permute.xlu0 %1879
  %1881 = vrot.lane.b32.xlu0 %v1627, 126
  %v1882 = vpop.permute.xlu0 %1881
  %1883 = vrot.lane.b32.xlu0 %v1631, 126
  %v1884 = vpop.permute.xlu0 %1883
  %1885 = vrot.lane.b32.xlu0 %v1635, 126
  %v1886 = vpop.permute.xlu0 %1885
  %1887 = vrot.lane.b32.xlu0 %v1639, 126
  %v1888 = vpop.permute.xlu0 %1887
  %1889 = vrot.lane.b32.xlu0 %v1628, 126
  %v1890 = vpop.permute.xlu0 %1889
  %1891 = vrot.lane.b32.xlu0 %v1632, 126
  %v1892 = vpop.permute.xlu0 %1891
  %1893 = vrot.lane.b32.xlu0 %v1636, 126
  %v1894 = vpop.permute.xlu0 %1893
  %1895 = vrot.lane.b32.xlu0 %v1640, 126
  %v1896 = vpop.permute.xlu0 %1895
  %v1897 = vsel %vm468, %v1882, %v1890
  %v1898 = vsel %vm468, %v1884, %v1892
  %v1899 = vsel %vm468, %v1886, %v1894
  %v1900 = vsel %vm468, %v1888, %v1896
  %v1901 = vsel %vm468, %v1874, %v1882
  %v1902 = vsel %vm468, %v1876, %v1884
  %v1903 = vsel %vm468, %v1878, %v1886
  %v1904 = vsel %vm468, %v1880, %v1888
  %v1905 = vsel %vm468, %v1866, %v1874
  %v1906 = vsel %vm468, %v1868, %v1876
  %v1907 = vsel %vm468, %v1870, %v1878
  %v1908 = vsel %vm468, %v1872, %v1880
  %v1909 = vsel %vm468, %v1890, %v1866
  %v1910 = vsel %vm468, %v1892, %v1868
  %v1911 = vsel %vm468, %v1894, %v1870
  %v1912 = vsel %vm468, %v1896, %v1872
  %v1913 = vpack.c.bf16 %v1901, %v1905
  %v1914 = vpack.c.bf16 %v1909, %v1897
  %v1915 = vpack.c.bf16 %v1902, %v1906
  %v1916 = vpack.c.bf16 %v1910, %v1898
  %v1917 = vpack.c.bf16 %v1903, %v1907
  %v1918 = vpack.c.bf16 %v1911, %v1899
  %v1919 = vpack.c.bf16 %v1904, %v1908
  %v1920 = vpack.c.bf16 %v1912, %v1900
  %1921 = vst [vmem:[#allocation2 + $0x100] sm:$0xff] %v1913
  %1922 = vst [vmem:[#allocation2 + $0x108] sm:$0xff] %v1914
  %1923 = vst [vmem:[#allocation2 + $0x110] sm:$0xff] %v1915
  %1924 = vst [vmem:[#allocation2 + $0x118] sm:$0xff] %v1916
  %1925 = vst [vmem:[#allocation2 + $0x120] sm:$0xff] %v1917
  %1926 = vst [vmem:[#allocation2 + $0x128] sm:$0xff] %v1918
  %1927 = vst [vmem:[#allocation2 + $0x130] sm:$0xff] %v1919
  %1928 = vst [vmem:[#allocation2 + $0x138] sm:$0xff] %v1920
  %s1929 = scalar_lea.vmem %s5, 64
  %v1930 = vld [vmem:[%s1929] sm:$0xff]
  %v1931 = vld [vmem:[%s1929 + $0x8] sm:$0xff]
  %v1932 = vld [vmem:[%s1929 + $0x10] sm:$0xff]
  %v1933 = vld [vmem:[%s1929 + $0x18] sm:$0xff]
  %v1934 = vld [vmem:[%s1929 + $0x20] sm:$0xff]
  %v1935 = vld [vmem:[%s1929 + $0x28] sm:$0xff]
  %v1936 = vld [vmem:[%s1929 + $0x30] sm:$0xff]
  %v1937 = vld [vmem:[%s1929 + $0x38] sm:$0xff]
  %v1938 = vld [vmem:[#allocation2] sm:$0xff]
  %v1939 = vld [vmem:[#allocation2 + $0x8] sm:$0xff]
  %v1940 = vld [vmem:[#allocation2 + $0x10] sm:$0xff]
  %v1941 = vld [vmem:[#allocation2 + $0x18] sm:$0xff]
  %v1942 = vld [vmem:[#allocation2 + $0x20] sm:$0xff]
  %v1943 = vld [vmem:[#allocation2 + $0x28] sm:$0xff]
  %v1944 = vld [vmem:[#allocation2 + $0x30] sm:$0xff]
  %v1945 = vld [vmem:[#allocation2 + $0x38] sm:$0xff]
  %v1946 = vld [vmem:[#allocation2 + $0x40] sm:$0xff]
  %v1947 = vld [vmem:[#allocation2 + $0x48] sm:$0xff]
  %v1948 = vld [vmem:[#allocation2 + $0x50] sm:$0xff]
  %v1949 = vld [vmem:[#allocation2 + $0x58] sm:$0xff]
  %v1950 = vld [vmem:[#allocation2 + $0x60] sm:$0xff]
  %v1951 = vld [vmem:[#allocation2 + $0x68] sm:$0xff]
  %v1952 = vld [vmem:[#allocation2 + $0x70] sm:$0xff]
  %v1953 = vld [vmem:[#allocation2 + $0x78] sm:$0xff]
  %v1954 = vld [vmem:[#allocation2 + $0x80] sm:$0xff]
  %v1955 = vld [vmem:[#allocation2 + $0x88] sm:$0xff]
  %v1956 = vld [vmem:[#allocation2 + $0x90] sm:$0xff]
  %v1957 = vld [vmem:[#allocation2 + $0x98] sm:$0xff]
  %v1958 = vld [vmem:[#allocation2 + $0xa0] sm:$0xff]
  %v1959 = vld [vmem:[#allocation2 + $0xa8] sm:$0xff]
  %v1960 = vld [vmem:[#allocation2 + $0xb0] sm:$0xff]
  %v1961 = vld [vmem:[#allocation2 + $0xb8] sm:$0xff]
  %v1962 = vld [vmem:[#allocation2 + $0xc0] sm:$0xff]
  %v1963 = vld [vmem:[#allocation2 + $0xc8] sm:$0xff]
  %v1964 = vld [vmem:[#allocation2 + $0xd0] sm:$0xff]
  %v1965 = vld [vmem:[#allocation2 + $0xd8] sm:$0xff]
  %v1966 = vld [vmem:[#allocation2 + $0xe0] sm:$0xff]
  %v1967 = vld [vmem:[#allocation2 + $0xe8] sm:$0xff]
  %v1968 = vld [vmem:[#allocation2 + $0xf0] sm:$0xff]
  %v1969 = vld [vmem:[#allocation2 + $0xf8] sm:$0xff]
  %v1970 = vld [vmem:[#allocation2 + $0x100] sm:$0xff]
  %v1971 = vld [vmem:[#allocation2 + $0x108] sm:$0xff]
  %v1972 = vld [vmem:[#allocation2 + $0x110] sm:$0xff]
  %v1973 = vld [vmem:[#allocation2 + $0x118] sm:$0xff]
  %v1974 = vld [vmem:[#allocation2 + $0x120] sm:$0xff]
  %v1975 = vld [vmem:[#allocation2 + $0x128] sm:$0xff]
  %v1976 = vld [vmem:[#allocation2 + $0x130] sm:$0xff]
  %v1977 = vld [vmem:[#allocation2 + $0x138] sm:$0xff]
  %s1978 = scalar_lea.vmem %s2, 256
  %v1979 = vld [vmem:[%s1978] sm:$0xff]
  %v1980 = vld [vmem:[%s1978 + $0x8] sm:$0xff]
  %v1981 = vld [vmem:[%s1978 + $0x10] sm:$0xff]
  %v1982 = vld [vmem:[%s1978 + $0x18] sm:$0xff]
  %v1983 = vld [vmem:[%s1978 + $0x20] sm:$0xff]
  %v1984 = vld [vmem:[%s1978 + $0x28] sm:$0xff]
  %v1985 = vld [vmem:[%s1978 + $0x30] sm:$0xff]
  %v1986 = vld [vmem:[%s1978 + $0x38] sm:$0xff]
  %v1987 = vld [vmem:[%s1978 + $0x40] sm:$0xff]
  %v1988 = vld [vmem:[%s1978 + $0x48] sm:$0xff]
  %v1989 = vld [vmem:[%s1978 + $0x50] sm:$0xff]
  %v1990 = vld [vmem:[%s1978 + $0x58] sm:$0xff]
  %v1991 = vld [vmem:[%s1978 + $0x60] sm:$0xff]
  %v1992 = vld [vmem:[%s1978 + $0x68] sm:$0xff]
  %v1993 = vld [vmem:[%s1978 + $0x70] sm:$0xff]
  %v1994 = vld [vmem:[%s1978 + $0x78] sm:$0xff]
  %v1995 = vld [vmem:[%s1978 + $0x80] sm:$0xff]
  %v1996 = vld [vmem:[%s1978 + $0x88] sm:$0xff]
  %v1997 = vld [vmem:[%s1978 + $0x90] sm:$0xff]
  %v1998 = vld [vmem:[%s1978 + $0x98] sm:$0xff]
  %v1999 = vld [vmem:[%s1978 + $0xa0] sm:$0xff]
  %v2000 = vld [vmem:[%s1978 + $0xa8] sm:$0xff]
  %v2001 = vld [vmem:[%s1978 + $0xb0] sm:$0xff]
  %v2002 = vld [vmem:[%s1978 + $0xb8] sm:$0xff]
  %v2003 = vld [vmem:[%s1978 + $0xc0] sm:$0xff]
  %v2004 = vld [vmem:[%s1978 + $0xc8] sm:$0xff]
  %v2005 = vld [vmem:[%s1978 + $0xd0] sm:$0xff]
  %v2006 = vld [vmem:[%s1978 + $0xd8] sm:$0xff]
  %v2007 = vld [vmem:[%s1978 + $0xe0] sm:$0xff]
  %v2008 = vld [vmem:[%s1978 + $0xe8] sm:$0xff]
  %v2009 = vld [vmem:[%s1978 + $0xf0] sm:$0xff]
  %v2010 = vld [vmem:[%s1978 + $0xf8] sm:$0xff]
  %v2019 = vunpack.c.l.b16 %v1930
  %v2020 = vunpack.c.h.b16 %v1930
  %v2021 = vunpack.c.l.b16 %v1931
  %v2022 = vunpack.c.h.b16 %v1931
  %v2023 = vunpack.c.l.b16 %v1932
  %v2024 = vunpack.c.h.b16 %v1932
  %v2025 = vunpack.c.l.b16 %v1933
  %v2026 = vunpack.c.h.b16 %v1933
  %v2027 = vunpack.c.l.b16 %v1934
  %v2028 = vunpack.c.h.b16 %v1934
  %v2029 = vunpack.c.l.b16 %v1935
  %v2030 = vunpack.c.h.b16 %v1935
  %v2031 = vunpack.c.l.b16 %v1936
  %v2032 = vunpack.c.h.b16 %v1936
  %v2033 = vunpack.c.l.b16 %v1937
  %v2034 = vunpack.c.h.b16 %v1937
  %v2035 = vpack.c.b16 %v2021, %v2019
  %v2036 = vpack.c.b16 %v2022, %v2020
  %v2037 = vpack.c.b16 %v2025, %v2023
  %v2038 = vpack.c.b16 %v2026, %v2024
  %v2039 = vpack.c.b16 %v2029, %v2027
  %v2040 = vpack.c.b16 %v2030, %v2028
  %v2041 = vpack.c.b16 %v2033, %v2031
  %v2042 = vpack.c.b16 %v2034, %v2032
  %v2087 = vunpack.c.l.b16 %v1938
  %v2088 = vunpack.c.h.b16 %v1938
  %v2089 = vunpack.c.l.b16 %v1939
  %v2090 = vunpack.c.h.b16 %v1939
  %v2091 = vunpack.c.l.b16 %v1940
  %v2092 = vunpack.c.h.b16 %v1940
  %v2093 = vunpack.c.l.b16 %v1941
  %v2094 = vunpack.c.h.b16 %v1941
  %v2095 = vunpack.c.l.b16 %v1942
  %v2096 = vunpack.c.h.b16 %v1942
  %v2097 = vunpack.c.l.b16 %v1943
  %v2098 = vunpack.c.h.b16 %v1943
  %v2099 = vunpack.c.l.b16 %v1944
  %v2100 = vunpack.c.h.b16 %v1944
  %v2101 = vunpack.c.l.b16 %v1945
  %v2102 = vunpack.c.h.b16 %v1945
  %v2103 = vunpack.c.l.b16 %v1946
  %v2104 = vunpack.c.h.b16 %v1946
  %v2105 = vunpack.c.l.b16 %v1947
  %v2106 = vunpack.c.h.b16 %v1947
  %v2107 = vunpack.c.l.b16 %v1948
  %v2108 = vunpack.c.h.b16 %v1948
  %v2109 = vunpack.c.l.b16 %v1949
  %v2110 = vunpack.c.h.b16 %v1949
  %v2111 = vunpack.c.l.b16 %v1950
  %v2112 = vunpack.c.h.b16 %v1950
  %v2113 = vunpack.c.l.b16 %v1951
  %v2114 = vunpack.c.h.b16 %v1951
  %v2115 = vunpack.c.l.b16 %v1952
  %v2116 = vunpack.c.h.b16 %v1952
  %v2117 = vunpack.c.l.b16 %v1953
  %v2118 = vunpack.c.h.b16 %v1953
  %v2119 = vunpack.c.l.b16 %v1954
  %v2120 = vunpack.c.h.b16 %v1954
  %v2121 = vunpack.c.l.b16 %v1955
  %v2122 = vunpack.c.h.b16 %v1955
  %v2123 = vunpack.c.l.b16 %v1956
  %v2124 = vunpack.c.h.b16 %v1956
  %v2125 = vunpack.c.l.b16 %v1957
  %v2126 = vunpack.c.h.b16 %v1957
  %v2127 = vunpack.c.l.b16 %v1958
  %v2128 = vunpack.c.h.b16 %v1958
  %v2129 = vunpack.c.l.b16 %v1959
  %v2130 = vunpack.c.h.b16 %v1959
  %v2131 = vunpack.c.l.b16 %v1960
  %v2132 = vunpack.c.h.b16 %v1960
  %v2133 = vunpack.c.l.b16 %v1961
  %v2134 = vunpack.c.h.b16 %v1961
  %v2135 = vunpack.c.l.b16 %v1962
  %v2136 = vunpack.c.h.b16 %v1962
  %v2137 = vunpack.c.l.b16 %v1963
  %v2138 = vunpack.c.h.b16 %v1963
  %v2139 = vunpack.c.l.b16 %v1964
  %v2140 = vunpack.c.h.b16 %v1964
  %v2141 = vunpack.c.l.b16 %v1965
  %v2142 = vunpack.c.h.b16 %v1965
  %v2143 = vunpack.c.l.b16 %v1966
  %v2144 = vunpack.c.h.b16 %v1966
  %v2145 = vunpack.c.l.b16 %v1967
  %v2146 = vunpack.c.h.b16 %v1967
  %v2147 = vunpack.c.l.b16 %v1968
  %v2148 = vunpack.c.h.b16 %v1968
  %v2149 = vunpack.c.l.b16 %v1969
  %v2150 = vunpack.c.h.b16 %v1969
  %v2151 = vunpack.c.l.b16 %v1970
  %v2152 = vunpack.c.h.b16 %v1970
  %v2153 = vunpack.c.l.b16 %v1971
  %v2154 = vunpack.c.h.b16 %v1971
  %v2155 = vunpack.c.l.b16 %v1972
  %v2156 = vunpack.c.h.b16 %v1972
  %v2157 = vunpack.c.l.b16 %v1973
  %v2158 = vunpack.c.h.b16 %v1973
  %v2159 = vunpack.c.l.b16 %v1974
  %v2160 = vunpack.c.h.b16 %v1974
  %v2161 = vunpack.c.l.b16 %v1975
  %v2162 = vunpack.c.h.b16 %v1975
  %v2163 = vunpack.c.l.b16 %v1976
  %v2164 = vunpack.c.h.b16 %v1976
  %v2165 = vunpack.c.l.b16 %v1977
  %v2166 = vunpack.c.h.b16 %v1977
  %v2167 = vpack.c.b16 %v2091, %v2087
  %v2168 = vpack.c.b16 %v2092, %v2088
  %v2169 = vpack.c.b16 %v2093, %v2089
  %v2170 = vpack.c.b16 %v2094, %v2090
  %v2171 = vpack.c.b16 %v2099, %v2095
  %v2172 = vpack.c.b16 %v2100, %v2096
  %v2173 = vpack.c.b16 %v2101, %v2097
  %v2174 = vpack.c.b16 %v2102, %v2098
  %v2175 = vpack.c.b16 %v2107, %v2103
  %v2176 = vpack.c.b16 %v2108, %v2104
  %v2177 = vpack.c.b16 %v2109, %v2105
  %v2178 = vpack.c.b16 %v2110, %v2106
  %v2179 = vpack.c.b16 %v2115, %v2111
  %v2180 = vpack.c.b16 %v2116, %v2112
  %v2181 = vpack.c.b16 %v2117, %v2113
  %v2182 = vpack.c.b16 %v2118, %v2114
  %v2183 = vpack.c.b16 %v2123, %v2119
  %v2184 = vpack.c.b16 %v2124, %v2120
  %v2185 = vpack.c.b16 %v2125, %v2121
  %v2186 = vpack.c.b16 %v2126, %v2122
  %v2187 = vpack.c.b16 %v2131, %v2127
  %v2188 = vpack.c.b16 %v2132, %v2128
  %v2189 = vpack.c.b16 %v2133, %v2129
  %v2190 = vpack.c.b16 %v2134, %v2130
  %v2191 = vpack.c.b16 %v2139, %v2135
  %v2192 = vpack.c.b16 %v2140, %v2136
  %v2193 = vpack.c.b16 %v2141, %v2137
  %v2194 = vpack.c.b16 %v2142, %v2138
  %v2195 = vpack.c.b16 %v2147, %v2143
  %v2196 = vpack.c.b16 %v2148, %v2144
  %v2197 = vpack.c.b16 %v2149, %v2145
  %v2198 = vpack.c.b16 %v2150, %v2146
  %v2199 = vpack.c.b16 %v2155, %v2151
  %v2200 = vpack.c.b16 %v2156, %v2152
  %v2201 = vpack.c.b16 %v2157, %v2153
  %v2202 = vpack.c.b16 %v2158, %v2154
  %v2203 = vpack.c.b16 %v2163, %v2159
  %v2204 = vpack.c.b16 %v2164, %v2160
  %v2205 = vpack.c.b16 %v2165, %v2161
  %v2206 = vpack.c.b16 %v2166, %v2162
  %v2248 = vsel %vm124, %v2036, 0
  %v2251 = vsel %vm124, %v2038, 0
  %v2254 = vsel %vm124, %v2040, 0
  %v2257 = vsel %vm124, %v2042, 0
  %2259 = vmatpush.bf16.msra.mxu0 %v2195
  %2260 = vmatpush.bf16.msra.mxu0 %v2191
  %2261 = vmatpush.bf16.msra.mxu0 %v2187
  %2262 = vmatpush.bf16.msra.mxu0 %v2183
  %2263 = vmatpush.bf16.msra.mxu0 %v2179
  %2264 = vmatpush.bf16.msra.mxu0 %v2175
  %2265 = vmatpush.bf16.msra.mxu0 %v2171
  %2266 = vmatpush.bf16.msra.mxu0 %v2167
  %2267 = vmatmul.bf16.gmra.mxu0 %v2035
  %v2268 = vpop.f32.mrf.mxu0
  %v2269 = vadd.f32 %v1979, %v2268
  %v2270 = vpop.f32.mrf.mxu0
  %v2271 = vadd.f32 %v1983, %v2270
  %2272 = vmatmul.bf16.gmra.mxu0 %v2037
  %v2273 = vpop.f32.mrf.mxu0
  %v2274 = vadd.f32 %v1987, %v2273
  %v2275 = vpop.f32.mrf.mxu0
  %v2276 = vadd.f32 %v1991, %v2275
  %2277 = vmatmul.bf16.gmra.mxu0 %v2039
  %v2278 = vpop.f32.mrf.mxu0
  %v2279 = vadd.f32 %v1995, %v2278
  %v2280 = vpop.f32.mrf.mxu0
  %v2281 = vadd.f32 %v1999, %v2280
  %2282 = vmatmul.bf16.gmra.mxu0 %v2041
  %v2283 = vpop.f32.mrf.mxu0
  %v2284 = vadd.f32 %v2003, %v2283
  %v2285 = vpop.f32.mrf.mxu0
  %v2286 = vadd.f32 %v2007, %v2285
  %2287 = vdwg.mxu0
  %2288 = vmatpush.bf16.msra.mxu0 0
  %2289 = vmatpush.bf16.msra.mxu0 0
  %2290 = vmatpush.bf16.msra.mxu0 0
  %2291 = vmatpush.bf16.msra.mxu0 0
  %2292 = vmatpush.bf16.msra.mxu0 0
  %2293 = vmatpush.bf16.msra.mxu0 0
  %2294 = vmatpush.bf16.msra.mxu0 %v2203
  %2295 = vmatpush.bf16.msra.mxu0 %v2199
  %2296 = vmatmul.bf16.gmra.mxu0 %v2248
  %v2297 = vpop.f32.mrf.mxu0
  %v2298 = vadd.f32 %v2269, %v2297
  %v2299 = vpop.f32.mrf.mxu0
  %v2300 = vadd.f32 %v2271, %v2299
  %2301 = vmatmul.bf16.gmra.mxu0 %v2251
  %v2302 = vpop.f32.mrf.mxu0
  %v2303 = vadd.f32 %v2274, %v2302
  %v2304 = vpop.f32.mrf.mxu0
  %v2305 = vadd.f32 %v2276, %v2304
  %2306 = vmatmul.bf16.gmra.mxu0 %v2254
  %v2307 = vpop.f32.mrf.mxu0
  %v2308 = vadd.f32 %v2279, %v2307
  %v2309 = vpop.f32.mrf.mxu0
  %v2310 = vadd.f32 %v2281, %v2309
  %2311 = vmatmul.bf16.gmra.mxu0 %v2257
  %v2312 = vpop.f32.mrf.mxu0
  %v2313 = vadd.f32 %v2284, %v2312
  %v2314 = vpop.f32.mrf.mxu0
  %v2315 = vadd.f32 %v2286, %v2314
  %2316 = vdwg.mxu0
  %2317 = vmatpush.bf16.msra.mxu0 %v2196
  %2318 = vmatpush.bf16.msra.mxu0 %v2192
  %2319 = vmatpush.bf16.msra.mxu0 %v2188
  %2320 = vmatpush.bf16.msra.mxu0 %v2184
  %2321 = vmatpush.bf16.msra.mxu0 %v2180
  %2322 = vmatpush.bf16.msra.mxu0 %v2176
  %2323 = vmatpush.bf16.msra.mxu0 %v2172
  %2324 = vmatpush.bf16.msra.mxu0 %v2168
  %2325 = vmatmul.bf16.gmra.mxu0 %v2035
  %v2326 = vpop.f32.mrf.mxu0
  %v2327 = vadd.f32 %v1980, %v2326
  %v2328 = vpop.f32.mrf.mxu0
  %v2329 = vadd.f32 %v1984, %v2328
  %2330 = vmatmul.bf16.gmra.mxu0 %v2037
  %v2331 = vpop.f32.mrf.mxu0
  %v2332 = vadd.f32 %v1988, %v2331
  %v2333 = vpop.f32.mrf.mxu0
  %v2334 = vadd.f32 %v1992, %v2333
  %2335 = vmatmul.bf16.gmra.mxu0 %v2039
  %v2336 = vpop.f32.mrf.mxu0
  %v2337 = vadd.f32 %v1996, %v2336
  %v2338 = vpop.f32.mrf.mxu0
  %v2339 = vadd.f32 %v2000, %v2338
  %2340 = vmatmul.bf16.gmra.mxu0 %v2041
  %v2341 = vpop.f32.mrf.mxu0
  %v2342 = vadd.f32 %v2004, %v2341
  %v2343 = vpop.f32.mrf.mxu0
  %v2344 = vadd.f32 %v2008, %v2343
  %2345 = vdwg.mxu0
  %2346 = vmatpush.bf16.msra.mxu0 0
  %2347 = vmatpush.bf16.msra.mxu0 0
  %2348 = vmatpush.bf16.msra.mxu0 0
  %2349 = vmatpush.bf16.msra.mxu0 0
  %2350 = vmatpush.bf16.msra.mxu0 0
  %2351 = vmatpush.bf16.msra.mxu0 0
  %2352 = vmatpush.bf16.msra.mxu0 %v2204
  %2353 = vmatpush.bf16.msra.mxu0 %v2200
  %2354 = vmatmul.bf16.gmra.mxu0 %v2248
  %v2355 = vpop.f32.mrf.mxu0
  %v2356 = vadd.f32 %v2327, %v2355
  %v2357 = vpop.f32.mrf.mxu0
  %v2358 = vadd.f32 %v2329, %v2357
  %2359 = vmatmul.bf16.gmra.mxu0 %v2251
  %v2360 = vpop.f32.mrf.mxu0
  %v2361 = vadd.f32 %v2332, %v2360
  %v2362 = vpop.f32.mrf.mxu0
  %v2363 = vadd.f32 %v2334, %v2362
  %2364 = vmatmul.bf16.gmra.mxu0 %v2254
  %v2365 = vpop.f32.mrf.mxu0
  %v2366 = vadd.f32 %v2337, %v2365
  %v2367 = vpop.f32.mrf.mxu0
  %v2368 = vadd.f32 %v2339, %v2367
  %2369 = vmatmul.bf16.gmra.mxu0 %v2257
  %v2370 = vpop.f32.mrf.mxu0
  %v2371 = vadd.f32 %v2342, %v2370
  %v2372 = vpop.f32.mrf.mxu0
  %v2373 = vadd.f32 %v2344, %v2372
  %2374 = vdwg.mxu0
  %2375 = vmatpush.bf16.msra.mxu0 %v2197
  %2376 = vmatpush.bf16.msra.mxu0 %v2193
  %2377 = vmatpush.bf16.msra.mxu0 %v2189
  %2378 = vmatpush.bf16.msra.mxu0 %v2185
  %2379 = vmatpush.bf16.msra.mxu0 %v2181
  %2380 = vmatpush.bf16.msra.mxu0 %v2177
  %2381 = vmatpush.bf16.msra.mxu0 %v2173
  %2382 = vmatpush.bf16.msra.mxu0 %v2169
  %2383 = vmatmul.bf16.gmra.mxu0 %v2035
  %v2384 = vpop.f32.mrf.mxu0
  %v2385 = vadd.f32 %v1981, %v2384
  %v2386 = vpop.f32.mrf.mxu0
  %v2387 = vadd.f32 %v1985, %v2386
  %2388 = vmatmul.bf16.gmra.mxu0 %v2037
  %v2389 = vpop.f32.mrf.mxu0
  %v2390 = vadd.f32 %v1989, %v2389
  %v2391 = vpop.f32.mrf.mxu0
  %v2392 = vadd.f32 %v1993, %v2391
  %2393 = vmatmul.bf16.gmra.mxu0 %v2039
  %v2394 = vpop.f32.mrf.mxu0
  %v2395 = vadd.f32 %v1997, %v2394
  %v2396 = vpop.f32.mrf.mxu0
  %v2397 = vadd.f32 %v2001, %v2396
  %2398 = vmatmul.bf16.gmra.mxu0 %v2041
  %v2399 = vpop.f32.mrf.mxu0
  %v2400 = vadd.f32 %v2005, %v2399
  %v2401 = vpop.f32.mrf.mxu0
  %v2402 = vadd.f32 %v2009, %v2401
  %2403 = vdwg.mxu0
  %2404 = vmatpush.bf16.msra.mxu0 0
  %2405 = vmatpush.bf16.msra.mxu0 0
  %2406 = vmatpush.bf16.msra.mxu0 0
  %2407 = vmatpush.bf16.msra.mxu0 0
  %2408 = vmatpush.bf16.msra.mxu0 0
  %2409 = vmatpush.bf16.msra.mxu0 0
  %2410 = vmatpush.bf16.msra.mxu0 %v2205
  %2411 = vmatpush.bf16.msra.mxu0 %v2201
  %2412 = vmatmul.bf16.gmra.mxu0 %v2248
  %v2413 = vpop.f32.mrf.mxu0
  %v2414 = vadd.f32 %v2385, %v2413
  %v2415 = vpop.f32.mrf.mxu0
  %v2416 = vadd.f32 %v2387, %v2415
  %2417 = vmatmul.bf16.gmra.mxu0 %v2251
  %v2418 = vpop.f32.mrf.mxu0
  %v2419 = vadd.f32 %v2390, %v2418
  %v2420 = vpop.f32.mrf.mxu0
  %v2421 = vadd.f32 %v2392, %v2420
  %2422 = vmatmul.bf16.gmra.mxu0 %v2254
  %v2423 = vpop.f32.mrf.mxu0
  %v2424 = vadd.f32 %v2395, %v2423
  %v2425 = vpop.f32.mrf.mxu0
  %v2426 = vadd.f32 %v2397, %v2425
  %2427 = vmatmul.bf16.gmra.mxu0 %v2257
  %v2428 = vpop.f32.mrf.mxu0
  %v2429 = vadd.f32 %v2400, %v2428
  %v2430 = vpop.f32.mrf.mxu0
  %v2431 = vadd.f32 %v2402, %v2430
  %2432 = vdwg.mxu0
  %2433 = vmatpush.bf16.msra.mxu0 %v2198
  %2434 = vmatpush.bf16.msra.mxu0 %v2194
  %2435 = vmatpush.bf16.msra.mxu0 %v2190
  %2436 = vmatpush.bf16.msra.mxu0 %v2186
  %2437 = vmatpush.bf16.msra.mxu0 %v2182
  %2438 = vmatpush.bf16.msra.mxu0 %v2178
  %2439 = vmatpush.bf16.msra.mxu0 %v2174
  %2440 = vmatpush.bf16.msra.mxu0 %v2170
  %2441 = vmatmul.bf16.gmra.mxu0 %v2035
  %v2442 = vpop.f32.mrf.mxu0
  %v2443 = vadd.f32 %v1982, %v2442
  %v2444 = vpop.f32.mrf.mxu0
  %v2445 = vadd.f32 %v1986, %v2444
  %2446 = vmatmul.bf16.gmra.mxu0 %v2037
  %v2447 = vpop.f32.mrf.mxu0
  %v2448 = vadd.f32 %v1990, %v2447
  %v2449 = vpop.f32.mrf.mxu0
  %v2450 = vadd.f32 %v1994, %v2449
  %2451 = vmatmul.bf16.gmra.mxu0 %v2039
  %v2452 = vpop.f32.mrf.mxu0
  %v2453 = vadd.f32 %v1998, %v2452
  %v2454 = vpop.f32.mrf.mxu0
  %v2455 = vadd.f32 %v2002, %v2454
  %2456 = vmatmul.bf16.gmra.mxu0 %v2041
  %v2457 = vpop.f32.mrf.mxu0
  %v2458 = vadd.f32 %v2006, %v2457
  %v2459 = vpop.f32.mrf.mxu0
  %v2460 = vadd.f32 %v2010, %v2459
  %2461 = vdwg.mxu0
  %2462 = vmatpush.bf16.msra.mxu0 0
  %2463 = vmatpush.bf16.msra.mxu0 0
  %2464 = vmatpush.bf16.msra.mxu0 0
  %2465 = vmatpush.bf16.msra.mxu0 0
  %2466 = vmatpush.bf16.msra.mxu0 0
  %2467 = vmatpush.bf16.msra.mxu0 0
  %2468 = vmatpush.bf16.msra.mxu0 %v2206
  %2469 = vmatpush.bf16.msra.mxu0 %v2202
  %2470 = vmatmul.bf16.gmra.mxu0 %v2248
  %v2471 = vpop.f32.mrf.mxu0
  %v2472 = vadd.f32 %v2443, %v2471
  %v2473 = vpop.f32.mrf.mxu0
  %v2474 = vadd.f32 %v2445, %v2473
  %2475 = vmatmul.bf16.gmra.mxu0 %v2251
  %v2476 = vpop.f32.mrf.mxu0
  %v2477 = vadd.f32 %v2448, %v2476
  %v2478 = vpop.f32.mrf.mxu0
  %v2479 = vadd.f32 %v2450, %v2478
  %2480 = vmatmul.bf16.gmra.mxu0 %v2254
  %v2481 = vpop.f32.mrf.mxu0
  %v2482 = vadd.f32 %v2453, %v2481
  %v2483 = vpop.f32.mrf.mxu0
  %v2484 = vadd.f32 %v2455, %v2483
  %2485 = vmatmul.bf16.gmra.mxu0 %v2257
  %v2486 = vpop.f32.mrf.mxu0
  %v2487 = vadd.f32 %v2458, %v2486
  %v2488 = vpop.f32.mrf.mxu0
  %v2489 = vadd.f32 %v2460, %v2488
  %2490 = vdwg.mxu0
  %v2491 = vtanh.pop %v2298
  %v2492 = vtanh.pop %v2356
  %v2493 = vtanh.pop %v2414
  %v2494 = vtanh.pop %v2472
  %v2495 = vtanh.pop %v2300
  %v2496 = vtanh.pop %v2358
  %v2497 = vtanh.pop %v2416
  %v2498 = vtanh.pop %v2474
  %v2499 = vtanh.pop %v2303
  %v2500 = vtanh.pop %v2361
  %v2501 = vtanh.pop %v2419
  %v2502 = vtanh.pop %v2477
  %v2503 = vtanh.pop %v2305
  %v2504 = vtanh.pop %v2363
  %v2505 = vtanh.pop %v2421
  %v2506 = vtanh.pop %v2479
  %v2507 = vxor.u32 %v2308, 2147483648
  %v2508 = vxor.u32 %v2366, 2147483648
  %v2509 = vxor.u32 %v2424, 2147483648
  %v2510 = vxor.u32 %v2482, 2147483648
  %v2511 = vxor.u32 %v2310, 2147483648
  %v2512 = vxor.u32 %v2368, 2147483648
  %v2513 = vxor.u32 %v2426, 2147483648
  %v2514 = vxor.u32 %v2484, 2147483648
  %v2515 = vxor.u32 %v2313, 2147483648
  %v2516 = vxor.u32 %v2371, 2147483648
  %v2517 = vxor.u32 %v2429, 2147483648
  %v2518 = vxor.u32 %v2487, 2147483648
  %v2519 = vxor.u32 %v2315, 2147483648
  %v2520 = vxor.u32 %v2373, 2147483648
  %v2521 = vxor.u32 %v2431, 2147483648
  %v2522 = vxor.u32 %v2489, 2147483648
  %v2523 = vmul.f32 %v2507, 1.442695
  %v2524 = vpow.pop %v2523
  %v2525 = vmul.f32 %v2508, 1.442695
  %v2526 = vpow.pop %v2525
  %v2527 = vmul.f32 %v2509, 1.442695
  %v2528 = vpow.pop %v2527
  %v2529 = vmul.f32 %v2510, 1.442695
  %v2530 = vpow.pop %v2529
  %v2531 = vmul.f32 %v2511, 1.442695
  %v2532 = vpow.pop %v2531
  %v2533 = vmul.f32 %v2512, 1.442695
  %v2534 = vpow.pop %v2533
  %v2535 = vmul.f32 %v2513, 1.442695
  %v2536 = vpow.pop %v2535
  %v2537 = vmul.f32 %v2514, 1.442695
  %v2538 = vpow.pop %v2537
  %v2539 = vmul.f32 %v2515, 1.442695
  %v2540 = vpow.pop %v2539
  %v2541 = vmul.f32 %v2516, 1.442695
  %v2542 = vpow.pop %v2541
  %v2543 = vmul.f32 %v2517, 1.442695
  %v2544 = vpow.pop %v2543
  %v2545 = vmul.f32 %v2518, 1.442695
  %v2546 = vpow.pop %v2545
  %v2547 = vmul.f32 %v2519, 1.442695
  %v2548 = vpow.pop %v2547
  %v2549 = vmul.f32 %v2520, 1.442695
  %v2550 = vpow.pop %v2549
  %v2551 = vmul.f32 %v2521, 1.442695
  %v2552 = vpow.pop %v2551
  %v2553 = vmul.f32 %v2522, 1.442695
  %v2554 = vpow.pop %v2553
  %v2555 = vadd.f32 %v2524, 1.0
  %v2556 = vadd.f32 %v2526, 1.0
  %v2557 = vadd.f32 %v2528, 1.0
  %v2558 = vadd.f32 %v2530, 1.0
  %v2559 = vadd.f32 %v2532, 1.0
  %v2560 = vadd.f32 %v2534, 1.0
  %v2561 = vadd.f32 %v2536, 1.0
  %v2562 = vadd.f32 %v2538, 1.0
  %v2563 = vadd.f32 %v2540, 1.0
  %v2564 = vadd.f32 %v2542, 1.0
  %v2565 = vadd.f32 %v2544, 1.0
  %v2566 = vadd.f32 %v2546, 1.0
  %v2567 = vadd.f32 %v2548, 1.0
  %v2568 = vadd.f32 %v2550, 1.0
  %v2569 = vadd.f32 %v2552, 1.0
  %v2570 = vadd.f32 %v2554, 1.0
  %v2571 = vrcp.pop %v2555
  %v2572 = vmul.f32 %v2555, %v2571
  %v2573 = vsub.f32 1.0, %v2572
  %v2574 = vmul.f32 %v2571, %v2573
  %v2575 = vadd.f32 %v2571, %v2574
  %vm2576 = vweird.f32 %v2555
  %vm2577 = vweird.f32 %v2571
  %vm2578 = vmor %vm2576, %vm2577
  %v2579 = vsel %vm2578, %v2571, %v2575
  %v2580 = vand.u32 2147483647, %v2555
  %vm2581 = vcmp.eq.f32.partialorder %v2580, 8.507059e+37
  %v2582 = vand.u32 %v2555, 2147483648
  %v2583 = vor.u32 1.1754944e-38, %v2582
  %v2584 = vsel %vm2581, %v2583, %v2579
  %v2585 = vmul.f32 1.0, %v2584
  %v2586 = vrcp.pop %v2556
  %v2587 = vmul.f32 %v2556, %v2586
  %v2588 = vsub.f32 1.0, %v2587
  %v2589 = vmul.f32 %v2586, %v2588
  %v2590 = vadd.f32 %v2586, %v2589
  %vm2591 = vweird.f32 %v2556
  %vm2592 = vweird.f32 %v2586
  %vm2593 = vmor %vm2591, %vm2592
  %v2594 = vsel %vm2593, %v2586, %v2590
  %v2595 = vand.u32 2147483647, %v2556
  %vm2596 = vcmp.eq.f32.partialorder %v2595, 8.507059e+37
  %v2597 = vand.u32 %v2556, 2147483648
  %v2598 = vor.u32 1.1754944e-38, %v2597
  %v2599 = vsel %vm2596, %v2598, %v2594
  %v2600 = vmul.f32 1.0, %v2599
  %v2601 = vrcp.pop %v2557
  %v2602 = vmul.f32 %v2557, %v2601
  %v2603 = vsub.f32 1.0, %v2602
  %v2604 = vmul.f32 %v2601, %v2603
  %v2605 = vadd.f32 %v2601, %v2604
  %vm2606 = vweird.f32 %v2557
  %vm2607 = vweird.f32 %v2601
  %vm2608 = vmor %vm2606, %vm2607
  %v2609 = vsel %vm2608, %v2601, %v2605
  %v2610 = vand.u32 2147483647, %v2557
  %vm2611 = vcmp.eq.f32.partialorder %v2610, 8.507059e+37
  %v2612 = vand.u32 %v2557, 2147483648
  %v2613 = vor.u32 1.1754944e-38, %v2612
  %v2614 = vsel %vm2611, %v2613, %v2609
  %v2615 = vmul.f32 1.0, %v2614
  %v2616 = vrcp.pop %v2558
  %v2617 = vmul.f32 %v2558, %v2616
  %v2618 = vsub.f32 1.0, %v2617
  %v2619 = vmul.f32 %v2616, %v2618
  %v2620 = vadd.f32 %v2616, %v2619
  %vm2621 = vweird.f32 %v2558
  %vm2622 = vweird.f32 %v2616
  %vm2623 = vmor %vm2621, %vm2622
  %v2624 = vsel %vm2623, %v2616, %v2620
  %v2625 = vand.u32 2147483647, %v2558
  %vm2626 = vcmp.eq.f32.partialorder %v2625, 8.507059e+37
  %v2627 = vand.u32 %v2558, 2147483648
  %v2628 = vor.u32 1.1754944e-38, %v2627
  %v2629 = vsel %vm2626, %v2628, %v2624
  %v2630 = vmul.f32 1.0, %v2629
  %v2631 = vrcp.pop %v2559
  %v2632 = vmul.f32 %v2559, %v2631
  %v2633 = vsub.f32 1.0, %v2632
  %v2634 = vmul.f32 %v2631, %v2633
  %v2635 = vadd.f32 %v2631, %v2634
  %vm2636 = vweird.f32 %v2559
  %vm2637 = vweird.f32 %v2631
  %vm2638 = vmor %vm2636, %vm2637
  %v2639 = vsel %vm2638, %v2631, %v2635
  %v2640 = vand.u32 2147483647, %v2559
  %vm2641 = vcmp.eq.f32.partialorder %v2640, 8.507059e+37
  %v2642 = vand.u32 %v2559, 2147483648
  %v2643 = vor.u32 1.1754944e-38, %v2642
  %v2644 = vsel %vm2641, %v2643, %v2639
  %v2645 = vmul.f32 1.0, %v2644
  %v2646 = vrcp.pop %v2560
  %v2647 = vmul.f32 %v2560, %v2646
  %v2648 = vsub.f32 1.0, %v2647
  %v2649 = vmul.f32 %v2646, %v2648
  %v2650 = vadd.f32 %v2646, %v2649
  %vm2651 = vweird.f32 %v2560
  %vm2652 = vweird.f32 %v2646
  %vm2653 = vmor %vm2651, %vm2652
  %v2654 = vsel %vm2653, %v2646, %v2650
  %v2655 = vand.u32 2147483647, %v2560
  %vm2656 = vcmp.eq.f32.partialorder %v2655, 8.507059e+37
  %v2657 = vand.u32 %v2560, 2147483648
  %v2658 = vor.u32 1.1754944e-38, %v2657
  %v2659 = vsel %vm2656, %v2658, %v2654
  %v2660 = vmul.f32 1.0, %v2659
  %v2661 = vrcp.pop %v2561
  %v2662 = vmul.f32 %v2561, %v2661
  %v2663 = vsub.f32 1.0, %v2662
  %v2664 = vmul.f32 %v2661, %v2663
  %v2665 = vadd.f32 %v2661, %v2664
  %vm2666 = vweird.f32 %v2561
  %vm2667 = vweird.f32 %v2661
  %vm2668 = vmor %vm2666, %vm2667
  %v2669 = vsel %vm2668, %v2661, %v2665
  %v2670 = vand.u32 2147483647, %v2561
  %vm2671 = vcmp.eq.f32.partialorder %v2670, 8.507059e+37
  %v2672 = vand.u32 %v2561, 2147483648
  %v2673 = vor.u32 1.1754944e-38, %v2672
  %v2674 = vsel %vm2671, %v2673, %v2669
  %v2675 = vmul.f32 1.0, %v2674
  %v2676 = vrcp.pop %v2562
  %v2677 = vmul.f32 %v2562, %v2676
  %v2678 = vsub.f32 1.0, %v2677
  %v2679 = vmul.f32 %v2676, %v2678
  %v2680 = vadd.f32 %v2676, %v2679
  %vm2681 = vweird.f32 %v2562
  %vm2682 = vweird.f32 %v2676
  %vm2683 = vmor %vm2681, %vm2682
  %v2684 = vsel %vm2683, %v2676, %v2680
  %v2685 = vand.u32 2147483647, %v2562
  %vm2686 = vcmp.eq.f32.partialorder %v2685, 8.507059e+37
  %v2687 = vand.u32 %v2562, 2147483648
  %v2688 = vor.u32 1.1754944e-38, %v2687
  %v2689 = vsel %vm2686, %v2688, %v2684
  %v2690 = vmul.f32 1.0, %v2689
  %v2691 = vrcp.pop %v2563
  %v2692 = vmul.f32 %v2563, %v2691
  %v2693 = vsub.f32 1.0, %v2692
  %v2694 = vmul.f32 %v2691, %v2693
  %v2695 = vadd.f32 %v2691, %v2694
  %vm2696 = vweird.f32 %v2563
  %vm2697 = vweird.f32 %v2691
  %vm2698 = vmor %vm2696, %vm2697
  %v2699 = vsel %vm2698, %v2691, %v2695
  %v2700 = vand.u32 2147483647, %v2563
  %vm2701 = vcmp.eq.f32.partialorder %v2700, 8.507059e+37
  %v2702 = vand.u32 %v2563, 2147483648
  %v2703 = vor.u32 1.1754944e-38, %v2702
  %v2704 = vsel %vm2701, %v2703, %v2699
  %v2705 = vmul.f32 1.0, %v2704
  %v2706 = vrcp.pop %v2564
  %v2707 = vmul.f32 %v2564, %v2706
  %v2708 = vsub.f32 1.0, %v2707
  %v2709 = vmul.f32 %v2706, %v2708
  %v2710 = vadd.f32 %v2706, %v2709
  %vm2711 = vweird.f32 %v2564
  %vm2712 = vweird.f32 %v2706
  %vm2713 = vmor %vm2711, %vm2712
  %v2714 = vsel %vm2713, %v2706, %v2710
  %v2715 = vand.u32 2147483647, %v2564
  %vm2716 = vcmp.eq.f32.partialorder %v2715, 8.507059e+37
  %v2717 = vand.u32 %v2564, 2147483648
  %v2718 = vor.u32 1.1754944e-38, %v2717
  %v2719 = vsel %vm2716, %v2718, %v2714
  %v2720 = vmul.f32 1.0, %v2719
  %v2721 = vrcp.pop %v2565
  %v2722 = vmul.f32 %v2565, %v2721
  %v2723 = vsub.f32 1.0, %v2722
  %v2724 = vmul.f32 %v2721, %v2723
  %v2725 = vadd.f32 %v2721, %v2724
  %vm2726 = vweird.f32 %v2565
  %vm2727 = vweird.f32 %v2721
  %vm2728 = vmor %vm2726, %vm2727
  %v2729 = vsel %vm2728, %v2721, %v2725
  %v2730 = vand.u32 2147483647, %v2565
  %vm2731 = vcmp.eq.f32.partialorder %v2730, 8.507059e+37
  %v2732 = vand.u32 %v2565, 2147483648
  %v2733 = vor.u32 1.1754944e-38, %v2732
  %v2734 = vsel %vm2731, %v2733, %v2729
  %v2735 = vmul.f32 1.0, %v2734
  %v2736 = vrcp.pop %v2566
  %v2737 = vmul.f32 %v2566, %v2736
  %v2738 = vsub.f32 1.0, %v2737
  %v2739 = vmul.f32 %v2736, %v2738
  %v2740 = vadd.f32 %v2736, %v2739
  %vm2741 = vweird.f32 %v2566
  %vm2742 = vweird.f32 %v2736
  %vm2743 = vmor %vm2741, %vm2742
  %v2744 = vsel %vm2743, %v2736, %v2740
  %v2745 = vand.u32 2147483647, %v2566
  %vm2746 = vcmp.eq.f32.partialorder %v2745, 8.507059e+37
  %v2747 = vand.u32 %v2566, 2147483648
  %v2748 = vor.u32 1.1754944e-38, %v2747
  %v2749 = vsel %vm2746, %v2748, %v2744
  %v2750 = vmul.f32 1.0, %v2749
  %v2751 = vrcp.pop %v2567
  %v2752 = vmul.f32 %v2567, %v2751
  %v2753 = vsub.f32 1.0, %v2752
  %v2754 = vmul.f32 %v2751, %v2753
  %v2755 = vadd.f32 %v2751, %v2754
  %vm2756 = vweird.f32 %v2567
  %vm2757 = vweird.f32 %v2751
  %vm2758 = vmor %vm2756, %vm2757
  %v2759 = vsel %vm2758, %v2751, %v2755
  %v2760 = vand.u32 2147483647, %v2567
  %vm2761 = vcmp.eq.f32.partialorder %v2760, 8.507059e+37
  %v2762 = vand.u32 %v2567, 2147483648
  %v2763 = vor.u32 1.1754944e-38, %v2762
  %v2764 = vsel %vm2761, %v2763, %v2759
  %v2765 = vmul.f32 1.0, %v2764
  %v2766 = vrcp.pop %v2568
  %v2767 = vmul.f32 %v2568, %v2766
  %v2768 = vsub.f32 1.0, %v2767
  %v2769 = vmul.f32 %v2766, %v2768
  %v2770 = vadd.f32 %v2766, %v2769
  %vm2771 = vweird.f32 %v2568
  %vm2772 = vweird.f32 %v2766
  %vm2773 = vmor %vm2771, %vm2772
  %v2774 = vsel %vm2773, %v2766, %v2770
  %v2775 = vand.u32 2147483647, %v2568
  %vm2776 = vcmp.eq.f32.partialorder %v2775, 8.507059e+37
  %v2777 = vand.u32 %v2568, 2147483648
  %v2778 = vor.u32 1.1754944e-38, %v2777
  %v2779 = vsel %vm2776, %v2778, %v2774
  %v2780 = vmul.f32 1.0, %v2779
  %v2781 = vrcp.pop %v2569
  %v2782 = vmul.f32 %v2569, %v2781
  %v2783 = vsub.f32 1.0, %v2782
  %v2784 = vmul.f32 %v2781, %v2783
  %v2785 = vadd.f32 %v2781, %v2784
  %vm2786 = vweird.f32 %v2569
  %vm2787 = vweird.f32 %v2781
  %vm2788 = vmor %vm2786, %vm2787
  %v2789 = vsel %vm2788, %v2781, %v2785
  %v2790 = vand.u32 2147483647, %v2569
  %vm2791 = vcmp.eq.f32.partialorder %v2790, 8.507059e+37
  %v2792 = vand.u32 %v2569, 2147483648
  %v2793 = vor.u32 1.1754944e-38, %v2792
  %v2794 = vsel %vm2791, %v2793, %v2789
  %v2795 = vmul.f32 1.0, %v2794
  %v2796 = vrcp.pop %v2570
  %v2797 = vmul.f32 %v2570, %v2796
  %v2798 = vsub.f32 1.0, %v2797
  %v2799 = vmul.f32 %v2796, %v2798
  %v2800 = vadd.f32 %v2796, %v2799
  %vm2801 = vweird.f32 %v2570
  %vm2802 = vweird.f32 %v2796
  %vm2803 = vmor %vm2801, %vm2802
  %v2804 = vsel %vm2803, %v2796, %v2800
  %v2805 = vand.u32 2147483647, %v2570
  %vm2806 = vcmp.eq.f32.partialorder %v2805, 8.507059e+37
  %v2807 = vand.u32 %v2570, 2147483648
  %v2808 = vor.u32 1.1754944e-38, %v2807
  %v2809 = vsel %vm2806, %v2808, %v2804
  %v2810 = vmul.f32 1.0, %v2809
  %v2811 = vmul.f32 %v2491, %v2585
  %v2812 = vmul.f32 %v2492, %v2600
  %v2813 = vmul.f32 %v2493, %v2615
  %v2814 = vmul.f32 %v2494, %v2630
  %v2815 = vmul.f32 %v2495, %v2645
  %v2816 = vmul.f32 %v2496, %v2660
  %v2817 = vmul.f32 %v2497, %v2675
  %v2818 = vmul.f32 %v2498, %v2690
  %v2819 = vmul.f32 %v2499, %v2705
  %v2820 = vmul.f32 %v2500, %v2720
  %v2821 = vmul.f32 %v2501, %v2735
  %v2822 = vmul.f32 %v2502, %v2750
  %v2823 = vmul.f32 %v2503, %v2765
  %v2824 = vmul.f32 %v2504, %v2780
  %v2825 = vmul.f32 %v2505, %v2795
  %v2826 = vmul.f32 %v2506, %v2810
  %v2827 = vpack.c.bf16 %v2815, %v2811
  %v2828 = vpack.c.bf16 %v2816, %v2812
  %v2829 = vpack.c.bf16 %v2817, %v2813
  %v2830 = vpack.c.bf16 %v2818, %v2814
  %v2831 = vpack.c.bf16 %v2823, %v2819
  %v2832 = vpack.c.bf16 %v2824, %v2820
  %v2833 = vpack.c.bf16 %v2825, %v2821
  %v2834 = vpack.c.bf16 %v2826, %v2822
  %s2835 = scalar_lea.vmem %s6, 32
  %v2836 = vld [vmem:[%s2835] sm:$0xf]
  %v2837 = vld [vmem:[%s2835 + $0x4] sm:$0xf]
  %v2838 = vld [vmem:[%s2835 + $0x8] sm:$0xf]
  %v2839 = vld [vmem:[%s2835 + $0xc] sm:$0xf]
  %v2840 = vld [vmem:[%s2835 + $0x10] sm:$0xf]
  %v2841 = vld [vmem:[%s2835 + $0x14] sm:$0xf]
  %v2842 = vld [vmem:[%s2835 + $0x18] sm:$0xf]
  %v2843 = vld [vmem:[%s2835 + $0x1c] sm:$0xf]
  %s2844 = scalar_lea.vmem %s7, 64
  %v2845 = vld [vmem:[%s2844] sm:$0xff]
  %v2846 = vld [vmem:[%s2844 + $0x8] sm:$0xff]
  %v2847 = vld [vmem:[%s2844 + $0x10] sm:$0xff]
  %v2848 = vld [vmem:[%s2844 + $0x18] sm:$0xff]
  %v2849 = vld [vmem:[%s2844 + $0x20] sm:$0xff]
  %v2850 = vld [vmem:[%s2844 + $0x28] sm:$0xff]
  %v2851 = vld [vmem:[%s2844 + $0x30] sm:$0xff]
  %v2852 = vld [vmem:[%s2844 + $0x38] sm:$0xff]
  %2854 = vset.pattern.permute.xlu0 0
  %2855 = vperm.xlu0 %2854, %v2845
  %v2856 = vpop.permute.xlu0 %2855
  %2859 = vset.pattern.permute.xlu0 0
  %2860 = vperm.xlu0 %2859, %v2846
  %v2861 = vpop.permute.xlu0 %2860
  %2864 = vset.pattern.permute.xlu0 0
  %2865 = vperm.xlu0 %2864, %v2847
  %v2866 = vpop.permute.xlu0 %2865
  %2869 = vset.pattern.permute.xlu0 0
  %2870 = vperm.xlu0 %2869, %v2848
  %v2871 = vpop.permute.xlu0 %2870
  %2874 = vset.pattern.permute.xlu0 0
  %2875 = vperm.xlu0 %2874, %v2849
  %v2876 = vpop.permute.xlu0 %2875
  %2879 = vset.pattern.permute.xlu0 0
  %2880 = vperm.xlu0 %2879, %v2850
  %v2881 = vpop.permute.xlu0 %2880
  %2884 = vset.pattern.permute.xlu0 0
  %2885 = vperm.xlu0 %2884, %v2851
  %v2886 = vpop.permute.xlu0 %2885
  %2889 = vset.pattern.permute.xlu0 0
  %2890 = vperm.xlu0 %2889, %v2852
  %v2891 = vpop.permute.xlu0 %2890
  %v2901 = vunpack.c.l.b16 %v2836
  %v2902 = vunpack.c.l.b16 %v2837
  %v2903 = vunpack.c.l.b16 %v2838
  %v2904 = vunpack.c.l.b16 %v2839
  %v2905 = vunpack.c.l.b16 %v2840
  %v2906 = vunpack.c.l.b16 %v2841
  %v2907 = vunpack.c.l.b16 %v2842
  %v2908 = vunpack.c.l.b16 %v2843
  %v2909 = vpack.c.b16 %v2902, %v2901
  %v2910 = vpack.c.b16 %v2904, %v2903
  %v2911 = vpack.c.b16 %v2906, %v2905
  %v2912 = vpack.c.b16 %v2908, %v2907
  %v2914 = vsel %vm124, %v2909, 0
  %v2917 = vsel %vm124, %v2910, 0
  %v2920 = vsel %vm124, %v2911, 0
  %v2923 = vsel %vm124, %v2912, 0
  %2925 = vmatpush.bf16.msra.mxu0 0
  %2926 = vmatpush.bf16.msra.mxu0 0
  %2927 = vmatpush.bf16.msra.mxu0 0
  %2928 = vmatpush.bf16.msra.mxu0 0
  %2929 = vmatpush.bf16.msra.mxu0 0
  %2930 = vmatpush.bf16.msra.mxu0 0
  %2931 = vmatpush.bf16.msra.mxu0 %v2831
  %2932 = vmatpush.bf16.msra.mxu0 %v2827
  %2933 = vmatmul.bf16.gmra.mxu0 %v2914
  %v2934 = vpop.f32.mrf.mxu0
  %v2935 = vadd.f32 %v2856, %v2934
  %v2936 = vpop.f32.mrf.mxu0
  %v2937 = vadd.f32 %v2861, %v2936
  %2938 = vmatmul.bf16.gmra.mxu0 %v2917
  %v2939 = vpop.f32.mrf.mxu0
  %v2940 = vadd.f32 %v2866, %v2939
  %v2941 = vpop.f32.mrf.mxu0
  %v2942 = vadd.f32 %v2871, %v2941
  %2943 = vmatmul.bf16.gmra.mxu0 %v2920
  %v2944 = vpop.f32.mrf.mxu0
  %v2945 = vadd.f32 %v2876, %v2944
  %v2946 = vpop.f32.mrf.mxu0
  %v2947 = vadd.f32 %v2881, %v2946
  %2948 = vmatmul.bf16.gmra.mxu0 %v2923
  %v2949 = vpop.f32.mrf.mxu0
  %v2950 = vadd.f32 %v2886, %v2949
  %v2951 = vpop.f32.mrf.mxu0
  %v2952 = vadd.f32 %v2891, %v2951
  %2953 = vdwg.mxu0
  %2954 = vmatpush.bf16.msra.mxu0 0
  %2955 = vmatpush.bf16.msra.mxu0 0
  %2956 = vmatpush.bf16.msra.mxu0 0
  %2957 = vmatpush.bf16.msra.mxu0 0
  %2958 = vmatpush.bf16.msra.mxu0 0
  %2959 = vmatpush.bf16.msra.mxu0 0
  %2960 = vmatpush.bf16.msra.mxu0 %v2832
  %2961 = vmatpush.bf16.msra.mxu0 %v2828
  %2962 = vmatmul.bf16.gmra.mxu0 %v2914
  %v2963 = vpop.f32.mrf.mxu0
  %v2964 = vadd.f32 %v2856, %v2963
  %v2965 = vpop.f32.mrf.mxu0
  %v2966 = vadd.f32 %v2861, %v2965
  %2967 = vmatmul.bf16.gmra.mxu0 %v2917
  %v2968 = vpop.f32.mrf.mxu0
  %v2969 = vadd.f32 %v2866, %v2968
  %v2970 = vpop.f32.mrf.mxu0
  %v2971 = vadd.f32 %v2871, %v2970
  %2972 = vmatmul.bf16.gmra.mxu0 %v2920
  %v2973 = vpop.f32.mrf.mxu0
  %v2974 = vadd.f32 %v2876, %v2973
  %v2975 = vpop.f32.mrf.mxu0
  %v2976 = vadd.f32 %v2881, %v2975
  %2977 = vmatmul.bf16.gmra.mxu0 %v2923
  %v2978 = vpop.f32.mrf.mxu0
  %v2979 = vadd.f32 %v2886, %v2978
  %v2980 = vpop.f32.mrf.mxu0
  %v2981 = vadd.f32 %v2891, %v2980
  %2982 = vdwg.mxu0
  %2983 = vmatpush.bf16.msra.mxu0 0
  %2984 = vmatpush.bf16.msra.mxu0 0
  %2985 = vmatpush.bf16.msra.mxu0 0
  %2986 = vmatpush.bf16.msra.mxu0 0
  %2987 = vmatpush.bf16.msra.mxu0 0
  %2988 = vmatpush.bf16.msra.mxu0 0
  %2989 = vmatpush.bf16.msra.mxu0 %v2833
  %2990 = vmatpush.bf16.msra.mxu0 %v2829
  %2991 = vmatmul.bf16.gmra.mxu0 %v2914
  %v2992 = vpop.f32.mrf.mxu0
  %v2993 = vadd.f32 %v2856, %v2992
  %v2994 = vpop.f32.mrf.mxu0
  %v2995 = vadd.f32 %v2861, %v2994
  %2996 = vmatmul.bf16.gmra.mxu0 %v2917
  %v2997 = vpop.f32.mrf.mxu0
  %v2998 = vadd.f32 %v2866, %v2997
  %v2999 = vpop.f32.mrf.mxu0
  %v3000 = vadd.f32 %v2871, %v2999
  %3001 = vmatmul.bf16.gmra.mxu0 %v2920
  %v3002 = vpop.f32.mrf.mxu0
  %v3003 = vadd.f32 %v2876, %v3002
  %v3004 = vpop.f32.mrf.mxu0
  %v3005 = vadd.f32 %v2881, %v3004
  %3006 = vmatmul.bf16.gmra.mxu0 %v2923
  %v3007 = vpop.f32.mrf.mxu0
  %v3008 = vadd.f32 %v2886, %v3007
  %v3009 = vpop.f32.mrf.mxu0
  %v3010 = vadd.f32 %v2891, %v3009
  %3011 = vdwg.mxu0
  %3012 = vmatpush.bf16.msra.mxu0 0
  %3013 = vmatpush.bf16.msra.mxu0 0
  %3014 = vmatpush.bf16.msra.mxu0 0
  %3015 = vmatpush.bf16.msra.mxu0 0
  %3016 = vmatpush.bf16.msra.mxu0 0
  %3017 = vmatpush.bf16.msra.mxu0 0
  %3018 = vmatpush.bf16.msra.mxu0 %v2834
  %3019 = vmatpush.bf16.msra.mxu0 %v2830
  %3020 = vmatmul.bf16.gmra.mxu0 %v2914
  %v3021 = vpop.f32.mrf.mxu0
  %v3022 = vadd.f32 %v2856, %v3021
  %v3023 = vpop.f32.mrf.mxu0
  %v3024 = vadd.f32 %v2861, %v3023
  %3025 = vmatmul.bf16.gmra.mxu0 %v2917
  %v3026 = vpop.f32.mrf.mxu0
  %v3027 = vadd.f32 %v2866, %v3026
  %v3028 = vpop.f32.mrf.mxu0
  %v3029 = vadd.f32 %v2871, %v3028
  %3030 = vmatmul.bf16.gmra.mxu0 %v2920
  %v3031 = vpop.f32.mrf.mxu0
  %v3032 = vadd.f32 %v2876, %v3031
  %v3033 = vpop.f32.mrf.mxu0
  %v3034 = vadd.f32 %v2881, %v3033
  %3035 = vmatmul.bf16.gmra.mxu0 %v2923
  %v3036 = vpop.f32.mrf.mxu0
  %v3037 = vadd.f32 %v2886, %v3036
  %v3038 = vpop.f32.mrf.mxu0
  %v3039 = vadd.f32 %v2891, %v3038
  %3040 = vdwg.mxu0
  %v3041 = vadd.f32 %v1625, %v2935
  %v3042 = vadd.f32 %v1626, %v2964
  %v3043 = vadd.f32 %v1627, %v2993
  %v3044 = vadd.f32 %v1628, %v3022
  %v3045 = vadd.f32 %v1629, %v2937
  %v3046 = vadd.f32 %v1630, %v2966
  %v3047 = vadd.f32 %v1631, %v2995
  %v3048 = vadd.f32 %v1632, %v3024
  %v3049 = vadd.f32 %v1633, %v2940
  %v3050 = vadd.f32 %v1634, %v2969
  %v3051 = vadd.f32 %v1635, %v2998
  %v3052 = vadd.f32 %v1636, %v3027
  %v3053 = vadd.f32 %v1637, %v2942
  %v3054 = vadd.f32 %v1638, %v2971
  %v3055 = vadd.f32 %v1639, %v3000
  %v3056 = vadd.f32 %v1640, %v3029
  %v3057 = vmul.f32 %v3041, %v58
  %v3058 = vmul.f32 %v3042, %v59
  %v3059 = vmul.f32 %v3043, %v60
  %v3060 = vmul.f32 %v3044, %v61
  %v3061 = vmul.f32 %v3045, %v58
  %v3062 = vmul.f32 %v3046, %v59
  %v3063 = vmul.f32 %v3047, %v60
  %v3064 = vmul.f32 %v3048, %v61
  %v3065 = vmul.f32 %v3049, %v58
  %v3066 = vmul.f32 %v3050, %v59
  %v3067 = vmul.f32 %v3051, %v60
  %v3068 = vmul.f32 %v3052, %v61
  %v3069 = vmul.f32 %v3053, %v58
  %v3070 = vmul.f32 %v3054, %v59
  %v3071 = vmul.f32 %v3055, %v60
  %v3072 = vmul.f32 %v3056, %v61
  %v3073 = vadd.f32 %v1641, %v2945
  %v3074 = vadd.f32 %v1642, %v2974
  %v3075 = vadd.f32 %v1643, %v3003
  %v3076 = vadd.f32 %v1644, %v3032
  %v3077 = vadd.f32 %v1645, %v2947
  %v3078 = vadd.f32 %v1646, %v2976
  %v3079 = vadd.f32 %v1647, %v3005
  %v3080 = vadd.f32 %v1648, %v3034
  %v3081 = vadd.f32 %v1649, %v2950
  %v3082 = vadd.f32 %v1650, %v2979
  %v3083 = vadd.f32 %v1651, %v3008
  %v3084 = vadd.f32 %v1652, %v3037
  %v3085 = vadd.f32 %v1653, %v2952
  %v3086 = vadd.f32 %v1654, %v2981
  %v3087 = vadd.f32 %v1655, %v3010
  %v3088 = vadd.f32 %v1656, %v3039
  %3089 = vrot.lane.b32.xlu0 %v3057, 2
  %v3090 = vpop.permute.xlu0 %3089
  %3091 = vrot.lane.b32.xlu0 %v3061, 2
  %v3092 = vpop.permute.xlu0 %3091
  %3093 = vrot.lane.b32.xlu0 %v3065, 2
  %v3094 = vpop.permute.xlu0 %3093
  %3095 = vrot.lane.b32.xlu0 %v3069, 2
  %v3096 = vpop.permute.xlu0 %3095
  %3097 = vrot.lane.b32.xlu0 %v3058, 2
  %v3098 = vpop.permute.xlu0 %3097
  %3099 = vrot.lane.b32.xlu0 %v3062, 2
  %v3100 = vpop.permute.xlu0 %3099
  %3101 = vrot.lane.b32.xlu0 %v3066, 2
  %v3102 = vpop.permute.xlu0 %3101
  %3103 = vrot.lane.b32.xlu0 %v3070, 2
  %v3104 = vpop.permute.xlu0 %3103
  %3105 = vrot.lane.b32.xlu0 %v3059, 2
  %v3106 = vpop.permute.xlu0 %3105
  %3107 = vrot.lane.b32.xlu0 %v3063, 2
  %v3108 = vpop.permute.xlu0 %3107
  %3109 = vrot.lane.b32.xlu0 %v3067, 2
  %v3110 = vpop.permute.xlu0 %3109
  %3111 = vrot.lane.b32.xlu0 %v3071, 2
  %v3112 = vpop.permute.xlu0 %3111
  %3113 = vrot.lane.b32.xlu0 %v3060, 2
  %v3114 = vpop.permute.xlu0 %3113
  %3115 = vrot.lane.b32.xlu0 %v3064, 2
  %v3116 = vpop.permute.xlu0 %3115
  %3117 = vrot.lane.b32.xlu0 %v3068, 2
  %v3118 = vpop.permute.xlu0 %3117
  %3119 = vrot.lane.b32.xlu0 %v3072, 2
  %v3120 = vpop.permute.xlu0 %3119
  %v3121 = vsel %vm257, %v3106, %v3114
  %v3122 = vsel %vm257, %v3108, %v3116
  %v3123 = vsel %vm257, %v3110, %v3118
  %v3124 = vsel %vm257, %v3112, %v3120
  %v3125 = vsel %vm257, %v3098, %v3106
  %v3126 = vsel %vm257, %v3100, %v3108
  %v3127 = vsel %vm257, %v3102, %v3110
  %v3128 = vsel %vm257, %v3104, %v3112
  %v3129 = vsel %vm257, %v3090, %v3098
  %v3130 = vsel %vm257, %v3092, %v3100
  %v3131 = vsel %vm257, %v3094, %v3102
  %v3132 = vsel %vm257, %v3096, %v3104
  %v3133 = vsel %vm257, %v3114, %v3090
  %v3134 = vsel %vm257, %v3116, %v3092
  %v3135 = vsel %vm257, %v3118, %v3094
  %v3136 = vsel %vm257, %v3120, %v3096
  %v3137 = vpack.c.bf16 %v3129, %v3133
  %v3138 = vpack.c.bf16 %v3121, %v3125
  %v3139 = vpack.c.bf16 %v3130, %v3134
  %v3140 = vpack.c.bf16 %v3122, %v3126
  %v3141 = vpack.c.bf16 %v3131, %v3135
  %v3142 = vpack.c.bf16 %v3123, %v3127
  %v3143 = vpack.c.bf16 %v3132, %v3136
  %v3144 = vpack.c.bf16 %v3124, %v3128
  %3145 = vst [vmem:[#allocation2] sm:$0xff] %v3137
  %3146 = vst [vmem:[#allocation2 + $0x8] sm:$0xff] %v3138
  %3147 = vst [vmem:[#allocation2 + $0x10] sm:$0xff] %v3139
  %3148 = vst [vmem:[#allocation2 + $0x18] sm:$0xff] %v3140
  %3149 = vst [vmem:[#allocation2 + $0x20] sm:$0xff] %v3141
  %3150 = vst [vmem:[#allocation2 + $0x28] sm:$0xff] %v3142
  %3151 = vst [vmem:[#allocation2 + $0x30] sm:$0xff] %v3143
  %3152 = vst [vmem:[#allocation2 + $0x38] sm:$0xff] %v3144
  %3153 = vrot.lane.b32.xlu0 %v3057, 1
  %v3154 = vpop.permute.xlu0 %3153
  %3155 = vrot.lane.b32.xlu0 %v3061, 1
  %v3156 = vpop.permute.xlu0 %3155
  %3157 = vrot.lane.b32.xlu0 %v3065, 1
  %v3158 = vpop.permute.xlu0 %3157
  %3159 = vrot.lane.b32.xlu0 %v3069, 1
  %v3160 = vpop.permute.xlu0 %3159
  %3161 = vrot.lane.b32.xlu0 %v3058, 1
  %v3162 = vpop.permute.xlu0 %3161
  %3163 = vrot.lane.b32.xlu0 %v3062, 1
  %v3164 = vpop.permute.xlu0 %3163
  %3165 = vrot.lane.b32.xlu0 %v3066, 1
  %v3166 = vpop.permute.xlu0 %3165
  %3167 = vrot.lane.b32.xlu0 %v3070, 1
  %v3168 = vpop.permute.xlu0 %3167
  %3169 = vrot.lane.b32.xlu0 %v3059, 1
  %v3170 = vpop.permute.xlu0 %3169
  %3171 = vrot.lane.b32.xlu0 %v3063, 1
  %v3172 = vpop.permute.xlu0 %3171
  %3173 = vrot.lane.b32.xlu0 %v3067, 1
  %v3174 = vpop.permute.xlu0 %3173
  %3175 = vrot.lane.b32.xlu0 %v3071, 1
  %v3176 = vpop.permute.xlu0 %3175
  %3177 = vrot.lane.b32.xlu0 %v3060, 1
  %v3178 = vpop.permute.xlu0 %3177
  %3179 = vrot.lane.b32.xlu0 %v3064, 1
  %v3180 = vpop.permute.xlu0 %3179
  %3181 = vrot.lane.b32.xlu0 %v3068, 1
  %v3182 = vpop.permute.xlu0 %3181
  %3183 = vrot.lane.b32.xlu0 %v3072, 1
  %v3184 = vpop.permute.xlu0 %3183
  %v3185 = vsel %vm322, %v3170, %v3178
  %v3186 = vsel %vm322, %v3172, %v3180
  %v3187 = vsel %vm322, %v3174, %v3182
  %v3188 = vsel %vm322, %v3176, %v3184
  %v3189 = vsel %vm322, %v3162, %v3170
  %v3190 = vsel %vm322, %v3164, %v3172
  %v3191 = vsel %vm322, %v3166, %v3174
  %v3192 = vsel %vm322, %v3168, %v3176
  %v3193 = vsel %vm322, %v3154, %v3162
  %v3194 = vsel %vm322, %v3156, %v3164
  %v3195 = vsel %vm322, %v3158, %v3166
  %v3196 = vsel %vm322, %v3160, %v3168
  %v3197 = vsel %vm322, %v3178, %v3154
  %v3198 = vsel %vm322, %v3180, %v3156
  %v3199 = vsel %vm322, %v3182, %v3158
  %v3200 = vsel %vm322, %v3184, %v3160
  %v3201 = vpack.c.bf16 %v3193, %v3197
  %v3202 = vpack.c.bf16 %v3185, %v3189
  %v3203 = vpack.c.bf16 %v3194, %v3198
  %v3204 = vpack.c.bf16 %v3186, %v3190
  %v3205 = vpack.c.bf16 %v3195, %v3199
  %v3206 = vpack.c.bf16 %v3187, %v3191
  %v3207 = vpack.c.bf16 %v3196, %v3200
  %v3208 = vpack.c.bf16 %v3188, %v3192
  %3209 = vst [vmem:[#allocation2 + $0x40] sm:$0xff] %v3201
  %3210 = vst [vmem:[#allocation2 + $0x48] sm:$0xff] %v3202
  %3211 = vst [vmem:[#allocation2 + $0x50] sm:$0xff] %v3203
  %3212 = vst [vmem:[#allocation2 + $0x58] sm:$0xff] %v3204
  %3213 = vst [vmem:[#allocation2 + $0x60] sm:$0xff] %v3205
  %3214 = vst [vmem:[#allocation2 + $0x68] sm:$0xff] %v3206
  %3215 = vst [vmem:[#allocation2 + $0x70] sm:$0xff] %v3207
  %3216 = vst [vmem:[#allocation2 + $0x78] sm:$0xff] %v3208
  %v3217 = vpack.c.bf16 %v3058, %v3057
  %v3218 = vpack.c.bf16 %v3060, %v3059
  %v3219 = vpack.c.bf16 %v3062, %v3061
  %v3220 = vpack.c.bf16 %v3064, %v3063
  %v3221 = vpack.c.bf16 %v3066, %v3065
  %v3222 = vpack.c.bf16 %v3068, %v3067
  %v3223 = vpack.c.bf16 %v3070, %v3069
  %v3224 = vpack.c.bf16 %v3072, %v3071
  %3225 = vst [vmem:[#allocation2 + $0x80] sm:$0xff] %v3217
  %3226 = vst [vmem:[#allocation2 + $0x88] sm:$0xff] %v3218
  %3227 = vst [vmem:[#allocation2 + $0x90] sm:$0xff] %v3219
  %3228 = vst [vmem:[#allocation2 + $0x98] sm:$0xff] %v3220
  %3229 = vst [vmem:[#allocation2 + $0xa0] sm:$0xff] %v3221
  %3230 = vst [vmem:[#allocation2 + $0xa8] sm:$0xff] %v3222
  %3231 = vst [vmem:[#allocation2 + $0xb0] sm:$0xff] %v3223
  %3232 = vst [vmem:[#allocation2 + $0xb8] sm:$0xff] %v3224
  %3233 = vrot.lane.b32.xlu0 %v3057, 127
  %v3234 = vpop.permute.xlu0 %3233
  %3235 = vrot.lane.b32.xlu0 %v3061, 127
  %v3236 = vpop.permute.xlu0 %3235
  %3237 = vrot.lane.b32.xlu0 %v3065, 127
  %v3238 = vpop.permute.xlu0 %3237
  %3239 = vrot.lane.b32.xlu0 %v3069, 127
  %v3240 = vpop.permute.xlu0 %3239
  %3241 = vrot.lane.b32.xlu0 %v3058, 127
  %v3242 = vpop.permute.xlu0 %3241
  %3243 = vrot.lane.b32.xlu0 %v3062, 127
  %v3244 = vpop.permute.xlu0 %3243
  %3245 = vrot.lane.b32.xlu0 %v3066, 127
  %v3246 = vpop.permute.xlu0 %3245
  %3247 = vrot.lane.b32.xlu0 %v3070, 127
  %v3248 = vpop.permute.xlu0 %3247
  %3249 = vrot.lane.b32.xlu0 %v3059, 127
  %v3250 = vpop.permute.xlu0 %3249
  %3251 = vrot.lane.b32.xlu0 %v3063, 127
  %v3252 = vpop.permute.xlu0 %3251
  %3253 = vrot.lane.b32.xlu0 %v3067, 127
  %v3254 = vpop.permute.xlu0 %3253
  %3255 = vrot.lane.b32.xlu0 %v3071, 127
  %v3256 = vpop.permute.xlu0 %3255
  %3257 = vrot.lane.b32.xlu0 %v3060, 127
  %v3258 = vpop.permute.xlu0 %3257
  %3259 = vrot.lane.b32.xlu0 %v3064, 127
  %v3260 = vpop.permute.xlu0 %3259
  %3261 = vrot.lane.b32.xlu0 %v3068, 127
  %v3262 = vpop.permute.xlu0 %3261
  %3263 = vrot.lane.b32.xlu0 %v3072, 127
  %v3264 = vpop.permute.xlu0 %3263
  %v3265 = vsel %vm403, %v3250, %v3258
  %v3266 = vsel %vm403, %v3252, %v3260
  %v3267 = vsel %vm403, %v3254, %v3262
  %v3268 = vsel %vm403, %v3256, %v3264
  %v3269 = vsel %vm403, %v3242, %v3250
  %v3270 = vsel %vm403, %v3244, %v3252
  %v3271 = vsel %vm403, %v3246, %v3254
  %v3272 = vsel %vm403, %v3248, %v3256
  %v3273 = vsel %vm403, %v3234, %v3242
  %v3274 = vsel %vm403, %v3236, %v3244
  %v3275 = vsel %vm403, %v3238, %v3246
  %v3276 = vsel %vm403, %v3240, %v3248
  %v3277 = vsel %vm403, %v3258, %v3234
  %v3278 = vsel %vm403, %v3260, %v3236
  %v3279 = vsel %vm403, %v3262, %v3238
  %v3280 = vsel %vm403, %v3264, %v3240
  %v3281 = vpack.c.bf16 %v3269, %v3273
  %v3282 = vpack.c.bf16 %v3277, %v3265
  %v3283 = vpack.c.bf16 %v3270, %v3274
  %v3284 = vpack.c.bf16 %v3278, %v3266
  %v3285 = vpack.c.bf16 %v3271, %v3275
  %v3286 = vpack.c.bf16 %v3279, %v3267
  %v3287 = vpack.c.bf16 %v3272, %v3276
  %v3288 = vpack.c.bf16 %v3280, %v3268
  %3289 = vst [vmem:[#allocation2 + $0xc0] sm:$0xff] %v3281
  %3290 = vst [vmem:[#allocation2 + $0xc8] sm:$0xff] %v3282
  %3291 = vst [vmem:[#allocation2 + $0xd0] sm:$0xff] %v3283
  %3292 = vst [vmem:[#allocation2 + $0xd8] sm:$0xff] %v3284
  %3293 = vst [vmem:[#allocation2 + $0xe0] sm:$0xff] %v3285
  %3294 = vst [vmem:[#allocation2 + $0xe8] sm:$0xff] %v3286
  %3295 = vst [vmem:[#allocation2 + $0xf0] sm:$0xff] %v3287
  %3296 = vst [vmem:[#allocation2 + $0xf8] sm:$0xff] %v3288
  %3297 = vrot.lane.b32.xlu0 %v3057, 126
  %v3298 = vpop.permute.xlu0 %3297
  %3299 = vrot.lane.b32.xlu0 %v3061, 126
  %v3300 = vpop.permute.xlu0 %3299
  %3301 = vrot.lane.b32.xlu0 %v3065, 126
  %v3302 = vpop.permute.xlu0 %3301
  %3303 = vrot.lane.b32.xlu0 %v3069, 126
  %v3304 = vpop.permute.xlu0 %3303
  %3305 = vrot.lane.b32.xlu0 %v3058, 126
  %v3306 = vpop.permute.xlu0 %3305
  %3307 = vrot.lane.b32.xlu0 %v3062, 126
  %v3308 = vpop.permute.xlu0 %3307
  %3309 = vrot.lane.b32.xlu0 %v3066, 126
  %v3310 = vpop.permute.xlu0 %3309
  %3311 = vrot.lane.b32.xlu0 %v3070, 126
  %v3312 = vpop.permute.xlu0 %3311
  %3313 = vrot.lane.b32.xlu0 %v3059, 126
  %v3314 = vpop.permute.xlu0 %3313
  %3315 = vrot.lane.b32.xlu0 %v3063, 126
  %v3316 = vpop.permute.xlu0 %3315
  %3317 = vrot.lane.b32.xlu0 %v3067, 126
  %v3318 = vpop.permute.xlu0 %3317
  %3319 = vrot.lane.b32.xlu0 %v3071, 126
  %v3320 = vpop.permute.xlu0 %3319
  %3321 = vrot.lane.b32.xlu0 %v3060, 126
  %v3322 = vpop.permute.xlu0 %3321
  %3323 = vrot.lane.b32.xlu0 %v3064, 126
  %v3324 = vpop.permute.xlu0 %3323
  %3325 = vrot.lane.b32.xlu0 %v3068, 126
  %v3326 = vpop.permute.xlu0 %3325
  %3327 = vrot.lane.b32.xlu0 %v3072, 126
  %v3328 = vpop.permute.xlu0 %3327
  %v3329 = vsel %vm468, %v3314, %v3322
  %v3330 = vsel %vm468, %v3316, %v3324
  %v3331 = vsel %vm468, %v3318, %v3326
  %v3332 = vsel %vm468, %v3320, %v3328
  %v3333 = vsel %vm468, %v3306, %v3314
  %v3334 = vsel %vm468, %v3308, %v3316
  %v3335 = vsel %vm468, %v3310, %v3318
  %v3336 = vsel %vm468, %v3312, %v3320
  %v3337 = vsel %vm468, %v3298, %v3306
  %v3338 = vsel %vm468, %v3300, %v3308
  %v3339 = vsel %vm468, %v3302, %v3310
  %v3340 = vsel %vm468, %v3304, %v3312
  %v3341 = vsel %vm468, %v3322, %v3298
  %v3342 = vsel %vm468, %v3324, %v3300
  %v3343 = vsel %vm468, %v3326, %v3302
  %v3344 = vsel %vm468, %v3328, %v3304
  %v3345 = vpack.c.bf16 %v3333, %v3337
  %v3346 = vpack.c.bf16 %v3341, %v3329
  %v3347 = vpack.c.bf16 %v3334, %v3338
  %v3348 = vpack.c.bf16 %v3342, %v3330
  %v3349 = vpack.c.bf16 %v3335, %v3339
  %v3350 = vpack.c.bf16 %v3343, %v3331
  %v3351 = vpack.c.bf16 %v3336, %v3340
  %v3352 = vpack.c.bf16 %v3344, %v3332
  %3353 = vst [vmem:[#allocation2 + $0x100] sm:$0xff] %v3345
  %3354 = vst [vmem:[#allocation2 + $0x108] sm:$0xff] %v3346
  %3355 = vst [vmem:[#allocation2 + $0x110] sm:$0xff] %v3347
  %3356 = vst [vmem:[#allocation2 + $0x118] sm:$0xff] %v3348
  %3357 = vst [vmem:[#allocation2 + $0x120] sm:$0xff] %v3349
  %3358 = vst [vmem:[#allocation2 + $0x128] sm:$0xff] %v3350
  %3359 = vst [vmem:[#allocation2 + $0x130] sm:$0xff] %v3351
  %3360 = vst [vmem:[#allocation2 + $0x138] sm:$0xff] %v3352
  %s3361 = scalar_lea.vmem %s5, 128
  %v3362 = vld [vmem:[%s3361] sm:$0xff]
  %v3363 = vld [vmem:[%s3361 + $0x8] sm:$0xff]
  %v3364 = vld [vmem:[%s3361 + $0x10] sm:$0xff]
  %v3365 = vld [vmem:[%s3361 + $0x18] sm:$0xff]
  %v3366 = vld [vmem:[%s3361 + $0x20] sm:$0xff]
  %v3367 = vld [vmem:[%s3361 + $0x28] sm:$0xff]
  %v3368 = vld [vmem:[%s3361 + $0x30] sm:$0xff]
  %v3369 = vld [vmem:[%s3361 + $0x38] sm:$0xff]
  %v3370 = vld [vmem:[#allocation2] sm:$0xff]
  %v3371 = vld [vmem:[#allocation2 + $0x8] sm:$0xff]
  %v3372 = vld [vmem:[#allocation2 + $0x10] sm:$0xff]
  %v3373 = vld [vmem:[#allocation2 + $0x18] sm:$0xff]
  %v3374 = vld [vmem:[#allocation2 + $0x20] sm:$0xff]
  %v3375 = vld [vmem:[#allocation2 + $0x28] sm:$0xff]
  %v3376 = vld [vmem:[#allocation2 + $0x30] sm:$0xff]
  %v3377 = vld [vmem:[#allocation2 + $0x38] sm:$0xff]
  %v3378 = vld [vmem:[#allocation2 + $0x40] sm:$0xff]
  %v3379 = vld [vmem:[#allocation2 + $0x48] sm:$0xff]
  %v3380 = vld [vmem:[#allocation2 + $0x50] sm:$0xff]
  %v3381 = vld [vmem:[#allocation2 + $0x58] sm:$0xff]
  %v3382 = vld [vmem:[#allocation2 + $0x60] sm:$0xff]
  %v3383 = vld [vmem:[#allocation2 + $0x68] sm:$0xff]
  %v3384 = vld [vmem:[#allocation2 + $0x70] sm:$0xff]
  %v3385 = vld [vmem:[#allocation2 + $0x78] sm:$0xff]
  %v3386 = vld [vmem:[#allocation2 + $0x80] sm:$0xff]
  %v3387 = vld [vmem:[#allocation2 + $0x88] sm:$0xff]
  %v3388 = vld [vmem:[#allocation2 + $0x90] sm:$0xff]
  %v3389 = vld [vmem:[#allocation2 + $0x98] sm:$0xff]
  %v3390 = vld [vmem:[#allocation2 + $0xa0] sm:$0xff]
  %v3391 = vld [vmem:[#allocation2 + $0xa8] sm:$0xff]
  %v3392 = vld [vmem:[#allocation2 + $0xb0] sm:$0xff]
  %v3393 = vld [vmem:[#allocation2 + $0xb8] sm:$0xff]
  %v3394 = vld [vmem:[#allocation2 + $0xc0] sm:$0xff]
  %v3395 = vld [vmem:[#allocation2 + $0xc8] sm:$0xff]
  %v3396 = vld [vmem:[#allocation2 + $0xd0] sm:$0xff]
  %v3397 = vld [vmem:[#allocation2 + $0xd8] sm:$0xff]
  %v3398 = vld [vmem:[#allocation2 + $0xe0] sm:$0xff]
  %v3399 = vld [vmem:[#allocation2 + $0xe8] sm:$0xff]
  %v3400 = vld [vmem:[#allocation2 + $0xf0] sm:$0xff]
  %v3401 = vld [vmem:[#allocation2 + $0xf8] sm:$0xff]
  %v3402 = vld [vmem:[#allocation2 + $0x100] sm:$0xff]
  %v3403 = vld [vmem:[#allocation2 + $0x108] sm:$0xff]
  %v3404 = vld [vmem:[#allocation2 + $0x110] sm:$0xff]
  %v3405 = vld [vmem:[#allocation2 + $0x118] sm:$0xff]
  %v3406 = vld [vmem:[#allocation2 + $0x120] sm:$0xff]
  %v3407 = vld [vmem:[#allocation2 + $0x128] sm:$0xff]
  %v3408 = vld [vmem:[#allocation2 + $0x130] sm:$0xff]
  %v3409 = vld [vmem:[#allocation2 + $0x138] sm:$0xff]
  %s3410 = scalar_lea.vmem %s2, 512
  %v3411 = vld [vmem:[%s3410] sm:$0xff]
  %v3412 = vld [vmem:[%s3410 + $0x8] sm:$0xff]
  %v3413 = vld [vmem:[%s3410 + $0x10] sm:$0xff]
  %v3414 = vld [vmem:[%s3410 + $0x18] sm:$0xff]
  %v3415 = vld [vmem:[%s3410 + $0x20] sm:$0xff]
  %v3416 = vld [vmem:[%s3410 + $0x28] sm:$0xff]
  %v3417 = vld [vmem:[%s3410 + $0x30] sm:$0xff]
  %v3418 = vld [vmem:[%s3410 + $0x38] sm:$0xff]
  %v3419 = vld [vmem:[%s3410 + $0x40] sm:$0xff]
  %v3420 = vld [vmem:[%s3410 + $0x48] sm:$0xff]
  %v3421 = vld [vmem:[%s3410 + $0x50] sm:$0xff]
  %v3422 = vld [vmem:[%s3410 + $0x58] sm:$0xff]
  %v3423 = vld [vmem:[%s3410 + $0x60] sm:$0xff]
  %v3424 = vld [vmem:[%s3410 + $0x68] sm:$0xff]
  %v3425 = vld [vmem:[%s3410 + $0x70] sm:$0xff]
  %v3426 = vld [vmem:[%s3410 + $0x78] sm:$0xff]
  %v3427 = vld [vmem:[%s3410 + $0x80] sm:$0xff]
  %v3428 = vld [vmem:[%s3410 + $0x88] sm:$0xff]
  %v3429 = vld [vmem:[%s3410 + $0x90] sm:$0xff]
  %v3430 = vld [vmem:[%s3410 + $0x98] sm:$0xff]
  %v3431 = vld [vmem:[%s3410 + $0xa0] sm:$0xff]
  %v3432 = vld [vmem:[%s3410 + $0xa8] sm:$0xff]
  %v3433 = vld [vmem:[%s3410 + $0xb0] sm:$0xff]
  %v3434 = vld [vmem:[%s3410 + $0xb8] sm:$0xff]
  %v3435 = vld [vmem:[%s3410 + $0xc0] sm:$0xff]
  %v3436 = vld [vmem:[%s3410 + $0xc8] sm:$0xff]
  %v3437 = vld [vmem:[%s3410 + $0xd0] sm:$0xff]
  %v3438 = vld [vmem:[%s3410 + $0xd8] sm:$0xff]
  %v3439 = vld [vmem:[%s3410 + $0xe0] sm:$0xff]
  %v3440 = vld [vmem:[%s3410 + $0xe8] sm:$0xff]
  %v3441 = vld [vmem:[%s3410 + $0xf0] sm:$0xff]
  %v3442 = vld [vmem:[%s3410 + $0xf8] sm:$0xff]
  %v3451 = vunpack.c.l.b16 %v3362
  %v3452 = vunpack.c.h.b16 %v3362
  %v3453 = vunpack.c.l.b16 %v3363
  %v3454 = vunpack.c.h.b16 %v3363
  %v3455 = vunpack.c.l.b16 %v3364
  %v3456 = vunpack.c.h.b16 %v3364
  %v3457 = vunpack.c.l.b16 %v3365
  %v3458 = vunpack.c.h.b16 %v3365
  %v3459 = vunpack.c.l.b16 %v3366
  %v3460 = vunpack.c.h.b16 %v3366
  %v3461 = vunpack.c.l.b16 %v3367
  %v3462 = vunpack.c.h.b16 %v3367
  %v3463 = vunpack.c.l.b16 %v3368
  %v3464 = vunpack.c.h.b16 %v3368
  %v3465 = vunpack.c.l.b16 %v3369
  %v3466 = vunpack.c.h.b16 %v3369
  %v3467 = vpack.c.b16 %v3453, %v3451
  %v3468 = vpack.c.b16 %v3454, %v3452
  %v3469 = vpack.c.b16 %v3457, %v3455
  %v3470 = vpack.c.b16 %v3458, %v3456
  %v3471 = vpack.c.b16 %v3461, %v3459
  %v3472 = vpack.c.b16 %v3462, %v3460
  %v3473 = vpack.c.b16 %v3465, %v3463
  %v3474 = vpack.c.b16 %v3466, %v3464
  %v3519 = vunpack.c.l.b16 %v3370
  %v3520 = vunpack.c.h.b16 %v3370
  %v3521 = vunpack.c.l.b16 %v3371
  %v3522 = vunpack.c.h.b16 %v3371
  %v3523 = vunpack.c.l.b16 %v3372
  %v3524 = vunpack.c.h.b16 %v3372
  %v3525 = vunpack.c.l.b16 %v3373
  %v3526 = vunpack.c.h.b16 %v3373
  %v3527 = vunpack.c.l.b16 %v3374
  %v3528 = vunpack.c.h.b16 %v3374
  %v3529 = vunpack.c.l.b16 %v3375
  %v3530 = vunpack.c.h.b16 %v3375
  %v3531 = vunpack.c.l.b16 %v3376
  %v3532 = vunpack.c.h.b16 %v3376
  %v3533 = vunpack.c.l.b16 %v3377
  %v3534 = vunpack.c.h.b16 %v3377
  %v3535 = vunpack.c.l.b16 %v3378
  %v3536 = vunpack.c.h.b16 %v3378
  %v3537 = vunpack.c.l.b16 %v3379
  %v3538 = vunpack.c.h.b16 %v3379
  %v3539 = vunpack.c.l.b16 %v3380
  %v3540 = vunpack.c.h.b16 %v3380
  %v3541 = vunpack.c.l.b16 %v3381
  %v3542 = vunpack.c.h.b16 %v3381
  %v3543 = vunpack.c.l.b16 %v3382
  %v3544 = vunpack.c.h.b16 %v3382
  %v3545 = vunpack.c.l.b16 %v3383
  %v3546 = vunpack.c.h.b16 %v3383
  %v3547 = vunpack.c.l.b16 %v3384
  %v3548 = vunpack.c.h.b16 %v3384
  %v3549 = vunpack.c.l.b16 %v3385
  %v3550 = vunpack.c.h.b16 %v3385
  %v3551 = vunpack.c.l.b16 %v3386
  %v3552 = vunpack.c.h.b16 %v3386
  %v3553 = vunpack.c.l.b16 %v3387
  %v3554 = vunpack.c.h.b16 %v3387
  %v3555 = vunpack.c.l.b16 %v3388
  %v3556 = vunpack.c.h.b16 %v3388
  %v3557 = vunpack.c.l.b16 %v3389
  %v3558 = vunpack.c.h.b16 %v3389
  %v3559 = vunpack.c.l.b16 %v3390
  %v3560 = vunpack.c.h.b16 %v3390
  %v3561 = vunpack.c.l.b16 %v3391
  %v3562 = vunpack.c.h.b16 %v3391
  %v3563 = vunpack.c.l.b16 %v3392
  %v3564 = vunpack.c.h.b16 %v3392
  %v3565 = vunpack.c.l.b16 %v3393
  %v3566 = vunpack.c.h.b16 %v3393
  %v3567 = vunpack.c.l.b16 %v3394
  %v3568 = vunpack.c.h.b16 %v3394
  %v3569 = vunpack.c.l.b16 %v3395
  %v3570 = vunpack.c.h.b16 %v3395
  %v3571 = vunpack.c.l.b16 %v3396
  %v3572 = vunpack.c.h.b16 %v3396
  %v3573 = vunpack.c.l.b16 %v3397
  %v3574 = vunpack.c.h.b16 %v3397
  %v3575 = vunpack.c.l.b16 %v3398
  %v3576 = vunpack.c.h.b16 %v3398
  %v3577 = vunpack.c.l.b16 %v3399
  %v3578 = vunpack.c.h.b16 %v3399
  %v3579 = vunpack.c.l.b16 %v3400
  %v3580 = vunpack.c.h.b16 %v3400
  %v3581 = vunpack.c.l.b16 %v3401
  %v3582 = vunpack.c.h.b16 %v3401
  %v3583 = vunpack.c.l.b16 %v3402
  %v3584 = vunpack.c.h.b16 %v3402
  %v3585 = vunpack.c.l.b16 %v3403
  %v3586 = vunpack.c.h.b16 %v3403
  %v3587 = vunpack.c.l.b16 %v3404
  %v3588 = vunpack.c.h.b16 %v3404
  %v3589 = vunpack.c.l.b16 %v3405
  %v3590 = vunpack.c.h.b16 %v3405
  %v3591 = vunpack.c.l.b16 %v3406
  %v3592 = vunpack.c.h.b16 %v3406
  %v3593 = vunpack.c.l.b16 %v3407
  %v3594 = vunpack.c.h.b16 %v3407
  %v3595 = vunpack.c.l.b16 %v3408
  %v3596 = vunpack.c.h.b16 %v3408
  %v3597 = vunpack.c.l.b16 %v3409
  %v3598 = vunpack.c.h.b16 %v3409
  %v3599 = vpack.c.b16 %v3523, %v3519
  %v3600 = vpack.c.b16 %v3524, %v3520
  %v3601 = vpack.c.b16 %v3525, %v3521
  %v3602 = vpack.c.b16 %v3526, %v3522
  %v3603 = vpack.c.b16 %v3531, %v3527
  %v3604 = vpack.c.b16 %v3532, %v3528
  %v3605 = vpack.c.b16 %v3533, %v3529
  %v3606 = vpack.c.b16 %v3534, %v3530
  %v3607 = vpack.c.b16 %v3539, %v3535
  %v3608 = vpack.c.b16 %v3540, %v3536
  %v3609 = vpack.c.b16 %v3541, %v3537
  %v3610 = vpack.c.b16 %v3542, %v3538
  %v3611 = vpack.c.b16 %v3547, %v3543
  %v3612 = vpack.c.b16 %v3548, %v3544
  %v3613 = vpack.c.b16 %v3549, %v3545
  %v3614 = vpack.c.b16 %v3550, %v3546
  %v3615 = vpack.c.b16 %v3555, %v3551
  %v3616 = vpack.c.b16 %v3556, %v3552
  %v3617 = vpack.c.b16 %v3557, %v3553
  %v3618 = vpack.c.b16 %v3558, %v3554
  %v3619 = vpack.c.b16 %v3563, %v3559
  %v3620 = vpack.c.b16 %v3564, %v3560
  %v3621 = vpack.c.b16 %v3565, %v3561
  %v3622 = vpack.c.b16 %v3566, %v3562
  %v3623 = vpack.c.b16 %v3571, %v3567
  %v3624 = vpack.c.b16 %v3572, %v3568
  %v3625 = vpack.c.b16 %v3573, %v3569
  %v3626 = vpack.c.b16 %v3574, %v3570
  %v3627 = vpack.c.b16 %v3579, %v3575
  %v3628 = vpack.c.b16 %v3580, %v3576
  %v3629 = vpack.c.b16 %v3581, %v3577
  %v3630 = vpack.c.b16 %v3582, %v3578
  %v3631 = vpack.c.b16 %v3587, %v3583
  %v3632 = vpack.c.b16 %v3588, %v3584
  %v3633 = vpack.c.b16 %v3589, %v3585
  %v3634 = vpack.c.b16 %v3590, %v3586
  %v3635 = vpack.c.b16 %v3595, %v3591
  %v3636 = vpack.c.b16 %v3596, %v3592
  %v3637 = vpack.c.b16 %v3597, %v3593
  %v3638 = vpack.c.b16 %v3598, %v3594
  %v3680 = vsel %vm124, %v3468, 0
  %v3683 = vsel %vm124, %v3470, 0
  %v3686 = vsel %vm124, %v3472, 0
  %v3689 = vsel %vm124, %v3474, 0
  %3691 = vmatpush.bf16.msra.mxu0 %v3627
  %3692 = vmatpush.bf16.msra.mxu0 %v3623
  %3693 = vmatpush.bf16.msra.mxu0 %v3619
  %3694 = vmatpush.bf16.msra.mxu0 %v3615
  %3695 = vmatpush.bf16.msra.mxu0 %v3611
  %3696 = vmatpush.bf16.msra.mxu0 %v3607
  %3697 = vmatpush.bf16.msra.mxu0 %v3603
  %3698 = vmatpush.bf16.msra.mxu0 %v3599
  %3699 = vmatmul.bf16.gmra.mxu0 %v3467
  %v3700 = vpop.f32.mrf.mxu0
  %v3701 = vadd.f32 %v3411, %v3700
  %v3702 = vpop.f32.mrf.mxu0
  %v3703 = vadd.f32 %v3415, %v3702
  %3704 = vmatmul.bf16.gmra.mxu0 %v3469
  %v3705 = vpop.f32.mrf.mxu0
  %v3706 = vadd.f32 %v3419, %v3705
  %v3707 = vpop.f32.mrf.mxu0
  %v3708 = vadd.f32 %v3423, %v3707
  %3709 = vmatmul.bf16.gmra.mxu0 %v3471
  %v3710 = vpop.f32.mrf.mxu0
  %v3711 = vadd.f32 %v3427, %v3710
  %v3712 = vpop.f32.mrf.mxu0
  %v3713 = vadd.f32 %v3431, %v3712
  %3714 = vmatmul.bf16.gmra.mxu0 %v3473
  %v3715 = vpop.f32.mrf.mxu0
  %v3716 = vadd.f32 %v3435, %v3715
  %v3717 = vpop.f32.mrf.mxu0
  %v3718 = vadd.f32 %v3439, %v3717
  %3719 = vdwg.mxu0
  %3720 = vmatpush.bf16.msra.mxu0 0
  %3721 = vmatpush.bf16.msra.mxu0 0
  %3722 = vmatpush.bf16.msra.mxu0 0
  %3723 = vmatpush.bf16.msra.mxu0 0
  %3724 = vmatpush.bf16.msra.mxu0 0
  %3725 = vmatpush.bf16.msra.mxu0 0
  %3726 = vmatpush.bf16.msra.mxu0 %v3635
  %3727 = vmatpush.bf16.msra.mxu0 %v3631
  %3728 = vmatmul.bf16.gmra.mxu0 %v3680
  %v3729 = vpop.f32.mrf.mxu0
  %v3730 = vadd.f32 %v3701, %v3729
  %v3731 = vpop.f32.mrf.mxu0
  %v3732 = vadd.f32 %v3703, %v3731
  %3733 = vmatmul.bf16.gmra.mxu0 %v3683
  %v3734 = vpop.f32.mrf.mxu0
  %v3735 = vadd.f32 %v3706, %v3734
  %v3736 = vpop.f32.mrf.mxu0
  %v3737 = vadd.f32 %v3708, %v3736
  %3738 = vmatmul.bf16.gmra.mxu0 %v3686
  %v3739 = vpop.f32.mrf.mxu0
  %v3740 = vadd.f32 %v3711, %v3739
  %v3741 = vpop.f32.mrf.mxu0
  %v3742 = vadd.f32 %v3713, %v3741
  %3743 = vmatmul.bf16.gmra.mxu0 %v3689
  %v3744 = vpop.f32.mrf.mxu0
  %v3745 = vadd.f32 %v3716, %v3744
  %v3746 = vpop.f32.mrf.mxu0
  %v3747 = vadd.f32 %v3718, %v3746
  %3748 = vdwg.mxu0
  %3749 = vmatpush.bf16.msra.mxu0 %v3628
  %3750 = vmatpush.bf16.msra.mxu0 %v3624
  %3751 = vmatpush.bf16.msra.mxu0 %v3620
  %3752 = vmatpush.bf16.msra.mxu0 %v3616
  %3753 = vmatpush.bf16.msra.mxu0 %v3612
  %3754 = vmatpush.bf16.msra.mxu0 %v3608
  %3755 = vmatpush.bf16.msra.mxu0 %v3604
  %3756 = vmatpush.bf16.msra.mxu0 %v3600
  %3757 = vmatmul.bf16.gmra.mxu0 %v3467
  %v3758 = vpop.f32.mrf.mxu0
  %v3759 = vadd.f32 %v3412, %v3758
  %v3760 = vpop.f32.mrf.mxu0
  %v3761 = vadd.f32 %v3416, %v3760
  %3762 = vmatmul.bf16.gmra.mxu0 %v3469
  %v3763 = vpop.f32.mrf.mxu0
  %v3764 = vadd.f32 %v3420, %v3763
  %v3765 = vpop.f32.mrf.mxu0
  %v3766 = vadd.f32 %v3424, %v3765
  %3767 = vmatmul.bf16.gmra.mxu0 %v3471
  %v3768 = vpop.f32.mrf.mxu0
  %v3769 = vadd.f32 %v3428, %v3768
  %v3770 = vpop.f32.mrf.mxu0
  %v3771 = vadd.f32 %v3432, %v3770
  %3772 = vmatmul.bf16.gmra.mxu0 %v3473
  %v3773 = vpop.f32.mrf.mxu0
  %v3774 = vadd.f32 %v3436, %v3773
  %v3775 = vpop.f32.mrf.mxu0
  %v3776 = vadd.f32 %v3440, %v3775
  %3777 = vdwg.mxu0
  %3778 = vmatpush.bf16.msra.mxu0 0
  %3779 = vmatpush.bf16.msra.mxu0 0
  %3780 = vmatpush.bf16.msra.mxu0 0
  %3781 = vmatpush.bf16.msra.mxu0 0
  %3782 = vmatpush.bf16.msra.mxu0 0
  %3783 = vmatpush.bf16.msra.mxu0 0
  %3784 = vmatpush.bf16.msra.mxu0 %v3636
  %3785 = vmatpush.bf16.msra.mxu0 %v3632
  %3786 = vmatmul.bf16.gmra.mxu0 %v3680
  %v3787 = vpop.f32.mrf.mxu0
  %v3788 = vadd.f32 %v3759, %v3787
  %v3789 = vpop.f32.mrf.mxu0
  %v3790 = vadd.f32 %v3761, %v3789
  %3791 = vmatmul.bf16.gmra.mxu0 %v3683
  %v3792 = vpop.f32.mrf.mxu0
  %v3793 = vadd.f32 %v3764, %v3792
  %v3794 = vpop.f32.mrf.mxu0
  %v3795 = vadd.f32 %v3766, %v3794
  %3796 = vmatmul.bf16.gmra.mxu0 %v3686
  %v3797 = vpop.f32.mrf.mxu0
  %v3798 = vadd.f32 %v3769, %v3797
  %v3799 = vpop.f32.mrf.mxu0
  %v3800 = vadd.f32 %v3771, %v3799
  %3801 = vmatmul.bf16.gmra.mxu0 %v3689
  %v3802 = vpop.f32.mrf.mxu0
  %v3803 = vadd.f32 %v3774, %v3802
  %v3804 = vpop.f32.mrf.mxu0
  %v3805 = vadd.f32 %v3776, %v3804
  %3806 = vdwg.mxu0
  %3807 = vmatpush.bf16.msra.mxu0 %v3629
  %3808 = vmatpush.bf16.msra.mxu0 %v3625
  %3809 = vmatpush.bf16.msra.mxu0 %v3621
  %3810 = vmatpush.bf16.msra.mxu0 %v3617
  %3811 = vmatpush.bf16.msra.mxu0 %v3613
  %3812 = vmatpush.bf16.msra.mxu0 %v3609
  %3813 = vmatpush.bf16.msra.mxu0 %v3605
  %3814 = vmatpush.bf16.msra.mxu0 %v3601
  %3815 = vmatmul.bf16.gmra.mxu0 %v3467
  %v3816 = vpop.f32.mrf.mxu0
  %v3817 = vadd.f32 %v3413, %v3816
  %v3818 = vpop.f32.mrf.mxu0
  %v3819 = vadd.f32 %v3417, %v3818
  %3820 = vmatmul.bf16.gmra.mxu0 %v3469
  %v3821 = vpop.f32.mrf.mxu0
  %v3822 = vadd.f32 %v3421, %v3821
  %v3823 = vpop.f32.mrf.mxu0
  %v3824 = vadd.f32 %v3425, %v3823
  %3825 = vmatmul.bf16.gmra.mxu0 %v3471
  %v3826 = vpop.f32.mrf.mxu0
  %v3827 = vadd.f32 %v3429, %v3826
  %v3828 = vpop.f32.mrf.mxu0
  %v3829 = vadd.f32 %v3433, %v3828
  %3830 = vmatmul.bf16.gmra.mxu0 %v3473
  %v3831 = vpop.f32.mrf.mxu0
  %v3832 = vadd.f32 %v3437, %v3831
  %v3833 = vpop.f32.mrf.mxu0
  %v3834 = vadd.f32 %v3441, %v3833
  %3835 = vdwg.mxu0
  %3836 = vmatpush.bf16.msra.mxu0 0
  %3837 = vmatpush.bf16.msra.mxu0 0
  %3838 = vmatpush.bf16.msra.mxu0 0
  %3839 = vmatpush.bf16.msra.mxu0 0
  %3840 = vmatpush.bf16.msra.mxu0 0
  %3841 = vmatpush.bf16.msra.mxu0 0
  %3842 = vmatpush.bf16.msra.mxu0 %v3637
  %3843 = vmatpush.bf16.msra.mxu0 %v3633
  %3844 = vmatmul.bf16.gmra.mxu0 %v3680
  %v3845 = vpop.f32.mrf.mxu0
  %v3846 = vadd.f32 %v3817, %v3845
  %v3847 = vpop.f32.mrf.mxu0
  %v3848 = vadd.f32 %v3819, %v3847
  %3849 = vmatmul.bf16.gmra.mxu0 %v3683
  %v3850 = vpop.f32.mrf.mxu0
  %v3851 = vadd.f32 %v3822, %v3850
  %v3852 = vpop.f32.mrf.mxu0
  %v3853 = vadd.f32 %v3824, %v3852
  %3854 = vmatmul.bf16.gmra.mxu0 %v3686
  %v3855 = vpop.f32.mrf.mxu0
  %v3856 = vadd.f32 %v3827, %v3855
  %v3857 = vpop.f32.mrf.mxu0
  %v3858 = vadd.f32 %v3829, %v3857
  %3859 = vmatmul.bf16.gmra.mxu0 %v3689
  %v3860 = vpop.f32.mrf.mxu0
  %v3861 = vadd.f32 %v3832, %v3860
  %v3862 = vpop.f32.mrf.mxu0
  %v3863 = vadd.f32 %v3834, %v3862
  %3864 = vdwg.mxu0
  %3865 = vmatpush.bf16.msra.mxu0 %v3630
  %3866 = vmatpush.bf16.msra.mxu0 %v3626
  %3867 = vmatpush.bf16.msra.mxu0 %v3622
  %3868 = vmatpush.bf16.msra.mxu0 %v3618
  %3869 = vmatpush.bf16.msra.mxu0 %v3614
  %3870 = vmatpush.bf16.msra.mxu0 %v3610
  %3871 = vmatpush.bf16.msra.mxu0 %v3606
  %3872 = vmatpush.bf16.msra.mxu0 %v3602
  %3873 = vmatmul.bf16.gmra.mxu0 %v3467
  %v3874 = vpop.f32.mrf.mxu0
  %v3875 = vadd.f32 %v3414, %v3874
  %v3876 = vpop.f32.mrf.mxu0
  %v3877 = vadd.f32 %v3418, %v3876
  %3878 = vmatmul.bf16.gmra.mxu0 %v3469
  %v3879 = vpop.f32.mrf.mxu0
  %v3880 = vadd.f32 %v3422, %v3879
  %v3881 = vpop.f32.mrf.mxu0
  %v3882 = vadd.f32 %v3426, %v3881
  %3883 = vmatmul.bf16.gmra.mxu0 %v3471
  %v3884 = vpop.f32.mrf.mxu0
  %v3885 = vadd.f32 %v3430, %v3884
  %v3886 = vpop.f32.mrf.mxu0
  %v3887 = vadd.f32 %v3434, %v3886
  %3888 = vmatmul.bf16.gmra.mxu0 %v3473
  %v3889 = vpop.f32.mrf.mxu0
  %v3890 = vadd.f32 %v3438, %v3889
  %v3891 = vpop.f32.mrf.mxu0
  %v3892 = vadd.f32 %v3442, %v3891
  %3893 = vdwg.mxu0
  %3894 = vmatpush.bf16.msra.mxu0 0
  %3895 = vmatpush.bf16.msra.mxu0 0
  %3896 = vmatpush.bf16.msra.mxu0 0
  %3897 = vmatpush.bf16.msra.mxu0 0
  %3898 = vmatpush.bf16.msra.mxu0 0
  %3899 = vmatpush.bf16.msra.mxu0 0
  %3900 = vmatpush.bf16.msra.mxu0 %v3638
  %3901 = vmatpush.bf16.msra.mxu0 %v3634
  %3902 = vmatmul.bf16.gmra.mxu0 %v3680
  %v3903 = vpop.f32.mrf.mxu0
  %v3904 = vadd.f32 %v3875, %v3903
  %v3905 = vpop.f32.mrf.mxu0
  %v3906 = vadd.f32 %v3877, %v3905
  %3907 = vmatmul.bf16.gmra.mxu0 %v3683
  %v3908 = vpop.f32.mrf.mxu0
  %v3909 = vadd.f32 %v3880, %v3908
  %v3910 = vpop.f32.mrf.mxu0
  %v3911 = vadd.f32 %v3882, %v3910
  %3912 = vmatmul.bf16.gmra.mxu0 %v3686
  %v3913 = vpop.f32.mrf.mxu0
  %v3914 = vadd.f32 %v3885, %v3913
  %v3915 = vpop.f32.mrf.mxu0
  %v3916 = vadd.f32 %v3887, %v3915
  %3917 = vmatmul.bf16.gmra.mxu0 %v3689
  %v3918 = vpop.f32.mrf.mxu0
  %v3919 = vadd.f32 %v3890, %v3918
  %v3920 = vpop.f32.mrf.mxu0
  %v3921 = vadd.f32 %v3892, %v3920
  %3922 = vdwg.mxu0
  %v3923 = vtanh.pop %v3730
  %v3924 = vtanh.pop %v3788
  %v3925 = vtanh.pop %v3846
  %v3926 = vtanh.pop %v3904
  %v3927 = vtanh.pop %v3732
  %v3928 = vtanh.pop %v3790
  %v3929 = vtanh.pop %v3848
  %v3930 = vtanh.pop %v3906
  %v3931 = vtanh.pop %v3735
  %v3932 = vtanh.pop %v3793
  %v3933 = vtanh.pop %v3851
  %v3934 = vtanh.pop %v3909
  %v3935 = vtanh.pop %v3737
  %v3936 = vtanh.pop %v3795
  %v3937 = vtanh.pop %v3853
  %v3938 = vtanh.pop %v3911
  %v3939 = vxor.u32 %v3740, 2147483648
  %v3940 = vxor.u32 %v3798, 2147483648
  %v3941 = vxor.u32 %v3856, 2147483648
  %v3942 = vxor.u32 %v3914, 2147483648
  %v3943 = vxor.u32 %v3742, 2147483648
  %v3944 = vxor.u32 %v3800, 2147483648
  %v3945 = vxor.u32 %v3858, 2147483648
  %v3946 = vxor.u32 %v3916, 2147483648
  %v3947 = vxor.u32 %v3745, 2147483648
  %v3948 = vxor.u32 %v3803, 2147483648
  %v3949 = vxor.u32 %v3861, 2147483648
  %v3950 = vxor.u32 %v3919, 2147483648
  %v3951 = vxor.u32 %v3747, 2147483648
  %v3952 = vxor.u32 %v3805, 2147483648
  %v3953 = vxor.u32 %v3863, 2147483648
  %v3954 = vxor.u32 %v3921, 2147483648
  %v3955 = vmul.f32 %v3939, 1.442695
  %v3956 = vpow.pop %v3955
  %v3957 = vmul.f32 %v3940, 1.442695
  %v3958 = vpow.pop %v3957
  %v3959 = vmul.f32 %v3941, 1.442695
  %v3960 = vpow.pop %v3959
  %v3961 = vmul.f32 %v3942, 1.442695
  %v3962 = vpow.pop %v3961
  %v3963 = vmul.f32 %v3943, 1.442695
  %v3964 = vpow.pop %v3963
  %v3965 = vmul.f32 %v3944, 1.442695
  %v3966 = vpow.pop %v3965
  %v3967 = vmul.f32 %v3945, 1.442695
  %v3968 = vpow.pop %v3967
  %v3969 = vmul.f32 %v3946, 1.442695
  %v3970 = vpow.pop %v3969
  %v3971 = vmul.f32 %v3947, 1.442695
  %v3972 = vpow.pop %v3971
  %v3973 = vmul.f32 %v3948, 1.442695
  %v3974 = vpow.pop %v3973
  %v3975 = vmul.f32 %v3949, 1.442695
  %v3976 = vpow.pop %v3975
  %v3977 = vmul.f32 %v3950, 1.442695
  %v3978 = vpow.pop %v3977
  %v3979 = vmul.f32 %v3951, 1.442695
  %v3980 = vpow.pop %v3979
  %v3981 = vmul.f32 %v3952, 1.442695
  %v3982 = vpow.pop %v3981
  %v3983 = vmul.f32 %v3953, 1.442695
  %v3984 = vpow.pop %v3983
  %v3985 = vmul.f32 %v3954, 1.442695
  %v3986 = vpow.pop %v3985
  %v3987 = vadd.f32 %v3956, 1.0
  %v3988 = vadd.f32 %v3958, 1.0
  %v3989 = vadd.f32 %v3960, 1.0
  %v3990 = vadd.f32 %v3962, 1.0
  %v3991 = vadd.f32 %v3964, 1.0
  %v3992 = vadd.f32 %v3966, 1.0
  %v3993 = vadd.f32 %v3968, 1.0
  %v3994 = vadd.f32 %v3970, 1.0
  %v3995 = vadd.f32 %v3972, 1.0
  %v3996 = vadd.f32 %v3974, 1.0
  %v3997 = vadd.f32 %v3976, 1.0
  %v3998 = vadd.f32 %v3978, 1.0
  %v3999 = vadd.f32 %v3980, 1.0
  %v4000 = vadd.f32 %v3982, 1.0
  %v4001 = vadd.f32 %v3984, 1.0
  %v4002 = vadd.f32 %v3986, 1.0
  %v4003 = vrcp.pop %v3987
  %v4004 = vmul.f32 %v3987, %v4003
  %v4005 = vsub.f32 1.0, %v4004
  %v4006 = vmul.f32 %v4003, %v4005
  %v4007 = vadd.f32 %v4003, %v4006
  %vm4008 = vweird.f32 %v3987
  %vm4009 = vweird.f32 %v4003
  %vm4010 = vmor %vm4008, %vm4009
  %v4011 = vsel %vm4010, %v4003, %v4007
  %v4012 = vand.u32 2147483647, %v3987
  %vm4013 = vcmp.eq.f32.partialorder %v4012, 8.507059e+37
  %v4014 = vand.u32 %v3987, 2147483648
  %v4015 = vor.u32 1.1754944e-38, %v4014
  %v4016 = vsel %vm4013, %v4015, %v4011
  %v4017 = vmul.f32 1.0, %v4016
  %v4018 = vrcp.pop %v3988
  %v4019 = vmul.f32 %v3988, %v4018
  %v4020 = vsub.f32 1.0, %v4019
  %v4021 = vmul.f32 %v4018, %v4020
  %v4022 = vadd.f32 %v4018, %v4021
  %vm4023 = vweird.f32 %v3988
  %vm4024 = vweird.f32 %v4018
  %vm4025 = vmor %vm4023, %vm4024
  %v4026 = vsel %vm4025, %v4018, %v4022
  %v4027 = vand.u32 2147483647, %v3988
  %vm4028 = vcmp.eq.f32.partialorder %v4027, 8.507059e+37
  %v4029 = vand.u32 %v3988, 2147483648
  %v4030 = vor.u32 1.1754944e-38, %v4029
  %v4031 = vsel %vm4028, %v4030, %v4026
  %v4032 = vmul.f32 1.0, %v4031
  %v4033 = vrcp.pop %v3989
  %v4034 = vmul.f32 %v3989, %v4033
  %v4035 = vsub.f32 1.0, %v4034
  %v4036 = vmul.f32 %v4033, %v4035
  %v4037 = vadd.f32 %v4033, %v4036
  %vm4038 = vweird.f32 %v3989
  %vm4039 = vweird.f32 %v4033
  %vm4040 = vmor %vm4038, %vm4039
  %v4041 = vsel %vm4040, %v4033, %v4037
  %v4042 = vand.u32 2147483647, %v3989
  %vm4043 = vcmp.eq.f32.partialorder %v4042, 8.507059e+37
  %v4044 = vand.u32 %v3989, 2147483648
  %v4045 = vor.u32 1.1754944e-38, %v4044
  %v4046 = vsel %vm4043, %v4045, %v4041
  %v4047 = vmul.f32 1.0, %v4046
  %v4048 = vrcp.pop %v3990
  %v4049 = vmul.f32 %v3990, %v4048
  %v4050 = vsub.f32 1.0, %v4049
  %v4051 = vmul.f32 %v4048, %v4050
  %v4052 = vadd.f32 %v4048, %v4051
  %vm4053 = vweird.f32 %v3990
  %vm4054 = vweird.f32 %v4048
  %vm4055 = vmor %vm4053, %vm4054
  %v4056 = vsel %vm4055, %v4048, %v4052
  %v4057 = vand.u32 2147483647, %v3990
  %vm4058 = vcmp.eq.f32.partialorder %v4057, 8.507059e+37
  %v4059 = vand.u32 %v3990, 2147483648
  %v4060 = vor.u32 1.1754944e-38, %v4059
  %v4061 = vsel %vm4058, %v4060, %v4056
  %v4062 = vmul.f32 1.0, %v4061
  %v4063 = vrcp.pop %v3991
  %v4064 = vmul.f32 %v3991, %v4063
  %v4065 = vsub.f32 1.0, %v4064
  %v4066 = vmul.f32 %v4063, %v4065
  %v4067 = vadd.f32 %v4063, %v4066
  %vm4068 = vweird.f32 %v3991
  %vm4069 = vweird.f32 %v4063
  %vm4070 = vmor %vm4068, %vm4069
  %v4071 = vsel %vm4070, %v4063, %v4067
  %v4072 = vand.u32 2147483647, %v3991
  %vm4073 = vcmp.eq.f32.partialorder %v4072, 8.507059e+37
  %v4074 = vand.u32 %v3991, 2147483648
  %v4075 = vor.u32 1.1754944e-38, %v4074
  %v4076 = vsel %vm4073, %v4075, %v4071
  %v4077 = vmul.f32 1.0, %v4076
  %v4078 = vrcp.pop %v3992
  %v4079 = vmul.f32 %v3992, %v4078
  %v4080 = vsub.f32 1.0, %v4079
  %v4081 = vmul.f32 %v4078, %v4080
  %v4082 = vadd.f32 %v4078, %v4081
  %vm4083 = vweird.f32 %v3992
  %vm4084 = vweird.f32 %v4078
  %vm4085 = vmor %vm4083, %vm4084
  %v4086 = vsel %vm4085, %v4078, %v4082
  %v4087 = vand.u32 2147483647, %v3992
  %vm4088 = vcmp.eq.f32.partialorder %v4087, 8.507059e+37
  %v4089 = vand.u32 %v3992, 2147483648
  %v4090 = vor.u32 1.1754944e-38, %v4089
  %v4091 = vsel %vm4088, %v4090, %v4086
  %v4092 = vmul.f32 1.0, %v4091
  %v4093 = vrcp.pop %v3993
  %v4094 = vmul.f32 %v3993, %v4093
  %v4095 = vsub.f32 1.0, %v4094
  %v4096 = vmul.f32 %v4093, %v4095
  %v4097 = vadd.f32 %v4093, %v4096
  %vm4098 = vweird.f32 %v3993
  %vm4099 = vweird.f32 %v4093
  %vm4100 = vmor %vm4098, %vm4099
  %v4101 = vsel %vm4100, %v4093, %v4097
  %v4102 = vand.u32 2147483647, %v3993
  %vm4103 = vcmp.eq.f32.partialorder %v4102, 8.507059e+37
  %v4104 = vand.u32 %v3993, 2147483648
  %v4105 = vor.u32 1.1754944e-38, %v4104
  %v4106 = vsel %vm4103, %v4105, %v4101
  %v4107 = vmul.f32 1.0, %v4106
  %v4108 = vrcp.pop %v3994
  %v4109 = vmul.f32 %v3994, %v4108
  %v4110 = vsub.f32 1.0, %v4109
  %v4111 = vmul.f32 %v4108, %v4110
  %v4112 = vadd.f32 %v4108, %v4111
  %vm4113 = vweird.f32 %v3994
  %vm4114 = vweird.f32 %v4108
  %vm4115 = vmor %vm4113, %vm4114
  %v4116 = vsel %vm4115, %v4108, %v4112
  %v4117 = vand.u32 2147483647, %v3994
  %vm4118 = vcmp.eq.f32.partialorder %v4117, 8.507059e+37
  %v4119 = vand.u32 %v3994, 2147483648
  %v4120 = vor.u32 1.1754944e-38, %v4119
  %v4121 = vsel %vm4118, %v4120, %v4116
  %v4122 = vmul.f32 1.0, %v4121
  %v4123 = vrcp.pop %v3995
  %v4124 = vmul.f32 %v3995, %v4123
  %v4125 = vsub.f32 1.0, %v4124
  %v4126 = vmul.f32 %v4123, %v4125
  %v4127 = vadd.f32 %v4123, %v4126
  %vm4128 = vweird.f32 %v3995
  %vm4129 = vweird.f32 %v4123
  %vm4130 = vmor %vm4128, %vm4129
  %v4131 = vsel %vm4130, %v4123, %v4127
  %v4132 = vand.u32 2147483647, %v3995
  %vm4133 = vcmp.eq.f32.partialorder %v4132, 8.507059e+37
  %v4134 = vand.u32 %v3995, 2147483648
  %v4135 = vor.u32 1.1754944e-38, %v4134
  %v4136 = vsel %vm4133, %v4135, %v4131
  %v4137 = vmul.f32 1.0, %v4136
  %v4138 = vrcp.pop %v3996
  %v4139 = vmul.f32 %v3996, %v4138
  %v4140 = vsub.f32 1.0, %v4139
  %v4141 = vmul.f32 %v4138, %v4140
  %v4142 = vadd.f32 %v4138, %v4141
  %vm4143 = vweird.f32 %v3996
  %vm4144 = vweird.f32 %v4138
  %vm4145 = vmor %vm4143, %vm4144
  %v4146 = vsel %vm4145, %v4138, %v4142
  %v4147 = vand.u32 2147483647, %v3996
  %vm4148 = vcmp.eq.f32.partialorder %v4147, 8.507059e+37
  %v4149 = vand.u32 %v3996, 2147483648
  %v4150 = vor.u32 1.1754944e-38, %v4149
  %v4151 = vsel %vm4148, %v4150, %v4146
  %v4152 = vmul.f32 1.0, %v4151
  %v4153 = vrcp.pop %v3997
  %v4154 = vmul.f32 %v3997, %v4153
  %v4155 = vsub.f32 1.0, %v4154
  %v4156 = vmul.f32 %v4153, %v4155
  %v4157 = vadd.f32 %v4153, %v4156
  %vm4158 = vweird.f32 %v3997
  %vm4159 = vweird.f32 %v4153
  %vm4160 = vmor %vm4158, %vm4159
  %v4161 = vsel %vm4160, %v4153, %v4157
  %v4162 = vand.u32 2147483647, %v3997
  %vm4163 = vcmp.eq.f32.partialorder %v4162, 8.507059e+37
  %v4164 = vand.u32 %v3997, 2147483648
  %v4165 = vor.u32 1.1754944e-38, %v4164
  %v4166 = vsel %vm4163, %v4165, %v4161
  %v4167 = vmul.f32 1.0, %v4166
  %v4168 = vrcp.pop %v3998
  %v4169 = vmul.f32 %v3998, %v4168
  %v4170 = vsub.f32 1.0, %v4169
  %v4171 = vmul.f32 %v4168, %v4170
  %v4172 = vadd.f32 %v4168, %v4171
  %vm4173 = vweird.f32 %v3998
  %vm4174 = vweird.f32 %v4168
  %vm4175 = vmor %vm4173, %vm4174
  %v4176 = vsel %vm4175, %v4168, %v4172
  %v4177 = vand.u32 2147483647, %v3998
  %vm4178 = vcmp.eq.f32.partialorder %v4177, 8.507059e+37
  %v4179 = vand.u32 %v3998, 2147483648
  %v4180 = vor.u32 1.1754944e-38, %v4179
  %v4181 = vsel %vm4178, %v4180, %v4176
  %v4182 = vmul.f32 1.0, %v4181
  %v4183 = vrcp.pop %v3999
  %v4184 = vmul.f32 %v3999, %v4183
  %v4185 = vsub.f32 1.0, %v4184
  %v4186 = vmul.f32 %v4183, %v4185
  %v4187 = vadd.f32 %v4183, %v4186
  %vm4188 = vweird.f32 %v3999
  %vm4189 = vweird.f32 %v4183
  %vm4190 = vmor %vm4188, %vm4189
  %v4191 = vsel %vm4190, %v4183, %v4187
  %v4192 = vand.u32 2147483647, %v3999
  %vm4193 = vcmp.eq.f32.partialorder %v4192, 8.507059e+37
  %v4194 = vand.u32 %v3999, 2147483648
  %v4195 = vor.u32 1.1754944e-38, %v4194
  %v4196 = vsel %vm4193, %v4195, %v4191
  %v4197 = vmul.f32 1.0, %v4196
  %v4198 = vrcp.pop %v4000
  %v4199 = vmul.f32 %v4000, %v4198
  %v4200 = vsub.f32 1.0, %v4199
  %v4201 = vmul.f32 %v4198, %v4200
  %v4202 = vadd.f32 %v4198, %v4201
  %vm4203 = vweird.f32 %v4000
  %vm4204 = vweird.f32 %v4198
  %vm4205 = vmor %vm4203, %vm4204
  %v4206 = vsel %vm4205, %v4198, %v4202
  %v4207 = vand.u32 2147483647, %v4000
  %vm4208 = vcmp.eq.f32.partialorder %v4207, 8.507059e+37
  %v4209 = vand.u32 %v4000, 2147483648
  %v4210 = vor.u32 1.1754944e-38, %v4209
  %v4211 = vsel %vm4208, %v4210, %v4206
  %v4212 = vmul.f32 1.0, %v4211
  %v4213 = vrcp.pop %v4001
  %v4214 = vmul.f32 %v4001, %v4213
  %v4215 = vsub.f32 1.0, %v4214
  %v4216 = vmul.f32 %v4213, %v4215
  %v4217 = vadd.f32 %v4213, %v4216
  %vm4218 = vweird.f32 %v4001
  %vm4219 = vweird.f32 %v4213
  %vm4220 = vmor %vm4218, %vm4219
  %v4221 = vsel %vm4220, %v4213, %v4217
  %v4222 = vand.u32 2147483647, %v4001
  %vm4223 = vcmp.eq.f32.partialorder %v4222, 8.507059e+37
  %v4224 = vand.u32 %v4001, 2147483648
  %v4225 = vor.u32 1.1754944e-38, %v4224
  %v4226 = vsel %vm4223, %v4225, %v4221
  %v4227 = vmul.f32 1.0, %v4226
  %v4228 = vrcp.pop %v4002
  %v4229 = vmul.f32 %v4002, %v4228
  %v4230 = vsub.f32 1.0, %v4229
  %v4231 = vmul.f32 %v4228, %v4230
  %v4232 = vadd.f32 %v4228, %v4231
  %vm4233 = vweird.f32 %v4002
  %vm4234 = vweird.f32 %v4228
  %vm4235 = vmor %vm4233, %vm4234
  %v4236 = vsel %vm4235, %v4228, %v4232
  %v4237 = vand.u32 2147483647, %v4002
  %vm4238 = vcmp.eq.f32.partialorder %v4237, 8.507059e+37
  %v4239 = vand.u32 %v4002, 2147483648
  %v4240 = vor.u32 1.1754944e-38, %v4239
  %v4241 = vsel %vm4238, %v4240, %v4236
  %v4242 = vmul.f32 1.0, %v4241
  %v4243 = vmul.f32 %v3923, %v4017
  %v4244 = vmul.f32 %v3924, %v4032
  %v4245 = vmul.f32 %v3925, %v4047
  %v4246 = vmul.f32 %v3926, %v4062
  %v4247 = vmul.f32 %v3927, %v4077
  %v4248 = vmul.f32 %v3928, %v4092
  %v4249 = vmul.f32 %v3929, %v4107
  %v4250 = vmul.f32 %v3930, %v4122
  %v4251 = vmul.f32 %v3931, %v4137
  %v4252 = vmul.f32 %v3932, %v4152
  %v4253 = vmul.f32 %v3933, %v4167
  %v4254 = vmul.f32 %v3934, %v4182
  %v4255 = vmul.f32 %v3935, %v4197
  %v4256 = vmul.f32 %v3936, %v4212
  %v4257 = vmul.f32 %v3937, %v4227
  %v4258 = vmul.f32 %v3938, %v4242
  %v4259 = vpack.c.bf16 %v4247, %v4243
  %v4260 = vpack.c.bf16 %v4248, %v4244
  %v4261 = vpack.c.bf16 %v4249, %v4245
  %v4262 = vpack.c.bf16 %v4250, %v4246
  %v4263 = vpack.c.bf16 %v4255, %v4251
  %v4264 = vpack.c.bf16 %v4256, %v4252
  %v4265 = vpack.c.bf16 %v4257, %v4253
  %v4266 = vpack.c.bf16 %v4258, %v4254
  %s4267 = scalar_lea.vmem %s6, 64
  %v4268 = vld [vmem:[%s4267] sm:$0xf]
  %v4269 = vld [vmem:[%s4267 + $0x4] sm:$0xf]
  %v4270 = vld [vmem:[%s4267 + $0x8] sm:$0xf]
  %v4271 = vld [vmem:[%s4267 + $0xc] sm:$0xf]
  %v4272 = vld [vmem:[%s4267 + $0x10] sm:$0xf]
  %v4273 = vld [vmem:[%s4267 + $0x14] sm:$0xf]
  %v4274 = vld [vmem:[%s4267 + $0x18] sm:$0xf]
  %v4275 = vld [vmem:[%s4267 + $0x1c] sm:$0xf]
  %s4276 = scalar_lea.vmem %s7, 128
  %v4277 = vld [vmem:[%s4276] sm:$0xff]
  %v4278 = vld [vmem:[%s4276 + $0x8] sm:$0xff]
  %v4279 = vld [vmem:[%s4276 + $0x10] sm:$0xff]
  %v4280 = vld [vmem:[%s4276 + $0x18] sm:$0xff]
  %v4281 = vld [vmem:[%s4276 + $0x20] sm:$0xff]
  %v4282 = vld [vmem:[%s4276 + $0x28] sm:$0xff]
  %v4283 = vld [vmem:[%s4276 + $0x30] sm:$0xff]
  %v4284 = vld [vmem:[%s4276 + $0x38] sm:$0xff]
  %4286 = vset.pattern.permute.xlu0 0
  %4287 = vperm.xlu0 %4286, %v4277
  %v4288 = vpop.permute.xlu0 %4287
  %4291 = vset.pattern.permute.xlu0 0
  %4292 = vperm.xlu0 %4291, %v4278
  %v4293 = vpop.permute.xlu0 %4292
  %4296 = vset.pattern.permute.xlu0 0
  %4297 = vperm.xlu0 %4296, %v4279
  %v4298 = vpop.permute.xlu0 %4297
  %4301 = vset.pattern.permute.xlu0 0
  %4302 = vperm.xlu0 %4301, %v4280
  %v4303 = vpop.permute.xlu0 %4302
  %4306 = vset.pattern.permute.xlu0 0
  %4307 = vperm.xlu0 %4306, %v4281
  %v4308 = vpop.permute.xlu0 %4307
  %4311 = vset.pattern.permute.xlu0 0
  %4312 = vperm.xlu0 %4311, %v4282
  %v4313 = vpop.permute.xlu0 %4312
  %4316 = vset.pattern.permute.xlu0 0
  %4317 = vperm.xlu0 %4316, %v4283
  %v4318 = vpop.permute.xlu0 %4317
  %4321 = vset.pattern.permute.xlu0 0
  %4322 = vperm.xlu0 %4321, %v4284
  %v4323 = vpop.permute.xlu0 %4322
  %v4333 = vunpack.c.l.b16 %v4268
  %v4334 = vunpack.c.l.b16 %v4269
  %v4335 = vunpack.c.l.b16 %v4270
  %v4336 = vunpack.c.l.b16 %v4271
  %v4337 = vunpack.c.l.b16 %v4272
  %v4338 = vunpack.c.l.b16 %v4273
  %v4339 = vunpack.c.l.b16 %v4274
  %v4340 = vunpack.c.l.b16 %v4275
  %v4341 = vpack.c.b16 %v4334, %v4333
  %v4342 = vpack.c.b16 %v4336, %v4335
  %v4343 = vpack.c.b16 %v4338, %v4337
  %v4344 = vpack.c.b16 %v4340, %v4339
  %v4346 = vsel %vm124, %v4341, 0
  %v4349 = vsel %vm124, %v4342, 0
  %v4352 = vsel %vm124, %v4343, 0
  %v4355 = vsel %vm124, %v4344, 0
  %4357 = vmatpush.bf16.msra.mxu0 0
  %4358 = vmatpush.bf16.msra.mxu0 0
  %4359 = vmatpush.bf16.msra.mxu0 0
  %4360 = vmatpush.bf16.msra.mxu0 0
  %4361 = vmatpush.bf16.msra.mxu0 0
  %4362 = vmatpush.bf16.msra.mxu0 0
  %4363 = vmatpush.bf16.msra.mxu0 %v4263
  %4364 = vmatpush.bf16.msra.mxu0 %v4259
  %4365 = vmatmul.bf16.gmra.mxu0 %v4346
  %v4366 = vpop.f32.mrf.mxu0
  %v4367 = vadd.f32 %v4288, %v4366
  %v4368 = vpop.f32.mrf.mxu0
  %v4369 = vadd.f32 %v4293, %v4368
  %4370 = vmatmul.bf16.gmra.mxu0 %v4349
  %v4371 = vpop.f32.mrf.mxu0
  %v4372 = vadd.f32 %v4298, %v4371
  %v4373 = vpop.f32.mrf.mxu0
  %v4374 = vadd.f32 %v4303, %v4373
  %4375 = vmatmul.bf16.gmra.mxu0 %v4352
  %v4376 = vpop.f32.mrf.mxu0
  %v4377 = vadd.f32 %v4308, %v4376
  %v4378 = vpop.f32.mrf.mxu0
  %v4379 = vadd.f32 %v4313, %v4378
  %4380 = vmatmul.bf16.gmra.mxu0 %v4355
  %v4381 = vpop.f32.mrf.mxu0
  %v4382 = vadd.f32 %v4318, %v4381
  %v4383 = vpop.f32.mrf.mxu0
  %v4384 = vadd.f32 %v4323, %v4383
  %4385 = vdwg.mxu0
  %4386 = vmatpush.bf16.msra.mxu0 0
  %4387 = vmatpush.bf16.msra.mxu0 0
  %4388 = vmatpush.bf16.msra.mxu0 0
  %4389 = vmatpush.bf16.msra.mxu0 0
  %4390 = vmatpush.bf16.msra.mxu0 0
  %4391 = vmatpush.bf16.msra.mxu0 0
  %4392 = vmatpush.bf16.msra.mxu0 %v4264
  %4393 = vmatpush.bf16.msra.mxu0 %v4260
  %4394 = vmatmul.bf16.gmra.mxu0 %v4346
  %v4395 = vpop.f32.mrf.mxu0
  %v4396 = vadd.f32 %v4288, %v4395
  %v4397 = vpop.f32.mrf.mxu0
  %v4398 = vadd.f32 %v4293, %v4397
  %4399 = vmatmul.bf16.gmra.mxu0 %v4349
  %v4400 = vpop.f32.mrf.mxu0
  %v4401 = vadd.f32 %v4298, %v4400
  %v4402 = vpop.f32.mrf.mxu0
  %v4403 = vadd.f32 %v4303, %v4402
  %4404 = vmatmul.bf16.gmra.mxu0 %v4352
  %v4405 = vpop.f32.mrf.mxu0
  %v4406 = vadd.f32 %v4308, %v4405
  %v4407 = vpop.f32.mrf.mxu0
  %v4408 = vadd.f32 %v4313, %v4407
  %4409 = vmatmul.bf16.gmra.mxu0 %v4355
  %v4410 = vpop.f32.mrf.mxu0
  %v4411 = vadd.f32 %v4318, %v4410
  %v4412 = vpop.f32.mrf.mxu0
  %v4413 = vadd.f32 %v4323, %v4412
  %4414 = vdwg.mxu0
  %4415 = vmatpush.bf16.msra.mxu0 0
  %4416 = vmatpush.bf16.msra.mxu0 0
  %4417 = vmatpush.bf16.msra.mxu0 0
  %4418 = vmatpush.bf16.msra.mxu0 0
  %4419 = vmatpush.bf16.msra.mxu0 0
  %4420 = vmatpush.bf16.msra.mxu0 0
  %4421 = vmatpush.bf16.msra.mxu0 %v4265
  %4422 = vmatpush.bf16.msra.mxu0 %v4261
  %4423 = vmatmul.bf16.gmra.mxu0 %v4346
  %v4424 = vpop.f32.mrf.mxu0
  %v4425 = vadd.f32 %v4288, %v4424
  %v4426 = vpop.f32.mrf.mxu0
  %v4427 = vadd.f32 %v4293, %v4426
  %4428 = vmatmul.bf16.gmra.mxu0 %v4349
  %v4429 = vpop.f32.mrf.mxu0
  %v4430 = vadd.f32 %v4298, %v4429
  %v4431 = vpop.f32.mrf.mxu0
  %v4432 = vadd.f32 %v4303, %v4431
  %4433 = vmatmul.bf16.gmra.mxu0 %v4352
  %v4434 = vpop.f32.mrf.mxu0
  %v4435 = vadd.f32 %v4308, %v4434
  %v4436 = vpop.f32.mrf.mxu0
  %v4437 = vadd.f32 %v4313, %v4436
  %4438 = vmatmul.bf16.gmra.mxu0 %v4355
  %v4439 = vpop.f32.mrf.mxu0
  %v4440 = vadd.f32 %v4318, %v4439
  %v4441 = vpop.f32.mrf.mxu0
  %v4442 = vadd.f32 %v4323, %v4441
  %4443 = vdwg.mxu0
  %4444 = vmatpush.bf16.msra.mxu0 0
  %4445 = vmatpush.bf16.msra.mxu0 0
  %4446 = vmatpush.bf16.msra.mxu0 0
  %4447 = vmatpush.bf16.msra.mxu0 0
  %4448 = vmatpush.bf16.msra.mxu0 0
  %4449 = vmatpush.bf16.msra.mxu0 0
  %4450 = vmatpush.bf16.msra.mxu0 %v4266
  %4451 = vmatpush.bf16.msra.mxu0 %v4262
  %4452 = vmatmul.bf16.gmra.mxu0 %v4346
  %v4453 = vpop.f32.mrf.mxu0
  %v4454 = vadd.f32 %v4288, %v4453
  %v4455 = vpop.f32.mrf.mxu0
  %v4456 = vadd.f32 %v4293, %v4455
  %4457 = vmatmul.bf16.gmra.mxu0 %v4349
  %v4458 = vpop.f32.mrf.mxu0
  %v4459 = vadd.f32 %v4298, %v4458
  %v4460 = vpop.f32.mrf.mxu0
  %v4461 = vadd.f32 %v4303, %v4460
  %4462 = vmatmul.bf16.gmra.mxu0 %v4352
  %v4463 = vpop.f32.mrf.mxu0
  %v4464 = vadd.f32 %v4308, %v4463
  %v4465 = vpop.f32.mrf.mxu0
  %v4466 = vadd.f32 %v4313, %v4465
  %4467 = vmatmul.bf16.gmra.mxu0 %v4355
  %v4468 = vpop.f32.mrf.mxu0
  %v4469 = vadd.f32 %v4318, %v4468
  %v4470 = vpop.f32.mrf.mxu0
  %v4471 = vadd.f32 %v4323, %v4470
  %4472 = vdwg.mxu0
  %v4473 = vadd.f32 %v3057, %v4367
  %v4474 = vadd.f32 %v3058, %v4396
  %v4475 = vadd.f32 %v3059, %v4425
  %v4476 = vadd.f32 %v3060, %v4454
  %v4477 = vadd.f32 %v3061, %v4369
  %v4478 = vadd.f32 %v3062, %v4398
  %v4479 = vadd.f32 %v3063, %v4427
  %v4480 = vadd.f32 %v3064, %v4456
  %v4481 = vadd.f32 %v3065, %v4372
  %v4482 = vadd.f32 %v3066, %v4401
  %v4483 = vadd.f32 %v3067, %v4430
  %v4484 = vadd.f32 %v3068, %v4459
  %v4485 = vadd.f32 %v3069, %v4374
  %v4486 = vadd.f32 %v3070, %v4403
  %v4487 = vadd.f32 %v3071, %v4432
  %v4488 = vadd.f32 %v3072, %v4461
  %v4489 = vmul.f32 %v4473, %v58
  %v4490 = vmul.f32 %v4474, %v59
  %v4491 = vmul.f32 %v4475, %v60
  %v4492 = vmul.f32 %v4476, %v61
  %v4493 = vmul.f32 %v4477, %v58
  %v4494 = vmul.f32 %v4478, %v59
  %v4495 = vmul.f32 %v4479, %v60
  %v4496 = vmul.f32 %v4480, %v61
  %v4497 = vmul.f32 %v4481, %v58
  %v4498 = vmul.f32 %v4482, %v59
  %v4499 = vmul.f32 %v4483, %v60
  %v4500 = vmul.f32 %v4484, %v61
  %v4501 = vmul.f32 %v4485, %v58
  %v4502 = vmul.f32 %v4486, %v59
  %v4503 = vmul.f32 %v4487, %v60
  %v4504 = vmul.f32 %v4488, %v61
  %v4505 = vadd.f32 %v3073, %v4377
  %v4506 = vadd.f32 %v3074, %v4406
  %v4507 = vadd.f32 %v3075, %v4435
  %v4508 = vadd.f32 %v3076, %v4464
  %v4509 = vadd.f32 %v3077, %v4379
  %v4510 = vadd.f32 %v3078, %v4408
  %v4511 = vadd.f32 %v3079, %v4437
  %v4512 = vadd.f32 %v3080, %v4466
  %v4513 = vadd.f32 %v3081, %v4382
  %v4514 = vadd.f32 %v3082, %v4411
  %v4515 = vadd.f32 %v3083, %v4440
  %v4516 = vadd.f32 %v3084, %v4469
  %v4517 = vadd.f32 %v3085, %v4384
  %v4518 = vadd.f32 %v3086, %v4413
  %v4519 = vadd.f32 %v3087, %v4442
  %v4520 = vadd.f32 %v3088, %v4471
  %4521 = vrot.lane.b32.xlu0 %v4489, 2
  %v4522 = vpop.permute.xlu0 %4521
  %4523 = vrot.lane.b32.xlu0 %v4493, 2
  %v4524 = vpop.permute.xlu0 %4523
  %4525 = vrot.lane.b32.xlu0 %v4497, 2
  %v4526 = vpop.permute.xlu0 %4525
  %4527 = vrot.lane.b32.xlu0 %v4501, 2
  %v4528 = vpop.permute.xlu0 %4527
  %4529 = vrot.lane.b32.xlu0 %v4490, 2
  %v4530 = vpop.permute.xlu0 %4529
  %4531 = vrot.lane.b32.xlu0 %v4494, 2
  %v4532 = vpop.permute.xlu0 %4531
  %4533 = vrot.lane.b32.xlu0 %v4498, 2
  %v4534 = vpop.permute.xlu0 %4533
  %4535 = vrot.lane.b32.xlu0 %v4502, 2
  %v4536 = vpop.permute.xlu0 %4535
  %4537 = vrot.lane.b32.xlu0 %v4491, 2
  %v4538 = vpop.permute.xlu0 %4537
  %4539 = vrot.lane.b32.xlu0 %v4495, 2
  %v4540 = vpop.permute.xlu0 %4539
  %4541 = vrot.lane.b32.xlu0 %v4499, 2
  %v4542 = vpop.permute.xlu0 %4541
  %4543 = vrot.lane.b32.xlu0 %v4503, 2
  %v4544 = vpop.permute.xlu0 %4543
  %4545 = vrot.lane.b32.xlu0 %v4492, 2
  %v4546 = vpop.permute.xlu0 %4545
  %4547 = vrot.lane.b32.xlu0 %v4496, 2
  %v4548 = vpop.permute.xlu0 %4547
  %4549 = vrot.lane.b32.xlu0 %v4500, 2
  %v4550 = vpop.permute.xlu0 %4549
  %4551 = vrot.lane.b32.xlu0 %v4504, 2
  %v4552 = vpop.permute.xlu0 %4551
  %v4553 = vsel %vm257, %v4538, %v4546
  %v4554 = vsel %vm257, %v4540, %v4548
  %v4555 = vsel %vm257, %v4542, %v4550
  %v4556 = vsel %vm257, %v4544, %v4552
  %v4557 = vsel %vm257, %v4530, %v4538
  %v4558 = vsel %vm257, %v4532, %v4540
  %v4559 = vsel %vm257, %v4534, %v4542
  %v4560 = vsel %vm257, %v4536, %v4544
  %v4561 = vsel %vm257, %v4522, %v4530
  %v4562 = vsel %vm257, %v4524, %v4532
  %v4563 = vsel %vm257, %v4526, %v4534
  %v4564 = vsel %vm257, %v4528, %v4536
  %v4565 = vsel %vm257, %v4546, %v4522
  %v4566 = vsel %vm257, %v4548, %v4524
  %v4567 = vsel %vm257, %v4550, %v4526
  %v4568 = vsel %vm257, %v4552, %v4528
  %v4569 = vpack.c.bf16 %v4561, %v4565
  %v4570 = vpack.c.bf16 %v4553, %v4557
  %v4571 = vpack.c.bf16 %v4562, %v4566
  %v4572 = vpack.c.bf16 %v4554, %v4558
  %v4573 = vpack.c.bf16 %v4563, %v4567
  %v4574 = vpack.c.bf16 %v4555, %v4559
  %v4575 = vpack.c.bf16 %v4564, %v4568
  %v4576 = vpack.c.bf16 %v4556, %v4560
  %4577 = vst [vmem:[#allocation2] sm:$0xff] %v4569
  %4578 = vst [vmem:[#allocation2 + $0x8] sm:$0xff] %v4570
  %4579 = vst [vmem:[#allocation2 + $0x10] sm:$0xff] %v4571
  %4580 = vst [vmem:[#allocation2 + $0x18] sm:$0xff] %v4572
  %4581 = vst [vmem:[#allocation2 + $0x20] sm:$0xff] %v4573
  %4582 = vst [vmem:[#allocation2 + $0x28] sm:$0xff] %v4574
  %4583 = vst [vmem:[#allocation2 + $0x30] sm:$0xff] %v4575
  %4584 = vst [vmem:[#allocation2 + $0x38] sm:$0xff] %v4576
  %4585 = vrot.lane.b32.xlu0 %v4489, 1
  %v4586 = vpop.permute.xlu0 %4585
  %4587 = vrot.lane.b32.xlu0 %v4493, 1
  %v4588 = vpop.permute.xlu0 %4587
  %4589 = vrot.lane.b32.xlu0 %v4497, 1
  %v4590 = vpop.permute.xlu0 %4589
  %4591 = vrot.lane.b32.xlu0 %v4501, 1
  %v4592 = vpop.permute.xlu0 %4591
  %4593 = vrot.lane.b32.xlu0 %v4490, 1
  %v4594 = vpop.permute.xlu0 %4593
  %4595 = vrot.lane.b32.xlu0 %v4494, 1
  %v4596 = vpop.permute.xlu0 %4595
  %4597 = vrot.lane.b32.xlu0 %v4498, 1
  %v4598 = vpop.permute.xlu0 %4597
  %4599 = vrot.lane.b32.xlu0 %v4502, 1
  %v4600 = vpop.permute.xlu0 %4599
  %4601 = vrot.lane.b32.xlu0 %v4491, 1
  %v4602 = vpop.permute.xlu0 %4601
  %4603 = vrot.lane.b32.xlu0 %v4495, 1
  %v4604 = vpop.permute.xlu0 %4603
  %4605 = vrot.lane.b32.xlu0 %v4499, 1
  %v4606 = vpop.permute.xlu0 %4605
  %4607 = vrot.lane.b32.xlu0 %v4503, 1
  %v4608 = vpop.permute.xlu0 %4607
  %4609 = vrot.lane.b32.xlu0 %v4492, 1
  %v4610 = vpop.permute.xlu0 %4609
  %4611 = vrot.lane.b32.xlu0 %v4496, 1
  %v4612 = vpop.permute.xlu0 %4611
  %4613 = vrot.lane.b32.xlu0 %v4500, 1
  %v4614 = vpop.permute.xlu0 %4613
  %4615 = vrot.lane.b32.xlu0 %v4504, 1
  %v4616 = vpop.permute.xlu0 %4615
  %v4617 = vsel %vm322, %v4602, %v4610
  %v4618 = vsel %vm322, %v4604, %v4612
  %v4619 = vsel %vm322, %v4606, %v4614
  %v4620 = vsel %vm322, %v4608, %v4616
  %v4621 = vsel %vm322, %v4594, %v4602
  %v4622 = vsel %vm322, %v4596, %v4604
  %v4623 = vsel %vm322, %v4598, %v4606
  %v4624 = vsel %vm322, %v4600, %v4608
  %v4625 = vsel %vm322, %v4586, %v4594
  %v4626 = vsel %vm322, %v4588, %v4596
  %v4627 = vsel %vm322, %v4590, %v4598
  %v4628 = vsel %vm322, %v4592, %v4600
  %v4629 = vsel %vm322, %v4610, %v4586
  %v4630 = vsel %vm322, %v4612, %v4588
  %v4631 = vsel %vm322, %v4614, %v4590
  %v4632 = vsel %vm322, %v4616, %v4592
  %v4633 = vpack.c.bf16 %v4625, %v4629
  %v4634 = vpack.c.bf16 %v4617, %v4621
  %v4635 = vpack.c.bf16 %v4626, %v4630
  %v4636 = vpack.c.bf16 %v4618, %v4622
  %v4637 = vpack.c.bf16 %v4627, %v4631
  %v4638 = vpack.c.bf16 %v4619, %v4623
  %v4639 = vpack.c.bf16 %v4628, %v4632
  %v4640 = vpack.c.bf16 %v4620, %v4624
  %4641 = vst [vmem:[#allocation2 + $0x40] sm:$0xff] %v4633
  %4642 = vst [vmem:[#allocation2 + $0x48] sm:$0xff] %v4634
  %4643 = vst [vmem:[#allocation2 + $0x50] sm:$0xff] %v4635
  %4644 = vst [vmem:[#allocation2 + $0x58] sm:$0xff] %v4636
  %4645 = vst [vmem:[#allocation2 + $0x60] sm:$0xff] %v4637
  %4646 = vst [vmem:[#allocation2 + $0x68] sm:$0xff] %v4638
  %4647 = vst [vmem:[#allocation2 + $0x70] sm:$0xff] %v4639
  %4648 = vst [vmem:[#allocation2 + $0x78] sm:$0xff] %v4640
  %v4649 = vpack.c.bf16 %v4490, %v4489
  %v4650 = vpack.c.bf16 %v4492, %v4491
  %v4651 = vpack.c.bf16 %v4494, %v4493
  %v4652 = vpack.c.bf16 %v4496, %v4495
  %v4653 = vpack.c.bf16 %v4498, %v4497
  %v4654 = vpack.c.bf16 %v4500, %v4499
  %v4655 = vpack.c.bf16 %v4502, %v4501
  %v4656 = vpack.c.bf16 %v4504, %v4503
  %4657 = vst [vmem:[#allocation2 + $0x80] sm:$0xff] %v4649
  %4658 = vst [vmem:[#allocation2 + $0x88] sm:$0xff] %v4650
  %4659 = vst [vmem:[#allocation2 + $0x90] sm:$0xff] %v4651
  %4660 = vst [vmem:[#allocation2 + $0x98] sm:$0xff] %v4652
  %4661 = vst [vmem:[#allocation2 + $0xa0] sm:$0xff] %v4653
  %4662 = vst [vmem:[#allocation2 + $0xa8] sm:$0xff] %v4654
  %4663 = vst [vmem:[#allocation2 + $0xb0] sm:$0xff] %v4655
  %4664 = vst [vmem:[#allocation2 + $0xb8] sm:$0xff] %v4656
  %4665 = vrot.lane.b32.xlu0 %v4489, 127
  %v4666 = vpop.permute.xlu0 %4665
  %4667 = vrot.lane.b32.xlu0 %v4493, 127
  %v4668 = vpop.permute.xlu0 %4667
  %4669 = vrot.lane.b32.xlu0 %v4497, 127
  %v4670 = vpop.permute.xlu0 %4669
  %4671 = vrot.lane.b32.xlu0 %v4501, 127
  %v4672 = vpop.permute.xlu0 %4671
  %4673 = vrot.lane.b32.xlu0 %v4490, 127
  %v4674 = vpop.permute.xlu0 %4673
  %4675 = vrot.lane.b32.xlu0 %v4494, 127
  %v4676 = vpop.permute.xlu0 %4675
  %4677 = vrot.lane.b32.xlu0 %v4498, 127
  %v4678 = vpop.permute.xlu0 %4677
  %4679 = vrot.lane.b32.xlu0 %v4502, 127
  %v4680 = vpop.permute.xlu0 %4679
  %4681 = vrot.lane.b32.xlu0 %v4491, 127
  %v4682 = vpop.permute.xlu0 %4681
  %4683 = vrot.lane.b32.xlu0 %v4495, 127
  %v4684 = vpop.permute.xlu0 %4683
  %4685 = vrot.lane.b32.xlu0 %v4499, 127
  %v4686 = vpop.permute.xlu0 %4685
  %4687 = vrot.lane.b32.xlu0 %v4503, 127
  %v4688 = vpop.permute.xlu0 %4687
  %4689 = vrot.lane.b32.xlu0 %v4492, 127
  %v4690 = vpop.permute.xlu0 %4689
  %4691 = vrot.lane.b32.xlu0 %v4496, 127
  %v4692 = vpop.permute.xlu0 %4691
  %4693 = vrot.lane.b32.xlu0 %v4500, 127
  %v4694 = vpop.permute.xlu0 %4693
  %4695 = vrot.lane.b32.xlu0 %v4504, 127
  %v4696 = vpop.permute.xlu0 %4695
  %v4697 = vsel %vm403, %v4682, %v4690
  %v4698 = vsel %vm403, %v4684, %v4692
  %v4699 = vsel %vm403, %v4686, %v4694
  %v4700 = vsel %vm403, %v4688, %v4696
  %v4701 = vsel %vm403, %v4674, %v4682
  %v4702 = vsel %vm403, %v4676, %v4684
  %v4703 = vsel %vm403, %v4678, %v4686
  %v4704 = vsel %vm403, %v4680, %v4688
  %v4705 = vsel %vm403, %v4666, %v4674
  %v4706 = vsel %vm403, %v4668, %v4676
  %v4707 = vsel %vm403, %v4670, %v4678
  %v4708 = vsel %vm403, %v4672, %v4680
  %v4709 = vsel %vm403, %v4690, %v4666
  %v4710 = vsel %vm403, %v4692, %v4668
  %v4711 = vsel %vm403, %v4694, %v4670
  %v4712 = vsel %vm403, %v4696, %v4672
  %v4713 = vpack.c.bf16 %v4701, %v4705
  %v4714 = vpack.c.bf16 %v4709, %v4697
  %v4715 = vpack.c.bf16 %v4702, %v4706
  %v4716 = vpack.c.bf16 %v4710, %v4698
  %v4717 = vpack.c.bf16 %v4703, %v4707
  %v4718 = vpack.c.bf16 %v4711, %v4699
  %v4719 = vpack.c.bf16 %v4704, %v4708
  %v4720 = vpack.c.bf16 %v4712, %v4700
  %4721 = vst [vmem:[#allocation2 + $0xc0] sm:$0xff] %v4713
  %4722 = vst [vmem:[#allocation2 + $0xc8] sm:$0xff] %v4714
  %4723 = vst [vmem:[#allocation2 + $0xd0] sm:$0xff] %v4715
  %4724 = vst [vmem:[#allocation2 + $0xd8] sm:$0xff] %v4716
  %4725 = vst [vmem:[#allocation2 + $0xe0] sm:$0xff] %v4717
  %4726 = vst [vmem:[#allocation2 + $0xe8] sm:$0xff] %v4718
  %4727 = vst [vmem:[#allocation2 + $0xf0] sm:$0xff] %v4719
  %4728 = vst [vmem:[#allocation2 + $0xf8] sm:$0xff] %v4720
  %4729 = vrot.lane.b32.xlu0 %v4489, 126
  %v4730 = vpop.permute.xlu0 %4729
  %4731 = vrot.lane.b32.xlu0 %v4493, 126
  %v4732 = vpop.permute.xlu0 %4731
  %4733 = vrot.lane.b32.xlu0 %v4497, 126
  %v4734 = vpop.permute.xlu0 %4733
  %4735 = vrot.lane.b32.xlu0 %v4501, 126
  %v4736 = vpop.permute.xlu0 %4735
  %4737 = vrot.lane.b32.xlu0 %v4490, 126
  %v4738 = vpop.permute.xlu0 %4737
  %4739 = vrot.lane.b32.xlu0 %v4494, 126
  %v4740 = vpop.permute.xlu0 %4739
  %4741 = vrot.lane.b32.xlu0 %v4498, 126
  %v4742 = vpop.permute.xlu0 %4741
  %4743 = vrot.lane.b32.xlu0 %v4502, 126
  %v4744 = vpop.permute.xlu0 %4743
  %4745 = vrot.lane.b32.xlu0 %v4491, 126
  %v4746 = vpop.permute.xlu0 %4745
  %4747 = vrot.lane.b32.xlu0 %v4495, 126
  %v4748 = vpop.permute.xlu0 %4747
  %4749 = vrot.lane.b32.xlu0 %v4499, 126
  %v4750 = vpop.permute.xlu0 %4749
  %4751 = vrot.lane.b32.xlu0 %v4503, 126
  %v4752 = vpop.permute.xlu0 %4751
  %4753 = vrot.lane.b32.xlu0 %v4492, 126
  %v4754 = vpop.permute.xlu0 %4753
  %4755 = vrot.lane.b32.xlu0 %v4496, 126
  %v4756 = vpop.permute.xlu0 %4755
  %4757 = vrot.lane.b32.xlu0 %v4500, 126
  %v4758 = vpop.permute.xlu0 %4757
  %4759 = vrot.lane.b32.xlu0 %v4504, 126
  %v4760 = vpop.permute.xlu0 %4759
  %v4761 = vsel %vm468, %v4746, %v4754
  %v4762 = vsel %vm468, %v4748, %v4756
  %v4763 = vsel %vm468, %v4750, %v4758
  %v4764 = vsel %vm468, %v4752, %v4760
  %v4765 = vsel %vm468, %v4738, %v4746
  %v4766 = vsel %vm468, %v4740, %v4748
  %v4767 = vsel %vm468, %v4742, %v4750
  %v4768 = vsel %vm468, %v4744, %v4752
  %v4769 = vsel %vm468, %v4730, %v4738
  %v4770 = vsel %vm468, %v4732, %v4740
  %v4771 = vsel %vm468, %v4734, %v4742
  %v4772 = vsel %vm468, %v4736, %v4744
  %v4773 = vsel %vm468, %v4754, %v4730
  %v4774 = vsel %vm468, %v4756, %v4732
  %v4775 = vsel %vm468, %v4758, %v4734
  %v4776 = vsel %vm468, %v4760, %v4736
  %v4777 = vpack.c.bf16 %v4765, %v4769
  %v4778 = vpack.c.bf16 %v4773, %v4761
  %v4779 = vpack.c.bf16 %v4766, %v4770
  %v4780 = vpack.c.bf16 %v4774, %v4762
  %v4781 = vpack.c.bf16 %v4767, %v4771
  %v4782 = vpack.c.bf16 %v4775, %v4763
  %v4783 = vpack.c.bf16 %v4768, %v4772
  %v4784 = vpack.c.bf16 %v4776, %v4764
  %4785 = vst [vmem:[#allocation2 + $0x100] sm:$0xff] %v4777
  %4786 = vst [vmem:[#allocation2 + $0x108] sm:$0xff] %v4778
  %4787 = vst [vmem:[#allocation2 + $0x110] sm:$0xff] %v4779
  %4788 = vst [vmem:[#allocation2 + $0x118] sm:$0xff] %v4780
  %4789 = vst [vmem:[#allocation2 + $0x120] sm:$0xff] %v4781
  %4790 = vst [vmem:[#allocation2 + $0x128] sm:$0xff] %v4782
  %4791 = vst [vmem:[#allocation2 + $0x130] sm:$0xff] %v4783
  %4792 = vst [vmem:[#allocation2 + $0x138] sm:$0xff] %v4784
  %s4793 = scalar_lea.vmem %s5, 192
  %v4794 = vld [vmem:[%s4793] sm:$0xff]
  %v4795 = vld [vmem:[%s4793 + $0x8] sm:$0xff]
  %v4796 = vld [vmem:[%s4793 + $0x10] sm:$0xff]
  %v4797 = vld [vmem:[%s4793 + $0x18] sm:$0xff]
  %v4798 = vld [vmem:[%s4793 + $0x20] sm:$0xff]
  %v4799 = vld [vmem:[%s4793 + $0x28] sm:$0xff]
  %v4800 = vld [vmem:[%s4793 + $0x30] sm:$0xff]
  %v4801 = vld [vmem:[%s4793 + $0x38] sm:$0xff]
  %v4802 = vld [vmem:[#allocation2] sm:$0xff]
  %v4803 = vld [vmem:[#allocation2 + $0x8] sm:$0xff]
  %v4804 = vld [vmem:[#allocation2 + $0x10] sm:$0xff]
  %v4805 = vld [vmem:[#allocation2 + $0x18] sm:$0xff]
  %v4806 = vld [vmem:[#allocation2 + $0x20] sm:$0xff]
  %v4807 = vld [vmem:[#allocation2 + $0x28] sm:$0xff]
  %v4808 = vld [vmem:[#allocation2 + $0x30] sm:$0xff]
  %v4809 = vld [vmem:[#allocation2 + $0x38] sm:$0xff]
  %v4810 = vld [vmem:[#allocation2 + $0x40] sm:$0xff]
  %v4811 = vld [vmem:[#allocation2 + $0x48] sm:$0xff]
  %v4812 = vld [vmem:[#allocation2 + $0x50] sm:$0xff]
  %v4813 = vld [vmem:[#allocation2 + $0x58] sm:$0xff]
  %v4814 = vld [vmem:[#allocation2 + $0x60] sm:$0xff]
  %v4815 = vld [vmem:[#allocation2 + $0x68] sm:$0xff]
  %v4816 = vld [vmem:[#allocation2 + $0x70] sm:$0xff]
  %v4817 = vld [vmem:[#allocation2 + $0x78] sm:$0xff]
  %v4818 = vld [vmem:[#allocation2 + $0x80] sm:$0xff]
  %v4819 = vld [vmem:[#allocation2 + $0x88] sm:$0xff]
  %v4820 = vld [vmem:[#allocation2 + $0x90] sm:$0xff]
  %v4821 = vld [vmem:[#allocation2 + $0x98] sm:$0xff]
  %v4822 = vld [vmem:[#allocation2 + $0xa0] sm:$0xff]
  %v4823 = vld [vmem:[#allocation2 + $0xa8] sm:$0xff]
  %v4824 = vld [vmem:[#allocation2 + $0xb0] sm:$0xff]
  %v4825 = vld [vmem:[#allocation2 + $0xb8] sm:$0xff]
  %v4826 = vld [vmem:[#allocation2 + $0xc0] sm:$0xff]
  %v4827 = vld [vmem:[#allocation2 + $0xc8] sm:$0xff]
  %v4828 = vld [vmem:[#allocation2 + $0xd0] sm:$0xff]
  %v4829 = vld [vmem:[#allocation2 + $0xd8] sm:$0xff]
  %v4830 = vld [vmem:[#allocation2 + $0xe0] sm:$0xff]
  %v4831 = vld [vmem:[#allocation2 + $0xe8] sm:$0xff]
  %v4832 = vld [vmem:[#allocation2 + $0xf0] sm:$0xff]
  %v4833 = vld [vmem:[#allocation2 + $0xf8] sm:$0xff]
  %v4834 = vld [vmem:[#allocation2 + $0x100] sm:$0xff]
  %v4835 = vld [vmem:[#allocation2 + $0x108] sm:$0xff]
  %v4836 = vld [vmem:[#allocation2 + $0x110] sm:$0xff]
  %v4837 = vld [vmem:[#allocation2 + $0x118] sm:$0xff]
  %v4838 = vld [vmem:[#allocation2 + $0x120] sm:$0xff]
  %v4839 = vld [vmem:[#allocation2 + $0x128] sm:$0xff]
  %v4840 = vld [vmem:[#allocation2 + $0x130] sm:$0xff]
  %v4841 = vld [vmem:[#allocation2 + $0x138] sm:$0xff]
  %s4842 = scalar_lea.vmem %s2, 768
  %v4843 = vld [vmem:[%s4842] sm:$0xff]
  %v4844 = vld [vmem:[%s4842 + $0x8] sm:$0xff]
  %v4845 = vld [vmem:[%s4842 + $0x10] sm:$0xff]
  %v4846 = vld [vmem:[%s4842 + $0x18] sm:$0xff]
  %v4847 = vld [vmem:[%s4842 + $0x20] sm:$0xff]
  %v4848 = vld [vmem:[%s4842 + $0x28] sm:$0xff]
  %v4849 = vld [vmem:[%s4842 + $0x30] sm:$0xff]
  %v4850 = vld [vmem:[%s4842 + $0x38] sm:$0xff]
  %v4851 = vld [vmem:[%s4842 + $0x40] sm:$0xff]
  %v4852 = vld [vmem:[%s4842 + $0x48] sm:$0xff]
  %v4853 = vld [vmem:[%s4842 + $0x50] sm:$0xff]
  %v4854 = vld [vmem:[%s4842 + $0x58] sm:$0xff]
  %v4855 = vld [vmem:[%s4842 + $0x60] sm:$0xff]
  %v4856 = vld [vmem:[%s4842 + $0x68] sm:$0xff]
  %v4857 = vld [vmem:[%s4842 + $0x70] sm:$0xff]
  %v4858 = vld [vmem:[%s4842 + $0x78] sm:$0xff]
  %v4859 = vld [vmem:[%s4842 + $0x80] sm:$0xff]
  %v4860 = vld [vmem:[%s4842 + $0x88] sm:$0xff]
  %v4861 = vld [vmem:[%s4842 + $0x90] sm:$0xff]
  %v4862 = vld [vmem:[%s4842 + $0x98] sm:$0xff]
  %v4863 = vld [vmem:[%s4842 + $0xa0] sm:$0xff]
  %v4864 = vld [vmem:[%s4842 + $0xa8] sm:$0xff]
  %v4865 = vld [vmem:[%s4842 + $0xb0] sm:$0xff]
  %v4866 = vld [vmem:[%s4842 + $0xb8] sm:$0xff]
  %v4867 = vld [vmem:[%s4842 + $0xc0] sm:$0xff]
  %v4868 = vld [vmem:[%s4842 + $0xc8] sm:$0xff]
  %v4869 = vld [vmem:[%s4842 + $0xd0] sm:$0xff]
  %v4870 = vld [vmem:[%s4842 + $0xd8] sm:$0xff]
  %v4871 = vld [vmem:[%s4842 + $0xe0] sm:$0xff]
  %v4872 = vld [vmem:[%s4842 + $0xe8] sm:$0xff]
  %v4873 = vld [vmem:[%s4842 + $0xf0] sm:$0xff]
  %v4874 = vld [vmem:[%s4842 + $0xf8] sm:$0xff]
  %v4883 = vunpack.c.l.b16 %v4794
  %v4884 = vunpack.c.h.b16 %v4794
  %v4885 = vunpack.c.l.b16 %v4795
  %v4886 = vunpack.c.h.b16 %v4795
  %v4887 = vunpack.c.l.b16 %v4796
  %v4888 = vunpack.c.h.b16 %v4796
  %v4889 = vunpack.c.l.b16 %v4797
  %v4890 = vunpack.c.h.b16 %v4797
  %v4891 = vunpack.c.l.b16 %v4798
  %v4892 = vunpack.c.h.b16 %v4798
  %v4893 = vunpack.c.l.b16 %v4799
  %v4894 = vunpack.c.h.b16 %v4799
  %v4895 = vunpack.c.l.b16 %v4800
  %v4896 = vunpack.c.h.b16 %v4800
  %v4897 = vunpack.c.l.b16 %v4801
  %v4898 = vunpack.c.h.b16 %v4801
  %v4899 = vpack.c.b16 %v4885, %v4883
  %v4900 = vpack.c.b16 %v4886, %v4884
  %v4901 = vpack.c.b16 %v4889, %v4887
  %v4902 = vpack.c.b16 %v4890, %v4888
  %v4903 = vpack.c.b16 %v4893, %v4891
  %v4904 = vpack.c.b16 %v4894, %v4892
  %v4905 = vpack.c.b16 %v4897, %v4895
  %v4906 = vpack.c.b16 %v4898, %v4896
  %v4951 = vunpack.c.l.b16 %v4802
  %v4952 = vunpack.c.h.b16 %v4802
  %v4953 = vunpack.c.l.b16 %v4803
  %v4954 = vunpack.c.h.b16 %v4803
  %v4955 = vunpack.c.l.b16 %v4804
  %v4956 = vunpack.c.h.b16 %v4804
  %v4957 = vunpack.c.l.b16 %v4805
  %v4958 = vunpack.c.h.b16 %v4805
  %v4959 = vunpack.c.l.b16 %v4806
  %v4960 = vunpack.c.h.b16 %v4806
  %v4961 = vunpack.c.l.b16 %v4807
  %v4962 = vunpack.c.h.b16 %v4807
  %v4963 = vunpack.c.l.b16 %v4808
  %v4964 = vunpack.c.h.b16 %v4808
  %v4965 = vunpack.c.l.b16 %v4809
  %v4966 = vunpack.c.h.b16 %v4809
  %v4967 = vunpack.c.l.b16 %v4810
  %v4968 = vunpack.c.h.b16 %v4810
  %v4969 = vunpack.c.l.b16 %v4811
  %v4970 = vunpack.c.h.b16 %v4811
  %v4971 = vunpack.c.l.b16 %v4812
  %v4972 = vunpack.c.h.b16 %v4812
  %v4973 = vunpack.c.l.b16 %v4813
  %v4974 = vunpack.c.h.b16 %v4813
  %v4975 = vunpack.c.l.b16 %v4814
  %v4976 = vunpack.c.h.b16 %v4814
  %v4977 = vunpack.c.l.b16 %v4815
  %v4978 = vunpack.c.h.b16 %v4815
  %v4979 = vunpack.c.l.b16 %v4816
  %v4980 = vunpack.c.h.b16 %v4816
  %v4981 = vunpack.c.l.b16 %v4817
  %v4982 = vunpack.c.h.b16 %v4817
  %v4983 = vunpack.c.l.b16 %v4818
  %v4984 = vunpack.c.h.b16 %v4818
  %v4985 = vunpack.c.l.b16 %v4819
  %v4986 = vunpack.c.h.b16 %v4819
  %v4987 = vunpack.c.l.b16 %v4820
  %v4988 = vunpack.c.h.b16 %v4820
  %v4989 = vunpack.c.l.b16 %v4821
  %v4990 = vunpack.c.h.b16 %v4821
  %v4991 = vunpack.c.l.b16 %v4822
  %v4992 = vunpack.c.h.b16 %v4822
  %v4993 = vunpack.c.l.b16 %v4823
  %v4994 = vunpack.c.h.b16 %v4823
  %v4995 = vunpack.c.l.b16 %v4824
  %v4996 = vunpack.c.h.b16 %v4824
  %v4997 = vunpack.c.l.b16 %v4825
  %v4998 = vunpack.c.h.b16 %v4825
  %v4999 = vunpack.c.l.b16 %v4826
  %v5000 = vunpack.c.h.b16 %v4826
  %v5001 = vunpack.c.l.b16 %v4827
  %v5002 = vunpack.c.h.b16 %v4827
  %v5003 = vunpack.c.l.b16 %v4828
  %v5004 = vunpack.c.h.b16 %v4828
  %v5005 = vunpack.c.l.b16 %v4829
  %v5006 = vunpack.c.h.b16 %v4829
  %v5007 = vunpack.c.l.b16 %v4830
  %v5008 = vunpack.c.h.b16 %v4830
  %v5009 = vunpack.c.l.b16 %v4831
  %v5010 = vunpack.c.h.b16 %v4831
  %v5011 = vunpack.c.l.b16 %v4832
  %v5012 = vunpack.c.h.b16 %v4832
  %v5013 = vunpack.c.l.b16 %v4833
  %v5014 = vunpack.c.h.b16 %v4833
  %v5015 = vunpack.c.l.b16 %v4834
  %v5016 = vunpack.c.h.b16 %v4834
  %v5017 = vunpack.c.l.b16 %v4835
  %v5018 = vunpack.c.h.b16 %v4835
  %v5019 = vunpack.c.l.b16 %v4836
  %v5020 = vunpack.c.h.b16 %v4836
  %v5021 = vunpack.c.l.b16 %v4837
  %v5022 = vunpack.c.h.b16 %v4837
  %v5023 = vunpack.c.l.b16 %v4838
  %v5024 = vunpack.c.h.b16 %v4838
  %v5025 = vunpack.c.l.b16 %v4839
  %v5026 = vunpack.c.h.b16 %v4839
  %v5027 = vunpack.c.l.b16 %v4840
  %v5028 = vunpack.c.h.b16 %v4840
  %v5029 = vunpack.c.l.b16 %v4841
  %v5030 = vunpack.c.h.b16 %v4841
  %v5031 = vpack.c.b16 %v4955, %v4951
  %v5032 = vpack.c.b16 %v4956, %v4952
  %v5033 = vpack.c.b16 %v4957, %v4953
  %v5034 = vpack.c.b16 %v4958, %v4954
  %v5035 = vpack.c.b16 %v4963, %v4959
  %v5036 = vpack.c.b16 %v4964, %v4960
  %v5037 = vpack.c.b16 %v4965, %v4961
  %v5038 = vpack.c.b16 %v4966, %v4962
  %v5039 = vpack.c.b16 %v4971, %v4967
  %v5040 = vpack.c.b16 %v4972, %v4968
  %v5041 = vpack.c.b16 %v4973, %v4969
  %v5042 = vpack.c.b16 %v4974, %v4970
  %v5043 = vpack.c.b16 %v4979, %v4975
  %v5044 = vpack.c.b16 %v4980, %v4976
  %v5045 = vpack.c.b16 %v4981, %v4977
  %v5046 = vpack.c.b16 %v4982, %v4978
  %v5047 = vpack.c.b16 %v4987, %v4983
  %v5048 = vpack.c.b16 %v4988, %v4984
  %v5049 = vpack.c.b16 %v4989, %v4985
  %v5050 = vpack.c.b16 %v4990, %v4986
  %v5051 = vpack.c.b16 %v4995, %v4991
  %v5052 = vpack.c.b16 %v4996, %v4992
  %v5053 = vpack.c.b16 %v4997, %v4993
  %v5054 = vpack.c.b16 %v4998, %v4994
  %v5055 = vpack.c.b16 %v5003, %v4999
  %v5056 = vpack.c.b16 %v5004, %v5000
  %v5057 = vpack.c.b16 %v5005, %v5001
  %v5058 = vpack.c.b16 %v5006, %v5002
  %v5059 = vpack.c.b16 %v5011, %v5007
  %v5060 = vpack.c.b16 %v5012, %v5008
  %v5061 = vpack.c.b16 %v5013, %v5009
  %v5062 = vpack.c.b16 %v5014, %v5010
  %v5063 = vpack.c.b16 %v5019, %v5015
  %v5064 = vpack.c.b16 %v5020, %v5016
  %v5065 = vpack.c.b16 %v5021, %v5017
  %v5066 = vpack.c.b16 %v5022, %v5018
  %v5067 = vpack.c.b16 %v5027, %v5023
  %v5068 = vpack.c.b16 %v5028, %v5024
  %v5069 = vpack.c.b16 %v5029, %v5025
  %v5070 = vpack.c.b16 %v5030, %v5026
  %v5112 = vsel %vm124, %v4900, 0
  %v5115 = vsel %vm124, %v4902, 0
  %v5118 = vsel %vm124, %v4904, 0
  %v5121 = vsel %vm124, %v4906, 0
  %5123 = vmatpush.bf16.msra.mxu0 %v5059
  %5124 = vmatpush.bf16.msra.mxu0 %v5055
  %5125 = vmatpush.bf16.msra.mxu0 %v5051
  %5126 = vmatpush.bf16.msra.mxu0 %v5047
  %5127 = vmatpush.bf16.msra.mxu0 %v5043
  %5128 = vmatpush.bf16.msra.mxu0 %v5039
  %5129 = vmatpush.bf16.msra.mxu0 %v5035
  %5130 = vmatpush.bf16.msra.mxu0 %v5031
  %5131 = vmatmul.bf16.gmra.mxu0 %v4899
  %v5132 = vpop.f32.mrf.mxu0
  %v5133 = vadd.f32 %v4843, %v5132
  %v5134 = vpop.f32.mrf.mxu0
  %v5135 = vadd.f32 %v4847, %v5134
  %5136 = vmatmul.bf16.gmra.mxu0 %v4901
  %v5137 = vpop.f32.mrf.mxu0
  %v5138 = vadd.f32 %v4851, %v5137
  %v5139 = vpop.f32.mrf.mxu0
  %v5140 = vadd.f32 %v4855, %v5139
  %5141 = vmatmul.bf16.gmra.mxu0 %v4903
  %v5142 = vpop.f32.mrf.mxu0
  %v5143 = vadd.f32 %v4859, %v5142
  %v5144 = vpop.f32.mrf.mxu0
  %v5145 = vadd.f32 %v4863, %v5144
  %5146 = vmatmul.bf16.gmra.mxu0 %v4905
  %v5147 = vpop.f32.mrf.mxu0
  %v5148 = vadd.f32 %v4867, %v5147
  %v5149 = vpop.f32.mrf.mxu0
  %v5150 = vadd.f32 %v4871, %v5149
  %5151 = vdwg.mxu0
  %5152 = vmatpush.bf16.msra.mxu0 0
  %5153 = vmatpush.bf16.msra.mxu0 0
  %5154 = vmatpush.bf16.msra.mxu0 0
  %5155 = vmatpush.bf16.msra.mxu0 0
  %5156 = vmatpush.bf16.msra.mxu0 0
  %5157 = vmatpush.bf16.msra.mxu0 0
  %5158 = vmatpush.bf16.msra.mxu0 %v5067
  %5159 = vmatpush.bf16.msra.mxu0 %v5063
  %5160 = vmatmul.bf16.gmra.mxu0 %v5112
  %v5161 = vpop.f32.mrf.mxu0
  %v5162 = vadd.f32 %v5133, %v5161
  %v5163 = vpop.f32.mrf.mxu0
  %v5164 = vadd.f32 %v5135, %v5163
  %5165 = vmatmul.bf16.gmra.mxu0 %v5115
  %v5166 = vpop.f32.mrf.mxu0
  %v5167 = vadd.f32 %v5138, %v5166
  %v5168 = vpop.f32.mrf.mxu0
  %v5169 = vadd.f32 %v5140, %v5168
  %5170 = vmatmul.bf16.gmra.mxu0 %v5118
  %v5171 = vpop.f32.mrf.mxu0
  %v5172 = vadd.f32 %v5143, %v5171
  %v5173 = vpop.f32.mrf.mxu0
  %v5174 = vadd.f32 %v5145, %v5173
  %5175 = vmatmul.bf16.gmra.mxu0 %v5121
  %v5176 = vpop.f32.mrf.mxu0
  %v5177 = vadd.f32 %v5148, %v5176
  %v5178 = vpop.f32.mrf.mxu0
  %v5179 = vadd.f32 %v5150, %v5178
  %5180 = vdwg.mxu0
  %5181 = vmatpush.bf16.msra.mxu0 %v5060
  %5182 = vmatpush.bf16.msra.mxu0 %v5056
  %5183 = vmatpush.bf16.msra.mxu0 %v5052
  %5184 = vmatpush.bf16.msra.mxu0 %v5048
  %5185 = vmatpush.bf16.msra.mxu0 %v5044
  %5186 = vmatpush.bf16.msra.mxu0 %v5040
  %5187 = vmatpush.bf16.msra.mxu0 %v5036
  %5188 = vmatpush.bf16.msra.mxu0 %v5032
  %5189 = vmatmul.bf16.gmra.mxu0 %v4899
  %v5190 = vpop.f32.mrf.mxu0
  %v5191 = vadd.f32 %v4844, %v5190
  %v5192 = vpop.f32.mrf.mxu0
  %v5193 = vadd.f32 %v4848, %v5192
  %5194 = vmatmul.bf16.gmra.mxu0 %v4901
  %v5195 = vpop.f32.mrf.mxu0
  %v5196 = vadd.f32 %v4852, %v5195
  %v5197 = vpop.f32.mrf.mxu0
  %v5198 = vadd.f32 %v4856, %v5197
  %5199 = vmatmul.bf16.gmra.mxu0 %v4903
  %v5200 = vpop.f32.mrf.mxu0
  %v5201 = vadd.f32 %v4860, %v5200
  %v5202 = vpop.f32.mrf.mxu0
  %v5203 = vadd.f32 %v4864, %v5202
  %5204 = vmatmul.bf16.gmra.mxu0 %v4905
  %v5205 = vpop.f32.mrf.mxu0
  %v5206 = vadd.f32 %v4868, %v5205
  %v5207 = vpop.f32.mrf.mxu0
  %v5208 = vadd.f32 %v4872, %v5207
  %5209 = vdwg.mxu0
  %5210 = vmatpush.bf16.msra.mxu0 0
  %5211 = vmatpush.bf16.msra.mxu0 0
  %5212 = vmatpush.bf16.msra.mxu0 0
  %5213 = vmatpush.bf16.msra.mxu0 0
  %5214 = vmatpush.bf16.msra.mxu0 0
  %5215 = vmatpush.bf16.msra.mxu0 0
  %5216 = vmatpush.bf16.msra.mxu0 %v5068
  %5217 = vmatpush.bf16.msra.mxu0 %v5064
  %5218 = vmatmul.bf16.gmra.mxu0 %v5112
  %v5219 = vpop.f32.mrf.mxu0
  %v5220 = vadd.f32 %v5191, %v5219
  %v5221 = vpop.f32.mrf.mxu0
  %v5222 = vadd.f32 %v5193, %v5221
  %5223 = vmatmul.bf16.gmra.mxu0 %v5115
  %v5224 = vpop.f32.mrf.mxu0
  %v5225 = vadd.f32 %v5196, %v5224
  %v5226 = vpop.f32.mrf.mxu0
  %v5227 = vadd.f32 %v5198, %v5226
  %5228 = vmatmul.bf16.gmra.mxu0 %v5118
  %v5229 = vpop.f32.mrf.mxu0
  %v5230 = vadd.f32 %v5201, %v5229
  %v5231 = vpop.f32.mrf.mxu0
  %v5232 = vadd.f32 %v5203, %v5231
  %5233 = vmatmul.bf16.gmra.mxu0 %v5121
  %v5234 = vpop.f32.mrf.mxu0
  %v5235 = vadd.f32 %v5206, %v5234
  %v5236 = vpop.f32.mrf.mxu0
  %v5237 = vadd.f32 %v5208, %v5236
  %5238 = vdwg.mxu0
  %5239 = vmatpush.bf16.msra.mxu0 %v5061
  %5240 = vmatpush.bf16.msra.mxu0 %v5057
  %5241 = vmatpush.bf16.msra.mxu0 %v5053
  %5242 = vmatpush.bf16.msra.mxu0 %v5049
  %5243 = vmatpush.bf16.msra.mxu0 %v5045
  %5244 = vmatpush.bf16.msra.mxu0 %v5041
  %5245 = vmatpush.bf16.msra.mxu0 %v5037
  %5246 = vmatpush.bf16.msra.mxu0 %v5033
  %5247 = vmatmul.bf16.gmra.mxu0 %v4899
  %v5248 = vpop.f32.mrf.mxu0
  %v5249 = vadd.f32 %v4845, %v5248
  %v5250 = vpop.f32.mrf.mxu0
  %v5251 = vadd.f32 %v4849, %v5250
  %5252 = vmatmul.bf16.gmra.mxu0 %v4901
  %v5253 = vpop.f32.mrf.mxu0
  %v5254 = vadd.f32 %v4853, %v5253
  %v5255 = vpop.f32.mrf.mxu0
  %v5256 = vadd.f32 %v4857, %v5255
  %5257 = vmatmul.bf16.gmra.mxu0 %v4903
  %v5258 = vpop.f32.mrf.mxu0
  %v5259 = vadd.f32 %v4861, %v5258
  %v5260 = vpop.f32.mrf.mxu0
  %v5261 = vadd.f32 %v4865, %v5260
  %5262 = vmatmul.bf16.gmra.mxu0 %v4905
  %v5263 = vpop.f32.mrf.mxu0
  %v5264 = vadd.f32 %v4869, %v5263
  %v5265 = vpop.f32.mrf.mxu0
  %v5266 = vadd.f32 %v4873, %v5265
  %5267 = vdwg.mxu0
  %5268 = vmatpush.bf16.msra.mxu0 0
  %5269 = vmatpush.bf16.msra.mxu0 0
  %5270 = vmatpush.bf16.msra.mxu0 0
  %5271 = vmatpush.bf16.msra.mxu0 0
  %5272 = vmatpush.bf16.msra.mxu0 0
  %5273 = vmatpush.bf16.msra.mxu0 0
  %5274 = vmatpush.bf16.msra.mxu0 %v5069
  %5275 = vmatpush.bf16.msra.mxu0 %v5065
  %5276 = vmatmul.bf16.gmra.mxu0 %v5112
  %v5277 = vpop.f32.mrf.mxu0
  %v5278 = vadd.f32 %v5249, %v5277
  %v5279 = vpop.f32.mrf.mxu0
  %v5280 = vadd.f32 %v5251, %v5279
  %5281 = vmatmul.bf16.gmra.mxu0 %v5115
  %v5282 = vpop.f32.mrf.mxu0
  %v5283 = vadd.f32 %v5254, %v5282
  %v5284 = vpop.f32.mrf.mxu0
  %v5285 = vadd.f32 %v5256, %v5284
  %5286 = vmatmul.bf16.gmra.mxu0 %v5118
  %v5287 = vpop.f32.mrf.mxu0
  %v5288 = vadd.f32 %v5259, %v5287
  %v5289 = vpop.f32.mrf.mxu0
  %v5290 = vadd.f32 %v5261, %v5289
  %5291 = vmatmul.bf16.gmra.mxu0 %v5121
  %v5292 = vpop.f32.mrf.mxu0
  %v5293 = vadd.f32 %v5264, %v5292
  %v5294 = vpop.f32.mrf.mxu0
  %v5295 = vadd.f32 %v5266, %v5294
  %5296 = vdwg.mxu0
  %5297 = vmatpush.bf16.msra.mxu0 %v5062
  %5298 = vmatpush.bf16.msra.mxu0 %v5058
  %5299 = vmatpush.bf16.msra.mxu0 %v5054
  %5300 = vmatpush.bf16.msra.mxu0 %v5050
  %5301 = vmatpush.bf16.msra.mxu0 %v5046
  %5302 = vmatpush.bf16.msra.mxu0 %v5042
  %5303 = vmatpush.bf16.msra.mxu0 %v5038
  %5304 = vmatpush.bf16.msra.mxu0 %v5034
  %5305 = vmatmul.bf16.gmra.mxu0 %v4899
  %v5306 = vpop.f32.mrf.mxu0
  %v5307 = vadd.f32 %v4846, %v5306
  %v5308 = vpop.f32.mrf.mxu0
  %v5309 = vadd.f32 %v4850, %v5308
  %5310 = vmatmul.bf16.gmra.mxu0 %v4901
  %v5311 = vpop.f32.mrf.mxu0
  %v5312 = vadd.f32 %v4854, %v5311
  %v5313 = vpop.f32.mrf.mxu0
  %v5314 = vadd.f32 %v4858, %v5313
  %5315 = vmatmul.bf16.gmra.mxu0 %v4903
  %v5316 = vpop.f32.mrf.mxu0
  %v5317 = vadd.f32 %v4862, %v5316
  %v5318 = vpop.f32.mrf.mxu0
  %v5319 = vadd.f32 %v4866, %v5318
  %5320 = vmatmul.bf16.gmra.mxu0 %v4905
  %v5321 = vpop.f32.mrf.mxu0
  %v5322 = vadd.f32 %v4870, %v5321
  %v5323 = vpop.f32.mrf.mxu0
  %v5324 = vadd.f32 %v4874, %v5323
  %5325 = vdwg.mxu0
  %5326 = vmatpush.bf16.msra.mxu0 0
  %5327 = vmatpush.bf16.msra.mxu0 0
  %5328 = vmatpush.bf16.msra.mxu0 0
  %5329 = vmatpush.bf16.msra.mxu0 0
  %5330 = vmatpush.bf16.msra.mxu0 0
  %5331 = vmatpush.bf16.msra.mxu0 0
  %5332 = vmatpush.bf16.msra.mxu0 %v5070
  %5333 = vmatpush.bf16.msra.mxu0 %v5066
  %5334 = vmatmul.bf16.gmra.mxu0 %v5112
  %v5335 = vpop.f32.mrf.mxu0
  %v5336 = vadd.f32 %v5307, %v5335
  %v5337 = vpop.f32.mrf.mxu0
  %v5338 = vadd.f32 %v5309, %v5337
  %5339 = vmatmul.bf16.gmra.mxu0 %v5115
  %v5340 = vpop.f32.mrf.mxu0
  %v5341 = vadd.f32 %v5312, %v5340
  %v5342 = vpop.f32.mrf.mxu0
  %v5343 = vadd.f32 %v5314, %v5342
  %5344 = vmatmul.bf16.gmra.mxu0 %v5118
  %v5345 = vpop.f32.mrf.mxu0
  %v5346 = vadd.f32 %v5317, %v5345
  %v5347 = vpop.f32.mrf.mxu0
  %v5348 = vadd.f32 %v5319, %v5347
  %5349 = vmatmul.bf16.gmra.mxu0 %v5121
  %v5350 = vpop.f32.mrf.mxu0
  %v5351 = vadd.f32 %v5322, %v5350
  %v5352 = vpop.f32.mrf.mxu0
  %v5353 = vadd.f32 %v5324, %v5352
  %5354 = vdwg.mxu0
  %v5355 = vtanh.pop %v5162
  %v5356 = vtanh.pop %v5220
  %v5357 = vtanh.pop %v5278
  %v5358 = vtanh.pop %v5336
  %v5359 = vtanh.pop %v5164
  %v5360 = vtanh.pop %v5222
  %v5361 = vtanh.pop %v5280
  %v5362 = vtanh.pop %v5338
  %v5363 = vtanh.pop %v5167
  %v5364 = vtanh.pop %v5225
  %v5365 = vtanh.pop %v5283
  %v5366 = vtanh.pop %v5341
  %v5367 = vtanh.pop %v5169
  %v5368 = vtanh.pop %v5227
  %v5369 = vtanh.pop %v5285
  %v5370 = vtanh.pop %v5343
  %v5371 = vxor.u32 %v5172, 2147483648
  %v5372 = vxor.u32 %v5230, 2147483648
  %v5373 = vxor.u32 %v5288, 2147483648
  %v5374 = vxor.u32 %v5346, 2147483648
  %v5375 = vxor.u32 %v5174, 2147483648
  %v5376 = vxor.u32 %v5232, 2147483648
  %v5377 = vxor.u32 %v5290, 2147483648
  %v5378 = vxor.u32 %v5348, 2147483648
  %v5379 = vxor.u32 %v5177, 2147483648
  %v5380 = vxor.u32 %v5235, 2147483648
  %v5381 = vxor.u32 %v5293, 2147483648
  %v5382 = vxor.u32 %v5351, 2147483648
  %v5383 = vxor.u32 %v5179, 2147483648
  %v5384 = vxor.u32 %v5237, 2147483648
  %v5385 = vxor.u32 %v5295, 2147483648
  %v5386 = vxor.u32 %v5353, 2147483648
  %v5387 = vmul.f32 %v5371, 1.442695
  %v5388 = vpow.pop %v5387
  %v5389 = vmul.f32 %v5372, 1.442695
  %v5390 = vpow.pop %v5389
  %v5391 = vmul.f32 %v5373, 1.442695
  %v5392 = vpow.pop %v5391
  %v5393 = vmul.f32 %v5374, 1.442695
  %v5394 = vpow.pop %v5393
  %v5395 = vmul.f32 %v5375, 1.442695
  %v5396 = vpow.pop %v5395
  %v5397 = vmul.f32 %v5376, 1.442695
  %v5398 = vpow.pop %v5397
  %v5399 = vmul.f32 %v5377, 1.442695
  %v5400 = vpow.pop %v5399
  %v5401 = vmul.f32 %v5378, 1.442695
  %v5402 = vpow.pop %v5401
  %v5403 = vmul.f32 %v5379, 1.442695
  %v5404 = vpow.pop %v5403
  %v5405 = vmul.f32 %v5380, 1.442695
  %v5406 = vpow.pop %v5405
  %v5407 = vmul.f32 %v5381, 1.442695
  %v5408 = vpow.pop %v5407
  %v5409 = vmul.f32 %v5382, 1.442695
  %v5410 = vpow.pop %v5409
  %v5411 = vmul.f32 %v5383, 1.442695
  %v5412 = vpow.pop %v5411
  %v5413 = vmul.f32 %v5384, 1.442695
  %v5414 = vpow.pop %v5413
  %v5415 = vmul.f32 %v5385, 1.442695
  %v5416 = vpow.pop %v5415
  %v5417 = vmul.f32 %v5386, 1.442695
  %v5418 = vpow.pop %v5417
  %v5419 = vadd.f32 %v5388, 1.0
  %v5420 = vadd.f32 %v5390, 1.0
  %v5421 = vadd.f32 %v5392, 1.0
  %v5422 = vadd.f32 %v5394, 1.0
  %v5423 = vadd.f32 %v5396, 1.0
  %v5424 = vadd.f32 %v5398, 1.0
  %v5425 = vadd.f32 %v5400, 1.0
  %v5426 = vadd.f32 %v5402, 1.0
  %v5427 = vadd.f32 %v5404, 1.0
  %v5428 = vadd.f32 %v5406, 1.0
  %v5429 = vadd.f32 %v5408, 1.0
  %v5430 = vadd.f32 %v5410, 1.0
  %v5431 = vadd.f32 %v5412, 1.0
  %v5432 = vadd.f32 %v5414, 1.0
  %v5433 = vadd.f32 %v5416, 1.0
  %v5434 = vadd.f32 %v5418, 1.0
  %v5435 = vrcp.pop %v5419
  %v5436 = vmul.f32 %v5419, %v5435
  %v5437 = vsub.f32 1.0, %v5436
  %v5438 = vmul.f32 %v5435, %v5437
  %v5439 = vadd.f32 %v5435, %v5438
  %vm5440 = vweird.f32 %v5419
  %vm5441 = vweird.f32 %v5435
  %vm5442 = vmor %vm5440, %vm5441
  %v5443 = vsel %vm5442, %v5435, %v5439
  %v5444 = vand.u32 2147483647, %v5419
  %vm5445 = vcmp.eq.f32.partialorder %v5444, 8.507059e+37
  %v5446 = vand.u32 %v5419, 2147483648
  %v5447 = vor.u32 1.1754944e-38, %v5446
  %v5448 = vsel %vm5445, %v5447, %v5443
  %v5449 = vmul.f32 1.0, %v5448
  %v5450 = vrcp.pop %v5420
  %v5451 = vmul.f32 %v5420, %v5450
  %v5452 = vsub.f32 1.0, %v5451
  %v5453 = vmul.f32 %v5450, %v5452
  %v5454 = vadd.f32 %v5450, %v5453
  %vm5455 = vweird.f32 %v5420
  %vm5456 = vweird.f32 %v5450
  %vm5457 = vmor %vm5455, %vm5456
  %v5458 = vsel %vm5457, %v5450, %v5454
  %v5459 = vand.u32 2147483647, %v5420
  %vm5460 = vcmp.eq.f32.partialorder %v5459, 8.507059e+37
  %v5461 = vand.u32 %v5420, 2147483648
  %v5462 = vor.u32 1.1754944e-38, %v5461
  %v5463 = vsel %vm5460, %v5462, %v5458
  %v5464 = vmul.f32 1.0, %v5463
  %v5465 = vrcp.pop %v5421
  %v5466 = vmul.f32 %v5421, %v5465
  %v5467 = vsub.f32 1.0, %v5466
  %v5468 = vmul.f32 %v5465, %v5467
  %v5469 = vadd.f32 %v5465, %v5468
  %vm5470 = vweird.f32 %v5421
  %vm5471 = vweird.f32 %v5465
  %vm5472 = vmor %vm5470, %vm5471
  %v5473 = vsel %vm5472, %v5465, %v5469
  %v5474 = vand.u32 2147483647, %v5421
  %vm5475 = vcmp.eq.f32.partialorder %v5474, 8.507059e+37
  %v5476 = vand.u32 %v5421, 2147483648
  %v5477 = vor.u32 1.1754944e-38, %v5476
  %v5478 = vsel %vm5475, %v5477, %v5473
  %v5479 = vmul.f32 1.0, %v5478
  %v5480 = vrcp.pop %v5422
  %v5481 = vmul.f32 %v5422, %v5480
  %v5482 = vsub.f32 1.0, %v5481
  %v5483 = vmul.f32 %v5480, %v5482
  %v5484 = vadd.f32 %v5480, %v5483
  %vm5485 = vweird.f32 %v5422
  %vm5486 = vweird.f32 %v5480
  %vm5487 = vmor %vm5485, %vm5486
  %v5488 = vsel %vm5487, %v5480, %v5484
  %v5489 = vand.u32 2147483647, %v5422
  %vm5490 = vcmp.eq.f32.partialorder %v5489, 8.507059e+37
  %v5491 = vand.u32 %v5422, 2147483648
  %v5492 = vor.u32 1.1754944e-38, %v5491
  %v5493 = vsel %vm5490, %v5492, %v5488
  %v5494 = vmul.f32 1.0, %v5493
  %v5495 = vrcp.pop %v5423
  %v5496 = vmul.f32 %v5423, %v5495
  %v5497 = vsub.f32 1.0, %v5496
  %v5498 = vmul.f32 %v5495, %v5497
  %v5499 = vadd.f32 %v5495, %v5498
  %vm5500 = vweird.f32 %v5423
  %vm5501 = vweird.f32 %v5495
  %vm5502 = vmor %vm5500, %vm5501
  %v5503 = vsel %vm5502, %v5495, %v5499
  %v5504 = vand.u32 2147483647, %v5423
  %vm5505 = vcmp.eq.f32.partialorder %v5504, 8.507059e+37
  %v5506 = vand.u32 %v5423, 2147483648
  %v5507 = vor.u32 1.1754944e-38, %v5506
  %v5508 = vsel %vm5505, %v5507, %v5503
  %v5509 = vmul.f32 1.0, %v5508
  %v5510 = vrcp.pop %v5424
  %v5511 = vmul.f32 %v5424, %v5510
  %v5512 = vsub.f32 1.0, %v5511
  %v5513 = vmul.f32 %v5510, %v5512
  %v5514 = vadd.f32 %v5510, %v5513
  %vm5515 = vweird.f32 %v5424
  %vm5516 = vweird.f32 %v5510
  %vm5517 = vmor %vm5515, %vm5516
  %v5518 = vsel %vm5517, %v5510, %v5514
  %v5519 = vand.u32 2147483647, %v5424
  %vm5520 = vcmp.eq.f32.partialorder %v5519, 8.507059e+37
  %v5521 = vand.u32 %v5424, 2147483648
  %v5522 = vor.u32 1.1754944e-38, %v5521
  %v5523 = vsel %vm5520, %v5522, %v5518
  %v5524 = vmul.f32 1.0, %v5523
  %v5525 = vrcp.pop %v5425
  %v5526 = vmul.f32 %v5425, %v5525
  %v5527 = vsub.f32 1.0, %v5526
  %v5528 = vmul.f32 %v5525, %v5527
  %v5529 = vadd.f32 %v5525, %v5528
  %vm5530 = vweird.f32 %v5425
  %vm5531 = vweird.f32 %v5525
  %vm5532 = vmor %vm5530, %vm5531
  %v5533 = vsel %vm5532, %v5525, %v5529
  %v5534 = vand.u32 2147483647, %v5425
  %vm5535 = vcmp.eq.f32.partialorder %v5534, 8.507059e+37
  %v5536 = vand.u32 %v5425, 2147483648
  %v5537 = vor.u32 1.1754944e-38, %v5536
  %v5538 = vsel %vm5535, %v5537, %v5533
  %v5539 = vmul.f32 1.0, %v5538
  %v5540 = vrcp.pop %v5426
  %v5541 = vmul.f32 %v5426, %v5540
  %v5542 = vsub.f32 1.0, %v5541
  %v5543 = vmul.f32 %v5540, %v5542
  %v5544 = vadd.f32 %v5540, %v5543
  %vm5545 = vweird.f32 %v5426
  %vm5546 = vweird.f32 %v5540
  %vm5547 = vmor %vm5545, %vm5546
  %v5548 = vsel %vm5547, %v5540, %v5544
  %v5549 = vand.u32 2147483647, %v5426
  %vm5550 = vcmp.eq.f32.partialorder %v5549, 8.507059e+37
  %v5551 = vand.u32 %v5426, 2147483648
  %v5552 = vor.u32 1.1754944e-38, %v5551
  %v5553 = vsel %vm5550, %v5552, %v5548
  %v5554 = vmul.f32 1.0, %v5553
  %v5555 = vrcp.pop %v5427
  %v5556 = vmul.f32 %v5427, %v5555
  %v5557 = vsub.f32 1.0, %v5556
  %v5558 = vmul.f32 %v5555, %v5557
  %v5559 = vadd.f32 %v5555, %v5558
  %vm5560 = vweird.f32 %v5427
  %vm5561 = vweird.f32 %v5555
  %vm5562 = vmor %vm5560, %vm5561
  %v5563 = vsel %vm5562, %v5555, %v5559
  %v5564 = vand.u32 2147483647, %v5427
  %vm5565 = vcmp.eq.f32.partialorder %v5564, 8.507059e+37
  %v5566 = vand.u32 %v5427, 2147483648
  %v5567 = vor.u32 1.1754944e-38, %v5566
  %v5568 = vsel %vm5565, %v5567, %v5563
  %v5569 = vmul.f32 1.0, %v5568
  %v5570 = vrcp.pop %v5428
  %v5571 = vmul.f32 %v5428, %v5570
  %v5572 = vsub.f32 1.0, %v5571
  %v5573 = vmul.f32 %v5570, %v5572
  %v5574 = vadd.f32 %v5570, %v5573
  %vm5575 = vweird.f32 %v5428
  %vm5576 = vweird.f32 %v5570
  %vm5577 = vmor %vm5575, %vm5576
  %v5578 = vsel %vm5577, %v5570, %v5574
  %v5579 = vand.u32 2147483647, %v5428
  %vm5580 = vcmp.eq.f32.partialorder %v5579, 8.507059e+37
  %v5581 = vand.u32 %v5428, 2147483648
  %v5582 = vor.u32 1.1754944e-38, %v5581
  %v5583 = vsel %vm5580, %v5582, %v5578
  %v5584 = vmul.f32 1.0, %v5583
  %v5585 = vrcp.pop %v5429
  %v5586 = vmul.f32 %v5429, %v5585
  %v5587 = vsub.f32 1.0, %v5586
  %v5588 = vmul.f32 %v5585, %v5587
  %v5589 = vadd.f32 %v5585, %v5588
  %vm5590 = vweird.f32 %v5429
  %vm5591 = vweird.f32 %v5585
  %vm5592 = vmor %vm5590, %vm5591
  %v5593 = vsel %vm5592, %v5585, %v5589
  %v5594 = vand.u32 2147483647, %v5429
  %vm5595 = vcmp.eq.f32.partialorder %v5594, 8.507059e+37
  %v5596 = vand.u32 %v5429, 2147483648
  %v5597 = vor.u32 1.1754944e-38, %v5596
  %v5598 = vsel %vm5595, %v5597, %v5593
  %v5599 = vmul.f32 1.0, %v5598
  %v5600 = vrcp.pop %v5430
  %v5601 = vmul.f32 %v5430, %v5600
  %v5602 = vsub.f32 1.0, %v5601
  %v5603 = vmul.f32 %v5600, %v5602
  %v5604 = vadd.f32 %v5600, %v5603
  %vm5605 = vweird.f32 %v5430
  %vm5606 = vweird.f32 %v5600
  %vm5607 = vmor %vm5605, %vm5606
  %v5608 = vsel %vm5607, %v5600, %v5604
  %v5609 = vand.u32 2147483647, %v5430
  %vm5610 = vcmp.eq.f32.partialorder %v5609, 8.507059e+37
  %v5611 = vand.u32 %v5430, 2147483648
  %v5612 = vor.u32 1.1754944e-38, %v5611
  %v5613 = vsel %vm5610, %v5612, %v5608
  %v5614 = vmul.f32 1.0, %v5613
  %v5615 = vrcp.pop %v5431
  %v5616 = vmul.f32 %v5431, %v5615
  %v5617 = vsub.f32 1.0, %v5616
  %v5618 = vmul.f32 %v5615, %v5617
  %v5619 = vadd.f32 %v5615, %v5618
  %vm5620 = vweird.f32 %v5431
  %vm5621 = vweird.f32 %v5615
  %vm5622 = vmor %vm5620, %vm5621
  %v5623 = vsel %vm5622, %v5615, %v5619
  %v5624 = vand.u32 2147483647, %v5431
  %vm5625 = vcmp.eq.f32.partialorder %v5624, 8.507059e+37
  %v5626 = vand.u32 %v5431, 2147483648
  %v5627 = vor.u32 1.1754944e-38, %v5626
  %v5628 = vsel %vm5625, %v5627, %v5623
  %v5629 = vmul.f32 1.0, %v5628
  %v5630 = vrcp.pop %v5432
  %v5631 = vmul.f32 %v5432, %v5630
  %v5632 = vsub.f32 1.0, %v5631
  %v5633 = vmul.f32 %v5630, %v5632
  %v5634 = vadd.f32 %v5630, %v5633
  %vm5635 = vweird.f32 %v5432
  %vm5636 = vweird.f32 %v5630
  %vm5637 = vmor %vm5635, %vm5636
  %v5638 = vsel %vm5637, %v5630, %v5634
  %v5639 = vand.u32 2147483647, %v5432
  %vm5640 = vcmp.eq.f32.partialorder %v5639, 8.507059e+37
  %v5641 = vand.u32 %v5432, 2147483648
  %v5642 = vor.u32 1.1754944e-38, %v5641
  %v5643 = vsel %vm5640, %v5642, %v5638
  %v5644 = vmul.f32 1.0, %v5643
  %v5645 = vrcp.pop %v5433
  %v5646 = vmul.f32 %v5433, %v5645
  %v5647 = vsub.f32 1.0, %v5646
  %v5648 = vmul.f32 %v5645, %v5647
  %v5649 = vadd.f32 %v5645, %v5648
  %vm5650 = vweird.f32 %v5433
  %vm5651 = vweird.f32 %v5645
  %vm5652 = vmor %vm5650, %vm5651
  %v5653 = vsel %vm5652, %v5645, %v5649
  %v5654 = vand.u32 2147483647, %v5433
  %vm5655 = vcmp.eq.f32.partialorder %v5654, 8.507059e+37
  %v5656 = vand.u32 %v5433, 2147483648
  %v5657 = vor.u32 1.1754944e-38, %v5656
  %v5658 = vsel %vm5655, %v5657, %v5653
  %v5659 = vmul.f32 1.0, %v5658
  %v5660 = vrcp.pop %v5434
  %v5661 = vmul.f32 %v5434, %v5660
  %v5662 = vsub.f32 1.0, %v5661
  %v5663 = vmul.f32 %v5660, %v5662
  %v5664 = vadd.f32 %v5660, %v5663
  %vm5665 = vweird.f32 %v5434
  %vm5666 = vweird.f32 %v5660
  %vm5667 = vmor %vm5665, %vm5666
  %v5668 = vsel %vm5667, %v5660, %v5664
  %v5669 = vand.u32 2147483647, %v5434
  %vm5670 = vcmp.eq.f32.partialorder %v5669, 8.507059e+37
  %v5671 = vand.u32 %v5434, 2147483648
  %v5672 = vor.u32 1.1754944e-38, %v5671
  %v5673 = vsel %vm5670, %v5672, %v5668
  %v5674 = vmul.f32 1.0, %v5673
  %v5675 = vmul.f32 %v5355, %v5449
  %v5676 = vmul.f32 %v5356, %v5464
  %v5677 = vmul.f32 %v5357, %v5479
  %v5678 = vmul.f32 %v5358, %v5494
  %v5679 = vmul.f32 %v5359, %v5509
  %v5680 = vmul.f32 %v5360, %v5524
  %v5681 = vmul.f32 %v5361, %v5539
  %v5682 = vmul.f32 %v5362, %v5554
  %v5683 = vmul.f32 %v5363, %v5569
  %v5684 = vmul.f32 %v5364, %v5584
  %v5685 = vmul.f32 %v5365, %v5599
  %v5686 = vmul.f32 %v5366, %v5614
  %v5687 = vmul.f32 %v5367, %v5629
  %v5688 = vmul.f32 %v5368, %v5644
  %v5689 = vmul.f32 %v5369, %v5659
  %v5690 = vmul.f32 %v5370, %v5674
  %v5691 = vpack.c.bf16 %v5679, %v5675
  %v5692 = vpack.c.bf16 %v5680, %v5676
  %v5693 = vpack.c.bf16 %v5681, %v5677
  %v5694 = vpack.c.bf16 %v5682, %v5678
  %v5695 = vpack.c.bf16 %v5687, %v5683
  %v5696 = vpack.c.bf16 %v5688, %v5684
  %v5697 = vpack.c.bf16 %v5689, %v5685
  %v5698 = vpack.c.bf16 %v5690, %v5686
  %s5699 = scalar_lea.vmem %s6, 96
  %v5700 = vld [vmem:[%s5699] sm:$0xf]
  %v5701 = vld [vmem:[%s5699 + $0x4] sm:$0xf]
  %v5702 = vld [vmem:[%s5699 + $0x8] sm:$0xf]
  %v5703 = vld [vmem:[%s5699 + $0xc] sm:$0xf]
  %v5704 = vld [vmem:[%s5699 + $0x10] sm:$0xf]
  %v5705 = vld [vmem:[%s5699 + $0x14] sm:$0xf]
  %v5706 = vld [vmem:[%s5699 + $0x18] sm:$0xf]
  %v5707 = vld [vmem:[%s5699 + $0x1c] sm:$0xf]
  %s5708 = scalar_lea.vmem %s7, 192
  %v5709 = vld [vmem:[%s5708] sm:$0xff]
  %v5710 = vld [vmem:[%s5708 + $0x8] sm:$0xff]
  %v5711 = vld [vmem:[%s5708 + $0x10] sm:$0xff]
  %v5712 = vld [vmem:[%s5708 + $0x18] sm:$0xff]
  %v5713 = vld [vmem:[%s5708 + $0x20] sm:$0xff]
  %v5714 = vld [vmem:[%s5708 + $0x28] sm:$0xff]
  %v5715 = vld [vmem:[%s5708 + $0x30] sm:$0xff]
  %v5716 = vld [vmem:[%s5708 + $0x38] sm:$0xff]
  %5718 = vset.pattern.permute.xlu0 0
  %5719 = vperm.xlu0 %5718, %v5709
  %v5720 = vpop.permute.xlu0 %5719
  %5723 = vset.pattern.permute.xlu0 0
  %5724 = vperm.xlu0 %5723, %v5710
  %v5725 = vpop.permute.xlu0 %5724
  %5728 = vset.pattern.permute.xlu0 0
  %5729 = vperm.xlu0 %5728, %v5711
  %v5730 = vpop.permute.xlu0 %5729
  %5733 = vset.pattern.permute.xlu0 0
  %5734 = vperm.xlu0 %5733, %v5712
  %v5735 = vpop.permute.xlu0 %5734
  %5738 = vset.pattern.permute.xlu0 0
  %5739 = vperm.xlu0 %5738, %v5713
  %v5740 = vpop.permute.xlu0 %5739
  %5743 = vset.pattern.permute.xlu0 0
  %5744 = vperm.xlu0 %5743, %v5714
  %v5745 = vpop.permute.xlu0 %5744
  %5748 = vset.pattern.permute.xlu0 0
  %5749 = vperm.xlu0 %5748, %v5715
  %v5750 = vpop.permute.xlu0 %5749
  %5753 = vset.pattern.permute.xlu0 0
  %5754 = vperm.xlu0 %5753, %v5716
  %v5755 = vpop.permute.xlu0 %5754
  %v5765 = vunpack.c.l.b16 %v5700
  %v5766 = vunpack.c.l.b16 %v5701
  %v5767 = vunpack.c.l.b16 %v5702
  %v5768 = vunpack.c.l.b16 %v5703
  %v5769 = vunpack.c.l.b16 %v5704
  %v5770 = vunpack.c.l.b16 %v5705
  %v5771 = vunpack.c.l.b16 %v5706
  %v5772 = vunpack.c.l.b16 %v5707
  %v5773 = vpack.c.b16 %v5766, %v5765
  %v5774 = vpack.c.b16 %v5768, %v5767
  %v5775 = vpack.c.b16 %v5770, %v5769
  %v5776 = vpack.c.b16 %v5772, %v5771
  %v5778 = vsel %vm124, %v5773, 0
  %v5781 = vsel %vm124, %v5774, 0
  %v5784 = vsel %vm124, %v5775, 0
  %v5787 = vsel %vm124, %v5776, 0
  %5789 = vmatpush.bf16.msra.mxu0 0
  %5790 = vmatpush.bf16.msra.mxu0 0
  %5791 = vmatpush.bf16.msra.mxu0 0
  %5792 = vmatpush.bf16.msra.mxu0 0
  %5793 = vmatpush.bf16.msra.mxu0 0
  %5794 = vmatpush.bf16.msra.mxu0 0
  %5795 = vmatpush.bf16.msra.mxu0 %v5695
  %5796 = vmatpush.bf16.msra.mxu0 %v5691
  %5797 = vmatmul.bf16.gmra.mxu0 %v5778
  %v5798 = vpop.f32.mrf.mxu0
  %v5799 = vadd.f32 %v5720, %v5798
  %v5800 = vpop.f32.mrf.mxu0
  %v5801 = vadd.f32 %v5725, %v5800
  %5802 = vmatmul.bf16.gmra.mxu0 %v5781
  %v5803 = vpop.f32.mrf.mxu0
  %v5804 = vadd.f32 %v5730, %v5803
  %v5805 = vpop.f32.mrf.mxu0
  %v5806 = vadd.f32 %v5735, %v5805
  %5807 = vmatmul.bf16.gmra.mxu0 %v5784
  %v5808 = vpop.f32.mrf.mxu0
  %v5809 = vadd.f32 %v5740, %v5808
  %v5810 = vpop.f32.mrf.mxu0
  %v5811 = vadd.f32 %v5745, %v5810
  %5812 = vmatmul.bf16.gmra.mxu0 %v5787
  %v5813 = vpop.f32.mrf.mxu0
  %v5814 = vadd.f32 %v5750, %v5813
  %v5815 = vpop.f32.mrf.mxu0
  %v5816 = vadd.f32 %v5755, %v5815
  %5817 = vdwg.mxu0
  %5818 = vmatpush.bf16.msra.mxu0 0
  %5819 = vmatpush.bf16.msra.mxu0 0
  %5820 = vmatpush.bf16.msra.mxu0 0
  %5821 = vmatpush.bf16.msra.mxu0 0
  %5822 = vmatpush.bf16.msra.mxu0 0
  %5823 = vmatpush.bf16.msra.mxu0 0
  %5824 = vmatpush.bf16.msra.mxu0 %v5696
  %5825 = vmatpush.bf16.msra.mxu0 %v5692
  %5826 = vmatmul.bf16.gmra.mxu0 %v5778
  %v5827 = vpop.f32.mrf.mxu0
  %v5828 = vadd.f32 %v5720, %v5827
  %v5829 = vpop.f32.mrf.mxu0
  %v5830 = vadd.f32 %v5725, %v5829
  %5831 = vmatmul.bf16.gmra.mxu0 %v5781
  %v5832 = vpop.f32.mrf.mxu0
  %v5833 = vadd.f32 %v5730, %v5832
  %v5834 = vpop.f32.mrf.mxu0
  %v5835 = vadd.f32 %v5735, %v5834
  %5836 = vmatmul.bf16.gmra.mxu0 %v5784
  %v5837 = vpop.f32.mrf.mxu0
  %v5838 = vadd.f32 %v5740, %v5837
  %v5839 = vpop.f32.mrf.mxu0
  %v5840 = vadd.f32 %v5745, %v5839
  %5841 = vmatmul.bf16.gmra.mxu0 %v5787
  %v5842 = vpop.f32.mrf.mxu0
  %v5843 = vadd.f32 %v5750, %v5842
  %v5844 = vpop.f32.mrf.mxu0
  %v5845 = vadd.f32 %v5755, %v5844
  %5846 = vdwg.mxu0
  %5847 = vmatpush.bf16.msra.mxu0 0
  %5848 = vmatpush.bf16.msra.mxu0 0
  %5849 = vmatpush.bf16.msra.mxu0 0
  %5850 = vmatpush.bf16.msra.mxu0 0
  %5851 = vmatpush.bf16.msra.mxu0 0
  %5852 = vmatpush.bf16.msra.mxu0 0
  %5853 = vmatpush.bf16.msra.mxu0 %v5697
  %5854 = vmatpush.bf16.msra.mxu0 %v5693
  %5855 = vmatmul.bf16.gmra.mxu0 %v5778
  %v5856 = vpop.f32.mrf.mxu0
  %v5857 = vadd.f32 %v5720, %v5856
  %v5858 = vpop.f32.mrf.mxu0
  %v5859 = vadd.f32 %v5725, %v5858
  %5860 = vmatmul.bf16.gmra.mxu0 %v5781
  %v5861 = vpop.f32.mrf.mxu0
  %v5862 = vadd.f32 %v5730, %v5861
  %v5863 = vpop.f32.mrf.mxu0
  %v5864 = vadd.f32 %v5735, %v5863
  %5865 = vmatmul.bf16.gmra.mxu0 %v5784
  %v5866 = vpop.f32.mrf.mxu0
  %v5867 = vadd.f32 %v5740, %v5866
  %v5868 = vpop.f32.mrf.mxu0
  %v5869 = vadd.f32 %v5745, %v5868
  %5870 = vmatmul.bf16.gmra.mxu0 %v5787
  %v5871 = vpop.f32.mrf.mxu0
  %v5872 = vadd.f32 %v5750, %v5871
  %v5873 = vpop.f32.mrf.mxu0
  %v5874 = vadd.f32 %v5755, %v5873
  %5875 = vdwg.mxu0
  %5876 = vmatpush.bf16.msra.mxu0 0
  %5877 = vmatpush.bf16.msra.mxu0 0
  %5878 = vmatpush.bf16.msra.mxu0 0
  %5879 = vmatpush.bf16.msra.mxu0 0
  %5880 = vmatpush.bf16.msra.mxu0 0
  %5881 = vmatpush.bf16.msra.mxu0 0
  %5882 = vmatpush.bf16.msra.mxu0 %v5698
  %5883 = vmatpush.bf16.msra.mxu0 %v5694
  %5884 = vmatmul.bf16.gmra.mxu0 %v5778
  %v5885 = vpop.f32.mrf.mxu0
  %v5886 = vadd.f32 %v5720, %v5885
  %v5887 = vpop.f32.mrf.mxu0
  %v5888 = vadd.f32 %v5725, %v5887
  %5889 = vmatmul.bf16.gmra.mxu0 %v5781
  %v5890 = vpop.f32.mrf.mxu0
  %v5891 = vadd.f32 %v5730, %v5890
  %v5892 = vpop.f32.mrf.mxu0
  %v5893 = vadd.f32 %v5735, %v5892
  %5894 = vmatmul.bf16.gmra.mxu0 %v5784
  %v5895 = vpop.f32.mrf.mxu0
  %v5896 = vadd.f32 %v5740, %v5895
  %v5897 = vpop.f32.mrf.mxu0
  %v5898 = vadd.f32 %v5745, %v5897
  %5899 = vmatmul.bf16.gmra.mxu0 %v5787
  %v5900 = vpop.f32.mrf.mxu0
  %v5901 = vadd.f32 %v5750, %v5900
  %v5902 = vpop.f32.mrf.mxu0
  %v5903 = vadd.f32 %v5755, %v5902
  %5904 = vdwg.mxu0
  %v5905 = vadd.f32 %v4489, %v5799
  %v5906 = vadd.f32 %v4490, %v5828
  %v5907 = vadd.f32 %v4491, %v5857
  %v5908 = vadd.f32 %v4492, %v5886
  %v5909 = vadd.f32 %v4493, %v5801
  %v5910 = vadd.f32 %v4494, %v5830
  %v5911 = vadd.f32 %v4495, %v5859
  %v5912 = vadd.f32 %v4496, %v5888
  %v5913 = vadd.f32 %v4497, %v5804
  %v5914 = vadd.f32 %v4498, %v5833
  %v5915 = vadd.f32 %v4499, %v5862
  %v5916 = vadd.f32 %v4500, %v5891
  %v5917 = vadd.f32 %v4501, %v5806
  %v5918 = vadd.f32 %v4502, %v5835
  %v5919 = vadd.f32 %v4503, %v5864
  %v5920 = vadd.f32 %v4504, %v5893
  %v5921 = vmul.f32 %v5905, %v58
  %v5922 = vmul.f32 %v5906, %v59
  %v5923 = vmul.f32 %v5907, %v60
  %v5924 = vmul.f32 %v5908, %v61
  %v5925 = vmul.f32 %v5909, %v58
  %v5926 = vmul.f32 %v5910, %v59
  %v5927 = vmul.f32 %v5911, %v60
  %v5928 = vmul.f32 %v5912, %v61
  %v5929 = vmul.f32 %v5913, %v58
  %v5930 = vmul.f32 %v5914, %v59
  %v5931 = vmul.f32 %v5915, %v60
  %v5932 = vmul.f32 %v5916, %v61
  %v5933 = vmul.f32 %v5917, %v58
  %v5934 = vmul.f32 %v5918, %v59
  %v5935 = vmul.f32 %v5919, %v60
  %v5936 = vmul.f32 %v5920, %v61
  %v5937 = vadd.f32 %v4505, %v5809
  %v5938 = vadd.f32 %v4506, %v5838
  %v5939 = vadd.f32 %v4507, %v5867
  %v5940 = vadd.f32 %v4508, %v5896
  %v5941 = vadd.f32 %v4509, %v5811
  %v5942 = vadd.f32 %v4510, %v5840
  %v5943 = vadd.f32 %v4511, %v5869
  %v5944 = vadd.f32 %v4512, %v5898
  %v5945 = vadd.f32 %v4513, %v5814
  %v5946 = vadd.f32 %v4514, %v5843
  %v5947 = vadd.f32 %v4515, %v5872
  %v5948 = vadd.f32 %v4516, %v5901
  %v5949 = vadd.f32 %v4517, %v5816
  %v5950 = vadd.f32 %v4518, %v5845
  %v5951 = vadd.f32 %v4519, %v5874
  %v5952 = vadd.f32 %v4520, %v5903
  %5953 = vrot.lane.b32.xlu0 %v5921, 2
  %v5954 = vpop.permute.xlu0 %5953
  %5955 = vrot.lane.b32.xlu0 %v5925, 2
  %v5956 = vpop.permute.xlu0 %5955
  %5957 = vrot.lane.b32.xlu0 %v5929, 2
  %v5958 = vpop.permute.xlu0 %5957
  %5959 = vrot.lane.b32.xlu0 %v5933, 2
  %v5960 = vpop.permute.xlu0 %5959
  %5961 = vrot.lane.b32.xlu0 %v5922, 2
  %v5962 = vpop.permute.xlu0 %5961
  %5963 = vrot.lane.b32.xlu0 %v5926, 2
  %v5964 = vpop.permute.xlu0 %5963
  %5965 = vrot.lane.b32.xlu0 %v5930, 2
  %v5966 = vpop.permute.xlu0 %5965
  %5967 = vrot.lane.b32.xlu0 %v5934, 2
  %v5968 = vpop.permute.xlu0 %5967
  %5969 = vrot.lane.b32.xlu0 %v5923, 2
  %v5970 = vpop.permute.xlu0 %5969
  %5971 = vrot.lane.b32.xlu0 %v5927, 2
  %v5972 = vpop.permute.xlu0 %5971
  %5973 = vrot.lane.b32.xlu0 %v5931, 2
  %v5974 = vpop.permute.xlu0 %5973
  %5975 = vrot.lane.b32.xlu0 %v5935, 2
  %v5976 = vpop.permute.xlu0 %5975
  %5977 = vrot.lane.b32.xlu0 %v5924, 2
  %v5978 = vpop.permute.xlu0 %5977
  %5979 = vrot.lane.b32.xlu0 %v5928, 2
  %v5980 = vpop.permute.xlu0 %5979
  %5981 = vrot.lane.b32.xlu0 %v5932, 2
  %v5982 = vpop.permute.xlu0 %5981
  %5983 = vrot.lane.b32.xlu0 %v5936, 2
  %v5984 = vpop.permute.xlu0 %5983
  %v5985 = vsel %vm257, %v5970, %v5978
  %v5986 = vsel %vm257, %v5972, %v5980
  %v5987 = vsel %vm257, %v5974, %v5982
  %v5988 = vsel %vm257, %v5976, %v5984
  %v5989 = vsel %vm257, %v5962, %v5970
  %v5990 = vsel %vm257, %v5964, %v5972
  %v5991 = vsel %vm257, %v5966, %v5974
  %v5992 = vsel %vm257, %v5968, %v5976
  %v5993 = vsel %vm257, %v5954, %v5962
  %v5994 = vsel %vm257, %v5956, %v5964
  %v5995 = vsel %vm257, %v5958, %v5966
  %v5996 = vsel %vm257, %v5960, %v5968
  %v5997 = vsel %vm257, %v5978, %v5954
  %v5998 = vsel %vm257, %v5980, %v5956
  %v5999 = vsel %vm257, %v5982, %v5958
  %v6000 = vsel %vm257, %v5984, %v5960
  %v6001 = vpack.c.bf16 %v5993, %v5997
  %v6002 = vpack.c.bf16 %v5985, %v5989
  %v6003 = vpack.c.bf16 %v5994, %v5998
  %v6004 = vpack.c.bf16 %v5986, %v5990
  %v6005 = vpack.c.bf16 %v5995, %v5999
  %v6006 = vpack.c.bf16 %v5987, %v5991
  %v6007 = vpack.c.bf16 %v5996, %v6000
  %v6008 = vpack.c.bf16 %v5988, %v5992
  %6009 = vst [vmem:[#allocation2] sm:$0xff] %v6001
  %6010 = vst [vmem:[#allocation2 + $0x8] sm:$0xff] %v6002
  %6011 = vst [vmem:[#allocation2 + $0x10] sm:$0xff] %v6003
  %6012 = vst [vmem:[#allocation2 + $0x18] sm:$0xff] %v6004
  %6013 = vst [vmem:[#allocation2 + $0x20] sm:$0xff] %v6005
  %6014 = vst [vmem:[#allocation2 + $0x28] sm:$0xff] %v6006
  %6015 = vst [vmem:[#allocation2 + $0x30] sm:$0xff] %v6007
  %6016 = vst [vmem:[#allocation2 + $0x38] sm:$0xff] %v6008
  %6017 = vrot.lane.b32.xlu0 %v5921, 1
  %v6018 = vpop.permute.xlu0 %6017
  %6019 = vrot.lane.b32.xlu0 %v5925, 1
  %v6020 = vpop.permute.xlu0 %6019
  %6021 = vrot.lane.b32.xlu0 %v5929, 1
  %v6022 = vpop.permute.xlu0 %6021
  %6023 = vrot.lane.b32.xlu0 %v5933, 1
  %v6024 = vpop.permute.xlu0 %6023
  %6025 = vrot.lane.b32.xlu0 %v5922, 1
  %v6026 = vpop.permute.xlu0 %6025
  %6027 = vrot.lane.b32.xlu0 %v5926, 1
  %v6028 = vpop.permute.xlu0 %6027
  %6029 = vrot.lane.b32.xlu0 %v5930, 1
  %v6030 = vpop.permute.xlu0 %6029
  %6031 = vrot.lane.b32.xlu0 %v5934, 1
  %v6032 = vpop.permute.xlu0 %6031
  %6033 = vrot.lane.b32.xlu0 %v5923, 1
  %v6034 = vpop.permute.xlu0 %6033
  %6035 = vrot.lane.b32.xlu0 %v5927, 1
  %v6036 = vpop.permute.xlu0 %6035
  %6037 = vrot.lane.b32.xlu0 %v5931, 1
  %v6038 = vpop.permute.xlu0 %6037
  %6039 = vrot.lane.b32.xlu0 %v5935, 1
  %v6040 = vpop.permute.xlu0 %6039
  %6041 = vrot.lane.b32.xlu0 %v5924, 1
  %v6042 = vpop.permute.xlu0 %6041
  %6043 = vrot.lane.b32.xlu0 %v5928, 1
  %v6044 = vpop.permute.xlu0 %6043
  %6045 = vrot.lane.b32.xlu0 %v5932, 1
  %v6046 = vpop.permute.xlu0 %6045
  %6047 = vrot.lane.b32.xlu0 %v5936, 1
  %v6048 = vpop.permute.xlu0 %6047
  %v6049 = vsel %vm322, %v6034, %v6042
  %v6050 = vsel %vm322, %v6036, %v6044
  %v6051 = vsel %vm322, %v6038, %v6046
  %v6052 = vsel %vm322, %v6040, %v6048
  %v6053 = vsel %vm322, %v6026, %v6034
  %v6054 = vsel %vm322, %v6028, %v6036
  %v6055 = vsel %vm322, %v6030, %v6038
  %v6056 = vsel %vm322, %v6032, %v6040
  %v6057 = vsel %vm322, %v6018, %v6026
  %v6058 = vsel %vm322, %v6020, %v6028
  %v6059 = vsel %vm322, %v6022, %v6030
  %v6060 = vsel %vm322, %v6024, %v6032
  %v6061 = vsel %vm322, %v6042, %v6018
  %v6062 = vsel %vm322, %v6044, %v6020
  %v6063 = vsel %vm322, %v6046, %v6022
  %v6064 = vsel %vm322, %v6048, %v6024
  %v6065 = vpack.c.bf16 %v6057, %v6061
  %v6066 = vpack.c.bf16 %v6049, %v6053
  %v6067 = vpack.c.bf16 %v6058, %v6062
  %v6068 = vpack.c.bf16 %v6050, %v6054
  %v6069 = vpack.c.bf16 %v6059, %v6063
  %v6070 = vpack.c.bf16 %v6051, %v6055
  %v6071 = vpack.c.bf16 %v6060, %v6064
  %v6072 = vpack.c.bf16 %v6052, %v6056
  %6073 = vst [vmem:[#allocation2 + $0x40] sm:$0xff] %v6065
  %6074 = vst [vmem:[#allocation2 + $0x48] sm:$0xff] %v6066
  %6075 = vst [vmem:[#allocation2 + $0x50] sm:$0xff] %v6067
  %6076 = vst [vmem:[#allocation2 + $0x58] sm:$0xff] %v6068
  %6077 = vst [vmem:[#allocation2 + $0x60] sm:$0xff] %v6069
  %6078 = vst [vmem:[#allocation2 + $0x68] sm:$0xff] %v6070
  %6079 = vst [vmem:[#allocation2 + $0x70] sm:$0xff] %v6071
  %6080 = vst [vmem:[#allocation2 + $0x78] sm:$0xff] %v6072
  %v6081 = vpack.c.bf16 %v5922, %v5921
  %v6082 = vpack.c.bf16 %v5924, %v5923
  %v6083 = vpack.c.bf16 %v5926, %v5925
  %v6084 = vpack.c.bf16 %v5928, %v5927
  %v6085 = vpack.c.bf16 %v5930, %v5929
  %v6086 = vpack.c.bf16 %v5932, %v5931
  %v6087 = vpack.c.bf16 %v5934, %v5933
  %v6088 = vpack.c.bf16 %v5936, %v5935
  %6089 = vst [vmem:[#allocation2 + $0x80] sm:$0xff] %v6081
  %6090 = vst [vmem:[#allocation2 + $0x88] sm:$0xff] %v6082
  %6091 = vst [vmem:[#allocation2 + $0x90] sm:$0xff] %v6083
  %6092 = vst [vmem:[#allocation2 + $0x98] sm:$0xff] %v6084
  %6093 = vst [vmem:[#allocation2 + $0xa0] sm:$0xff] %v6085
  %6094 = vst [vmem:[#allocation2 + $0xa8] sm:$0xff] %v6086
  %6095 = vst [vmem:[#allocation2 + $0xb0] sm:$0xff] %v6087
  %6096 = vst [vmem:[#allocation2 + $0xb8] sm:$0xff] %v6088
  %6097 = vrot.lane.b32.xlu0 %v5921, 127
  %v6098 = vpop.permute.xlu0 %6097
  %6099 = vrot.lane.b32.xlu0 %v5925, 127
  %v6100 = vpop.permute.xlu0 %6099
  %6101 = vrot.lane.b32.xlu0 %v5929, 127
  %v6102 = vpop.permute.xlu0 %6101
  %6103 = vrot.lane.b32.xlu0 %v5933, 127
  %v6104 = vpop.permute.xlu0 %6103
  %6105 = vrot.lane.b32.xlu0 %v5922, 127
  %v6106 = vpop.permute.xlu0 %6105
  %6107 = vrot.lane.b32.xlu0 %v5926, 127
  %v6108 = vpop.permute.xlu0 %6107
  %6109 = vrot.lane.b32.xlu0 %v5930, 127
  %v6110 = vpop.permute.xlu0 %6109
  %6111 = vrot.lane.b32.xlu0 %v5934, 127
  %v6112 = vpop.permute.xlu0 %6111
  %6113 = vrot.lane.b32.xlu0 %v5923, 127
  %v6114 = vpop.permute.xlu0 %6113
  %6115 = vrot.lane.b32.xlu0 %v5927, 127
  %v6116 = vpop.permute.xlu0 %6115
  %6117 = vrot.lane.b32.xlu0 %v5931, 127
  %v6118 = vpop.permute.xlu0 %6117
  %6119 = vrot.lane.b32.xlu0 %v5935, 127
  %v6120 = vpop.permute.xlu0 %6119
  %6121 = vrot.lane.b32.xlu0 %v5924, 127
  %v6122 = vpop.permute.xlu0 %6121
  %6123 = vrot.lane.b32.xlu0 %v5928, 127
  %v6124 = vpop.permute.xlu0 %6123
  %6125 = vrot.lane.b32.xlu0 %v5932, 127
  %v6126 = vpop.permute.xlu0 %6125
  %6127 = vrot.lane.b32.xlu0 %v5936, 127
  %v6128 = vpop.permute.xlu0 %6127
  %v6129 = vsel %vm403, %v6114, %v6122
  %v6130 = vsel %vm403, %v6116, %v6124
  %v6131 = vsel %vm403, %v6118, %v6126
  %v6132 = vsel %vm403, %v6120, %v6128
  %v6133 = vsel %vm403, %v6106, %v6114
  %v6134 = vsel %vm403, %v6108, %v6116
  %v6135 = vsel %vm403, %v6110, %v6118
  %v6136 = vsel %vm403, %v6112, %v6120
  %v6137 = vsel %vm403, %v6098, %v6106
  %v6138 = vsel %vm403, %v6100, %v6108
  %v6139 = vsel %vm403, %v6102, %v6110
  %v6140 = vsel %vm403, %v6104, %v6112
  %v6141 = vsel %vm403, %v6122, %v6098
  %v6142 = vsel %vm403, %v6124, %v6100
  %v6143 = vsel %vm403, %v6126, %v6102
  %v6144 = vsel %vm403, %v6128, %v6104
  %v6145 = vpack.c.bf16 %v6133, %v6137
  %v6146 = vpack.c.bf16 %v6141, %v6129
  %v6147 = vpack.c.bf16 %v6134, %v6138
  %v6148 = vpack.c.bf16 %v6142, %v6130
  %v6149 = vpack.c.bf16 %v6135, %v6139
  %v6150 = vpack.c.bf16 %v6143, %v6131
  %v6151 = vpack.c.bf16 %v6136, %v6140
  %v6152 = vpack.c.bf16 %v6144, %v6132
  %6153 = vst [vmem:[#allocation2 + $0xc0] sm:$0xff] %v6145
  %6154 = vst [vmem:[#allocation2 + $0xc8] sm:$0xff] %v6146
  %6155 = vst [vmem:[#allocation2 + $0xd0] sm:$0xff] %v6147
  %6156 = vst [vmem:[#allocation2 + $0xd8] sm:$0xff] %v6148
  %6157 = vst [vmem:[#allocation2 + $0xe0] sm:$0xff] %v6149
  %6158 = vst [vmem:[#allocation2 + $0xe8] sm:$0xff] %v6150
  %6159 = vst [vmem:[#allocation2 + $0xf0] sm:$0xff] %v6151
  %6160 = vst [vmem:[#allocation2 + $0xf8] sm:$0xff] %v6152
  %6161 = vrot.lane.b32.xlu0 %v5921, 126
  %v6162 = vpop.permute.xlu0 %6161
  %6163 = vrot.lane.b32.xlu0 %v5925, 126
  %v6164 = vpop.permute.xlu0 %6163
  %6165 = vrot.lane.b32.xlu0 %v5929, 126
  %v6166 = vpop.permute.xlu0 %6165
  %6167 = vrot.lane.b32.xlu0 %v5933, 126
  %v6168 = vpop.permute.xlu0 %6167
  %6169 = vrot.lane.b32.xlu0 %v5922, 126
  %v6170 = vpop.permute.xlu0 %6169
  %6171 = vrot.lane.b32.xlu0 %v5926, 126
  %v6172 = vpop.permute.xlu0 %6171
  %6173 = vrot.lane.b32.xlu0 %v5930, 126
  %v6174 = vpop.permute.xlu0 %6173
  %6175 = vrot.lane.b32.xlu0 %v5934, 126
  %v6176 = vpop.permute.xlu0 %6175
  %6177 = vrot.lane.b32.xlu0 %v5923, 126
  %v6178 = vpop.permute.xlu0 %6177
  %6179 = vrot.lane.b32.xlu0 %v5927, 126
  %v6180 = vpop.permute.xlu0 %6179
  %6181 = vrot.lane.b32.xlu0 %v5931, 126
  %v6182 = vpop.permute.xlu0 %6181
  %6183 = vrot.lane.b32.xlu0 %v5935, 126
  %v6184 = vpop.permute.xlu0 %6183
  %6185 = vrot.lane.b32.xlu0 %v5924, 126
  %v6186 = vpop.permute.xlu0 %6185
  %6187 = vrot.lane.b32.xlu0 %v5928, 126
  %v6188 = vpop.permute.xlu0 %6187
  %6189 = vrot.lane.b32.xlu0 %v5932, 126
  %v6190 = vpop.permute.xlu0 %6189
  %6191 = vrot.lane.b32.xlu0 %v5936, 126
  %v6192 = vpop.permute.xlu0 %6191
  %v6193 = vsel %vm468, %v6178, %v6186
  %v6194 = vsel %vm468, %v6180, %v6188
  %v6195 = vsel %vm468, %v6182, %v6190
  %v6196 = vsel %vm468, %v6184, %v6192
  %v6197 = vsel %vm468, %v6170, %v6178
  %v6198 = vsel %vm468, %v6172, %v6180
  %v6199 = vsel %vm468, %v6174, %v6182
  %v6200 = vsel %vm468, %v6176, %v6184
  %v6201 = vsel %vm468, %v6162, %v6170
  %v6202 = vsel %vm468, %v6164, %v6172
  %v6203 = vsel %vm468, %v6166, %v6174
  %v6204 = vsel %vm468, %v6168, %v6176
  %v6205 = vsel %vm468, %v6186, %v6162
  %v6206 = vsel %vm468, %v6188, %v6164
  %v6207 = vsel %vm468, %v6190, %v6166
  %v6208 = vsel %vm468, %v6192, %v6168
  %v6209 = vpack.c.bf16 %v6197, %v6201
  %v6210 = vpack.c.bf16 %v6205, %v6193
  %v6211 = vpack.c.bf16 %v6198, %v6202
  %v6212 = vpack.c.bf16 %v6206, %v6194
  %v6213 = vpack.c.bf16 %v6199, %v6203
  %v6214 = vpack.c.bf16 %v6207, %v6195
  %v6215 = vpack.c.bf16 %v6200, %v6204
  %v6216 = vpack.c.bf16 %v6208, %v6196
  %6217 = vst [vmem:[#allocation2 + $0x100] sm:$0xff] %v6209
  %6218 = vst [vmem:[#allocation2 + $0x108] sm:$0xff] %v6210
  %6219 = vst [vmem:[#allocation2 + $0x110] sm:$0xff] %v6211
  %6220 = vst [vmem:[#allocation2 + $0x118] sm:$0xff] %v6212
  %6221 = vst [vmem:[#allocation2 + $0x120] sm:$0xff] %v6213
  %6222 = vst [vmem:[#allocation2 + $0x128] sm:$0xff] %v6214
  %6223 = vst [vmem:[#allocation2 + $0x130] sm:$0xff] %v6215
  %6224 = vst [vmem:[#allocation2 + $0x138] sm:$0xff] %v6216
  %s6225 = scalar_lea.vmem %s5, 256
  %v6226 = vld [vmem:[%s6225] sm:$0xff]
  %v6227 = vld [vmem:[%s6225 + $0x8] sm:$0xff]
  %v6228 = vld [vmem:[%s6225 + $0x10] sm:$0xff]
  %v6229 = vld [vmem:[%s6225 + $0x18] sm:$0xff]
  %v6230 = vld [vmem:[%s6225 + $0x20] sm:$0xff]
  %v6231 = vld [vmem:[%s6225 + $0x28] sm:$0xff]
  %v6232 = vld [vmem:[%s6225 + $0x30] sm:$0xff]
  %v6233 = vld [vmem:[%s6225 + $0x38] sm:$0xff]
  %v6234 = vld [vmem:[#allocation2] sm:$0xff]
  %v6235 = vld [vmem:[#allocation2 + $0x8] sm:$0xff]
  %v6236 = vld [vmem:[#allocation2 + $0x10] sm:$0xff]
  %v6237 = vld [vmem:[#allocation2 + $0x18] sm:$0xff]
  %v6238 = vld [vmem:[#allocation2 + $0x20] sm:$0xff]
  %v6239 = vld [vmem:[#allocation2 + $0x28] sm:$0xff]
  %v6240 = vld [vmem:[#allocation2 + $0x30] sm:$0xff]
  %v6241 = vld [vmem:[#allocation2 + $0x38] sm:$0xff]
  %v6242 = vld [vmem:[#allocation2 + $0x40] sm:$0xff]
  %v6243 = vld [vmem:[#allocation2 + $0x48] sm:$0xff]
  %v6244 = vld [vmem:[#allocation2 + $0x50] sm:$0xff]
  %v6245 = vld [vmem:[#allocation2 + $0x58] sm:$0xff]
  %v6246 = vld [vmem:[#allocation2 + $0x60] sm:$0xff]
  %v6247 = vld [vmem:[#allocation2 + $0x68] sm:$0xff]
  %v6248 = vld [vmem:[#allocation2 + $0x70] sm:$0xff]
  %v6249 = vld [vmem:[#allocation2 + $0x78] sm:$0xff]
  %v6250 = vld [vmem:[#allocation2 + $0x80] sm:$0xff]
  %v6251 = vld [vmem:[#allocation2 + $0x88] sm:$0xff]
  %v6252 = vld [vmem:[#allocation2 + $0x90] sm:$0xff]
  %v6253 = vld [vmem:[#allocation2 + $0x98] sm:$0xff]
  %v6254 = vld [vmem:[#allocation2 + $0xa0] sm:$0xff]
  %v6255 = vld [vmem:[#allocation2 + $0xa8] sm:$0xff]
  %v6256 = vld [vmem:[#allocation2 + $0xb0] sm:$0xff]
  %v6257 = vld [vmem:[#allocation2 + $0xb8] sm:$0xff]
  %v6258 = vld [vmem:[#allocation2 + $0xc0] sm:$0xff]
  %v6259 = vld [vmem:[#allocation2 + $0xc8] sm:$0xff]
  %v6260 = vld [vmem:[#allocation2 + $0xd0] sm:$0xff]
  %v6261 = vld [vmem:[#allocation2 + $0xd8] sm:$0xff]
  %v6262 = vld [vmem:[#allocation2 + $0xe0] sm:$0xff]
  %v6263 = vld [vmem:[#allocation2 + $0xe8] sm:$0xff]
  %v6264 = vld [vmem:[#allocation2 + $0xf0] sm:$0xff]
  %v6265 = vld [vmem:[#allocation2 + $0xf8] sm:$0xff]
  %v6266 = vld [vmem:[#allocation2 + $0x100] sm:$0xff]
  %v6267 = vld [vmem:[#allocation2 + $0x108] sm:$0xff]
  %v6268 = vld [vmem:[#allocation2 + $0x110] sm:$0xff]
  %v6269 = vld [vmem:[#allocation2 + $0x118] sm:$0xff]
  %v6270 = vld [vmem:[#allocation2 + $0x120] sm:$0xff]
  %v6271 = vld [vmem:[#allocation2 + $0x128] sm:$0xff]
  %v6272 = vld [vmem:[#allocation2 + $0x130] sm:$0xff]
  %v6273 = vld [vmem:[#allocation2 + $0x138] sm:$0xff]
  %s6274 = scalar_lea.vmem %s2, 1024
  %v6275 = vld [vmem:[%s6274] sm:$0xff]
  %v6276 = vld [vmem:[%s6274 + $0x8] sm:$0xff]
  %v6277 = vld [vmem:[%s6274 + $0x10] sm:$0xff]
  %v6278 = vld [vmem:[%s6274 + $0x18] sm:$0xff]
  %v6279 = vld [vmem:[%s6274 + $0x20] sm:$0xff]
  %v6280 = vld [vmem:[%s6274 + $0x28] sm:$0xff]
  %v6281 = vld [vmem:[%s6274 + $0x30] sm:$0xff]
  %v6282 = vld [vmem:[%s6274 + $0x38] sm:$0xff]
  %v6283 = vld [vmem:[%s6274 + $0x40] sm:$0xff]
  %v6284 = vld [vmem:[%s6274 + $0x48] sm:$0xff]
  %v6285 = vld [vmem:[%s6274 + $0x50] sm:$0xff]
  %v6286 = vld [vmem:[%s6274 + $0x58] sm:$0xff]
  %v6287 = vld [vmem:[%s6274 + $0x60] sm:$0xff]
  %v6288 = vld [vmem:[%s6274 + $0x68] sm:$0xff]
  %v6289 = vld [vmem:[%s6274 + $0x70] sm:$0xff]
  %v6290 = vld [vmem:[%s6274 + $0x78] sm:$0xff]
  %v6291 = vld [vmem:[%s6274 + $0x80] sm:$0xff]
  %v6292 = vld [vmem:[%s6274 + $0x88] sm:$0xff]
  %v6293 = vld [vmem:[%s6274 + $0x90] sm:$0xff]
  %v6294 = vld [vmem:[%s6274 + $0x98] sm:$0xff]
  %v6295 = vld [vmem:[%s6274 + $0xa0] sm:$0xff]
  %v6296 = vld [vmem:[%s6274 + $0xa8] sm:$0xff]
  %v6297 = vld [vmem:[%s6274 + $0xb0] sm:$0xff]
  %v6298 = vld [vmem:[%s6274 + $0xb8] sm:$0xff]
  %v6299 = vld [vmem:[%s6274 + $0xc0] sm:$0xff]
  %v6300 = vld [vmem:[%s6274 + $0xc8] sm:$0xff]
  %v6301 = vld [vmem:[%s6274 + $0xd0] sm:$0xff]
  %v6302 = vld [vmem:[%s6274 + $0xd8] sm:$0xff]
  %v6303 = vld [vmem:[%s6274 + $0xe0] sm:$0xff]
  %v6304 = vld [vmem:[%s6274 + $0xe8] sm:$0xff]
  %v6305 = vld [vmem:[%s6274 + $0xf0] sm:$0xff]
  %v6306 = vld [vmem:[%s6274 + $0xf8] sm:$0xff]
  %v6315 = vunpack.c.l.b16 %v6226
  %v6316 = vunpack.c.h.b16 %v6226
  %v6317 = vunpack.c.l.b16 %v6227
  %v6318 = vunpack.c.h.b16 %v6227
  %v6319 = vunpack.c.l.b16 %v6228
  %v6320 = vunpack.c.h.b16 %v6228
  %v6321 = vunpack.c.l.b16 %v6229
  %v6322 = vunpack.c.h.b16 %v6229
  %v6323 = vunpack.c.l.b16 %v6230
  %v6324 = vunpack.c.h.b16 %v6230
  %v6325 = vunpack.c.l.b16 %v6231
  %v6326 = vunpack.c.h.b16 %v6231
  %v6327 = vunpack.c.l.b16 %v6232
  %v6328 = vunpack.c.h.b16 %v6232
  %v6329 = vunpack.c.l.b16 %v6233
  %v6330 = vunpack.c.h.b16 %v6233
  %v6331 = vpack.c.b16 %v6317, %v6315
  %v6332 = vpack.c.b16 %v6318, %v6316
  %v6333 = vpack.c.b16 %v6321, %v6319
  %v6334 = vpack.c.b16 %v6322, %v6320
  %v6335 = vpack.c.b16 %v6325, %v6323
  %v6336 = vpack.c.b16 %v6326, %v6324
  %v6337 = vpack.c.b16 %v6329, %v6327
  %v6338 = vpack.c.b16 %v6330, %v6328
  %v6383 = vunpack.c.l.b16 %v6234
  %v6384 = vunpack.c.h.b16 %v6234
  %v6385 = vunpack.c.l.b16 %v6235
  %v6386 = vunpack.c.h.b16 %v6235
  %v6387 = vunpack.c.l.b16 %v6236
  %v6388 = vunpack.c.h.b16 %v6236
  %v6389 = vunpack.c.l.b16 %v6237
  %v6390 = vunpack.c.h.b16 %v6237
  %v6391 = vunpack.c.l.b16 %v6238
  %v6392 = vunpack.c.h.b16 %v6238
  %v6393 = vunpack.c.l.b16 %v6239
  %v6394 = vunpack.c.h.b16 %v6239
  %v6395 = vunpack.c.l.b16 %v6240
  %v6396 = vunpack.c.h.b16 %v6240
  %v6397 = vunpack.c.l.b16 %v6241
  %v6398 = vunpack.c.h.b16 %v6241
  %v6399 = vunpack.c.l.b16 %v6242
  %v6400 = vunpack.c.h.b16 %v6242
  %v6401 = vunpack.c.l.b16 %v6243
  %v6402 = vunpack.c.h.b16 %v6243
  %v6403 = vunpack.c.l.b16 %v6244
  %v6404 = vunpack.c.h.b16 %v6244
  %v6405 = vunpack.c.l.b16 %v6245
  %v6406 = vunpack.c.h.b16 %v6245
  %v6407 = vunpack.c.l.b16 %v6246
  %v6408 = vunpack.c.h.b16 %v6246
  %v6409 = vunpack.c.l.b16 %v6247
  %v6410 = vunpack.c.h.b16 %v6247
  %v6411 = vunpack.c.l.b16 %v6248
  %v6412 = vunpack.c.h.b16 %v6248
  %v6413 = vunpack.c.l.b16 %v6249
  %v6414 = vunpack.c.h.b16 %v6249
  %v6415 = vunpack.c.l.b16 %v6250
  %v6416 = vunpack.c.h.b16 %v6250
  %v6417 = vunpack.c.l.b16 %v6251
  %v6418 = vunpack.c.h.b16 %v6251
  %v6419 = vunpack.c.l.b16 %v6252
  %v6420 = vunpack.c.h.b16 %v6252
  %v6421 = vunpack.c.l.b16 %v6253
  %v6422 = vunpack.c.h.b16 %v6253
  %v6423 = vunpack.c.l.b16 %v6254
  %v6424 = vunpack.c.h.b16 %v6254
  %v6425 = vunpack.c.l.b16 %v6255
  %v6426 = vunpack.c.h.b16 %v6255
  %v6427 = vunpack.c.l.b16 %v6256
  %v6428 = vunpack.c.h.b16 %v6256
  %v6429 = vunpack.c.l.b16 %v6257
  %v6430 = vunpack.c.h.b16 %v6257
  %v6431 = vunpack.c.l.b16 %v6258
  %v6432 = vunpack.c.h.b16 %v6258
  %v6433 = vunpack.c.l.b16 %v6259
  %v6434 = vunpack.c.h.b16 %v6259
  %v6435 = vunpack.c.l.b16 %v6260
  %v6436 = vunpack.c.h.b16 %v6260
  %v6437 = vunpack.c.l.b16 %v6261
  %v6438 = vunpack.c.h.b16 %v6261
  %v6439 = vunpack.c.l.b16 %v6262
  %v6440 = vunpack.c.h.b16 %v6262
  %v6441 = vunpack.c.l.b16 %v6263
  %v6442 = vunpack.c.h.b16 %v6263
  %v6443 = vunpack.c.l.b16 %v6264
  %v6444 = vunpack.c.h.b16 %v6264
  %v6445 = vunpack.c.l.b16 %v6265
  %v6446 = vunpack.c.h.b16 %v6265
  %v6447 = vunpack.c.l.b16 %v6266
  %v6448 = vunpack.c.h.b16 %v6266
  %v6449 = vunpack.c.l.b16 %v6267
  %v6450 = vunpack.c.h.b16 %v6267
  %v6451 = vunpack.c.l.b16 %v6268
  %v6452 = vunpack.c.h.b16 %v6268
  %v6453 = vunpack.c.l.b16 %v6269
  %v6454 = vunpack.c.h.b16 %v6269
  %v6455 = vunpack.c.l.b16 %v6270
  %v6456 = vunpack.c.h.b16 %v6270
  %v6457 = vunpack.c.l.b16 %v6271
  %v6458 = vunpack.c.h.b16 %v6271
  %v6459 = vunpack.c.l.b16 %v6272
  %v6460 = vunpack.c.h.b16 %v6272
  %v6461 = vunpack.c.l.b16 %v6273
  %v6462 = vunpack.c.h.b16 %v6273
  %v6463 = vpack.c.b16 %v6387, %v6383
  %v6464 = vpack.c.b16 %v6388, %v6384
  %v6465 = vpack.c.b16 %v6389, %v6385
  %v6466 = vpack.c.b16 %v6390, %v6386
  %v6467 = vpack.c.b16 %v6395, %v6391
  %v6468 = vpack.c.b16 %v6396, %v6392
  %v6469 = vpack.c.b16 %v6397, %v6393
  %v6470 = vpack.c.b16 %v6398, %v6394
  %v6471 = vpack.c.b16 %v6403, %v6399
  %v6472 = vpack.c.b16 %v6404, %v6400
  %v6473 = vpack.c.b16 %v6405, %v6401
  %v6474 = vpack.c.b16 %v6406, %v6402
  %v6475 = vpack.c.b16 %v6411, %v6407
  %v6476 = vpack.c.b16 %v6412, %v6408
  %v6477 = vpack.c.b16 %v6413, %v6409
  %v6478 = vpack.c.b16 %v6414, %v6410
  %v6479 = vpack.c.b16 %v6419, %v6415
  %v6480 = vpack.c.b16 %v6420, %v6416
  %v6481 = vpack.c.b16 %v6421, %v6417
  %v6482 = vpack.c.b16 %v6422, %v6418
  %v6483 = vpack.c.b16 %v6427, %v6423
  %v6484 = vpack.c.b16 %v6428, %v6424
  %v6485 = vpack.c.b16 %v6429, %v6425
  %v6486 = vpack.c.b16 %v6430, %v6426
  %v6487 = vpack.c.b16 %v6435, %v6431
  %v6488 = vpack.c.b16 %v6436, %v6432
  %v6489 = vpack.c.b16 %v6437, %v6433
  %v6490 = vpack.c.b16 %v6438, %v6434
  %v6491 = vpack.c.b16 %v6443, %v6439
  %v6492 = vpack.c.b16 %v6444, %v6440
  %v6493 = vpack.c.b16 %v6445, %v6441
  %v6494 = vpack.c.b16 %v6446, %v6442
  %v6495 = vpack.c.b16 %v6451, %v6447
  %v6496 = vpack.c.b16 %v6452, %v6448
  %v6497 = vpack.c.b16 %v6453, %v6449
  %v6498 = vpack.c.b16 %v6454, %v6450
  %v6499 = vpack.c.b16 %v6459, %v6455
  %v6500 = vpack.c.b16 %v6460, %v6456
  %v6501 = vpack.c.b16 %v6461, %v6457
  %v6502 = vpack.c.b16 %v6462, %v6458
  %v6544 = vsel %vm124, %v6332, 0
  %v6547 = vsel %vm124, %v6334, 0
  %v6550 = vsel %vm124, %v6336, 0
  %v6553 = vsel %vm124, %v6338, 0
  %6555 = vmatpush.bf16.msra.mxu0 %v6491
  %6556 = vmatpush.bf16.msra.mxu0 %v6487
  %6557 = vmatpush.bf16.msra.mxu0 %v6483
  %6558 = vmatpush.bf16.msra.mxu0 %v6479
  %6559 = vmatpush.bf16.msra.mxu0 %v6475
  %6560 = vmatpush.bf16.msra.mxu0 %v6471
  %6561 = vmatpush.bf16.msra.mxu0 %v6467
  %6562 = vmatpush.bf16.msra.mxu0 %v6463
  %6563 = vmatmul.bf16.gmra.mxu0 %v6331
  %v6564 = vpop.f32.mrf.mxu0
  %v6565 = vadd.f32 %v6275, %v6564
  %v6566 = vpop.f32.mrf.mxu0
  %v6567 = vadd.f32 %v6279, %v6566
  %6568 = vmatmul.bf16.gmra.mxu0 %v6333
  %v6569 = vpop.f32.mrf.mxu0
  %v6570 = vadd.f32 %v6283, %v6569
  %v6571 = vpop.f32.mrf.mxu0
  %v6572 = vadd.f32 %v6287, %v6571
  %6573 = vmatmul.bf16.gmra.mxu0 %v6335
  %v6574 = vpop.f32.mrf.mxu0
  %v6575 = vadd.f32 %v6291, %v6574
  %v6576 = vpop.f32.mrf.mxu0
  %v6577 = vadd.f32 %v6295, %v6576
  %6578 = vmatmul.bf16.gmra.mxu0 %v6337
  %v6579 = vpop.f32.mrf.mxu0
  %v6580 = vadd.f32 %v6299, %v6579
  %v6581 = vpop.f32.mrf.mxu0
  %v6582 = vadd.f32 %v6303, %v6581
  %6583 = vdwg.mxu0
  %6584 = vmatpush.bf16.msra.mxu0 0
  %6585 = vmatpush.bf16.msra.mxu0 0
  %6586 = vmatpush.bf16.msra.mxu0 0
  %6587 = vmatpush.bf16.msra.mxu0 0
  %6588 = vmatpush.bf16.msra.mxu0 0
  %6589 = vmatpush.bf16.msra.mxu0 0
  %6590 = vmatpush.bf16.msra.mxu0 %v6499
  %6591 = vmatpush.bf16.msra.mxu0 %v6495
  %6592 = vmatmul.bf16.gmra.mxu0 %v6544
  %v6593 = vpop.f32.mrf.mxu0
  %v6594 = vadd.f32 %v6565, %v6593
  %v6595 = vpop.f32.mrf.mxu0
  %v6596 = vadd.f32 %v6567, %v6595
  %6597 = vmatmul.bf16.gmra.mxu0 %v6547
  %v6598 = vpop.f32.mrf.mxu0
  %v6599 = vadd.f32 %v6570, %v6598
  %v6600 = vpop.f32.mrf.mxu0
  %v6601 = vadd.f32 %v6572, %v6600
  %6602 = vmatmul.bf16.gmra.mxu0 %v6550
  %v6603 = vpop.f32.mrf.mxu0
  %v6604 = vadd.f32 %v6575, %v6603
  %v6605 = vpop.f32.mrf.mxu0
  %v6606 = vadd.f32 %v6577, %v6605
  %6607 = vmatmul.bf16.gmra.mxu0 %v6553
  %v6608 = vpop.f32.mrf.mxu0
  %v6609 = vadd.f32 %v6580, %v6608
  %v6610 = vpop.f32.mrf.mxu0
  %v6611 = vadd.f32 %v6582, %v6610
  %6612 = vdwg.mxu0
  %6613 = vmatpush.bf16.msra.mxu0 %v6492
  %6614 = vmatpush.bf16.msra.mxu0 %v6488
  %6615 = vmatpush.bf16.msra.mxu0 %v6484
  %6616 = vmatpush.bf16.msra.mxu0 %v6480
  %6617 = vmatpush.bf16.msra.mxu0 %v6476
  %6618 = vmatpush.bf16.msra.mxu0 %v6472
  %6619 = vmatpush.bf16.msra.mxu0 %v6468
  %6620 = vmatpush.bf16.msra.mxu0 %v6464
  %6621 = vmatmul.bf16.gmra.mxu0 %v6331
  %v6622 = vpop.f32.mrf.mxu0
  %v6623 = vadd.f32 %v6276, %v6622
  %v6624 = vpop.f32.mrf.mxu0
  %v6625 = vadd.f32 %v6280, %v6624
  %6626 = vmatmul.bf16.gmra.mxu0 %v6333
  %v6627 = vpop.f32.mrf.mxu0
  %v6628 = vadd.f32 %v6284, %v6627
  %v6629 = vpop.f32.mrf.mxu0
  %v6630 = vadd.f32 %v6288, %v6629
  %6631 = vmatmul.bf16.gmra.mxu0 %v6335
  %v6632 = vpop.f32.mrf.mxu0
  %v6633 = vadd.f32 %v6292, %v6632
  %v6634 = vpop.f32.mrf.mxu0
  %v6635 = vadd.f32 %v6296, %v6634
  %6636 = vmatmul.bf16.gmra.mxu0 %v6337
  %v6637 = vpop.f32.mrf.mxu0
  %v6638 = vadd.f32 %v6300, %v6637
  %v6639 = vpop.f32.mrf.mxu0
  %v6640 = vadd.f32 %v6304, %v6639
  %6641 = vdwg.mxu0
  %6642 = vmatpush.bf16.msra.mxu0 0
  %6643 = vmatpush.bf16.msra.mxu0 0
  %6644 = vmatpush.bf16.msra.mxu0 0
  %6645 = vmatpush.bf16.msra.mxu0 0
  %6646 = vmatpush.bf16.msra.mxu0 0
  %6647 = vmatpush.bf16.msra.mxu0 0
  %6648 = vmatpush.bf16.msra.mxu0 %v6500
  %6649 = vmatpush.bf16.msra.mxu0 %v6496
  %6650 = vmatmul.bf16.gmra.mxu0 %v6544
  %v6651 = vpop.f32.mrf.mxu0
  %v6652 = vadd.f32 %v6623, %v6651
  %v6653 = vpop.f32.mrf.mxu0
  %v6654 = vadd.f32 %v6625, %v6653
  %6655 = vmatmul.bf16.gmra.mxu0 %v6547
  %v6656 = vpop.f32.mrf.mxu0
  %v6657 = vadd.f32 %v6628, %v6656
  %v6658 = vpop.f32.mrf.mxu0
  %v6659 = vadd.f32 %v6630, %v6658
  %6660 = vmatmul.bf16.gmra.mxu0 %v6550
  %v6661 = vpop.f32.mrf.mxu0
  %v6662 = vadd.f32 %v6633, %v6661
  %v6663 = vpop.f32.mrf.mxu0
  %v6664 = vadd.f32 %v6635, %v6663
  %6665 = vmatmul.bf16.gmra.mxu0 %v6553
  %v6666 = vpop.f32.mrf.mxu0
  %v6667 = vadd.f32 %v6638, %v6666
  %v6668 = vpop.f32.mrf.mxu0
  %v6669 = vadd.f32 %v6640, %v6668
  %6670 = vdwg.mxu0
  %6671 = vmatpush.bf16.msra.mxu0 %v6493
  %6672 = vmatpush.bf16.msra.mxu0 %v6489
  %6673 = vmatpush.bf16.msra.mxu0 %v6485
  %6674 = vmatpush.bf16.msra.mxu0 %v6481
  %6675 = vmatpush.bf16.msra.mxu0 %v6477
  %6676 = vmatpush.bf16.msra.mxu0 %v6473
  %6677 = vmatpush.bf16.msra.mxu0 %v6469
  %6678 = vmatpush.bf16.msra.mxu0 %v6465
  %6679 = vmatmul.bf16.gmra.mxu0 %v6331
  %v6680 = vpop.f32.mrf.mxu0
  %v6681 = vadd.f32 %v6277, %v6680
  %v6682 = vpop.f32.mrf.mxu0
  %v6683 = vadd.f32 %v6281, %v6682
  %6684 = vmatmul.bf16.gmra.mxu0 %v6333
  %v6685 = vpop.f32.mrf.mxu0
  %v6686 = vadd.f32 %v6285, %v6685
  %v6687 = vpop.f32.mrf.mxu0
  %v6688 = vadd.f32 %v6289, %v6687
  %6689 = vmatmul.bf16.gmra.mxu0 %v6335
  %v6690 = vpop.f32.mrf.mxu0
  %v6691 = vadd.f32 %v6293, %v6690
  %v6692 = vpop.f32.mrf.mxu0
  %v6693 = vadd.f32 %v6297, %v6692
  %6694 = vmatmul.bf16.gmra.mxu0 %v6337
  %v6695 = vpop.f32.mrf.mxu0
  %v6696 = vadd.f32 %v6301, %v6695
  %v6697 = vpop.f32.mrf.mxu0
  %v6698 = vadd.f32 %v6305, %v6697
  %6699 = vdwg.mxu0
  %6700 = vmatpush.bf16.msra.mxu0 0
  %6701 = vmatpush.bf16.msra.mxu0 0
  %6702 = vmatpush.bf16.msra.mxu0 0
  %6703 = vmatpush.bf16.msra.mxu0 0
  %6704 = vmatpush.bf16.msra.mxu0 0
  %6705 = vmatpush.bf16.msra.mxu0 0
  %6706 = vmatpush.bf16.msra.mxu0 %v6501
  %6707 = vmatpush.bf16.msra.mxu0 %v6497
  %6708 = vmatmul.bf16.gmra.mxu0 %v6544
  %v6709 = vpop.f32.mrf.mxu0
  %v6710 = vadd.f32 %v6681, %v6709
  %v6711 = vpop.f32.mrf.mxu0
  %v6712 = vadd.f32 %v6683, %v6711
  %6713 = vmatmul.bf16.gmra.mxu0 %v6547
  %v6714 = vpop.f32.mrf.mxu0
  %v6715 = vadd.f32 %v6686, %v6714
  %v6716 = vpop.f32.mrf.mxu0
  %v6717 = vadd.f32 %v6688, %v6716
  %6718 = vmatmul.bf16.gmra.mxu0 %v6550
  %v6719 = vpop.f32.mrf.mxu0
  %v6720 = vadd.f32 %v6691, %v6719
  %v6721 = vpop.f32.mrf.mxu0
  %v6722 = vadd.f32 %v6693, %v6721
  %6723 = vmatmul.bf16.gmra.mxu0 %v6553
  %v6724 = vpop.f32.mrf.mxu0
  %v6725 = vadd.f32 %v6696, %v6724
  %v6726 = vpop.f32.mrf.mxu0
  %v6727 = vadd.f32 %v6698, %v6726
  %6728 = vdwg.mxu0
  %6729 = vmatpush.bf16.msra.mxu0 %v6494
  %6730 = vmatpush.bf16.msra.mxu0 %v6490
  %6731 = vmatpush.bf16.msra.mxu0 %v6486
  %6732 = vmatpush.bf16.msra.mxu0 %v6482
  %6733 = vmatpush.bf16.msra.mxu0 %v6478
  %6734 = vmatpush.bf16.msra.mxu0 %v6474
  %6735 = vmatpush.bf16.msra.mxu0 %v6470
  %6736 = vmatpush.bf16.msra.mxu0 %v6466
  %6737 = vmatmul.bf16.gmra.mxu0 %v6331
  %v6738 = vpop.f32.mrf.mxu0
  %v6739 = vadd.f32 %v6278, %v6738
  %v6740 = vpop.f32.mrf.mxu0
  %v6741 = vadd.f32 %v6282, %v6740
  %6742 = vmatmul.bf16.gmra.mxu0 %v6333
  %v6743 = vpop.f32.mrf.mxu0
  %v6744 = vadd.f32 %v6286, %v6743
  %v6745 = vpop.f32.mrf.mxu0
  %v6746 = vadd.f32 %v6290, %v6745
  %6747 = vmatmul.bf16.gmra.mxu0 %v6335
  %v6748 = vpop.f32.mrf.mxu0
  %v6749 = vadd.f32 %v6294, %v6748
  %v6750 = vpop.f32.mrf.mxu0
  %v6751 = vadd.f32 %v6298, %v6750
  %6752 = vmatmul.bf16.gmra.mxu0 %v6337
  %v6753 = vpop.f32.mrf.mxu0
  %v6754 = vadd.f32 %v6302, %v6753
  %v6755 = vpop.f32.mrf.mxu0
  %v6756 = vadd.f32 %v6306, %v6755
  %6757 = vdwg.mxu0
  %6758 = vmatpush.bf16.msra.mxu0 0
  %6759 = vmatpush.bf16.msra.mxu0 0
  %6760 = vmatpush.bf16.msra.mxu0 0
  %6761 = vmatpush.bf16.msra.mxu0 0
  %6762 = vmatpush.bf16.msra.mxu0 0
  %6763 = vmatpush.bf16.msra.mxu0 0
  %6764 = vmatpush.bf16.msra.mxu0 %v6502
  %6765 = vmatpush.bf16.msra.mxu0 %v6498
  %6766 = vmatmul.bf16.gmra.mxu0 %v6544
  %v6767 = vpop.f32.mrf.mxu0
  %v6768 = vadd.f32 %v6739, %v6767
  %v6769 = vpop.f32.mrf.mxu0
  %v6770 = vadd.f32 %v6741, %v6769
  %6771 = vmatmul.bf16.gmra.mxu0 %v6547
  %v6772 = vpop.f32.mrf.mxu0
  %v6773 = vadd.f32 %v6744, %v6772
  %v6774 = vpop.f32.mrf.mxu0
  %v6775 = vadd.f32 %v6746, %v6774
  %6776 = vmatmul.bf16.gmra.mxu0 %v6550
  %v6777 = vpop.f32.mrf.mxu0
  %v6778 = vadd.f32 %v6749, %v6777
  %v6779 = vpop.f32.mrf.mxu0
  %v6780 = vadd.f32 %v6751, %v6779
  %6781 = vmatmul.bf16.gmra.mxu0 %v6553
  %v6782 = vpop.f32.mrf.mxu0
  %v6783 = vadd.f32 %v6754, %v6782
  %v6784 = vpop.f32.mrf.mxu0
  %v6785 = vadd.f32 %v6756, %v6784
  %6786 = vdwg.mxu0
  %v6787 = vtanh.pop %v6594
  %v6788 = vtanh.pop %v6652
  %v6789 = vtanh.pop %v6710
  %v6790 = vtanh.pop %v6768
  %v6791 = vtanh.pop %v6596
  %v6792 = vtanh.pop %v6654
  %v6793 = vtanh.pop %v6712
  %v6794 = vtanh.pop %v6770
  %v6795 = vtanh.pop %v6599
  %v6796 = vtanh.pop %v6657
  %v6797 = vtanh.pop %v6715
  %v6798 = vtanh.pop %v6773
  %v6799 = vtanh.pop %v6601
  %v6800 = vtanh.pop %v6659
  %v6801 = vtanh.pop %v6717
  %v6802 = vtanh.pop %v6775
  %v6803 = vxor.u32 %v6604, 2147483648
  %v6804 = vxor.u32 %v6662, 2147483648
  %v6805 = vxor.u32 %v6720, 2147483648
  %v6806 = vxor.u32 %v6778, 2147483648
  %v6807 = vxor.u32 %v6606, 2147483648
  %v6808 = vxor.u32 %v6664, 2147483648
  %v6809 = vxor.u32 %v6722, 2147483648
  %v6810 = vxor.u32 %v6780, 2147483648
  %v6811 = vxor.u32 %v6609, 2147483648
  %v6812 = vxor.u32 %v6667, 2147483648
  %v6813 = vxor.u32 %v6725, 2147483648
  %v6814 = vxor.u32 %v6783, 2147483648
  %v6815 = vxor.u32 %v6611, 2147483648
  %v6816 = vxor.u32 %v6669, 2147483648
  %v6817 = vxor.u32 %v6727, 2147483648
  %v6818 = vxor.u32 %v6785, 2147483648
  %v6819 = vmul.f32 %v6803, 1.442695
  %v6820 = vpow.pop %v6819
  %v6821 = vmul.f32 %v6804, 1.442695
  %v6822 = vpow.pop %v6821
  %v6823 = vmul.f32 %v6805, 1.442695
  %v6824 = vpow.pop %v6823
  %v6825 = vmul.f32 %v6806, 1.442695
  %v6826 = vpow.pop %v6825
  %v6827 = vmul.f32 %v6807, 1.442695
  %v6828 = vpow.pop %v6827
  %v6829 = vmul.f32 %v6808, 1.442695
  %v6830 = vpow.pop %v6829
  %v6831 = vmul.f32 %v6809, 1.442695
  %v6832 = vpow.pop %v6831
  %v6833 = vmul.f32 %v6810, 1.442695
  %v6834 = vpow.pop %v6833
  %v6835 = vmul.f32 %v6811, 1.442695
  %v6836 = vpow.pop %v6835
  %v6837 = vmul.f32 %v6812, 1.442695
  %v6838 = vpow.pop %v6837
  %v6839 = vmul.f32 %v6813, 1.442695
  %v6840 = vpow.pop %v6839
  %v6841 = vmul.f32 %v6814, 1.442695
  %v6842 = vpow.pop %v6841
  %v6843 = vmul.f32 %v6815, 1.442695
  %v6844 = vpow.pop %v6843
  %v6845 = vmul.f32 %v6816, 1.442695
  %v6846 = vpow.pop %v6845
  %v6847 = vmul.f32 %v6817, 1.442695
  %v6848 = vpow.pop %v6847
  %v6849 = vmul.f32 %v6818, 1.442695
  %v6850 = vpow.pop %v6849
  %v6851 = vadd.f32 %v6820, 1.0
  %v6852 = vadd.f32 %v6822, 1.0
  %v6853 = vadd.f32 %v6824, 1.0
  %v6854 = vadd.f32 %v6826, 1.0
  %v6855 = vadd.f32 %v6828, 1.0
  %v6856 = vadd.f32 %v6830, 1.0
  %v6857 = vadd.f32 %v6832, 1.0
  %v6858 = vadd.f32 %v6834, 1.0
  %v6859 = vadd.f32 %v6836, 1.0
  %v6860 = vadd.f32 %v6838, 1.0
  %v6861 = vadd.f32 %v6840, 1.0
  %v6862 = vadd.f32 %v6842, 1.0
  %v6863 = vadd.f32 %v6844, 1.0
  %v6864 = vadd.f32 %v6846, 1.0
  %v6865 = vadd.f32 %v6848, 1.0
  %v6866 = vadd.f32 %v6850, 1.0
  %v6867 = vrcp.pop %v6851
  %v6868 = vmul.f32 %v6851, %v6867
  %v6869 = vsub.f32 1.0, %v6868
  %v6870 = vmul.f32 %v6867, %v6869
  %v6871 = vadd.f32 %v6867, %v6870
  %vm6872 = vweird.f32 %v6851
  %vm6873 = vweird.f32 %v6867
  %vm6874 = vmor %vm6872, %vm6873
  %v6875 = vsel %vm6874, %v6867, %v6871
  %v6876 = vand.u32 2147483647, %v6851
  %vm6877 = vcmp.eq.f32.partialorder %v6876, 8.507059e+37
  %v6878 = vand.u32 %v6851, 2147483648
  %v6879 = vor.u32 1.1754944e-38, %v6878
  %v6880 = vsel %vm6877, %v6879, %v6875
  %v6881 = vmul.f32 1.0, %v6880
  %v6882 = vrcp.pop %v6852
  %v6883 = vmul.f32 %v6852, %v6882
  %v6884 = vsub.f32 1.0, %v6883
  %v6885 = vmul.f32 %v6882, %v6884
  %v6886 = vadd.f32 %v6882, %v6885
  %vm6887 = vweird.f32 %v6852
  %vm6888 = vweird.f32 %v6882
  %vm6889 = vmor %vm6887, %vm6888
  %v6890 = vsel %vm6889, %v6882, %v6886
  %v6891 = vand.u32 2147483647, %v6852
  %vm6892 = vcmp.eq.f32.partialorder %v6891, 8.507059e+37
  %v6893 = vand.u32 %v6852, 2147483648
  %v6894 = vor.u32 1.1754944e-38, %v6893
  %v6895 = vsel %vm6892, %v6894, %v6890
  %v6896 = vmul.f32 1.0, %v6895
  %v6897 = vrcp.pop %v6853
  %v6898 = vmul.f32 %v6853, %v6897
  %v6899 = vsub.f32 1.0, %v6898
  %v6900 = vmul.f32 %v6897, %v6899
  %v6901 = vadd.f32 %v6897, %v6900
  %vm6902 = vweird.f32 %v6853
  %vm6903 = vweird.f32 %v6897
  %vm6904 = vmor %vm6902, %vm6903
  %v6905 = vsel %vm6904, %v6897, %v6901
  %v6906 = vand.u32 2147483647, %v6853
  %vm6907 = vcmp.eq.f32.partialorder %v6906, 8.507059e+37
  %v6908 = vand.u32 %v6853, 2147483648
  %v6909 = vor.u32 1.1754944e-38, %v6908
  %v6910 = vsel %vm6907, %v6909, %v6905
  %v6911 = vmul.f32 1.0, %v6910
  %v6912 = vrcp.pop %v6854
  %v6913 = vmul.f32 %v6854, %v6912
  %v6914 = vsub.f32 1.0, %v6913
  %v6915 = vmul.f32 %v6912, %v6914
  %v6916 = vadd.f32 %v6912, %v6915
  %vm6917 = vweird.f32 %v6854
  %vm6918 = vweird.f32 %v6912
  %vm6919 = vmor %vm6917, %vm6918
  %v6920 = vsel %vm6919, %v6912, %v6916
  %v6921 = vand.u32 2147483647, %v6854
  %vm6922 = vcmp.eq.f32.partialorder %v6921, 8.507059e+37
  %v6923 = vand.u32 %v6854, 2147483648
  %v6924 = vor.u32 1.1754944e-38, %v6923
  %v6925 = vsel %vm6922, %v6924, %v6920
  %v6926 = vmul.f32 1.0, %v6925
  %v6927 = vrcp.pop %v6855
  %v6928 = vmul.f32 %v6855, %v6927
  %v6929 = vsub.f32 1.0, %v6928
  %v6930 = vmul.f32 %v6927, %v6929
  %v6931 = vadd.f32 %v6927, %v6930
  %vm6932 = vweird.f32 %v6855
  %vm6933 = vweird.f32 %v6927
  %vm6934 = vmor %vm6932, %vm6933
  %v6935 = vsel %vm6934, %v6927, %v6931
  %v6936 = vand.u32 2147483647, %v6855
  %vm6937 = vcmp.eq.f32.partialorder %v6936, 8.507059e+37
  %v6938 = vand.u32 %v6855, 2147483648
  %v6939 = vor.u32 1.1754944e-38, %v6938
  %v6940 = vsel %vm6937, %v6939, %v6935
  %v6941 = vmul.f32 1.0, %v6940
  %v6942 = vrcp.pop %v6856
  %v6943 = vmul.f32 %v6856, %v6942
  %v6944 = vsub.f32 1.0, %v6943
  %v6945 = vmul.f32 %v6942, %v6944
  %v6946 = vadd.f32 %v6942, %v6945
  %vm6947 = vweird.f32 %v6856
  %vm6948 = vweird.f32 %v6942
  %vm6949 = vmor %vm6947, %vm6948
  %v6950 = vsel %vm6949, %v6942, %v6946
  %v6951 = vand.u32 2147483647, %v6856
  %vm6952 = vcmp.eq.f32.partialorder %v6951, 8.507059e+37
  %v6953 = vand.u32 %v6856, 2147483648
  %v6954 = vor.u32 1.1754944e-38, %v6953
  %v6955 = vsel %vm6952, %v6954, %v6950
  %v6956 = vmul.f32 1.0, %v6955
  %v6957 = vrcp.pop %v6857
  %v6958 = vmul.f32 %v6857, %v6957
  %v6959 = vsub.f32 1.0, %v6958
  %v6960 = vmul.f32 %v6957, %v6959
  %v6961 = vadd.f32 %v6957, %v6960
  %vm6962 = vweird.f32 %v6857
  %vm6963 = vweird.f32 %v6957
  %vm6964 = vmor %vm6962, %vm6963
  %v6965 = vsel %vm6964, %v6957, %v6961
  %v6966 = vand.u32 2147483647, %v6857
  %vm6967 = vcmp.eq.f32.partialorder %v6966, 8.507059e+37
  %v6968 = vand.u32 %v6857, 2147483648
  %v6969 = vor.u32 1.1754944e-38, %v6968
  %v6970 = vsel %vm6967, %v6969, %v6965
  %v6971 = vmul.f32 1.0, %v6970
  %v6972 = vrcp.pop %v6858
  %v6973 = vmul.f32 %v6858, %v6972
  %v6974 = vsub.f32 1.0, %v6973
  %v6975 = vmul.f32 %v6972, %v6974
  %v6976 = vadd.f32 %v6972, %v6975
  %vm6977 = vweird.f32 %v6858
  %vm6978 = vweird.f32 %v6972
  %vm6979 = vmor %vm6977, %vm6978
  %v6980 = vsel %vm6979, %v6972, %v6976
  %v6981 = vand.u32 2147483647, %v6858
  %vm6982 = vcmp.eq.f32.partialorder %v6981, 8.507059e+37
  %v6983 = vand.u32 %v6858, 2147483648
  %v6984 = vor.u32 1.1754944e-38, %v6983
  %v6985 = vsel %vm6982, %v6984, %v6980
  %v6986 = vmul.f32 1.0, %v6985
  %v6987 = vrcp.pop %v6859
  %v6988 = vmul.f32 %v6859, %v6987
  %v6989 = vsub.f32 1.0, %v6988
  %v6990 = vmul.f32 %v6987, %v6989
  %v6991 = vadd.f32 %v6987, %v6990
  %vm6992 = vweird.f32 %v6859
  %vm6993 = vweird.f32 %v6987
  %vm6994 = vmor %vm6992, %vm6993
  %v6995 = vsel %vm6994, %v6987, %v6991
  %v6996 = vand.u32 2147483647, %v6859
  %vm6997 = vcmp.eq.f32.partialorder %v6996, 8.507059e+37
  %v6998 = vand.u32 %v6859, 2147483648
  %v6999 = vor.u32 1.1754944e-38, %v6998
  %v7000 = vsel %vm6997, %v6999, %v6995
  %v7001 = vmul.f32 1.0, %v7000
  %v7002 = vrcp.pop %v6860
  %v7003 = vmul.f32 %v6860, %v7002
  %v7004 = vsub.f32 1.0, %v7003
  %v7005 = vmul.f32 %v7002, %v7004
  %v7006 = vadd.f32 %v7002, %v7005
  %vm7007 = vweird.f32 %v6860
  %vm7008 = vweird.f32 %v7002
  %vm7009 = vmor %vm7007, %vm7008
  %v7010 = vsel %vm7009, %v7002, %v7006
  %v7011 = vand.u32 2147483647, %v6860
  %vm7012 = vcmp.eq.f32.partialorder %v7011, 8.507059e+37
  %v7013 = vand.u32 %v6860, 2147483648
  %v7014 = vor.u32 1.1754944e-38, %v7013
  %v7015 = vsel %vm7012, %v7014, %v7010
  %v7016 = vmul.f32 1.0, %v7015
  %v7017 = vrcp.pop %v6861
  %v7018 = vmul.f32 %v6861, %v7017
  %v7019 = vsub.f32 1.0, %v7018
  %v7020 = vmul.f32 %v7017, %v7019
  %v7021 = vadd.f32 %v7017, %v7020
  %vm7022 = vweird.f32 %v6861
  %vm7023 = vweird.f32 %v7017
  %vm7024 = vmor %vm7022, %vm7023
  %v7025 = vsel %vm7024, %v7017, %v7021
  %v7026 = vand.u32 2147483647, %v6861
  %vm7027 = vcmp.eq.f32.partialorder %v7026, 8.507059e+37
  %v7028 = vand.u32 %v6861, 2147483648
  %v7029 = vor.u32 1.1754944e-38, %v7028
  %v7030 = vsel %vm7027, %v7029, %v7025
  %v7031 = vmul.f32 1.0, %v7030
  %v7032 = vrcp.pop %v6862
  %v7033 = vmul.f32 %v6862, %v7032
  %v7034 = vsub.f32 1.0, %v7033
  %v7035 = vmul.f32 %v7032, %v7034
  %v7036 = vadd.f32 %v7032, %v7035
  %vm7037 = vweird.f32 %v6862
  %vm7038 = vweird.f32 %v7032
  %vm7039 = vmor %vm7037, %vm7038
  %v7040 = vsel %vm7039, %v7032, %v7036
  %v7041 = vand.u32 2147483647, %v6862
  %vm7042 = vcmp.eq.f32.partialorder %v7041, 8.507059e+37
  %v7043 = vand.u32 %v6862, 2147483648
  %v7044 = vor.u32 1.1754944e-38, %v7043
  %v7045 = vsel %vm7042, %v7044, %v7040
  %v7046 = vmul.f32 1.0, %v7045
  %v7047 = vrcp.pop %v6863
  %v7048 = vmul.f32 %v6863, %v7047
  %v7049 = vsub.f32 1.0, %v7048
  %v7050 = vmul.f32 %v7047, %v7049
  %v7051 = vadd.f32 %v7047, %v7050
  %vm7052 = vweird.f32 %v6863
  %vm7053 = vweird.f32 %v7047
  %vm7054 = vmor %vm7052, %vm7053
  %v7055 = vsel %vm7054, %v7047, %v7051
  %v7056 = vand.u32 2147483647, %v6863
  %vm7057 = vcmp.eq.f32.partialorder %v7056, 8.507059e+37
  %v7058 = vand.u32 %v6863, 2147483648
  %v7059 = vor.u32 1.1754944e-38, %v7058
  %v7060 = vsel %vm7057, %v7059, %v7055
  %v7061 = vmul.f32 1.0, %v7060
  %v7062 = vrcp.pop %v6864
  %v7063 = vmul.f32 %v6864, %v7062
  %v7064 = vsub.f32 1.0, %v7063
  %v7065 = vmul.f32 %v7062, %v7064
  %v7066 = vadd.f32 %v7062, %v7065
  %vm7067 = vweird.f32 %v6864
  %vm7068 = vweird.f32 %v7062
  %vm7069 = vmor %vm7067, %vm7068
  %v7070 = vsel %vm7069, %v7062, %v7066
  %v7071 = vand.u32 2147483647, %v6864
  %vm7072 = vcmp.eq.f32.partialorder %v7071, 8.507059e+37
  %v7073 = vand.u32 %v6864, 2147483648
  %v7074 = vor.u32 1.1754944e-38, %v7073
  %v7075 = vsel %vm7072, %v7074, %v7070
  %v7076 = vmul.f32 1.0, %v7075
  %v7077 = vrcp.pop %v6865
  %v7078 = vmul.f32 %v6865, %v7077
  %v7079 = vsub.f32 1.0, %v7078
  %v7080 = vmul.f32 %v7077, %v7079
  %v7081 = vadd.f32 %v7077, %v7080
  %vm7082 = vweird.f32 %v6865
  %vm7083 = vweird.f32 %v7077
  %vm7084 = vmor %vm7082, %vm7083
  %v7085 = vsel %vm7084, %v7077, %v7081
  %v7086 = vand.u32 2147483647, %v6865
  %vm7087 = vcmp.eq.f32.partialorder %v7086, 8.507059e+37
  %v7088 = vand.u32 %v6865, 2147483648
  %v7089 = vor.u32 1.1754944e-38, %v7088
  %v7090 = vsel %vm7087, %v7089, %v7085
  %v7091 = vmul.f32 1.0, %v7090
  %v7092 = vrcp.pop %v6866
  %v7093 = vmul.f32 %v6866, %v7092
  %v7094 = vsub.f32 1.0, %v7093
  %v7095 = vmul.f32 %v7092, %v7094
  %v7096 = vadd.f32 %v7092, %v7095
  %vm7097 = vweird.f32 %v6866
  %vm7098 = vweird.f32 %v7092
  %vm7099 = vmor %vm7097, %vm7098
  %v7100 = vsel %vm7099, %v7092, %v7096
  %v7101 = vand.u32 2147483647, %v6866
  %vm7102 = vcmp.eq.f32.partialorder %v7101, 8.507059e+37
  %v7103 = vand.u32 %v6866, 2147483648
  %v7104 = vor.u32 1.1754944e-38, %v7103
  %v7105 = vsel %vm7102, %v7104, %v7100
  %v7106 = vmul.f32 1.0, %v7105
  %v7107 = vmul.f32 %v6787, %v6881
  %v7108 = vmul.f32 %v6788, %v6896
  %v7109 = vmul.f32 %v6789, %v6911
  %v7110 = vmul.f32 %v6790, %v6926
  %v7111 = vmul.f32 %v6791, %v6941
  %v7112 = vmul.f32 %v6792, %v6956
  %v7113 = vmul.f32 %v6793, %v6971
  %v7114 = vmul.f32 %v6794, %v6986
  %v7115 = vmul.f32 %v6795, %v7001
  %v7116 = vmul.f32 %v6796, %v7016
  %v7117 = vmul.f32 %v6797, %v7031
  %v7118 = vmul.f32 %v6798, %v7046
  %v7119 = vmul.f32 %v6799, %v7061
  %v7120 = vmul.f32 %v6800, %v7076
  %v7121 = vmul.f32 %v6801, %v7091
  %v7122 = vmul.f32 %v6802, %v7106
  %v7123 = vpack.c.bf16 %v7111, %v7107
  %v7124 = vpack.c.bf16 %v7112, %v7108
  %v7125 = vpack.c.bf16 %v7113, %v7109
  %v7126 = vpack.c.bf16 %v7114, %v7110
  %v7127 = vpack.c.bf16 %v7119, %v7115
  %v7128 = vpack.c.bf16 %v7120, %v7116
  %v7129 = vpack.c.bf16 %v7121, %v7117
  %v7130 = vpack.c.bf16 %v7122, %v7118
  %s7131 = scalar_lea.vmem %s6, 128
  %v7132 = vld [vmem:[%s7131] sm:$0xf]
  %v7133 = vld [vmem:[%s7131 + $0x4] sm:$0xf]
  %v7134 = vld [vmem:[%s7131 + $0x8] sm:$0xf]
  %v7135 = vld [vmem:[%s7131 + $0xc] sm:$0xf]
  %v7136 = vld [vmem:[%s7131 + $0x10] sm:$0xf]
  %v7137 = vld [vmem:[%s7131 + $0x14] sm:$0xf]
  %v7138 = vld [vmem:[%s7131 + $0x18] sm:$0xf]
  %v7139 = vld [vmem:[%s7131 + $0x1c] sm:$0xf]
  %s7140 = scalar_lea.vmem %s7, 256
  %v7141 = vld [vmem:[%s7140] sm:$0xff]
  %v7142 = vld [vmem:[%s7140 + $0x8] sm:$0xff]
  %v7143 = vld [vmem:[%s7140 + $0x10] sm:$0xff]
  %v7144 = vld [vmem:[%s7140 + $0x18] sm:$0xff]
  %v7145 = vld [vmem:[%s7140 + $0x20] sm:$0xff]
  %v7146 = vld [vmem:[%s7140 + $0x28] sm:$0xff]
  %v7147 = vld [vmem:[%s7140 + $0x30] sm:$0xff]
  %v7148 = vld [vmem:[%s7140 + $0x38] sm:$0xff]
  %7150 = vset.pattern.permute.xlu0 0
  %7151 = vperm.xlu0 %7150, %v7141
  %v7152 = vpop.permute.xlu0 %7151
  %7155 = vset.pattern.permute.xlu0 0
  %7156 = vperm.xlu0 %7155, %v7142
  %v7157 = vpop.permute.xlu0 %7156
  %7160 = vset.pattern.permute.xlu0 0
  %7161 = vperm.xlu0 %7160, %v7143
  %v7162 = vpop.permute.xlu0 %7161
  %7165 = vset.pattern.permute.xlu0 0
  %7166 = vperm.xlu0 %7165, %v7144
  %v7167 = vpop.permute.xlu0 %7166
  %7170 = vset.pattern.permute.xlu0 0
  %7171 = vperm.xlu0 %7170, %v7145
  %v7172 = vpop.permute.xlu0 %7171
  %7175 = vset.pattern.permute.xlu0 0
  %7176 = vperm.xlu0 %7175, %v7146
  %v7177 = vpop.permute.xlu0 %7176
  %7180 = vset.pattern.permute.xlu0 0
  %7181 = vperm.xlu0 %7180, %v7147
  %v7182 = vpop.permute.xlu0 %7181
  %7185 = vset.pattern.permute.xlu0 0
  %7186 = vperm.xlu0 %7185, %v7148
  %v7187 = vpop.permute.xlu0 %7186
  %v7197 = vunpack.c.l.b16 %v7132
  %v7198 = vunpack.c.l.b16 %v7133
  %v7199 = vunpack.c.l.b16 %v7134
  %v7200 = vunpack.c.l.b16 %v7135
  %v7201 = vunpack.c.l.b16 %v7136
  %v7202 = vunpack.c.l.b16 %v7137
  %v7203 = vunpack.c.l.b16 %v7138
  %v7204 = vunpack.c.l.b16 %v7139
  %v7205 = vpack.c.b16 %v7198, %v7197
  %v7206 = vpack.c.b16 %v7200, %v7199
  %v7207 = vpack.c.b16 %v7202, %v7201
  %v7208 = vpack.c.b16 %v7204, %v7203
  %v7210 = vsel %vm124, %v7205, 0
  %v7213 = vsel %vm124, %v7206, 0
  %v7216 = vsel %vm124, %v7207, 0
  %v7219 = vsel %vm124, %v7208, 0
  %7221 = vmatpush.bf16.msra.mxu0 0
  %7222 = vmatpush.bf16.msra.mxu0 0
  %7223 = vmatpush.bf16.msra.mxu0 0
  %7224 = vmatpush.bf16.msra.mxu0 0
  %7225 = vmatpush.bf16.msra.mxu0 0
  %7226 = vmatpush.bf16.msra.mxu0 0
  %7227 = vmatpush.bf16.msra.mxu0 %v7127
  %7228 = vmatpush.bf16.msra.mxu0 %v7123
  %7229 = vmatmul.bf16.gmra.mxu0 %v7210
  %v7230 = vpop.f32.mrf.mxu0
  %v7231 = vadd.f32 %v7152, %v7230
  %v7232 = vpop.f32.mrf.mxu0
  %v7233 = vadd.f32 %v7157, %v7232
  %7234 = vmatmul.bf16.gmra.mxu0 %v7213
  %v7235 = vpop.f32.mrf.mxu0
  %v7236 = vadd.f32 %v7162, %v7235
  %v7237 = vpop.f32.mrf.mxu0
  %v7238 = vadd.f32 %v7167, %v7237
  %7239 = vmatmul.bf16.gmra.mxu0 %v7216
  %v7240 = vpop.f32.mrf.mxu0
  %v7241 = vadd.f32 %v7172, %v7240
  %v7242 = vpop.f32.mrf.mxu0
  %v7243 = vadd.f32 %v7177, %v7242
  %7244 = vmatmul.bf16.gmra.mxu0 %v7219
  %v7245 = vpop.f32.mrf.mxu0
  %v7246 = vadd.f32 %v7182, %v7245
  %v7247 = vpop.f32.mrf.mxu0
  %v7248 = vadd.f32 %v7187, %v7247
  %7249 = vdwg.mxu0
  %7250 = vmatpush.bf16.msra.mxu0 0
  %7251 = vmatpush.bf16.msra.mxu0 0
  %7252 = vmatpush.bf16.msra.mxu0 0
  %7253 = vmatpush.bf16.msra.mxu0 0
  %7254 = vmatpush.bf16.msra.mxu0 0
  %7255 = vmatpush.bf16.msra.mxu0 0
  %7256 = vmatpush.bf16.msra.mxu0 %v7128
  %7257 = vmatpush.bf16.msra.mxu0 %v7124
  %7258 = vmatmul.bf16.gmra.mxu0 %v7210
  %v7259 = vpop.f32.mrf.mxu0
  %v7260 = vadd.f32 %v7152, %v7259
  %v7261 = vpop.f32.mrf.mxu0
  %v7262 = vadd.f32 %v7157, %v7261
  %7263 = vmatmul.bf16.gmra.mxu0 %v7213
  %v7264 = vpop.f32.mrf.mxu0
  %v7265 = vadd.f32 %v7162, %v7264
  %v7266 = vpop.f32.mrf.mxu0
  %v7267 = vadd.f32 %v7167, %v7266
  %7268 = vmatmul.bf16.gmra.mxu0 %v7216
  %v7269 = vpop.f32.mrf.mxu0
  %v7270 = vadd.f32 %v7172, %v7269
  %v7271 = vpop.f32.mrf.mxu0
  %v7272 = vadd.f32 %v7177, %v7271
  %7273 = vmatmul.bf16.gmra.mxu0 %v7219
  %v7274 = vpop.f32.mrf.mxu0
  %v7275 = vadd.f32 %v7182, %v7274
  %v7276 = vpop.f32.mrf.mxu0
  %v7277 = vadd.f32 %v7187, %v7276
  %7278 = vdwg.mxu0
  %7279 = vmatpush.bf16.msra.mxu0 0
  %7280 = vmatpush.bf16.msra.mxu0 0
  %7281 = vmatpush.bf16.msra.mxu0 0
  %7282 = vmatpush.bf16.msra.mxu0 0
  %7283 = vmatpush.bf16.msra.mxu0 0
  %7284 = vmatpush.bf16.msra.mxu0 0
  %7285 = vmatpush.bf16.msra.mxu0 %v7129
  %7286 = vmatpush.bf16.msra.mxu0 %v7125
  %7287 = vmatmul.bf16.gmra.mxu0 %v7210
  %v7288 = vpop.f32.mrf.mxu0
  %v7289 = vadd.f32 %v7152, %v7288
  %v7290 = vpop.f32.mrf.mxu0
  %v7291 = vadd.f32 %v7157, %v7290
  %7292 = vmatmul.bf16.gmra.mxu0 %v7213
  %v7293 = vpop.f32.mrf.mxu0
  %v7294 = vadd.f32 %v7162, %v7293
  %v7295 = vpop.f32.mrf.mxu0
  %v7296 = vadd.f32 %v7167, %v7295
  %7297 = vmatmul.bf16.gmra.mxu0 %v7216
  %v7298 = vpop.f32.mrf.mxu0
  %v7299 = vadd.f32 %v7172, %v7298
  %v7300 = vpop.f32.mrf.mxu0
  %v7301 = vadd.f32 %v7177, %v7300
  %7302 = vmatmul.bf16.gmra.mxu0 %v7219
  %v7303 = vpop.f32.mrf.mxu0
  %v7304 = vadd.f32 %v7182, %v7303
  %v7305 = vpop.f32.mrf.mxu0
  %v7306 = vadd.f32 %v7187, %v7305
  %7307 = vdwg.mxu0
  %7308 = vmatpush.bf16.msra.mxu0 0
  %7309 = vmatpush.bf16.msra.mxu0 0
  %7310 = vmatpush.bf16.msra.mxu0 0
  %7311 = vmatpush.bf16.msra.mxu0 0
  %7312 = vmatpush.bf16.msra.mxu0 0
  %7313 = vmatpush.bf16.msra.mxu0 0
  %7314 = vmatpush.bf16.msra.mxu0 %v7130
  %7315 = vmatpush.bf16.msra.mxu0 %v7126
  %7316 = vmatmul.bf16.gmra.mxu0 %v7210
  %v7317 = vpop.f32.mrf.mxu0
  %v7318 = vadd.f32 %v7152, %v7317
  %v7319 = vpop.f32.mrf.mxu0
  %v7320 = vadd.f32 %v7157, %v7319
  %7321 = vmatmul.bf16.gmra.mxu0 %v7213
  %v7322 = vpop.f32.mrf.mxu0
  %v7323 = vadd.f32 %v7162, %v7322
  %v7324 = vpop.f32.mrf.mxu0
  %v7325 = vadd.f32 %v7167, %v7324
  %7326 = vmatmul.bf16.gmra.mxu0 %v7216
  %v7327 = vpop.f32.mrf.mxu0
  %v7328 = vadd.f32 %v7172, %v7327
  %v7329 = vpop.f32.mrf.mxu0
  %v7330 = vadd.f32 %v7177, %v7329
  %7331 = vmatmul.bf16.gmra.mxu0 %v7219
  %v7332 = vpop.f32.mrf.mxu0
  %v7333 = vadd.f32 %v7182, %v7332
  %v7334 = vpop.f32.mrf.mxu0
  %v7335 = vadd.f32 %v7187, %v7334
  %7336 = vdwg.mxu0
  %v7337 = vadd.f32 %v5921, %v7231
  %v7338 = vadd.f32 %v5922, %v7260
  %v7339 = vadd.f32 %v5923, %v7289
  %v7340 = vadd.f32 %v5924, %v7318
  %v7341 = vadd.f32 %v5925, %v7233
  %v7342 = vadd.f32 %v5926, %v7262
  %v7343 = vadd.f32 %v5927, %v7291
  %v7344 = vadd.f32 %v5928, %v7320
  %v7345 = vadd.f32 %v5929, %v7236
  %v7346 = vadd.f32 %v5930, %v7265
  %v7347 = vadd.f32 %v5931, %v7294
  %v7348 = vadd.f32 %v5932, %v7323
  %v7349 = vadd.f32 %v5933, %v7238
  %v7350 = vadd.f32 %v5934, %v7267
  %v7351 = vadd.f32 %v5935, %v7296
  %v7352 = vadd.f32 %v5936, %v7325
  %v7353 = vmul.f32 %v7337, %v58
  %v7354 = vmul.f32 %v7338, %v59
  %v7355 = vmul.f32 %v7339, %v60
  %v7356 = vmul.f32 %v7340, %v61
  %v7357 = vmul.f32 %v7341, %v58
  %v7358 = vmul.f32 %v7342, %v59
  %v7359 = vmul.f32 %v7343, %v60
  %v7360 = vmul.f32 %v7344, %v61
  %v7361 = vmul.f32 %v7345, %v58
  %v7362 = vmul.f32 %v7346, %v59
  %v7363 = vmul.f32 %v7347, %v60
  %v7364 = vmul.f32 %v7348, %v61
  %v7365 = vmul.f32 %v7349, %v58
  %v7366 = vmul.f32 %v7350, %v59
  %v7367 = vmul.f32 %v7351, %v60
  %v7368 = vmul.f32 %v7352, %v61
  %v7369 = vadd.f32 %v5937, %v7241
  %v7370 = vadd.f32 %v5938, %v7270
  %v7371 = vadd.f32 %v5939, %v7299
  %v7372 = vadd.f32 %v5940, %v7328
  %v7373 = vadd.f32 %v5941, %v7243
  %v7374 = vadd.f32 %v5942, %v7272
  %v7375 = vadd.f32 %v5943, %v7301
  %v7376 = vadd.f32 %v5944, %v7330
  %v7377 = vadd.f32 %v5945, %v7246
  %v7378 = vadd.f32 %v5946, %v7275
  %v7379 = vadd.f32 %v5947, %v7304
  %v7380 = vadd.f32 %v5948, %v7333
  %v7381 = vadd.f32 %v5949, %v7248
  %v7382 = vadd.f32 %v5950, %v7277
  %v7383 = vadd.f32 %v5951, %v7306
  %v7384 = vadd.f32 %v5952, %v7335
  %7385 = vrot.lane.b32.xlu0 %v7353, 2
  %v7386 = vpop.permute.xlu0 %7385
  %7387 = vrot.lane.b32.xlu0 %v7357, 2
  %v7388 = vpop.permute.xlu0 %7387
  %7389 = vrot.lane.b32.xlu0 %v7361, 2
  %v7390 = vpop.permute.xlu0 %7389
  %7391 = vrot.lane.b32.xlu0 %v7365, 2
  %v7392 = vpop.permute.xlu0 %7391
  %7393 = vrot.lane.b32.xlu0 %v7354, 2
  %v7394 = vpop.permute.xlu0 %7393
  %7395 = vrot.lane.b32.xlu0 %v7358, 2
  %v7396 = vpop.permute.xlu0 %7395
  %7397 = vrot.lane.b32.xlu0 %v7362, 2
  %v7398 = vpop.permute.xlu0 %7397
  %7399 = vrot.lane.b32.xlu0 %v7366, 2
  %v7400 = vpop.permute.xlu0 %7399
  %7401 = vrot.lane.b32.xlu0 %v7355, 2
  %v7402 = vpop.permute.xlu0 %7401
  %7403 = vrot.lane.b32.xlu0 %v7359, 2
  %v7404 = vpop.permute.xlu0 %7403
  %7405 = vrot.lane.b32.xlu0 %v7363, 2
  %v7406 = vpop.permute.xlu0 %7405
  %7407 = vrot.lane.b32.xlu0 %v7367, 2
  %v7408 = vpop.permute.xlu0 %7407
  %7409 = vrot.lane.b32.xlu0 %v7356, 2
  %v7410 = vpop.permute.xlu0 %7409
  %7411 = vrot.lane.b32.xlu0 %v7360, 2
  %v7412 = vpop.permute.xlu0 %7411
  %7413 = vrot.lane.b32.xlu0 %v7364, 2
  %v7414 = vpop.permute.xlu0 %7413
  %7415 = vrot.lane.b32.xlu0 %v7368, 2
  %v7416 = vpop.permute.xlu0 %7415
  %v7417 = vsel %vm257, %v7402, %v7410
  %v7418 = vsel %vm257, %v7404, %v7412
  %v7419 = vsel %vm257, %v7406, %v7414
  %v7420 = vsel %vm257, %v7408, %v7416
  %v7421 = vsel %vm257, %v7394, %v7402
  %v7422 = vsel %vm257, %v7396, %v7404
  %v7423 = vsel %vm257, %v7398, %v7406
  %v7424 = vsel %vm257, %v7400, %v7408
  %v7425 = vsel %vm257, %v7386, %v7394
  %v7426 = vsel %vm257, %v7388, %v7396
  %v7427 = vsel %vm257, %v7390, %v7398
  %v7428 = vsel %vm257, %v7392, %v7400
  %v7429 = vsel %vm257, %v7410, %v7386
  %v7430 = vsel %vm257, %v7412, %v7388
  %v7431 = vsel %vm257, %v7414, %v7390
  %v7432 = vsel %vm257, %v7416, %v7392
  %v7433 = vpack.c.bf16 %v7425, %v7429
  %v7434 = vpack.c.bf16 %v7417, %v7421
  %v7435 = vpack.c.bf16 %v7426, %v7430
  %v7436 = vpack.c.bf16 %v7418, %v7422
  %v7437 = vpack.c.bf16 %v7427, %v7431
  %v7438 = vpack.c.bf16 %v7419, %v7423
  %v7439 = vpack.c.bf16 %v7428, %v7432
  %v7440 = vpack.c.bf16 %v7420, %v7424
  %7441 = vst [vmem:[#allocation2] sm:$0xff] %v7433
  %7442 = vst [vmem:[#allocation2 + $0x8] sm:$0xff] %v7434
  %7443 = vst [vmem:[#allocation2 + $0x10] sm:$0xff] %v7435
  %7444 = vst [vmem:[#allocation2 + $0x18] sm:$0xff] %v7436
  %7445 = vst [vmem:[#allocation2 + $0x20] sm:$0xff] %v7437
  %7446 = vst [vmem:[#allocation2 + $0x28] sm:$0xff] %v7438
  %7447 = vst [vmem:[#allocation2 + $0x30] sm:$0xff] %v7439
  %7448 = vst [vmem:[#allocation2 + $0x38] sm:$0xff] %v7440
  %7449 = vrot.lane.b32.xlu0 %v7353, 1
  %v7450 = vpop.permute.xlu0 %7449
  %7451 = vrot.lane.b32.xlu0 %v7357, 1
  %v7452 = vpop.permute.xlu0 %7451
  %7453 = vrot.lane.b32.xlu0 %v7361, 1
  %v7454 = vpop.permute.xlu0 %7453
  %7455 = vrot.lane.b32.xlu0 %v7365, 1
  %v7456 = vpop.permute.xlu0 %7455
  %7457 = vrot.lane.b32.xlu0 %v7354, 1
  %v7458 = vpop.permute.xlu0 %7457
  %7459 = vrot.lane.b32.xlu0 %v7358, 1
  %v7460 = vpop.permute.xlu0 %7459
  %7461 = vrot.lane.b32.xlu0 %v7362, 1
  %v7462 = vpop.permute.xlu0 %7461
  %7463 = vrot.lane.b32.xlu0 %v7366, 1
  %v7464 = vpop.permute.xlu0 %7463
  %7465 = vrot.lane.b32.xlu0 %v7355, 1
  %v7466 = vpop.permute.xlu0 %7465
  %7467 = vrot.lane.b32.xlu0 %v7359, 1
  %v7468 = vpop.permute.xlu0 %7467
  %7469 = vrot.lane.b32.xlu0 %v7363, 1
  %v7470 = vpop.permute.xlu0 %7469
  %7471 = vrot.lane.b32.xlu0 %v7367, 1
  %v7472 = vpop.permute.xlu0 %7471
  %7473 = vrot.lane.b32.xlu0 %v7356, 1
  %v7474 = vpop.permute.xlu0 %7473
  %7475 = vrot.lane.b32.xlu0 %v7360, 1
  %v7476 = vpop.permute.xlu0 %7475
  %7477 = vrot.lane.b32.xlu0 %v7364, 1
  %v7478 = vpop.permute.xlu0 %7477
  %7479 = vrot.lane.b32.xlu0 %v7368, 1
  %v7480 = vpop.permute.xlu0 %7479
  %v7481 = vsel %vm322, %v7466, %v7474
  %v7482 = vsel %vm322, %v7468, %v7476
  %v7483 = vsel %vm322, %v7470, %v7478
  %v7484 = vsel %vm322, %v7472, %v7480
  %v7485 = vsel %vm322, %v7458, %v7466
  %v7486 = vsel %vm322, %v7460, %v7468
  %v7487 = vsel %vm322, %v7462, %v7470
  %v7488 = vsel %vm322, %v7464, %v7472
  %v7489 = vsel %vm322, %v7450, %v7458
  %v7490 = vsel %vm322, %v7452, %v7460
  %v7491 = vsel %vm322, %v7454, %v7462
  %v7492 = vsel %vm322, %v7456, %v7464
  %v7493 = vsel %vm322, %v7474, %v7450
  %v7494 = vsel %vm322, %v7476, %v7452
  %v7495 = vsel %vm322, %v7478, %v7454
  %v7496 = vsel %vm322, %v7480, %v7456
  %v7497 = vpack.c.bf16 %v7489, %v7493
  %v7498 = vpack.c.bf16 %v7481, %v7485
  %v7499 = vpack.c.bf16 %v7490, %v7494
  %v7500 = vpack.c.bf16 %v7482, %v7486
  %v7501 = vpack.c.bf16 %v7491, %v7495
  %v7502 = vpack.c.bf16 %v7483, %v7487
  %v7503 = vpack.c.bf16 %v7492, %v7496
  %v7504 = vpack.c.bf16 %v7484, %v7488
  %7505 = vst [vmem:[#allocation2 + $0x40] sm:$0xff] %v7497
  %7506 = vst [vmem:[#allocation2 + $0x48] sm:$0xff] %v7498
  %7507 = vst [vmem:[#allocation2 + $0x50] sm:$0xff] %v7499
  %7508 = vst [vmem:[#allocation2 + $0x58] sm:$0xff] %v7500
  %7509 = vst [vmem:[#allocation2 + $0x60] sm:$0xff] %v7501
  %7510 = vst [vmem:[#allocation2 + $0x68] sm:$0xff] %v7502
  %7511 = vst [vmem:[#allocation2 + $0x70] sm:$0xff] %v7503
  %7512 = vst [vmem:[#allocation2 + $0x78] sm:$0xff] %v7504
  %v7513 = vpack.c.bf16 %v7354, %v7353
  %v7514 = vpack.c.bf16 %v7356, %v7355
  %v7515 = vpack.c.bf16 %v7358, %v7357
  %v7516 = vpack.c.bf16 %v7360, %v7359
  %v7517 = vpack.c.bf16 %v7362, %v7361
  %v7518 = vpack.c.bf16 %v7364, %v7363
  %v7519 = vpack.c.bf16 %v7366, %v7365
  %v7520 = vpack.c.bf16 %v7368, %v7367
  %7521 = vst [vmem:[#allocation2 + $0x80] sm:$0xff] %v7513
  %7522 = vst [vmem:[#allocation2 + $0x88] sm:$0xff] %v7514
  %7523 = vst [vmem:[#allocation2 + $0x90] sm:$0xff] %v7515
  %7524 = vst [vmem:[#allocation2 + $0x98] sm:$0xff] %v7516
  %7525 = vst [vmem:[#allocation2 + $0xa0] sm:$0xff] %v7517
  %7526 = vst [vmem:[#allocation2 + $0xa8] sm:$0xff] %v7518
  %7527 = vst [vmem:[#allocation2 + $0xb0] sm:$0xff] %v7519
  %7528 = vst [vmem:[#allocation2 + $0xb8] sm:$0xff] %v7520
  %7529 = vrot.lane.b32.xlu0 %v7353, 127
  %v7530 = vpop.permute.xlu0 %7529
  %7531 = vrot.lane.b32.xlu0 %v7357, 127
  %v7532 = vpop.permute.xlu0 %7531
  %7533 = vrot.lane.b32.xlu0 %v7361, 127
  %v7534 = vpop.permute.xlu0 %7533
  %7535 = vrot.lane.b32.xlu0 %v7365, 127
  %v7536 = vpop.permute.xlu0 %7535
  %7537 = vrot.lane.b32.xlu0 %v7354, 127
  %v7538 = vpop.permute.xlu0 %7537
  %7539 = vrot.lane.b32.xlu0 %v7358, 127
  %v7540 = vpop.permute.xlu0 %7539
  %7541 = vrot.lane.b32.xlu0 %v7362, 127
  %v7542 = vpop.permute.xlu0 %7541
  %7543 = vrot.lane.b32.xlu0 %v7366, 127
  %v7544 = vpop.permute.xlu0 %7543
  %7545 = vrot.lane.b32.xlu0 %v7355, 127
  %v7546 = vpop.permute.xlu0 %7545
  %7547 = vrot.lane.b32.xlu0 %v7359, 127
  %v7548 = vpop.permute.xlu0 %7547
  %7549 = vrot.lane.b32.xlu0 %v7363, 127
  %v7550 = vpop.permute.xlu0 %7549
  %7551 = vrot.lane.b32.xlu0 %v7367, 127
  %v7552 = vpop.permute.xlu0 %7551
  %7553 = vrot.lane.b32.xlu0 %v7356, 127
  %v7554 = vpop.permute.xlu0 %7553
  %7555 = vrot.lane.b32.xlu0 %v7360, 127
  %v7556 = vpop.permute.xlu0 %7555
  %7557 = vrot.lane.b32.xlu0 %v7364, 127
  %v7558 = vpop.permute.xlu0 %7557
  %7559 = vrot.lane.b32.xlu0 %v7368, 127
  %v7560 = vpop.permute.xlu0 %7559
  %v7561 = vsel %vm403, %v7546, %v7554
  %v7562 = vsel %vm403, %v7548, %v7556
  %v7563 = vsel %vm403, %v7550, %v7558
  %v7564 = vsel %vm403, %v7552, %v7560
  %v7565 = vsel %vm403, %v7538, %v7546
  %v7566 = vsel %vm403, %v7540, %v7548
  %v7567 = vsel %vm403, %v7542, %v7550
  %v7568 = vsel %vm403, %v7544, %v7552
  %v7569 = vsel %vm403, %v7530, %v7538
  %v7570 = vsel %vm403, %v7532, %v7540
  %v7571 = vsel %vm403, %v7534, %v7542
  %v7572 = vsel %vm403, %v7536, %v7544
  %v7573 = vsel %vm403, %v7554, %v7530
  %v7574 = vsel %vm403, %v7556, %v7532
  %v7575 = vsel %vm403, %v7558, %v7534
  %v7576 = vsel %vm403, %v7560, %v7536
  %v7577 = vpack.c.bf16 %v7565, %v7569
  %v7578 = vpack.c.bf16 %v7573, %v7561
  %v7579 = vpack.c.bf16 %v7566, %v7570
  %v7580 = vpack.c.bf16 %v7574, %v7562
  %v7581 = vpack.c.bf16 %v7567, %v7571
  %v7582 = vpack.c.bf16 %v7575, %v7563
  %v7583 = vpack.c.bf16 %v7568, %v7572
  %v7584 = vpack.c.bf16 %v7576, %v7564
  %7585 = vst [vmem:[#allocation2 + $0xc0] sm:$0xff] %v7577
  %7586 = vst [vmem:[#allocation2 + $0xc8] sm:$0xff] %v7578
  %7587 = vst [vmem:[#allocation2 + $0xd0] sm:$0xff] %v7579
  %7588 = vst [vmem:[#allocation2 + $0xd8] sm:$0xff] %v7580
  %7589 = vst [vmem:[#allocation2 + $0xe0] sm:$0xff] %v7581
  %7590 = vst [vmem:[#allocation2 + $0xe8] sm:$0xff] %v7582
  %7591 = vst [vmem:[#allocation2 + $0xf0] sm:$0xff] %v7583
  %7592 = vst [vmem:[#allocation2 + $0xf8] sm:$0xff] %v7584
  %7593 = vrot.lane.b32.xlu0 %v7353, 126
  %v7594 = vpop.permute.xlu0 %7593
  %7595 = vrot.lane.b32.xlu0 %v7357, 126
  %v7596 = vpop.permute.xlu0 %7595
  %7597 = vrot.lane.b32.xlu0 %v7361, 126
  %v7598 = vpop.permute.xlu0 %7597
  %7599 = vrot.lane.b32.xlu0 %v7365, 126
  %v7600 = vpop.permute.xlu0 %7599
  %7601 = vrot.lane.b32.xlu0 %v7354, 126
  %v7602 = vpop.permute.xlu0 %7601
  %7603 = vrot.lane.b32.xlu0 %v7358, 126
  %v7604 = vpop.permute.xlu0 %7603
  %7605 = vrot.lane.b32.xlu0 %v7362, 126
  %v7606 = vpop.permute.xlu0 %7605
  %7607 = vrot.lane.b32.xlu0 %v7366, 126
  %v7608 = vpop.permute.xlu0 %7607
  %7609 = vrot.lane.b32.xlu0 %v7355, 126
  %v7610 = vpop.permute.xlu0 %7609
  %7611 = vrot.lane.b32.xlu0 %v7359, 126
  %v7612 = vpop.permute.xlu0 %7611
  %7613 = vrot.lane.b32.xlu0 %v7363, 126
  %v7614 = vpop.permute.xlu0 %7613
  %7615 = vrot.lane.b32.xlu0 %v7367, 126
  %v7616 = vpop.permute.xlu0 %7615
  %7617 = vrot.lane.b32.xlu0 %v7356, 126
  %v7618 = vpop.permute.xlu0 %7617
  %7619 = vrot.lane.b32.xlu0 %v7360, 126
  %v7620 = vpop.permute.xlu0 %7619
  %7621 = vrot.lane.b32.xlu0 %v7364, 126
  %v7622 = vpop.permute.xlu0 %7621
  %7623 = vrot.lane.b32.xlu0 %v7368, 126
  %v7624 = vpop.permute.xlu0 %7623
  %v7625 = vsel %vm468, %v7610, %v7618
  %v7626 = vsel %vm468, %v7612, %v7620
  %v7627 = vsel %vm468, %v7614, %v7622
  %v7628 = vsel %vm468, %v7616, %v7624
  %v7629 = vsel %vm468, %v7602, %v7610
  %v7630 = vsel %vm468, %v7604, %v7612
  %v7631 = vsel %vm468, %v7606, %v7614
  %v7632 = vsel %vm468, %v7608, %v7616
  %v7633 = vsel %vm468, %v7594, %v7602
  %v7634 = vsel %vm468, %v7596, %v7604
  %v7635 = vsel %vm468, %v7598, %v7606
  %v7636 = vsel %vm468, %v7600, %v7608
  %v7637 = vsel %vm468, %v7618, %v7594
  %v7638 = vsel %vm468, %v7620, %v7596
  %v7639 = vsel %vm468, %v7622, %v7598
  %v7640 = vsel %vm468, %v7624, %v7600
  %v7641 = vpack.c.bf16 %v7629, %v7633
  %v7642 = vpack.c.bf16 %v7637, %v7625
  %v7643 = vpack.c.bf16 %v7630, %v7634
  %v7644 = vpack.c.bf16 %v7638, %v7626
  %v7645 = vpack.c.bf16 %v7631, %v7635
  %v7646 = vpack.c.bf16 %v7639, %v7627
  %v7647 = vpack.c.bf16 %v7632, %v7636
  %v7648 = vpack.c.bf16 %v7640, %v7628
  %7649 = vst [vmem:[#allocation2 + $0x100] sm:$0xff] %v7641
  %7650 = vst [vmem:[#allocation2 + $0x108] sm:$0xff] %v7642
  %7651 = vst [vmem:[#allocation2 + $0x110] sm:$0xff] %v7643
  %7652 = vst [vmem:[#allocation2 + $0x118] sm:$0xff] %v7644
  %7653 = vst [vmem:[#allocation2 + $0x120] sm:$0xff] %v7645
  %7654 = vst [vmem:[#allocation2 + $0x128] sm:$0xff] %v7646
  %7655 = vst [vmem:[#allocation2 + $0x130] sm:$0xff] %v7647
  %7656 = vst [vmem:[#allocation2 + $0x138] sm:$0xff] %v7648
  %s7657 = scalar_lea.vmem %s5, 320
  %v7658 = vld [vmem:[%s7657] sm:$0xff]
  %v7659 = vld [vmem:[%s7657 + $0x8] sm:$0xff]
  %v7660 = vld [vmem:[%s7657 + $0x10] sm:$0xff]
  %v7661 = vld [vmem:[%s7657 + $0x18] sm:$0xff]
  %v7662 = vld [vmem:[%s7657 + $0x20] sm:$0xff]
  %v7663 = vld [vmem:[%s7657 + $0x28] sm:$0xff]
  %v7664 = vld [vmem:[%s7657 + $0x30] sm:$0xff]
  %v7665 = vld [vmem:[%s7657 + $0x38] sm:$0xff]
  %v7666 = vld [vmem:[#allocation2] sm:$0xff]
  %v7667 = vld [vmem:[#allocation2 + $0x8] sm:$0xff]
  %v7668 = vld [vmem:[#allocation2 + $0x10] sm:$0xff]
  %v7669 = vld [vmem:[#allocation2 + $0x18] sm:$0xff]
  %v7670 = vld [vmem:[#allocation2 + $0x20] sm:$0xff]
  %v7671 = vld [vmem:[#allocation2 + $0x28] sm:$0xff]
  %v7672 = vld [vmem:[#allocation2 + $0x30] sm:$0xff]
  %v7673 = vld [vmem:[#allocation2 + $0x38] sm:$0xff]
  %v7674 = vld [vmem:[#allocation2 + $0x40] sm:$0xff]
  %v7675 = vld [vmem:[#allocation2 + $0x48] sm:$0xff]
  %v7676 = vld [vmem:[#allocation2 + $0x50] sm:$0xff]
  %v7677 = vld [vmem:[#allocation2 + $0x58] sm:$0xff]
  %v7678 = vld [vmem:[#allocation2 + $0x60] sm:$0xff]
  %v7679 = vld [vmem:[#allocation2 + $0x68] sm:$0xff]
  %v7680 = vld [vmem:[#allocation2 + $0x70] sm:$0xff]
  %v7681 = vld [vmem:[#allocation2 + $0x78] sm:$0xff]
  %v7682 = vld [vmem:[#allocation2 + $0x80] sm:$0xff]
  %v7683 = vld [vmem:[#allocation2 + $0x88] sm:$0xff]
  %v7684 = vld [vmem:[#allocation2 + $0x90] sm:$0xff]
  %v7685 = vld [vmem:[#allocation2 + $0x98] sm:$0xff]
  %v7686 = vld [vmem:[#allocation2 + $0xa0] sm:$0xff]
  %v7687 = vld [vmem:[#allocation2 + $0xa8] sm:$0xff]
  %v7688 = vld [vmem:[#allocation2 + $0xb0] sm:$0xff]
  %v7689 = vld [vmem:[#allocation2 + $0xb8] sm:$0xff]
  %v7690 = vld [vmem:[#allocation2 + $0xc0] sm:$0xff]
  %v7691 = vld [vmem:[#allocation2 + $0xc8] sm:$0xff]
  %v7692 = vld [vmem:[#allocation2 + $0xd0] sm:$0xff]
  %v7693 = vld [vmem:[#allocation2 + $0xd8] sm:$0xff]
  %v7694 = vld [vmem:[#allocation2 + $0xe0] sm:$0xff]
  %v7695 = vld [vmem:[#allocation2 + $0xe8] sm:$0xff]
  %v7696 = vld [vmem:[#allocation2 + $0xf0] sm:$0xff]
  %v7697 = vld [vmem:[#allocation2 + $0xf8] sm:$0xff]
  %v7698 = vld [vmem:[#allocation2 + $0x100] sm:$0xff]
  %v7699 = vld [vmem:[#allocation2 + $0x108] sm:$0xff]
  %v7700 = vld [vmem:[#allocation2 + $0x110] sm:$0xff]
  %v7701 = vld [vmem:[#allocation2 + $0x118] sm:$0xff]
  %v7702 = vld [vmem:[#allocation2 + $0x120] sm:$0xff]
  %v7703 = vld [vmem:[#allocation2 + $0x128] sm:$0xff]
  %v7704 = vld [vmem:[#allocation2 + $0x130] sm:$0xff]
  %v7705 = vld [vmem:[#allocation2 + $0x138] sm:$0xff]
  %s7706 = scalar_lea.vmem %s2, 1280
  %v7707 = vld [vmem:[%s7706] sm:$0xff]
  %v7708 = vld [vmem:[%s7706 + $0x8] sm:$0xff]
  %v7709 = vld [vmem:[%s7706 + $0x10] sm:$0xff]
  %v7710 = vld [vmem:[%s7706 + $0x18] sm:$0xff]
  %v7711 = vld [vmem:[%s7706 + $0x20] sm:$0xff]
  %v7712 = vld [vmem:[%s7706 + $0x28] sm:$0xff]
  %v7713 = vld [vmem:[%s7706 + $0x30] sm:$0xff]
  %v7714 = vld [vmem:[%s7706 + $0x38] sm:$0xff]
  %v7715 = vld [vmem:[%s7706 + $0x40] sm:$0xff]
  %v7716 = vld [vmem:[%s7706 + $0x48] sm:$0xff]
  %v7717 = vld [vmem:[%s7706 + $0x50] sm:$0xff]
  %v7718 = vld [vmem:[%s7706 + $0x58] sm:$0xff]
  %v7719 = vld [vmem:[%s7706 + $0x60] sm:$0xff]
  %v7720 = vld [vmem:[%s7706 + $0x68] sm:$0xff]
  %v7721 = vld [vmem:[%s7706 + $0x70] sm:$0xff]
  %v7722 = vld [vmem:[%s7706 + $0x78] sm:$0xff]
  %v7723 = vld [vmem:[%s7706 + $0x80] sm:$0xff]
  %v7724 = vld [vmem:[%s7706 + $0x88] sm:$0xff]
  %v7725 = vld [vmem:[%s7706 + $0x90] sm:$0xff]
  %v7726 = vld [vmem:[%s7706 + $0x98] sm:$0xff]
  %v7727 = vld [vmem:[%s7706 + $0xa0] sm:$0xff]
  %v7728 = vld [vmem:[%s7706 + $0xa8] sm:$0xff]
  %v7729 = vld [vmem:[%s7706 + $0xb0] sm:$0xff]
  %v7730 = vld [vmem:[%s7706 + $0xb8] sm:$0xff]
  %v7731 = vld [vmem:[%s7706 + $0xc0] sm:$0xff]
  %v7732 = vld [vmem:[%s7706 + $0xc8] sm:$0xff]
  %v7733 = vld [vmem:[%s7706 + $0xd0] sm:$0xff]
  %v7734 = vld [vmem:[%s7706 + $0xd8] sm:$0xff]
  %v7735 = vld [vmem:[%s7706 + $0xe0] sm:$0xff]
  %v7736 = vld [vmem:[%s7706 + $0xe8] sm:$0xff]
  %v7737 = vld [vmem:[%s7706 + $0xf0] sm:$0xff]
  %v7738 = vld [vmem:[%s7706 + $0xf8] sm:$0xff]
  %v7747 = vunpack.c.l.b16 %v7658
  %v7748 = vunpack.c.h.b16 %v7658
  %v7749 = vunpack.c.l.b16 %v7659
  %v7750 = vunpack.c.h.b16 %v7659
  %v7751 = vunpack.c.l.b16 %v7660
  %v7752 = vunpack.c.h.b16 %v7660
  %v7753 = vunpack.c.l.b16 %v7661
  %v7754 = vunpack.c.h.b16 %v7661
  %v7755 = vunpack.c.l.b16 %v7662
  %v7756 = vunpack.c.h.b16 %v7662
  %v7757 = vunpack.c.l.b16 %v7663
  %v7758 = vunpack.c.h.b16 %v7663
  %v7759 = vunpack.c.l.b16 %v7664
  %v7760 = vunpack.c.h.b16 %v7664
  %v7761 = vunpack.c.l.b16 %v7665
  %v7762 = vunpack.c.h.b16 %v7665
  %v7763 = vpack.c.b16 %v7749, %v7747
  %v7764 = vpack.c.b16 %v7750, %v7748
  %v7765 = vpack.c.b16 %v7753, %v7751
  %v7766 = vpack.c.b16 %v7754, %v7752
  %v7767 = vpack.c.b16 %v7757, %v7755
  %v7768 = vpack.c.b16 %v7758, %v7756
  %v7769 = vpack.c.b16 %v7761, %v7759
  %v7770 = vpack.c.b16 %v7762, %v7760
  %v7815 = vunpack.c.l.b16 %v7666
  %v7816 = vunpack.c.h.b16 %v7666
  %v7817 = vunpack.c.l.b16 %v7667
  %v7818 = vunpack.c.h.b16 %v7667
  %v7819 = vunpack.c.l.b16 %v7668
  %v7820 = vunpack.c.h.b16 %v7668
  %v7821 = vunpack.c.l.b16 %v7669
  %v7822 = vunpack.c.h.b16 %v7669
  %v7823 = vunpack.c.l.b16 %v7670
  %v7824 = vunpack.c.h.b16 %v7670
  %v7825 = vunpack.c.l.b16 %v7671
  %v7826 = vunpack.c.h.b16 %v7671
  %v7827 = vunpack.c.l.b16 %v7672
  %v7828 = vunpack.c.h.b16 %v7672
  %v7829 = vunpack.c.l.b16 %v7673
  %v7830 = vunpack.c.h.b16 %v7673
  %v7831 = vunpack.c.l.b16 %v7674
  %v7832 = vunpack.c.h.b16 %v7674
  %v7833 = vunpack.c.l.b16 %v7675
  %v7834 = vunpack.c.h.b16 %v7675
  %v7835 = vunpack.c.l.b16 %v7676
  %v7836 = vunpack.c.h.b16 %v7676
  %v7837 = vunpack.c.l.b16 %v7677
  %v7838 = vunpack.c.h.b16 %v7677
  %v7839 = vunpack.c.l.b16 %v7678
  %v7840 = vunpack.c.h.b16 %v7678
  %v7841 = vunpack.c.l.b16 %v7679
  %v7842 = vunpack.c.h.b16 %v7679
  %v7843 = vunpack.c.l.b16 %v7680
  %v7844 = vunpack.c.h.b16 %v7680
  %v7845 = vunpack.c.l.b16 %v7681
  %v7846 = vunpack.c.h.b16 %v7681
  %v7847 = vunpack.c.l.b16 %v7682
  %v7848 = vunpack.c.h.b16 %v7682
  %v7849 = vunpack.c.l.b16 %v7683
  %v7850 = vunpack.c.h.b16 %v7683
  %v7851 = vunpack.c.l.b16 %v7684
  %v7852 = vunpack.c.h.b16 %v7684
  %v7853 = vunpack.c.l.b16 %v7685
  %v7854 = vunpack.c.h.b16 %v7685
  %v7855 = vunpack.c.l.b16 %v7686
  %v7856 = vunpack.c.h.b16 %v7686
  %v7857 = vunpack.c.l.b16 %v7687
  %v7858 = vunpack.c.h.b16 %v7687
  %v7859 = vunpack.c.l.b16 %v7688
  %v7860 = vunpack.c.h.b16 %v7688
  %v7861 = vunpack.c.l.b16 %v7689
  %v7862 = vunpack.c.h.b16 %v7689
  %v7863 = vunpack.c.l.b16 %v7690
  %v7864 = vunpack.c.h.b16 %v7690
  %v7865 = vunpack.c.l.b16 %v7691
  %v7866 = vunpack.c.h.b16 %v7691
  %v7867 = vunpack.c.l.b16 %v7692
  %v7868 = vunpack.c.h.b16 %v7692
  %v7869 = vunpack.c.l.b16 %v7693
  %v7870 = vunpack.c.h.b16 %v7693
  %v7871 = vunpack.c.l.b16 %v7694
  %v7872 = vunpack.c.h.b16 %v7694
  %v7873 = vunpack.c.l.b16 %v7695
  %v7874 = vunpack.c.h.b16 %v7695
  %v7875 = vunpack.c.l.b16 %v7696
  %v7876 = vunpack.c.h.b16 %v7696
  %v7877 = vunpack.c.l.b16 %v7697
  %v7878 = vunpack.c.h.b16 %v7697
  %v7879 = vunpack.c.l.b16 %v7698
  %v7880 = vunpack.c.h.b16 %v7698
  %v7881 = vunpack.c.l.b16 %v7699
  %v7882 = vunpack.c.h.b16 %v7699
  %v7883 = vunpack.c.l.b16 %v7700
  %v7884 = vunpack.c.h.b16 %v7700
  %v7885 = vunpack.c.l.b16 %v7701
  %v7886 = vunpack.c.h.b16 %v7701
  %v7887 = vunpack.c.l.b16 %v7702
  %v7888 = vunpack.c.h.b16 %v7702
  %v7889 = vunpack.c.l.b16 %v7703
  %v7890 = vunpack.c.h.b16 %v7703
  %v7891 = vunpack.c.l.b16 %v7704
  %v7892 = vunpack.c.h.b16 %v7704
  %v7893 = vunpack.c.l.b16 %v7705
  %v7894 = vunpack.c.h.b16 %v7705
  %v7895 = vpack.c.b16 %v7819, %v7815
  %v7896 = vpack.c.b16 %v7820, %v7816
  %v7897 = vpack.c.b16 %v7821, %v7817
  %v7898 = vpack.c.b16 %v7822, %v7818
  %v7899 = vpack.c.b16 %v7827, %v7823
  %v7900 = vpack.c.b16 %v7828, %v7824
  %v7901 = vpack.c.b16 %v7829, %v7825
  %v7902 = vpack.c.b16 %v7830, %v7826
  %v7903 = vpack.c.b16 %v7835, %v7831
  %v7904 = vpack.c.b16 %v7836, %v7832
  %v7905 = vpack.c.b16 %v7837, %v7833
  %v7906 = vpack.c.b16 %v7838, %v7834
  %v7907 = vpack.c.b16 %v7843, %v7839
  %v7908 = vpack.c.b16 %v7844, %v7840
  %v7909 = vpack.c.b16 %v7845, %v7841
  %v7910 = vpack.c.b16 %v7846, %v7842
  %v7911 = vpack.c.b16 %v7851, %v7847
  %v7912 = vpack.c.b16 %v7852, %v7848
  %v7913 = vpack.c.b16 %v7853, %v7849
  %v7914 = vpack.c.b16 %v7854, %v7850
  %v7915 = vpack.c.b16 %v7859, %v7855
  %v7916 = vpack.c.b16 %v7860, %v7856
  %v7917 = vpack.c.b16 %v7861, %v7857
  %v7918 = vpack.c.b16 %v7862, %v7858
  %v7919 = vpack.c.b16 %v7867, %v7863
  %v7920 = vpack.c.b16 %v7868, %v7864
  %v7921 = vpack.c.b16 %v7869, %v7865
  %v7922 = vpack.c.b16 %v7870, %v7866
  %v7923 = vpack.c.b16 %v7875, %v7871
  %v7924 = vpack.c.b16 %v7876, %v7872
  %v7925 = vpack.c.b16 %v7877, %v7873
  %v7926 = vpack.c.b16 %v7878, %v7874
  %v7927 = vpack.c.b16 %v7883, %v7879
  %v7928 = vpack.c.b16 %v7884, %v7880
  %v7929 = vpack.c.b16 %v7885, %v7881
  %v7930 = vpack.c.b16 %v7886, %v7882
  %v7931 = vpack.c.b16 %v7891, %v7887
  %v7932 = vpack.c.b16 %v7892, %v7888
  %v7933 = vpack.c.b16 %v7893, %v7889
  %v7934 = vpack.c.b16 %v7894, %v7890
  %v7976 = vsel %vm124, %v7764, 0
  %v7979 = vsel %vm124, %v7766, 0
  %v7982 = vsel %vm124, %v7768, 0
  %v7985 = vsel %vm124, %v7770, 0
  %7987 = vmatpush.bf16.msra.mxu0 %v7923
  %7988 = vmatpush.bf16.msra.mxu0 %v7919
  %7989 = vmatpush.bf16.msra.mxu0 %v7915
  %7990 = vmatpush.bf16.msra.mxu0 %v7911
  %7991 = vmatpush.bf16.msra.mxu0 %v7907
  %7992 = vmatpush.bf16.msra.mxu0 %v7903
  %7993 = vmatpush.bf16.msra.mxu0 %v7899
  %7994 = vmatpush.bf16.msra.mxu0 %v7895
  %7995 = vmatmul.bf16.gmra.mxu0 %v7763
  %v7996 = vpop.f32.mrf.mxu0
  %v7997 = vadd.f32 %v7707, %v7996
  %v7998 = vpop.f32.mrf.mxu0
  %v7999 = vadd.f32 %v7711, %v7998
  %8000 = vmatmul.bf16.gmra.mxu0 %v7765
  %v8001 = vpop.f32.mrf.mxu0
  %v8002 = vadd.f32 %v7715, %v8001
  %v8003 = vpop.f32.mrf.mxu0
  %v8004 = vadd.f32 %v7719, %v8003
  %8005 = vmatmul.bf16.gmra.mxu0 %v7767
  %v8006 = vpop.f32.mrf.mxu0
  %v8007 = vadd.f32 %v7723, %v8006
  %v8008 = vpop.f32.mrf.mxu0
  %v8009 = vadd.f32 %v7727, %v8008
  %8010 = vmatmul.bf16.gmra.mxu0 %v7769
  %v8011 = vpop.f32.mrf.mxu0
  %v8012 = vadd.f32 %v7731, %v8011
  %v8013 = vpop.f32.mrf.mxu0
  %v8014 = vadd.f32 %v7735, %v8013
  %8015 = vdwg.mxu0
  %8016 = vmatpush.bf16.msra.mxu0 0
  %8017 = vmatpush.bf16.msra.mxu0 0
  %8018 = vmatpush.bf16.msra.mxu0 0
  %8019 = vmatpush.bf16.msra.mxu0 0
  %8020 = vmatpush.bf16.msra.mxu0 0
  %8021 = vmatpush.bf16.msra.mxu0 0
  %8022 = vmatpush.bf16.msra.mxu0 %v7931
  %8023 = vmatpush.bf16.msra.mxu0 %v7927
  %8024 = vmatmul.bf16.gmra.mxu0 %v7976
  %v8025 = vpop.f32.mrf.mxu0
  %v8026 = vadd.f32 %v7997, %v8025
  %v8027 = vpop.f32.mrf.mxu0
  %v8028 = vadd.f32 %v7999, %v8027
  %8029 = vmatmul.bf16.gmra.mxu0 %v7979
  %v8030 = vpop.f32.mrf.mxu0
  %v8031 = vadd.f32 %v8002, %v8030
  %v8032 = vpop.f32.mrf.mxu0
  %v8033 = vadd.f32 %v8004, %v8032
  %8034 = vmatmul.bf16.gmra.mxu0 %v7982
  %v8035 = vpop.f32.mrf.mxu0
  %v8036 = vadd.f32 %v8007, %v8035
  %v8037 = vpop.f32.mrf.mxu0
  %v8038 = vadd.f32 %v8009, %v8037
  %8039 = vmatmul.bf16.gmra.mxu0 %v7985
  %v8040 = vpop.f32.mrf.mxu0
  %v8041 = vadd.f32 %v8012, %v8040
  %v8042 = vpop.f32.mrf.mxu0
  %v8043 = vadd.f32 %v8014, %v8042
  %8044 = vdwg.mxu0
  %8045 = vmatpush.bf16.msra.mxu0 %v7924
  %8046 = vmatpush.bf16.msra.mxu0 %v7920
  %8047 = vmatpush.bf16.msra.mxu0 %v7916
  %8048 = vmatpush.bf16.msra.mxu0 %v7912
  %8049 = vmatpush.bf16.msra.mxu0 %v7908
  %8050 = vmatpush.bf16.msra.mxu0 %v7904
  %8051 = vmatpush.bf16.msra.mxu0 %v7900
  %8052 = vmatpush.bf16.msra.mxu0 %v7896
  %8053 = vmatmul.bf16.gmra.mxu0 %v7763
  %v8054 = vpop.f32.mrf.mxu0
  %v8055 = vadd.f32 %v7708, %v8054
  %v8056 = vpop.f32.mrf.mxu0
  %v8057 = vadd.f32 %v7712, %v8056
  %8058 = vmatmul.bf16.gmra.mxu0 %v7765
  %v8059 = vpop.f32.mrf.mxu0
  %v8060 = vadd.f32 %v7716, %v8059
  %v8061 = vpop.f32.mrf.mxu0
  %v8062 = vadd.f32 %v7720, %v8061
  %8063 = vmatmul.bf16.gmra.mxu0 %v7767
  %v8064 = vpop.f32.mrf.mxu0
  %v8065 = vadd.f32 %v7724, %v8064
  %v8066 = vpop.f32.mrf.mxu0
  %v8067 = vadd.f32 %v7728, %v8066
  %8068 = vmatmul.bf16.gmra.mxu0 %v7769
  %v8069 = vpop.f32.mrf.mxu0
  %v8070 = vadd.f32 %v7732, %v8069
  %v8071 = vpop.f32.mrf.mxu0
  %v8072 = vadd.f32 %v7736, %v8071
  %8073 = vdwg.mxu0
  %8074 = vmatpush.bf16.msra.mxu0 0
  %8075 = vmatpush.bf16.msra.mxu0 0
  %8076 = vmatpush.bf16.msra.mxu0 0
  %8077 = vmatpush.bf16.msra.mxu0 0
  %8078 = vmatpush.bf16.msra.mxu0 0
  %8079 = vmatpush.bf16.msra.mxu0 0
  %8080 = vmatpush.bf16.msra.mxu0 %v7932
  %8081 = vmatpush.bf16.msra.mxu0 %v7928
  %8082 = vmatmul.bf16.gmra.mxu0 %v7976
  %v8083 = vpop.f32.mrf.mxu0
  %v8084 = vadd.f32 %v8055, %v8083
  %v8085 = vpop.f32.mrf.mxu0
  %v8086 = vadd.f32 %v8057, %v8085
  %8087 = vmatmul.bf16.gmra.mxu0 %v7979
  %v8088 = vpop.f32.mrf.mxu0
  %v8089 = vadd.f32 %v8060, %v8088
  %v8090 = vpop.f32.mrf.mxu0
  %v8091 = vadd.f32 %v8062, %v8090
  %8092 = vmatmul.bf16.gmra.mxu0 %v7982
  %v8093 = vpop.f32.mrf.mxu0
  %v8094 = vadd.f32 %v8065, %v8093
  %v8095 = vpop.f32.mrf.mxu0
  %v8096 = vadd.f32 %v8067, %v8095
  %8097 = vmatmul.bf16.gmra.mxu0 %v7985
  %v8098 = vpop.f32.mrf.mxu0
  %v8099 = vadd.f32 %v8070, %v8098
  %v8100 = vpop.f32.mrf.mxu0
  %v8101 = vadd.f32 %v8072, %v8100
  %8102 = vdwg.mxu0
  %8103 = vmatpush.bf16.msra.mxu0 %v7925
  %8104 = vmatpush.bf16.msra.mxu0 %v7921
  %8105 = vmatpush.bf16.msra.mxu0 %v7917
  %8106 = vmatpush.bf16.msra.mxu0 %v7913
  %8107 = vmatpush.bf16.msra.mxu0 %v7909
  %8108 = vmatpush.bf16.msra.mxu0 %v7905
  %8109 = vmatpush.bf16.msra.mxu0 %v7901
  %8110 = vmatpush.bf16.msra.mxu0 %v7897
  %8111 = vmatmul.bf16.gmra.mxu0 %v7763
  %v8112 = vpop.f32.mrf.mxu0
  %v8113 = vadd.f32 %v7709, %v8112
  %v8114 = vpop.f32.mrf.mxu0
  %v8115 = vadd.f32 %v7713, %v8114
  %8116 = vmatmul.bf16.gmra.mxu0 %v7765
  %v8117 = vpop.f32.mrf.mxu0
  %v8118 = vadd.f32 %v7717, %v8117
  %v8119 = vpop.f32.mrf.mxu0
  %v8120 = vadd.f32 %v7721, %v8119
  %8121 = vmatmul.bf16.gmra.mxu0 %v7767
  %v8122 = vpop.f32.mrf.mxu0
  %v8123 = vadd.f32 %v7725, %v8122
  %v8124 = vpop.f32.mrf.mxu0
  %v8125 = vadd.f32 %v7729, %v8124
  %8126 = vmatmul.bf16.gmra.mxu0 %v7769
  %v8127 = vpop.f32.mrf.mxu0
  %v8128 = vadd.f32 %v7733, %v8127
  %v8129 = vpop.f32.mrf.mxu0
  %v8130 = vadd.f32 %v7737, %v8129
  %8131 = vdwg.mxu0
  %8132 = vmatpush.bf16.msra.mxu0 0
  %8133 = vmatpush.bf16.msra.mxu0 0
  %8134 = vmatpush.bf16.msra.mxu0 0
  %8135 = vmatpush.bf16.msra.mxu0 0
  %8136 = vmatpush.bf16.msra.mxu0 0
  %8137 = vmatpush.bf16.msra.mxu0 0
  %8138 = vmatpush.bf16.msra.mxu0 %v7933
  %8139 = vmatpush.bf16.msra.mxu0 %v7929
  %8140 = vmatmul.bf16.gmra.mxu0 %v7976
  %v8141 = vpop.f32.mrf.mxu0
  %v8142 = vadd.f32 %v8113, %v8141
  %v8143 = vpop.f32.mrf.mxu0
  %v8144 = vadd.f32 %v8115, %v8143
  %8145 = vmatmul.bf16.gmra.mxu0 %v7979
  %v8146 = vpop.f32.mrf.mxu0
  %v8147 = vadd.f32 %v8118, %v8146
  %v8148 = vpop.f32.mrf.mxu0
  %v8149 = vadd.f32 %v8120, %v8148
  %8150 = vmatmul.bf16.gmra.mxu0 %v7982
  %v8151 = vpop.f32.mrf.mxu0
  %v8152 = vadd.f32 %v8123, %v8151
  %v8153 = vpop.f32.mrf.mxu0
  %v8154 = vadd.f32 %v8125, %v8153
  %8155 = vmatmul.bf16.gmra.mxu0 %v7985
  %v8156 = vpop.f32.mrf.mxu0
  %v8157 = vadd.f32 %v8128, %v8156
  %v8158 = vpop.f32.mrf.mxu0
  %v8159 = vadd.f32 %v8130, %v8158
  %8160 = vdwg.mxu0
  %8161 = vmatpush.bf16.msra.mxu0 %v7926
  %8162 = vmatpush.bf16.msra.mxu0 %v7922
  %8163 = vmatpush.bf16.msra.mxu0 %v7918
  %8164 = vmatpush.bf16.msra.mxu0 %v7914
  %8165 = vmatpush.bf16.msra.mxu0 %v7910
  %8166 = vmatpush.bf16.msra.mxu0 %v7906
  %8167 = vmatpush.bf16.msra.mxu0 %v7902
  %8168 = vmatpush.bf16.msra.mxu0 %v7898
  %8169 = vmatmul.bf16.gmra.mxu0 %v7763
  %v8170 = vpop.f32.mrf.mxu0
  %v8171 = vadd.f32 %v7710, %v8170
  %v8172 = vpop.f32.mrf.mxu0
  %v8173 = vadd.f32 %v7714, %v8172
  %8174 = vmatmul.bf16.gmra.mxu0 %v7765
  %v8175 = vpop.f32.mrf.mxu0
  %v8176 = vadd.f32 %v7718, %v8175
  %v8177 = vpop.f32.mrf.mxu0
  %v8178 = vadd.f32 %v7722, %v8177
  %8179 = vmatmul.bf16.gmra.mxu0 %v7767
  %v8180 = vpop.f32.mrf.mxu0
  %v8181 = vadd.f32 %v7726, %v8180
  %v8182 = vpop.f32.mrf.mxu0
  %v8183 = vadd.f32 %v7730, %v8182
  %8184 = vmatmul.bf16.gmra.mxu0 %v7769
  %v8185 = vpop.f32.mrf.mxu0
  %v8186 = vadd.f32 %v7734, %v8185
  %v8187 = vpop.f32.mrf.mxu0
  %v8188 = vadd.f32 %v7738, %v8187
  %8189 = vdwg.mxu0
  %8190 = vmatpush.bf16.msra.mxu0 0
  %8191 = vmatpush.bf16.msra.mxu0 0
  %8192 = vmatpush.bf16.msra.mxu0 0
  %8193 = vmatpush.bf16.msra.mxu0 0
  %8194 = vmatpush.bf16.msra.mxu0 0
  %8195 = vmatpush.bf16.msra.mxu0 0
  %8196 = vmatpush.bf16.msra.mxu0 %v7934
  %8197 = vmatpush.bf16.msra.mxu0 %v7930
  %8198 = vmatmul.bf16.gmra.mxu0 %v7976
  %v8199 = vpop.f32.mrf.mxu0
  %v8200 = vadd.f32 %v8171, %v8199
  %v8201 = vpop.f32.mrf.mxu0
  %v8202 = vadd.f32 %v8173, %v8201
  %8203 = vmatmul.bf16.gmra.mxu0 %v7979
  %v8204 = vpop.f32.mrf.mxu0
  %v8205 = vadd.f32 %v8176, %v8204
  %v8206 = vpop.f32.mrf.mxu0
  %v8207 = vadd.f32 %v8178, %v8206
  %8208 = vmatmul.bf16.gmra.mxu0 %v7982
  %v8209 = vpop.f32.mrf.mxu0
  %v8210 = vadd.f32 %v8181, %v8209
  %v8211 = vpop.f32.mrf.mxu0
  %v8212 = vadd.f32 %v8183, %v8211
  %8213 = vmatmul.bf16.gmra.mxu0 %v7985
  %v8214 = vpop.f32.mrf.mxu0
  %v8215 = vadd.f32 %v8186, %v8214
  %v8216 = vpop.f32.mrf.mxu0
  %v8217 = vadd.f32 %v8188, %v8216
  %8218 = vdwg.mxu0
  %v8219 = vtanh.pop %v8026
  %v8220 = vtanh.pop %v8084
  %v8221 = vtanh.pop %v8142
  %v8222 = vtanh.pop %v8200
  %v8223 = vtanh.pop %v8028
  %v8224 = vtanh.pop %v8086
  %v8225 = vtanh.pop %v8144
  %v8226 = vtanh.pop %v8202
  %v8227 = vtanh.pop %v8031
  %v8228 = vtanh.pop %v8089
  %v8229 = vtanh.pop %v8147
  %v8230 = vtanh.pop %v8205
  %v8231 = vtanh.pop %v8033
  %v8232 = vtanh.pop %v8091
  %v8233 = vtanh.pop %v8149
  %v8234 = vtanh.pop %v8207
  %v8235 = vxor.u32 %v8036, 2147483648
  %v8236 = vxor.u32 %v8094, 2147483648
  %v8237 = vxor.u32 %v8152, 2147483648
  %v8238 = vxor.u32 %v8210, 2147483648
  %v8239 = vxor.u32 %v8038, 2147483648
  %v8240 = vxor.u32 %v8096, 2147483648
  %v8241 = vxor.u32 %v8154, 2147483648
  %v8242 = vxor.u32 %v8212, 2147483648
  %v8243 = vxor.u32 %v8041, 2147483648
  %v8244 = vxor.u32 %v8099, 2147483648
  %v8245 = vxor.u32 %v8157, 2147483648
  %v8246 = vxor.u32 %v8215, 2147483648
  %v8247 = vxor.u32 %v8043, 2147483648
  %v8248 = vxor.u32 %v8101, 2147483648
  %v8249 = vxor.u32 %v8159, 2147483648
  %v8250 = vxor.u32 %v8217, 2147483648
  %v8251 = vmul.f32 %v8235, 1.442695
  %v8252 = vpow.pop %v8251
  %v8253 = vmul.f32 %v8236, 1.442695
  %v8254 = vpow.pop %v8253
  %v8255 = vmul.f32 %v8237, 1.442695
  %v8256 = vpow.pop %v8255
  %v8257 = vmul.f32 %v8238, 1.442695
  %v8258 = vpow.pop %v8257
  %v8259 = vmul.f32 %v8239, 1.442695
  %v8260 = vpow.pop %v8259
  %v8261 = vmul.f32 %v8240, 1.442695
  %v8262 = vpow.pop %v8261
  %v8263 = vmul.f32 %v8241, 1.442695
  %v8264 = vpow.pop %v8263
  %v8265 = vmul.f32 %v8242, 1.442695
  %v8266 = vpow.pop %v8265
  %v8267 = vmul.f32 %v8243, 1.442695
  %v8268 = vpow.pop %v8267
  %v8269 = vmul.f32 %v8244, 1.442695
  %v8270 = vpow.pop %v8269
  %v8271 = vmul.f32 %v8245, 1.442695
  %v8272 = vpow.pop %v8271
  %v8273 = vmul.f32 %v8246, 1.442695
  %v8274 = vpow.pop %v8273
  %v8275 = vmul.f32 %v8247, 1.442695
  %v8276 = vpow.pop %v8275
  %v8277 = vmul.f32 %v8248, 1.442695
  %v8278 = vpow.pop %v8277
  %v8279 = vmul.f32 %v8249, 1.442695
  %v8280 = vpow.pop %v8279
  %v8281 = vmul.f32 %v8250, 1.442695
  %v8282 = vpow.pop %v8281
  %v8283 = vadd.f32 %v8252, 1.0
  %v8284 = vadd.f32 %v8254, 1.0
  %v8285 = vadd.f32 %v8256, 1.0
  %v8286 = vadd.f32 %v8258, 1.0
  %v8287 = vadd.f32 %v8260, 1.0
  %v8288 = vadd.f32 %v8262, 1.0
  %v8289 = vadd.f32 %v8264, 1.0
  %v8290 = vadd.f32 %v8266, 1.0
  %v8291 = vadd.f32 %v8268, 1.0
  %v8292 = vadd.f32 %v8270, 1.0
  %v8293 = vadd.f32 %v8272, 1.0
  %v8294 = vadd.f32 %v8274, 1.0
  %v8295 = vadd.f32 %v8276, 1.0
  %v8296 = vadd.f32 %v8278, 1.0
  %v8297 = vadd.f32 %v8280, 1.0
  %v8298 = vadd.f32 %v8282, 1.0
  %v8299 = vrcp.pop %v8283
  %v8300 = vmul.f32 %v8283, %v8299
  %v8301 = vsub.f32 1.0, %v8300
  %v8302 = vmul.f32 %v8299, %v8301
  %v8303 = vadd.f32 %v8299, %v8302
  %vm8304 = vweird.f32 %v8283
  %vm8305 = vweird.f32 %v8299
  %vm8306 = vmor %vm8304, %vm8305
  %v8307 = vsel %vm8306, %v8299, %v8303
  %v8308 = vand.u32 2147483647, %v8283
  %vm8309 = vcmp.eq.f32.partialorder %v8308, 8.507059e+37
  %v8310 = vand.u32 %v8283, 2147483648
  %v8311 = vor.u32 1.1754944e-38, %v8310
  %v8312 = vsel %vm8309, %v8311, %v8307
  %v8313 = vmul.f32 1.0, %v8312
  %v8314 = vrcp.pop %v8284
  %v8315 = vmul.f32 %v8284, %v8314
  %v8316 = vsub.f32 1.0, %v8315
  %v8317 = vmul.f32 %v8314, %v8316
  %v8318 = vadd.f32 %v8314, %v8317
  %vm8319 = vweird.f32 %v8284
  %vm8320 = vweird.f32 %v8314
  %vm8321 = vmor %vm8319, %vm8320
  %v8322 = vsel %vm8321, %v8314, %v8318
  %v8323 = vand.u32 2147483647, %v8284
  %vm8324 = vcmp.eq.f32.partialorder %v8323, 8.507059e+37
  %v8325 = vand.u32 %v8284, 2147483648
  %v8326 = vor.u32 1.1754944e-38, %v8325
  %v8327 = vsel %vm8324, %v8326, %v8322
  %v8328 = vmul.f32 1.0, %v8327
  %v8329 = vrcp.pop %v8285
  %v8330 = vmul.f32 %v8285, %v8329
  %v8331 = vsub.f32 1.0, %v8330
  %v8332 = vmul.f32 %v8329, %v8331
  %v8333 = vadd.f32 %v8329, %v8332
  %vm8334 = vweird.f32 %v8285
  %vm8335 = vweird.f32 %v8329
  %vm8336 = vmor %vm8334, %vm8335
  %v8337 = vsel %vm8336, %v8329, %v8333
  %v8338 = vand.u32 2147483647, %v8285
  %vm8339 = vcmp.eq.f32.partialorder %v8338, 8.507059e+37
  %v8340 = vand.u32 %v8285, 2147483648
  %v8341 = vor.u32 1.1754944e-38, %v8340
  %v8342 = vsel %vm8339, %v8341, %v8337
  %v8343 = vmul.f32 1.0, %v8342
  %v8344 = vrcp.pop %v8286
  %v8345 = vmul.f32 %v8286, %v8344
  %v8346 = vsub.f32 1.0, %v8345
  %v8347 = vmul.f32 %v8344, %v8346
  %v8348 = vadd.f32 %v8344, %v8347
  %vm8349 = vweird.f32 %v8286
  %vm8350 = vweird.f32 %v8344
  %vm8351 = vmor %vm8349, %vm8350
  %v8352 = vsel %vm8351, %v8344, %v8348
  %v8353 = vand.u32 2147483647, %v8286
  %vm8354 = vcmp.eq.f32.partialorder %v8353, 8.507059e+37
  %v8355 = vand.u32 %v8286, 2147483648
  %v8356 = vor.u32 1.1754944e-38, %v8355
  %v8357 = vsel %vm8354, %v8356, %v8352
  %v8358 = vmul.f32 1.0, %v8357
  %v8359 = vrcp.pop %v8287
  %v8360 = vmul.f32 %v8287, %v8359
  %v8361 = vsub.f32 1.0, %v8360
  %v8362 = vmul.f32 %v8359, %v8361
  %v8363 = vadd.f32 %v8359, %v8362
  %vm8364 = vweird.f32 %v8287
  %vm8365 = vweird.f32 %v8359
  %vm8366 = vmor %vm8364, %vm8365
  %v8367 = vsel %vm8366, %v8359, %v8363
  %v8368 = vand.u32 2147483647, %v8287
  %vm8369 = vcmp.eq.f32.partialorder %v8368, 8.507059e+37
  %v8370 = vand.u32 %v8287, 2147483648
  %v8371 = vor.u32 1.1754944e-38, %v8370
  %v8372 = vsel %vm8369, %v8371, %v8367
  %v8373 = vmul.f32 1.0, %v8372
  %v8374 = vrcp.pop %v8288
  %v8375 = vmul.f32 %v8288, %v8374
  %v8376 = vsub.f32 1.0, %v8375
  %v8377 = vmul.f32 %v8374, %v8376
  %v8378 = vadd.f32 %v8374, %v8377
  %vm8379 = vweird.f32 %v8288
  %vm8380 = vweird.f32 %v8374
  %vm8381 = vmor %vm8379, %vm8380
  %v8382 = vsel %vm8381, %v8374, %v8378
  %v8383 = vand.u32 2147483647, %v8288
  %vm8384 = vcmp.eq.f32.partialorder %v8383, 8.507059e+37
  %v8385 = vand.u32 %v8288, 2147483648
  %v8386 = vor.u32 1.1754944e-38, %v8385
  %v8387 = vsel %vm8384, %v8386, %v8382
  %v8388 = vmul.f32 1.0, %v8387
  %v8389 = vrcp.pop %v8289
  %v8390 = vmul.f32 %v8289, %v8389
  %v8391 = vsub.f32 1.0, %v8390
  %v8392 = vmul.f32 %v8389, %v8391
  %v8393 = vadd.f32 %v8389, %v8392
  %vm8394 = vweird.f32 %v8289
  %vm8395 = vweird.f32 %v8389
  %vm8396 = vmor %vm8394, %vm8395
  %v8397 = vsel %vm8396, %v8389, %v8393
  %v8398 = vand.u32 2147483647, %v8289
  %vm8399 = vcmp.eq.f32.partialorder %v8398, 8.507059e+37
  %v8400 = vand.u32 %v8289, 2147483648
  %v8401 = vor.u32 1.1754944e-38, %v8400
  %v8402 = vsel %vm8399, %v8401, %v8397
  %v8403 = vmul.f32 1.0, %v8402
  %v8404 = vrcp.pop %v8290
  %v8405 = vmul.f32 %v8290, %v8404
  %v8406 = vsub.f32 1.0, %v8405
  %v8407 = vmul.f32 %v8404, %v8406
  %v8408 = vadd.f32 %v8404, %v8407
  %vm8409 = vweird.f32 %v8290
  %vm8410 = vweird.f32 %v8404
  %vm8411 = vmor %vm8409, %vm8410
  %v8412 = vsel %vm8411, %v8404, %v8408
  %v8413 = vand.u32 2147483647, %v8290
  %vm8414 = vcmp.eq.f32.partialorder %v8413, 8.507059e+37
  %v8415 = vand.u32 %v8290, 2147483648
  %v8416 = vor.u32 1.1754944e-38, %v8415
  %v8417 = vsel %vm8414, %v8416, %v8412
  %v8418 = vmul.f32 1.0, %v8417
  %v8419 = vrcp.pop %v8291
  %v8420 = vmul.f32 %v8291, %v8419
  %v8421 = vsub.f32 1.0, %v8420
  %v8422 = vmul.f32 %v8419, %v8421
  %v8423 = vadd.f32 %v8419, %v8422
  %vm8424 = vweird.f32 %v8291
  %vm8425 = vweird.f32 %v8419
  %vm8426 = vmor %vm8424, %vm8425
  %v8427 = vsel %vm8426, %v8419, %v8423
  %v8428 = vand.u32 2147483647, %v8291
  %vm8429 = vcmp.eq.f32.partialorder %v8428, 8.507059e+37
  %v8430 = vand.u32 %v8291, 2147483648
  %v8431 = vor.u32 1.1754944e-38, %v8430
  %v8432 = vsel %vm8429, %v8431, %v8427
  %v8433 = vmul.f32 1.0, %v8432
  %v8434 = vrcp.pop %v8292
  %v8435 = vmul.f32 %v8292, %v8434
  %v8436 = vsub.f32 1.0, %v8435
  %v8437 = vmul.f32 %v8434, %v8436
  %v8438 = vadd.f32 %v8434, %v8437
  %vm8439 = vweird.f32 %v8292
  %vm8440 = vweird.f32 %v8434
  %vm8441 = vmor %vm8439, %vm8440
  %v8442 = vsel %vm8441, %v8434, %v8438
  %v8443 = vand.u32 2147483647, %v8292
  %vm8444 = vcmp.eq.f32.partialorder %v8443, 8.507059e+37
  %v8445 = vand.u32 %v8292, 2147483648
  %v8446 = vor.u32 1.1754944e-38, %v8445
  %v8447 = vsel %vm8444, %v8446, %v8442
  %v8448 = vmul.f32 1.0, %v8447
  %v8449 = vrcp.pop %v8293
  %v8450 = vmul.f32 %v8293, %v8449
  %v8451 = vsub.f32 1.0, %v8450
  %v8452 = vmul.f32 %v8449, %v8451
  %v8453 = vadd.f32 %v8449, %v8452
  %vm8454 = vweird.f32 %v8293
  %vm8455 = vweird.f32 %v8449
  %vm8456 = vmor %vm8454, %vm8455
  %v8457 = vsel %vm8456, %v8449, %v8453
  %v8458 = vand.u32 2147483647, %v8293
  %vm8459 = vcmp.eq.f32.partialorder %v8458, 8.507059e+37
  %v8460 = vand.u32 %v8293, 2147483648
  %v8461 = vor.u32 1.1754944e-38, %v8460
  %v8462 = vsel %vm8459, %v8461, %v8457
  %v8463 = vmul.f32 1.0, %v8462
  %v8464 = vrcp.pop %v8294
  %v8465 = vmul.f32 %v8294, %v8464
  %v8466 = vsub.f32 1.0, %v8465
  %v8467 = vmul.f32 %v8464, %v8466
  %v8468 = vadd.f32 %v8464, %v8467
  %vm8469 = vweird.f32 %v8294
  %vm8470 = vweird.f32 %v8464
  %vm8471 = vmor %vm8469, %vm8470
  %v8472 = vsel %vm8471, %v8464, %v8468
  %v8473 = vand.u32 2147483647, %v8294
  %vm8474 = vcmp.eq.f32.partialorder %v8473, 8.507059e+37
  %v8475 = vand.u32 %v8294, 2147483648
  %v8476 = vor.u32 1.1754944e-38, %v8475
  %v8477 = vsel %vm8474, %v8476, %v8472
  %v8478 = vmul.f32 1.0, %v8477
  %v8479 = vrcp.pop %v8295
  %v8480 = vmul.f32 %v8295, %v8479
  %v8481 = vsub.f32 1.0, %v8480
  %v8482 = vmul.f32 %v8479, %v8481
  %v8483 = vadd.f32 %v8479, %v8482
  %vm8484 = vweird.f32 %v8295
  %vm8485 = vweird.f32 %v8479
  %vm8486 = vmor %vm8484, %vm8485
  %v8487 = vsel %vm8486, %v8479, %v8483
  %v8488 = vand.u32 2147483647, %v8295
  %vm8489 = vcmp.eq.f32.partialorder %v8488, 8.507059e+37
  %v8490 = vand.u32 %v8295, 2147483648
  %v8491 = vor.u32 1.1754944e-38, %v8490
  %v8492 = vsel %vm8489, %v8491, %v8487
  %v8493 = vmul.f32 1.0, %v8492
  %v8494 = vrcp.pop %v8296
  %v8495 = vmul.f32 %v8296, %v8494
  %v8496 = vsub.f32 1.0, %v8495
  %v8497 = vmul.f32 %v8494, %v8496
  %v8498 = vadd.f32 %v8494, %v8497
  %vm8499 = vweird.f32 %v8296
  %vm8500 = vweird.f32 %v8494
  %vm8501 = vmor %vm8499, %vm8500
  %v8502 = vsel %vm8501, %v8494, %v8498
  %v8503 = vand.u32 2147483647, %v8296
  %vm8504 = vcmp.eq.f32.partialorder %v8503, 8.507059e+37
  %v8505 = vand.u32 %v8296, 2147483648
  %v8506 = vor.u32 1.1754944e-38, %v8505
  %v8507 = vsel %vm8504, %v8506, %v8502
  %v8508 = vmul.f32 1.0, %v8507
  %v8509 = vrcp.pop %v8297
  %v8510 = vmul.f32 %v8297, %v8509
  %v8511 = vsub.f32 1.0, %v8510
  %v8512 = vmul.f32 %v8509, %v8511
  %v8513 = vadd.f32 %v8509, %v8512
  %vm8514 = vweird.f32 %v8297
  %vm8515 = vweird.f32 %v8509
  %vm8516 = vmor %vm8514, %vm8515
  %v8517 = vsel %vm8516, %v8509, %v8513
  %v8518 = vand.u32 2147483647, %v8297
  %vm8519 = vcmp.eq.f32.partialorder %v8518, 8.507059e+37
  %v8520 = vand.u32 %v8297, 2147483648
  %v8521 = vor.u32 1.1754944e-38, %v8520
  %v8522 = vsel %vm8519, %v8521, %v8517
  %v8523 = vmul.f32 1.0, %v8522
  %v8524 = vrcp.pop %v8298
  %v8525 = vmul.f32 %v8298, %v8524
  %v8526 = vsub.f32 1.0, %v8525
  %v8527 = vmul.f32 %v8524, %v8526
  %v8528 = vadd.f32 %v8524, %v8527
  %vm8529 = vweird.f32 %v8298
  %vm8530 = vweird.f32 %v8524
  %vm8531 = vmor %vm8529, %vm8530
  %v8532 = vsel %vm8531, %v8524, %v8528
  %v8533 = vand.u32 2147483647, %v8298
  %vm8534 = vcmp.eq.f32.partialorder %v8533, 8.507059e+37
  %v8535 = vand.u32 %v8298, 2147483648
  %v8536 = vor.u32 1.1754944e-38, %v8535
  %v8537 = vsel %vm8534, %v8536, %v8532
  %v8538 = vmul.f32 1.0, %v8537
  %v8539 = vmul.f32 %v8219, %v8313
  %v8540 = vmul.f32 %v8220, %v8328
  %v8541 = vmul.f32 %v8221, %v8343
  %v8542 = vmul.f32 %v8222, %v8358
  %v8543 = vmul.f32 %v8223, %v8373
  %v8544 = vmul.f32 %v8224, %v8388
  %v8545 = vmul.f32 %v8225, %v8403
  %v8546 = vmul.f32 %v8226, %v8418
  %v8547 = vmul.f32 %v8227, %v8433
  %v8548 = vmul.f32 %v8228, %v8448
  %v8549 = vmul.f32 %v8229, %v8463
  %v8550 = vmul.f32 %v8230, %v8478
  %v8551 = vmul.f32 %v8231, %v8493
  %v8552 = vmul.f32 %v8232, %v8508
  %v8553 = vmul.f32 %v8233, %v8523
  %v8554 = vmul.f32 %v8234, %v8538
  %v8555 = vpack.c.bf16 %v8543, %v8539
  %v8556 = vpack.c.bf16 %v8544, %v8540
  %v8557 = vpack.c.bf16 %v8545, %v8541
  %v8558 = vpack.c.bf16 %v8546, %v8542
  %v8559 = vpack.c.bf16 %v8551, %v8547
  %v8560 = vpack.c.bf16 %v8552, %v8548
  %v8561 = vpack.c.bf16 %v8553, %v8549
  %v8562 = vpack.c.bf16 %v8554, %v8550
  %s8563 = scalar_lea.vmem %s6, 160
  %v8564 = vld [vmem:[%s8563] sm:$0xf]
  %v8565 = vld [vmem:[%s8563 + $0x4] sm:$0xf]
  %v8566 = vld [vmem:[%s8563 + $0x8] sm:$0xf]
  %v8567 = vld [vmem:[%s8563 + $0xc] sm:$0xf]
  %v8568 = vld [vmem:[%s8563 + $0x10] sm:$0xf]
  %v8569 = vld [vmem:[%s8563 + $0x14] sm:$0xf]
  %v8570 = vld [vmem:[%s8563 + $0x18] sm:$0xf]
  %v8571 = vld [vmem:[%s8563 + $0x1c] sm:$0xf]
  %s8572 = scalar_lea.vmem %s7, 320
  %v8573 = vld [vmem:[%s8572] sm:$0xff]
  %v8574 = vld [vmem:[%s8572 + $0x8] sm:$0xff]
  %v8575 = vld [vmem:[%s8572 + $0x10] sm:$0xff]
  %v8576 = vld [vmem:[%s8572 + $0x18] sm:$0xff]
  %v8577 = vld [vmem:[%s8572 + $0x20] sm:$0xff]
  %v8578 = vld [vmem:[%s8572 + $0x28] sm:$0xff]
  %v8579 = vld [vmem:[%s8572 + $0x30] sm:$0xff]
  %v8580 = vld [vmem:[%s8572 + $0x38] sm:$0xff]
  %8582 = vset.pattern.permute.xlu0 0
  %8583 = vperm.xlu0 %8582, %v8573
  %v8584 = vpop.permute.xlu0 %8583
  %8587 = vset.pattern.permute.xlu0 0
  %8588 = vperm.xlu0 %8587, %v8574
  %v8589 = vpop.permute.xlu0 %8588
  %8592 = vset.pattern.permute.xlu0 0
  %8593 = vperm.xlu0 %8592, %v8575
  %v8594 = vpop.permute.xlu0 %8593
  %8597 = vset.pattern.permute.xlu0 0
  %8598 = vperm.xlu0 %8597, %v8576
  %v8599 = vpop.permute.xlu0 %8598
  %8602 = vset.pattern.permute.xlu0 0
  %8603 = vperm.xlu0 %8602, %v8577
  %v8604 = vpop.permute.xlu0 %8603
  %8607 = vset.pattern.permute.xlu0 0
  %8608 = vperm.xlu0 %8607, %v8578
  %v8609 = vpop.permute.xlu0 %8608
  %8612 = vset.pattern.permute.xlu0 0
  %8613 = vperm.xlu0 %8612, %v8579
  %v8614 = vpop.permute.xlu0 %8613
  %8617 = vset.pattern.permute.xlu0 0
  %8618 = vperm.xlu0 %8617, %v8580
  %v8619 = vpop.permute.xlu0 %8618
  %v8629 = vunpack.c.l.b16 %v8564
  %v8630 = vunpack.c.l.b16 %v8565
  %v8631 = vunpack.c.l.b16 %v8566
  %v8632 = vunpack.c.l.b16 %v8567
  %v8633 = vunpack.c.l.b16 %v8568
  %v8634 = vunpack.c.l.b16 %v8569
  %v8635 = vunpack.c.l.b16 %v8570
  %v8636 = vunpack.c.l.b16 %v8571
  %v8637 = vpack.c.b16 %v8630, %v8629
  %v8638 = vpack.c.b16 %v8632, %v8631
  %v8639 = vpack.c.b16 %v8634, %v8633
  %v8640 = vpack.c.b16 %v8636, %v8635
  %v8642 = vsel %vm124, %v8637, 0
  %v8645 = vsel %vm124, %v8638, 0
  %v8648 = vsel %vm124, %v8639, 0
  %v8651 = vsel %vm124, %v8640, 0
  %8653 = vmatpush.bf16.msra.mxu0 0
  %8654 = vmatpush.bf16.msra.mxu0 0
  %8655 = vmatpush.bf16.msra.mxu0 0
  %8656 = vmatpush.bf16.msra.mxu0 0
  %8657 = vmatpush.bf16.msra.mxu0 0
  %8658 = vmatpush.bf16.msra.mxu0 0
  %8659 = vmatpush.bf16.msra.mxu0 %v8559
  %8660 = vmatpush.bf16.msra.mxu0 %v8555
  %8661 = vmatmul.bf16.gmra.mxu0 %v8642
  %v8662 = vpop.f32.mrf.mxu0
  %v8663 = vadd.f32 %v8584, %v8662
  %v8664 = vpop.f32.mrf.mxu0
  %v8665 = vadd.f32 %v8589, %v8664
  %8666 = vmatmul.bf16.gmra.mxu0 %v8645
  %v8667 = vpop.f32.mrf.mxu0
  %v8668 = vadd.f32 %v8594, %v8667
  %v8669 = vpop.f32.mrf.mxu0
  %v8670 = vadd.f32 %v8599, %v8669
  %8671 = vmatmul.bf16.gmra.mxu0 %v8648
  %v8672 = vpop.f32.mrf.mxu0
  %v8673 = vadd.f32 %v8604, %v8672
  %v8674 = vpop.f32.mrf.mxu0
  %v8675 = vadd.f32 %v8609, %v8674
  %8676 = vmatmul.bf16.gmra.mxu0 %v8651
  %v8677 = vpop.f32.mrf.mxu0
  %v8678 = vadd.f32 %v8614, %v8677
  %v8679 = vpop.f32.mrf.mxu0
  %v8680 = vadd.f32 %v8619, %v8679
  %8681 = vdwg.mxu0
  %8682 = vmatpush.bf16.msra.mxu0 0
  %8683 = vmatpush.bf16.msra.mxu0 0
  %8684 = vmatpush.bf16.msra.mxu0 0
  %8685 = vmatpush.bf16.msra.mxu0 0
  %8686 = vmatpush.bf16.msra.mxu0 0
  %8687 = vmatpush.bf16.msra.mxu0 0
  %8688 = vmatpush.bf16.msra.mxu0 %v8560
  %8689 = vmatpush.bf16.msra.mxu0 %v8556
  %8690 = vmatmul.bf16.gmra.mxu0 %v8642
  %v8691 = vpop.f32.mrf.mxu0
  %v8692 = vadd.f32 %v8584, %v8691
  %v8693 = vpop.f32.mrf.mxu0
  %v8694 = vadd.f32 %v8589, %v8693
  %8695 = vmatmul.bf16.gmra.mxu0 %v8645
  %v8696 = vpop.f32.mrf.mxu0
  %v8697 = vadd.f32 %v8594, %v8696
  %v8698 = vpop.f32.mrf.mxu0
  %v8699 = vadd.f32 %v8599, %v8698
  %8700 = vmatmul.bf16.gmra.mxu0 %v8648
  %v8701 = vpop.f32.mrf.mxu0
  %v8702 = vadd.f32 %v8604, %v8701
  %v8703 = vpop.f32.mrf.mxu0
  %v8704 = vadd.f32 %v8609, %v8703
  %8705 = vmatmul.bf16.gmra.mxu0 %v8651
  %v8706 = vpop.f32.mrf.mxu0
  %v8707 = vadd.f32 %v8614, %v8706
  %v8708 = vpop.f32.mrf.mxu0
  %v8709 = vadd.f32 %v8619, %v8708
  %8710 = vdwg.mxu0
  %8711 = vmatpush.bf16.msra.mxu0 0
  %8712 = vmatpush.bf16.msra.mxu0 0
  %8713 = vmatpush.bf16.msra.mxu0 0
  %8714 = vmatpush.bf16.msra.mxu0 0
  %8715 = vmatpush.bf16.msra.mxu0 0
  %8716 = vmatpush.bf16.msra.mxu0 0
  %8717 = vmatpush.bf16.msra.mxu0 %v8561
  %8718 = vmatpush.bf16.msra.mxu0 %v8557
  %8719 = vmatmul.bf16.gmra.mxu0 %v8642
  %v8720 = vpop.f32.mrf.mxu0
  %v8721 = vadd.f32 %v8584, %v8720
  %v8722 = vpop.f32.mrf.mxu0
  %v8723 = vadd.f32 %v8589, %v8722
  %8724 = vmatmul.bf16.gmra.mxu0 %v8645
  %v8725 = vpop.f32.mrf.mxu0
  %v8726 = vadd.f32 %v8594, %v8725
  %v8727 = vpop.f32.mrf.mxu0
  %v8728 = vadd.f32 %v8599, %v8727
  %8729 = vmatmul.bf16.gmra.mxu0 %v8648
  %v8730 = vpop.f32.mrf.mxu0
  %v8731 = vadd.f32 %v8604, %v8730
  %v8732 = vpop.f32.mrf.mxu0
  %v8733 = vadd.f32 %v8609, %v8732
  %8734 = vmatmul.bf16.gmra.mxu0 %v8651
  %v8735 = vpop.f32.mrf.mxu0
  %v8736 = vadd.f32 %v8614, %v8735
  %v8737 = vpop.f32.mrf.mxu0
  %v8738 = vadd.f32 %v8619, %v8737
  %8739 = vdwg.mxu0
  %8740 = vmatpush.bf16.msra.mxu0 0
  %8741 = vmatpush.bf16.msra.mxu0 0
  %8742 = vmatpush.bf16.msra.mxu0 0
  %8743 = vmatpush.bf16.msra.mxu0 0
  %8744 = vmatpush.bf16.msra.mxu0 0
  %8745 = vmatpush.bf16.msra.mxu0 0
  %8746 = vmatpush.bf16.msra.mxu0 %v8562
  %8747 = vmatpush.bf16.msra.mxu0 %v8558
  %8748 = vmatmul.bf16.gmra.mxu0 %v8642
  %v8749 = vpop.f32.mrf.mxu0
  %v8750 = vadd.f32 %v8584, %v8749
  %v8751 = vpop.f32.mrf.mxu0
  %v8752 = vadd.f32 %v8589, %v8751
  %8753 = vmatmul.bf16.gmra.mxu0 %v8645
  %v8754 = vpop.f32.mrf.mxu0
  %v8755 = vadd.f32 %v8594, %v8754
  %v8756 = vpop.f32.mrf.mxu0
  %v8757 = vadd.f32 %v8599, %v8756
  %8758 = vmatmul.bf16.gmra.mxu0 %v8648
  %v8759 = vpop.f32.mrf.mxu0
  %v8760 = vadd.f32 %v8604, %v8759
  %v8761 = vpop.f32.mrf.mxu0
  %v8762 = vadd.f32 %v8609, %v8761
  %8763 = vmatmul.bf16.gmra.mxu0 %v8651
  %v8764 = vpop.f32.mrf.mxu0
  %v8765 = vadd.f32 %v8614, %v8764
  %v8766 = vpop.f32.mrf.mxu0
  %v8767 = vadd.f32 %v8619, %v8766
  %8768 = vdwg.mxu0
  %v8769 = vadd.f32 %v7353, %v8663
  %v8770 = vadd.f32 %v7354, %v8692
  %v8771 = vadd.f32 %v7355, %v8721
  %v8772 = vadd.f32 %v7356, %v8750
  %v8773 = vadd.f32 %v7357, %v8665
  %v8774 = vadd.f32 %v7358, %v8694
  %v8775 = vadd.f32 %v7359, %v8723
  %v8776 = vadd.f32 %v7360, %v8752
  %v8777 = vadd.f32 %v7361, %v8668
  %v8778 = vadd.f32 %v7362, %v8697
  %v8779 = vadd.f32 %v7363, %v8726
  %v8780 = vadd.f32 %v7364, %v8755
  %v8781 = vadd.f32 %v7365, %v8670
  %v8782 = vadd.f32 %v7366, %v8699
  %v8783 = vadd.f32 %v7367, %v8728
  %v8784 = vadd.f32 %v7368, %v8757
  %v8785 = vmul.f32 %v8769, %v58
  %v8786 = vmul.f32 %v8770, %v59
  %v8787 = vmul.f32 %v8771, %v60
  %v8788 = vmul.f32 %v8772, %v61
  %v8789 = vmul.f32 %v8773, %v58
  %v8790 = vmul.f32 %v8774, %v59
  %v8791 = vmul.f32 %v8775, %v60
  %v8792 = vmul.f32 %v8776, %v61
  %v8793 = vmul.f32 %v8777, %v58
  %v8794 = vmul.f32 %v8778, %v59
  %v8795 = vmul.f32 %v8779, %v60
  %v8796 = vmul.f32 %v8780, %v61
  %v8797 = vmul.f32 %v8781, %v58
  %v8798 = vmul.f32 %v8782, %v59
  %v8799 = vmul.f32 %v8783, %v60
  %v8800 = vmul.f32 %v8784, %v61
  %v8801 = vadd.f32 %v7369, %v8673
  %v8802 = vadd.f32 %v7370, %v8702
  %v8803 = vadd.f32 %v7371, %v8731
  %v8804 = vadd.f32 %v7372, %v8760
  %v8805 = vadd.f32 %v7373, %v8675
  %v8806 = vadd.f32 %v7374, %v8704
  %v8807 = vadd.f32 %v7375, %v8733
  %v8808 = vadd.f32 %v7376, %v8762
  %v8809 = vadd.f32 %v7377, %v8678
  %v8810 = vadd.f32 %v7378, %v8707
  %v8811 = vadd.f32 %v7379, %v8736
  %v8812 = vadd.f32 %v7380, %v8765
  %v8813 = vadd.f32 %v7381, %v8680
  %v8814 = vadd.f32 %v7382, %v8709
  %v8815 = vadd.f32 %v7383, %v8738
  %v8816 = vadd.f32 %v7384, %v8767
  %8817 = vrot.lane.b32.xlu0 %v8785, 2
  %v8818 = vpop.permute.xlu0 %8817
  %8819 = vrot.lane.b32.xlu0 %v8789, 2
  %v8820 = vpop.permute.xlu0 %8819
  %8821 = vrot.lane.b32.xlu0 %v8793, 2
  %v8822 = vpop.permute.xlu0 %8821
  %8823 = vrot.lane.b32.xlu0 %v8797, 2
  %v8824 = vpop.permute.xlu0 %8823
  %8825 = vrot.lane.b32.xlu0 %v8786, 2
  %v8826 = vpop.permute.xlu0 %8825
  %8827 = vrot.lane.b32.xlu0 %v8790, 2
  %v8828 = vpop.permute.xlu0 %8827
  %8829 = vrot.lane.b32.xlu0 %v8794, 2
  %v8830 = vpop.permute.xlu0 %8829
  %8831 = vrot.lane.b32.xlu0 %v8798, 2
  %v8832 = vpop.permute.xlu0 %8831
  %8833 = vrot.lane.b32.xlu0 %v8787, 2
  %v8834 = vpop.permute.xlu0 %8833
  %8835 = vrot.lane.b32.xlu0 %v8791, 2
  %v8836 = vpop.permute.xlu0 %8835
  %8837 = vrot.lane.b32.xlu0 %v8795, 2
  %v8838 = vpop.permute.xlu0 %8837
  %8839 = vrot.lane.b32.xlu0 %v8799, 2
  %v8840 = vpop.permute.xlu0 %8839
  %8841 = vrot.lane.b32.xlu0 %v8788, 2
  %v8842 = vpop.permute.xlu0 %8841
  %8843 = vrot.lane.b32.xlu0 %v8792, 2
  %v8844 = vpop.permute.xlu0 %8843
  %8845 = vrot.lane.b32.xlu0 %v8796, 2
  %v8846 = vpop.permute.xlu0 %8845
  %8847 = vrot.lane.b32.xlu0 %v8800, 2
  %v8848 = vpop.permute.xlu0 %8847
  %v8849 = vsel %vm257, %v8834, %v8842
  %v8850 = vsel %vm257, %v8836, %v8844
  %v8851 = vsel %vm257, %v8838, %v8846
  %v8852 = vsel %vm257, %v8840, %v8848
  %v8853 = vsel %vm257, %v8826, %v8834
  %v8854 = vsel %vm257, %v8828, %v8836
  %v8855 = vsel %vm257, %v8830, %v8838
  %v8856 = vsel %vm257, %v8832, %v8840
  %v8857 = vsel %vm257, %v8818, %v8826
  %v8858 = vsel %vm257, %v8820, %v8828
  %v8859 = vsel %vm257, %v8822, %v8830
  %v8860 = vsel %vm257, %v8824, %v8832
  %v8861 = vsel %vm257, %v8842, %v8818
  %v8862 = vsel %vm257, %v8844, %v8820
  %v8863 = vsel %vm257, %v8846, %v8822
  %v8864 = vsel %vm257, %v8848, %v8824
  %v8865 = vpack.c.bf16 %v8857, %v8861
  %v8866 = vpack.c.bf16 %v8849, %v8853
  %v8867 = vpack.c.bf16 %v8858, %v8862
  %v8868 = vpack.c.bf16 %v8850, %v8854
  %v8869 = vpack.c.bf16 %v8859, %v8863
  %v8870 = vpack.c.bf16 %v8851, %v8855
  %v8871 = vpack.c.bf16 %v8860, %v8864
  %v8872 = vpack.c.bf16 %v8852, %v8856
  %8873 = vst [vmem:[#allocation2] sm:$0xff] %v8865
  %8874 = vst [vmem:[#allocation2 + $0x8] sm:$0xff] %v8866
  %8875 = vst [vmem:[#allocation2 + $0x10] sm:$0xff] %v8867
  %8876 = vst [vmem:[#allocation2 + $0x18] sm:$0xff] %v8868
  %8877 = vst [vmem:[#allocation2 + $0x20] sm:$0xff] %v8869
  %8878 = vst [vmem:[#allocation2 + $0x28] sm:$0xff] %v8870
  %8879 = vst [vmem:[#allocation2 + $0x30] sm:$0xff] %v8871
  %8880 = vst [vmem:[#allocation2 + $0x38] sm:$0xff] %v8872
  %8881 = vrot.lane.b32.xlu0 %v8785, 1
  %v8882 = vpop.permute.xlu0 %8881
  %8883 = vrot.lane.b32.xlu0 %v8789, 1
  %v8884 = vpop.permute.xlu0 %8883
  %8885 = vrot.lane.b32.xlu0 %v8793, 1
  %v8886 = vpop.permute.xlu0 %8885
  %8887 = vrot.lane.b32.xlu0 %v8797, 1
  %v8888 = vpop.permute.xlu0 %8887
  %8889 = vrot.lane.b32.xlu0 %v8786, 1
  %v8890 = vpop.permute.xlu0 %8889
  %8891 = vrot.lane.b32.xlu0 %v8790, 1
  %v8892 = vpop.permute.xlu0 %8891
  %8893 = vrot.lane.b32.xlu0 %v8794, 1
  %v8894 = vpop.permute.xlu0 %8893
  %8895 = vrot.lane.b32.xlu0 %v8798, 1
  %v8896 = vpop.permute.xlu0 %8895
  %8897 = vrot.lane.b32.xlu0 %v8787, 1
  %v8898 = vpop.permute.xlu0 %8897
  %8899 = vrot.lane.b32.xlu0 %v8791, 1
  %v8900 = vpop.permute.xlu0 %8899
  %8901 = vrot.lane.b32.xlu0 %v8795, 1
  %v8902 = vpop.permute.xlu0 %8901
  %8903 = vrot.lane.b32.xlu0 %v8799, 1
  %v8904 = vpop.permute.xlu0 %8903
  %8905 = vrot.lane.b32.xlu0 %v8788, 1
  %v8906 = vpop.permute.xlu0 %8905
  %8907 = vrot.lane.b32.xlu0 %v8792, 1
  %v8908 = vpop.permute.xlu0 %8907
  %8909 = vrot.lane.b32.xlu0 %v8796, 1
  %v8910 = vpop.permute.xlu0 %8909
  %8911 = vrot.lane.b32.xlu0 %v8800, 1
  %v8912 = vpop.permute.xlu0 %8911
  %v8913 = vsel %vm322, %v8898, %v8906
  %v8914 = vsel %vm322, %v8900, %v8908
  %v8915 = vsel %vm322, %v8902, %v8910
  %v8916 = vsel %vm322, %v8904, %v8912
  %v8917 = vsel %vm322, %v8890, %v8898
  %v8918 = vsel %vm322, %v8892, %v8900
  %v8919 = vsel %vm322, %v8894, %v8902
  %v8920 = vsel %vm322, %v8896, %v8904
  %v8921 = vsel %vm322, %v8882, %v8890
  %v8922 = vsel %vm322, %v8884, %v8892
  %v8923 = vsel %vm322, %v8886, %v8894
  %v8924 = vsel %vm322, %v8888, %v8896
  %v8925 = vsel %vm322, %v8906, %v8882
  %v8926 = vsel %vm322, %v8908, %v8884
  %v8927 = vsel %vm322, %v8910, %v8886
  %v8928 = vsel %vm322, %v8912, %v8888
  %v8929 = vpack.c.bf16 %v8921, %v8925
  %v8930 = vpack.c.bf16 %v8913, %v8917
  %v8931 = vpack.c.bf16 %v8922, %v8926
  %v8932 = vpack.c.bf16 %v8914, %v8918
  %v8933 = vpack.c.bf16 %v8923, %v8927
  %v8934 = vpack.c.bf16 %v8915, %v8919
  %v8935 = vpack.c.bf16 %v8924, %v8928
  %v8936 = vpack.c.bf16 %v8916, %v8920
  %8937 = vst [vmem:[#allocation2 + $0x40] sm:$0xff] %v8929
  %8938 = vst [vmem:[#allocation2 + $0x48] sm:$0xff] %v8930
  %8939 = vst [vmem:[#allocation2 + $0x50] sm:$0xff] %v8931
  %8940 = vst [vmem:[#allocation2 + $0x58] sm:$0xff] %v8932
  %8941 = vst [vmem:[#allocation2 + $0x60] sm:$0xff] %v8933
  %8942 = vst [vmem:[#allocation2 + $0x68] sm:$0xff] %v8934
  %8943 = vst [vmem:[#allocation2 + $0x70] sm:$0xff] %v8935
  %8944 = vst [vmem:[#allocation2 + $0x78] sm:$0xff] %v8936
  %v8945 = vpack.c.bf16 %v8786, %v8785
  %v8946 = vpack.c.bf16 %v8788, %v8787
  %v8947 = vpack.c.bf16 %v8790, %v8789
  %v8948 = vpack.c.bf16 %v8792, %v8791
  %v8949 = vpack.c.bf16 %v8794, %v8793
  %v8950 = vpack.c.bf16 %v8796, %v8795
  %v8951 = vpack.c.bf16 %v8798, %v8797
  %v8952 = vpack.c.bf16 %v8800, %v8799
  %8953 = vst [vmem:[#allocation2 + $0x80] sm:$0xff] %v8945
  %8954 = vst [vmem:[#allocation2 + $0x88] sm:$0xff] %v8946
  %8955 = vst [vmem:[#allocation2 + $0x90] sm:$0xff] %v8947
  %8956 = vst [vmem:[#allocation2 + $0x98] sm:$0xff] %v8948
  %8957 = vst [vmem:[#allocation2 + $0xa0] sm:$0xff] %v8949
  %8958 = vst [vmem:[#allocation2 + $0xa8] sm:$0xff] %v8950
  %8959 = vst [vmem:[#allocation2 + $0xb0] sm:$0xff] %v8951
  %8960 = vst [vmem:[#allocation2 + $0xb8] sm:$0xff] %v8952
  %8961 = vrot.lane.b32.xlu0 %v8785, 127
  %v8962 = vpop.permute.xlu0 %8961
  %8963 = vrot.lane.b32.xlu0 %v8789, 127
  %v8964 = vpop.permute.xlu0 %8963
  %8965 = vrot.lane.b32.xlu0 %v8793, 127
  %v8966 = vpop.permute.xlu0 %8965
  %8967 = vrot.lane.b32.xlu0 %v8797, 127
  %v8968 = vpop.permute.xlu0 %8967
  %8969 = vrot.lane.b32.xlu0 %v8786, 127
  %v8970 = vpop.permute.xlu0 %8969
  %8971 = vrot.lane.b32.xlu0 %v8790, 127
  %v8972 = vpop.permute.xlu0 %8971
  %8973 = vrot.lane.b32.xlu0 %v8794, 127
  %v8974 = vpop.permute.xlu0 %8973
  %8975 = vrot.lane.b32.xlu0 %v8798, 127
  %v8976 = vpop.permute.xlu0 %8975
  %8977 = vrot.lane.b32.xlu0 %v8787, 127
  %v8978 = vpop.permute.xlu0 %8977
  %8979 = vrot.lane.b32.xlu0 %v8791, 127
  %v8980 = vpop.permute.xlu0 %8979
  %8981 = vrot.lane.b32.xlu0 %v8795, 127
  %v8982 = vpop.permute.xlu0 %8981
  %8983 = vrot.lane.b32.xlu0 %v8799, 127
  %v8984 = vpop.permute.xlu0 %8983
  %8985 = vrot.lane.b32.xlu0 %v8788, 127
  %v8986 = vpop.permute.xlu0 %8985
  %8987 = vrot.lane.b32.xlu0 %v8792, 127
  %v8988 = vpop.permute.xlu0 %8987
  %8989 = vrot.lane.b32.xlu0 %v8796, 127
  %v8990 = vpop.permute.xlu0 %8989
  %8991 = vrot.lane.b32.xlu0 %v8800, 127
  %v8992 = vpop.permute.xlu0 %8991
  %v8993 = vsel %vm403, %v8978, %v8986
  %v8994 = vsel %vm403, %v8980, %v8988
  %v8995 = vsel %vm403, %v8982, %v8990
  %v8996 = vsel %vm403, %v8984, %v8992
  %v8997 = vsel %vm403, %v8970, %v8978
  %v8998 = vsel %vm403, %v8972, %v8980
  %v8999 = vsel %vm403, %v8974, %v8982
  %v9000 = vsel %vm403, %v8976, %v8984
  %v9001 = vsel %vm403, %v8962, %v8970
  %v9002 = vsel %vm403, %v8964, %v8972
  %v9003 = vsel %vm403, %v8966, %v8974
  %v9004 = vsel %vm403, %v8968, %v8976
  %v9005 = vsel %vm403, %v8986, %v8962
  %v9006 = vsel %vm403, %v8988, %v8964
  %v9007 = vsel %vm403, %v8990, %v8966
  %v9008 = vsel %vm403, %v8992, %v8968
  %v9009 = vpack.c.bf16 %v8997, %v9001
  %v9010 = vpack.c.bf16 %v9005, %v8993
  %v9011 = vpack.c.bf16 %v8998, %v9002
  %v9012 = vpack.c.bf16 %v9006, %v8994
  %v9013 = vpack.c.bf16 %v8999, %v9003
  %v9014 = vpack.c.bf16 %v9007, %v8995
  %v9015 = vpack.c.bf16 %v9000, %v9004
  %v9016 = vpack.c.bf16 %v9008, %v8996
  %9017 = vst [vmem:[#allocation2 + $0xc0] sm:$0xff] %v9009
  %9018 = vst [vmem:[#allocation2 + $0xc8] sm:$0xff] %v9010
  %9019 = vst [vmem:[#allocation2 + $0xd0] sm:$0xff] %v9011
  %9020 = vst [vmem:[#allocation2 + $0xd8] sm:$0xff] %v9012
  %9021 = vst [vmem:[#allocation2 + $0xe0] sm:$0xff] %v9013
  %9022 = vst [vmem:[#allocation2 + $0xe8] sm:$0xff] %v9014
  %9023 = vst [vmem:[#allocation2 + $0xf0] sm:$0xff] %v9015
  %9024 = vst [vmem:[#allocation2 + $0xf8] sm:$0xff] %v9016
  %9025 = vrot.lane.b32.xlu0 %v8785, 126
  %v9026 = vpop.permute.xlu0 %9025
  %9027 = vrot.lane.b32.xlu0 %v8789, 126
  %v9028 = vpop.permute.xlu0 %9027
  %9029 = vrot.lane.b32.xlu0 %v8793, 126
  %v9030 = vpop.permute.xlu0 %9029
  %9031 = vrot.lane.b32.xlu0 %v8797, 126
  %v9032 = vpop.permute.xlu0 %9031
  %9033 = vrot.lane.b32.xlu0 %v8786, 126
  %v9034 = vpop.permute.xlu0 %9033
  %9035 = vrot.lane.b32.xlu0 %v8790, 126
  %v9036 = vpop.permute.xlu0 %9035
  %9037 = vrot.lane.b32.xlu0 %v8794, 126
  %v9038 = vpop.permute.xlu0 %9037
  %9039 = vrot.lane.b32.xlu0 %v8798, 126
  %v9040 = vpop.permute.xlu0 %9039
  %9041 = vrot.lane.b32.xlu0 %v8787, 126
  %v9042 = vpop.permute.xlu0 %9041
  %9043 = vrot.lane.b32.xlu0 %v8791, 126
  %v9044 = vpop.permute.xlu0 %9043
  %9045 = vrot.lane.b32.xlu0 %v8795, 126
  %v9046 = vpop.permute.xlu0 %9045
  %9047 = vrot.lane.b32.xlu0 %v8799, 126
  %v9048 = vpop.permute.xlu0 %9047
  %9049 = vrot.lane.b32.xlu0 %v8788, 126
  %v9050 = vpop.permute.xlu0 %9049
  %9051 = vrot.lane.b32.xlu0 %v8792, 126
  %v9052 = vpop.permute.xlu0 %9051
  %9053 = vrot.lane.b32.xlu0 %v8796, 126
  %v9054 = vpop.permute.xlu0 %9053
  %9055 = vrot.lane.b32.xlu0 %v8800, 126
  %v9056 = vpop.permute.xlu0 %9055
  %v9057 = vsel %vm468, %v9042, %v9050
  %v9058 = vsel %vm468, %v9044, %v9052
  %v9059 = vsel %vm468, %v9046, %v9054
  %v9060 = vsel %vm468, %v9048, %v9056
  %v9061 = vsel %vm468, %v9034, %v9042
  %v9062 = vsel %vm468, %v9036, %v9044
  %v9063 = vsel %vm468, %v9038, %v9046
  %v9064 = vsel %vm468, %v9040, %v9048
  %v9065 = vsel %vm468, %v9026, %v9034
  %v9066 = vsel %vm468, %v9028, %v9036
  %v9067 = vsel %vm468, %v9030, %v9038
  %v9068 = vsel %vm468, %v9032, %v9040
  %v9069 = vsel %vm468, %v9050, %v9026
  %v9070 = vsel %vm468, %v9052, %v9028
  %v9071 = vsel %vm468, %v9054, %v9030
  %v9072 = vsel %vm468, %v9056, %v9032
  %v9073 = vpack.c.bf16 %v9061, %v9065
  %v9074 = vpack.c.bf16 %v9069, %v9057
  %v9075 = vpack.c.bf16 %v9062, %v9066
  %v9076 = vpack.c.bf16 %v9070, %v9058
  %v9077 = vpack.c.bf16 %v9063, %v9067
  %v9078 = vpack.c.bf16 %v9071, %v9059
  %v9079 = vpack.c.bf16 %v9064, %v9068
  %v9080 = vpack.c.bf16 %v9072, %v9060
  %9081 = vst [vmem:[#allocation2 + $0x100] sm:$0xff] %v9073
  %9082 = vst [vmem:[#allocation2 + $0x108] sm:$0xff] %v9074
  %9083 = vst [vmem:[#allocation2 + $0x110] sm:$0xff] %v9075
  %9084 = vst [vmem:[#allocation2 + $0x118] sm:$0xff] %v9076
  %9085 = vst [vmem:[#allocation2 + $0x120] sm:$0xff] %v9077
  %9086 = vst [vmem:[#allocation2 + $0x128] sm:$0xff] %v9078
  %9087 = vst [vmem:[#allocation2 + $0x130] sm:$0xff] %v9079
  %9088 = vst [vmem:[#allocation2 + $0x138] sm:$0xff] %v9080
  %s9089 = scalar_lea.vmem %s5, 384
  %v9090 = vld [vmem:[%s9089] sm:$0xff]
  %v9091 = vld [vmem:[%s9089 + $0x8] sm:$0xff]
  %v9092 = vld [vmem:[%s9089 + $0x10] sm:$0xff]
  %v9093 = vld [vmem:[%s9089 + $0x18] sm:$0xff]
  %v9094 = vld [vmem:[%s9089 + $0x20] sm:$0xff]
  %v9095 = vld [vmem:[%s9089 + $0x28] sm:$0xff]
  %v9096 = vld [vmem:[%s9089 + $0x30] sm:$0xff]
  %v9097 = vld [vmem:[%s9089 + $0x38] sm:$0xff]
  %v9098 = vld [vmem:[#allocation2] sm:$0xff]
  %v9099 = vld [vmem:[#allocation2 + $0x8] sm:$0xff]
  %v9100 = vld [vmem:[#allocation2 + $0x10] sm:$0xff]
  %v9101 = vld [vmem:[#allocation2 + $0x18] sm:$0xff]
  %v9102 = vld [vmem:[#allocation2 + $0x20] sm:$0xff]
  %v9103 = vld [vmem:[#allocation2 + $0x28] sm:$0xff]
  %v9104 = vld [vmem:[#allocation2 + $0x30] sm:$0xff]
  %v9105 = vld [vmem:[#allocation2 + $0x38] sm:$0xff]
  %v9106 = vld [vmem:[#allocation2 + $0x40] sm:$0xff]
  %v9107 = vld [vmem:[#allocation2 + $0x48] sm:$0xff]
  %v9108 = vld [vmem:[#allocation2 + $0x50] sm:$0xff]
  %v9109 = vld [vmem:[#allocation2 + $0x58] sm:$0xff]
  %v9110 = vld [vmem:[#allocation2 + $0x60] sm:$0xff]
  %v9111 = vld [vmem:[#allocation2 + $0x68] sm:$0xff]
  %v9112 = vld [vmem:[#allocation2 + $0x70] sm:$0xff]
  %v9113 = vld [vmem:[#allocation2 + $0x78] sm:$0xff]
  %v9114 = vld [vmem:[#allocation2 + $0x80] sm:$0xff]
  %v9115 = vld [vmem:[#allocation2 + $0x88] sm:$0xff]
  %v9116 = vld [vmem:[#allocation2 + $0x90] sm:$0xff]
  %v9117 = vld [vmem:[#allocation2 + $0x98] sm:$0xff]
  %v9118 = vld [vmem:[#allocation2 + $0xa0] sm:$0xff]
  %v9119 = vld [vmem:[#allocation2 + $0xa8] sm:$0xff]
  %v9120 = vld [vmem:[#allocation2 + $0xb0] sm:$0xff]
  %v9121 = vld [vmem:[#allocation2 + $0xb8] sm:$0xff]
  %v9122 = vld [vmem:[#allocation2 + $0xc0] sm:$0xff]
  %v9123 = vld [vmem:[#allocation2 + $0xc8] sm:$0xff]
  %v9124 = vld [vmem:[#allocation2 + $0xd0] sm:$0xff]
  %v9125 = vld [vmem:[#allocation2 + $0xd8] sm:$0xff]
  %v9126 = vld [vmem:[#allocation2 + $0xe0] sm:$0xff]
  %v9127 = vld [vmem:[#allocation2 + $0xe8] sm:$0xff]
  %v9128 = vld [vmem:[#allocation2 + $0xf0] sm:$0xff]
  %v9129 = vld [vmem:[#allocation2 + $0xf8] sm:$0xff]
  %v9130 = vld [vmem:[#allocation2 + $0x100] sm:$0xff]
  %v9131 = vld [vmem:[#allocation2 + $0x108] sm:$0xff]
  %v9132 = vld [vmem:[#allocation2 + $0x110] sm:$0xff]
  %v9133 = vld [vmem:[#allocation2 + $0x118] sm:$0xff]
  %v9134 = vld [vmem:[#allocation2 + $0x120] sm:$0xff]
  %v9135 = vld [vmem:[#allocation2 + $0x128] sm:$0xff]
  %v9136 = vld [vmem:[#allocation2 + $0x130] sm:$0xff]
  %v9137 = vld [vmem:[#allocation2 + $0x138] sm:$0xff]
  %s9138 = scalar_lea.vmem %s2, 1536
  %v9139 = vld [vmem:[%s9138] sm:$0xff]
  %v9140 = vld [vmem:[%s9138 + $0x8] sm:$0xff]
  %v9141 = vld [vmem:[%s9138 + $0x10] sm:$0xff]
  %v9142 = vld [vmem:[%s9138 + $0x18] sm:$0xff]
  %v9143 = vld [vmem:[%s9138 + $0x20] sm:$0xff]
  %v9144 = vld [vmem:[%s9138 + $0x28] sm:$0xff]
  %v9145 = vld [vmem:[%s9138 + $0x30] sm:$0xff]
  %v9146 = vld [vmem:[%s9138 + $0x38] sm:$0xff]
  %v9147 = vld [vmem:[%s9138 + $0x40] sm:$0xff]
  %v9148 = vld [vmem:[%s9138 + $0x48] sm:$0xff]
  %v9149 = vld [vmem:[%s9138 + $0x50] sm:$0xff]
  %v9150 = vld [vmem:[%s9138 + $0x58] sm:$0xff]
  %v9151 = vld [vmem:[%s9138 + $0x60] sm:$0xff]
  %v9152 = vld [vmem:[%s9138 + $0x68] sm:$0xff]
  %v9153 = vld [vmem:[%s9138 + $0x70] sm:$0xff]
  %v9154 = vld [vmem:[%s9138 + $0x78] sm:$0xff]
  %v9155 = vld [vmem:[%s9138 + $0x80] sm:$0xff]
  %v9156 = vld [vmem:[%s9138 + $0x88] sm:$0xff]
  %v9157 = vld [vmem:[%s9138 + $0x90] sm:$0xff]
  %v9158 = vld [vmem:[%s9138 + $0x98] sm:$0xff]
  %v9159 = vld [vmem:[%s9138 + $0xa0] sm:$0xff]
  %v9160 = vld [vmem:[%s9138 + $0xa8] sm:$0xff]
  %v9161 = vld [vmem:[%s9138 + $0xb0] sm:$0xff]
  %v9162 = vld [vmem:[%s9138 + $0xb8] sm:$0xff]
  %v9163 = vld [vmem:[%s9138 + $0xc0] sm:$0xff]
  %v9164 = vld [vmem:[%s9138 + $0xc8] sm:$0xff]
  %v9165 = vld [vmem:[%s9138 + $0xd0] sm:$0xff]
  %v9166 = vld [vmem:[%s9138 + $0xd8] sm:$0xff]
  %v9167 = vld [vmem:[%s9138 + $0xe0] sm:$0xff]
  %v9168 = vld [vmem:[%s9138 + $0xe8] sm:$0xff]
  %v9169 = vld [vmem:[%s9138 + $0xf0] sm:$0xff]
  %v9170 = vld [vmem:[%s9138 + $0xf8] sm:$0xff]
  %v9179 = vunpack.c.l.b16 %v9090
  %v9180 = vunpack.c.h.b16 %v9090
  %v9181 = vunpack.c.l.b16 %v9091
  %v9182 = vunpack.c.h.b16 %v9091
  %v9183 = vunpack.c.l.b16 %v9092
  %v9184 = vunpack.c.h.b16 %v9092
  %v9185 = vunpack.c.l.b16 %v9093
  %v9186 = vunpack.c.h.b16 %v9093
  %v9187 = vunpack.c.l.b16 %v9094
  %v9188 = vunpack.c.h.b16 %v9094
  %v9189 = vunpack.c.l.b16 %v9095
  %v9190 = vunpack.c.h.b16 %v9095
  %v9191 = vunpack.c.l.b16 %v9096
  %v9192 = vunpack.c.h.b16 %v9096
  %v9193 = vunpack.c.l.b16 %v9097
  %v9194 = vunpack.c.h.b16 %v9097
  %v9195 = vpack.c.b16 %v9181, %v9179
  %v9196 = vpack.c.b16 %v9182, %v9180
  %v9197 = vpack.c.b16 %v9185, %v9183
  %v9198 = vpack.c.b16 %v9186, %v9184
  %v9199 = vpack.c.b16 %v9189, %v9187
  %v9200 = vpack.c.b16 %v9190, %v9188
  %v9201 = vpack.c.b16 %v9193, %v9191
  %v9202 = vpack.c.b16 %v9194, %v9192
  %v9247 = vunpack.c.l.b16 %v9098
  %v9248 = vunpack.c.h.b16 %v9098
  %v9249 = vunpack.c.l.b16 %v9099
  %v9250 = vunpack.c.h.b16 %v9099
  %v9251 = vunpack.c.l.b16 %v9100
  %v9252 = vunpack.c.h.b16 %v9100
  %v9253 = vunpack.c.l.b16 %v9101
  %v9254 = vunpack.c.h.b16 %v9101
  %v9255 = vunpack.c.l.b16 %v9102
  %v9256 = vunpack.c.h.b16 %v9102
  %v9257 = vunpack.c.l.b16 %v9103
  %v9258 = vunpack.c.h.b16 %v9103
  %v9259 = vunpack.c.l.b16 %v9104
  %v9260 = vunpack.c.h.b16 %v9104
  %v9261 = vunpack.c.l.b16 %v9105
  %v9262 = vunpack.c.h.b16 %v9105
  %v9263 = vunpack.c.l.b16 %v9106
  %v9264 = vunpack.c.h.b16 %v9106
  %v9265 = vunpack.c.l.b16 %v9107
  %v9266 = vunpack.c.h.b16 %v9107
  %v9267 = vunpack.c.l.b16 %v9108
  %v9268 = vunpack.c.h.b16 %v9108
  %v9269 = vunpack.c.l.b16 %v9109
  %v9270 = vunpack.c.h.b16 %v9109
  %v9271 = vunpack.c.l.b16 %v9110
  %v9272 = vunpack.c.h.b16 %v9110
  %v9273 = vunpack.c.l.b16 %v9111
  %v9274 = vunpack.c.h.b16 %v9111
  %v9275 = vunpack.c.l.b16 %v9112
  %v9276 = vunpack.c.h.b16 %v9112
  %v9277 = vunpack.c.l.b16 %v9113
  %v9278 = vunpack.c.h.b16 %v9113
  %v9279 = vunpack.c.l.b16 %v9114
  %v9280 = vunpack.c.h.b16 %v9114
  %v9281 = vunpack.c.l.b16 %v9115
  %v9282 = vunpack.c.h.b16 %v9115
  %v9283 = vunpack.c.l.b16 %v9116
  %v9284 = vunpack.c.h.b16 %v9116
  %v9285 = vunpack.c.l.b16 %v9117
  %v9286 = vunpack.c.h.b16 %v9117
  %v9287 = vunpack.c.l.b16 %v9118
  %v9288 = vunpack.c.h.b16 %v9118
  %v9289 = vunpack.c.l.b16 %v9119
  %v9290 = vunpack.c.h.b16 %v9119
  %v9291 = vunpack.c.l.b16 %v9120
  %v9292 = vunpack.c.h.b16 %v9120
  %v9293 = vunpack.c.l.b16 %v9121
  %v9294 = vunpack.c.h.b16 %v9121
  %v9295 = vunpack.c.l.b16 %v9122
  %v9296 = vunpack.c.h.b16 %v9122
  %v9297 = vunpack.c.l.b16 %v9123
  %v9298 = vunpack.c.h.b16 %v9123
  %v9299 = vunpack.c.l.b16 %v9124
  %v9300 = vunpack.c.h.b16 %v9124
  %v9301 = vunpack.c.l.b16 %v9125
  %v9302 = vunpack.c.h.b16 %v9125
  %v9303 = vunpack.c.l.b16 %v9126
  %v9304 = vunpack.c.h.b16 %v9126
  %v9305 = vunpack.c.l.b16 %v9127
  %v9306 = vunpack.c.h.b16 %v9127
  %v9307 = vunpack.c.l.b16 %v9128
  %v9308 = vunpack.c.h.b16 %v9128
  %v9309 = vunpack.c.l.b16 %v9129
  %v9310 = vunpack.c.h.b16 %v9129
  %v9311 = vunpack.c.l.b16 %v9130
  %v9312 = vunpack.c.h.b16 %v9130
  %v9313 = vunpack.c.l.b16 %v9131
  %v9314 = vunpack.c.h.b16 %v9131
  %v9315 = vunpack.c.l.b16 %v9132
  %v9316 = vunpack.c.h.b16 %v9132
  %v9317 = vunpack.c.l.b16 %v9133
  %v9318 = vunpack.c.h.b16 %v9133
  %v9319 = vunpack.c.l.b16 %v9134
  %v9320 = vunpack.c.h.b16 %v9134
  %v9321 = vunpack.c.l.b16 %v9135
  %v9322 = vunpack.c.h.b16 %v9135
  %v9323 = vunpack.c.l.b16 %v9136
  %v9324 = vunpack.c.h.b16 %v9136
  %v9325 = vunpack.c.l.b16 %v9137
  %v9326 = vunpack.c.h.b16 %v9137
  %v9327 = vpack.c.b16 %v9251, %v9247
  %v9328 = vpack.c.b16 %v9252, %v9248
  %v9329 = vpack.c.b16 %v9253, %v9249
  %v9330 = vpack.c.b16 %v9254, %v9250
  %v9331 = vpack.c.b16 %v9259, %v9255
  %v9332 = vpack.c.b16 %v9260, %v9256
  %v9333 = vpack.c.b16 %v9261, %v9257
  %v9334 = vpack.c.b16 %v9262, %v9258
  %v9335 = vpack.c.b16 %v9267, %v9263
  %v9336 = vpack.c.b16 %v9268, %v9264
  %v9337 = vpack.c.b16 %v9269, %v9265
  %v9338 = vpack.c.b16 %v9270, %v9266
  %v9339 = vpack.c.b16 %v9275, %v9271
  %v9340 = vpack.c.b16 %v9276, %v9272
  %v9341 = vpack.c.b16 %v9277, %v9273
  %v9342 = vpack.c.b16 %v9278, %v9274
  %v9343 = vpack.c.b16 %v9283, %v9279
  %v9344 = vpack.c.b16 %v9284, %v9280
  %v9345 = vpack.c.b16 %v9285, %v9281
  %v9346 = vpack.c.b16 %v9286, %v9282
  %v9347 = vpack.c.b16 %v9291, %v9287
  %v9348 = vpack.c.b16 %v9292, %v9288
  %v9349 = vpack.c.b16 %v9293, %v9289
  %v9350 = vpack.c.b16 %v9294, %v9290
  %v9351 = vpack.c.b16 %v9299, %v9295
  %v9352 = vpack.c.b16 %v9300, %v9296
  %v9353 = vpack.c.b16 %v9301, %v9297
  %v9354 = vpack.c.b16 %v9302, %v9298
  %v9355 = vpack.c.b16 %v9307, %v9303
  %v9356 = vpack.c.b16 %v9308, %v9304
  %v9357 = vpack.c.b16 %v9309, %v9305
  %v9358 = vpack.c.b16 %v9310, %v9306
  %v9359 = vpack.c.b16 %v9315, %v9311
  %v9360 = vpack.c.b16 %v9316, %v9312
  %v9361 = vpack.c.b16 %v9317, %v9313
  %v9362 = vpack.c.b16 %v9318, %v9314
  %v9363 = vpack.c.b16 %v9323, %v9319
  %v9364 = vpack.c.b16 %v9324, %v9320
  %v9365 = vpack.c.b16 %v9325, %v9321
  %v9366 = vpack.c.b16 %v9326, %v9322
  %v9408 = vsel %vm124, %v9196, 0
  %v9411 = vsel %vm124, %v9198, 0
  %v9414 = vsel %vm124, %v9200, 0
  %v9417 = vsel %vm124, %v9202, 0
  %9419 = vmatpush.bf16.msra.mxu0 %v9355
  %9420 = vmatpush.bf16.msra.mxu0 %v9351
  %9421 = vmatpush.bf16.msra.mxu0 %v9347
  %9422 = vmatpush.bf16.msra.mxu0 %v9343
  %9423 = vmatpush.bf16.msra.mxu0 %v9339
  %9424 = vmatpush.bf16.msra.mxu0 %v9335
  %9425 = vmatpush.bf16.msra.mxu0 %v9331
  %9426 = vmatpush.bf16.msra.mxu0 %v9327
  %9427 = vmatmul.bf16.gmra.mxu0 %v9195
  %v9428 = vpop.f32.mrf.mxu0
  %v9429 = vadd.f32 %v9139, %v9428
  %v9430 = vpop.f32.mrf.mxu0
  %v9431 = vadd.f32 %v9143, %v9430
  %9432 = vmatmul.bf16.gmra.mxu0 %v9197
  %v9433 = vpop.f32.mrf.mxu0
  %v9434 = vadd.f32 %v9147, %v9433
  %v9435 = vpop.f32.mrf.mxu0
  %v9436 = vadd.f32 %v9151, %v9435
  %9437 = vmatmul.bf16.gmra.mxu0 %v9199
  %v9438 = vpop.f32.mrf.mxu0
  %v9439 = vadd.f32 %v9155, %v9438
  %v9440 = vpop.f32.mrf.mxu0
  %v9441 = vadd.f32 %v9159, %v9440
  %9442 = vmatmul.bf16.gmra.mxu0 %v9201
  %v9443 = vpop.f32.mrf.mxu0
  %v9444 = vadd.f32 %v9163, %v9443
  %v9445 = vpop.f32.mrf.mxu0
  %v9446 = vadd.f32 %v9167, %v9445
  %9447 = vdwg.mxu0
  %9448 = vmatpush.bf16.msra.mxu0 0
  %9449 = vmatpush.bf16.msra.mxu0 0
  %9450 = vmatpush.bf16.msra.mxu0 0
  %9451 = vmatpush.bf16.msra.mxu0 0
  %9452 = vmatpush.bf16.msra.mxu0 0
  %9453 = vmatpush.bf16.msra.mxu0 0
  %9454 = vmatpush.bf16.msra.mxu0 %v9363
  %9455 = vmatpush.bf16.msra.mxu0 %v9359
  %9456 = vmatmul.bf16.gmra.mxu0 %v9408
  %v9457 = vpop.f32.mrf.mxu0
  %v9458 = vadd.f32 %v9429, %v9457
  %v9459 = vpop.f32.mrf.mxu0
  %v9460 = vadd.f32 %v9431, %v9459
  %9461 = vmatmul.bf16.gmra.mxu0 %v9411
  %v9462 = vpop.f32.mrf.mxu0
  %v9463 = vadd.f32 %v9434, %v9462
  %v9464 = vpop.f32.mrf.mxu0
  %v9465 = vadd.f32 %v9436, %v9464
  %9466 = vmatmul.bf16.gmra.mxu0 %v9414
  %v9467 = vpop.f32.mrf.mxu0
  %v9468 = vadd.f32 %v9439, %v9467
  %v9469 = vpop.f32.mrf.mxu0
  %v9470 = vadd.f32 %v9441, %v9469
  %9471 = vmatmul.bf16.gmra.mxu0 %v9417
  %v9472 = vpop.f32.mrf.mxu0
  %v9473 = vadd.f32 %v9444, %v9472
  %v9474 = vpop.f32.mrf.mxu0
  %v9475 = vadd.f32 %v9446, %v9474
  %9476 = vdwg.mxu0
  %9477 = vmatpush.bf16.msra.mxu0 %v9356
  %9478 = vmatpush.bf16.msra.mxu0 %v9352
  %9479 = vmatpush.bf16.msra.mxu0 %v9348
  %9480 = vmatpush.bf16.msra.mxu0 %v9344
  %9481 = vmatpush.bf16.msra.mxu0 %v9340
  %9482 = vmatpush.bf16.msra.mxu0 %v9336
  %9483 = vmatpush.bf16.msra.mxu0 %v9332
  %9484 = vmatpush.bf16.msra.mxu0 %v9328
  %9485 = vmatmul.bf16.gmra.mxu0 %v9195
  %v9486 = vpop.f32.mrf.mxu0
  %v9487 = vadd.f32 %v9140, %v9486
  %v9488 = vpop.f32.mrf.mxu0
  %v9489 = vadd.f32 %v9144, %v9488
  %9490 = vmatmul.bf16.gmra.mxu0 %v9197
  %v9491 = vpop.f32.mrf.mxu0
  %v9492 = vadd.f32 %v9148, %v9491
  %v9493 = vpop.f32.mrf.mxu0
  %v9494 = vadd.f32 %v9152, %v9493
  %9495 = vmatmul.bf16.gmra.mxu0 %v9199
  %v9496 = vpop.f32.mrf.mxu0
  %v9497 = vadd.f32 %v9156, %v9496
  %v9498 = vpop.f32.mrf.mxu0
  %v9499 = vadd.f32 %v9160, %v9498
  %9500 = vmatmul.bf16.gmra.mxu0 %v9201
  %v9501 = vpop.f32.mrf.mxu0
  %v9502 = vadd.f32 %v9164, %v9501
  %v9503 = vpop.f32.mrf.mxu0
  %v9504 = vadd.f32 %v9168, %v9503
  %9505 = vdwg.mxu0
  %9506 = vmatpush.bf16.msra.mxu0 0
  %9507 = vmatpush.bf16.msra.mxu0 0
  %9508 = vmatpush.bf16.msra.mxu0 0
  %9509 = vmatpush.bf16.msra.mxu0 0
  %9510 = vmatpush.bf16.msra.mxu0 0
  %9511 = vmatpush.bf16.msra.mxu0 0
  %9512 = vmatpush.bf16.msra.mxu0 %v9364
  %9513 = vmatpush.bf16.msra.mxu0 %v9360
  %9514 = vmatmul.bf16.gmra.mxu0 %v9408
  %v9515 = vpop.f32.mrf.mxu0
  %v9516 = vadd.f32 %v9487, %v9515
  %v9517 = vpop.f32.mrf.mxu0
  %v9518 = vadd.f32 %v9489, %v9517
  %9519 = vmatmul.bf16.gmra.mxu0 %v9411
  %v9520 = vpop.f32.mrf.mxu0
  %v9521 = vadd.f32 %v9492, %v9520
  %v9522 = vpop.f32.mrf.mxu0
  %v9523 = vadd.f32 %v9494, %v9522
  %9524 = vmatmul.bf16.gmra.mxu0 %v9414
  %v9525 = vpop.f32.mrf.mxu0
  %v9526 = vadd.f32 %v9497, %v9525
  %v9527 = vpop.f32.mrf.mxu0
  %v9528 = vadd.f32 %v9499, %v9527
  %9529 = vmatmul.bf16.gmra.mxu0 %v9417
  %v9530 = vpop.f32.mrf.mxu0
  %v9531 = vadd.f32 %v9502, %v9530
  %v9532 = vpop.f32.mrf.mxu0
  %v9533 = vadd.f32 %v9504, %v9532
  %9534 = vdwg.mxu0
  %9535 = vmatpush.bf16.msra.mxu0 %v9357
  %9536 = vmatpush.bf16.msra.mxu0 %v9353
  %9537 = vmatpush.bf16.msra.mxu0 %v9349
  %9538 = vmatpush.bf16.msra.mxu0 %v9345
  %9539 = vmatpush.bf16.msra.mxu0 %v9341
  %9540 = vmatpush.bf16.msra.mxu0 %v9337
  %9541 = vmatpush.bf16.msra.mxu0 %v9333
  %9542 = vmatpush.bf16.msra.mxu0 %v9329
  %9543 = vmatmul.bf16.gmra.mxu0 %v9195
  %v9544 = vpop.f32.mrf.mxu0
  %v9545 = vadd.f32 %v9141, %v9544
  %v9546 = vpop.f32.mrf.mxu0
  %v9547 = vadd.f32 %v9145, %v9546
  %9548 = vmatmul.bf16.gmra.mxu0 %v9197
  %v9549 = vpop.f32.mrf.mxu0
  %v9550 = vadd.f32 %v9149, %v9549
  %v9551 = vpop.f32.mrf.mxu0
  %v9552 = vadd.f32 %v9153, %v9551
  %9553 = vmatmul.bf16.gmra.mxu0 %v9199
  %v9554 = vpop.f32.mrf.mxu0
  %v9555 = vadd.f32 %v9157, %v9554
  %v9556 = vpop.f32.mrf.mxu0
  %v9557 = vadd.f32 %v9161, %v9556
  %9558 = vmatmul.bf16.gmra.mxu0 %v9201
  %v9559 = vpop.f32.mrf.mxu0
  %v9560 = vadd.f32 %v9165, %v9559
  %v9561 = vpop.f32.mrf.mxu0
  %v9562 = vadd.f32 %v9169, %v9561
  %9563 = vdwg.mxu0
  %9564 = vmatpush.bf16.msra.mxu0 0
  %9565 = vmatpush.bf16.msra.mxu0 0
  %9566 = vmatpush.bf16.msra.mxu0 0
  %9567 = vmatpush.bf16.msra.mxu0 0
  %9568 = vmatpush.bf16.msra.mxu0 0
  %9569 = vmatpush.bf16.msra.mxu0 0
  %9570 = vmatpush.bf16.msra.mxu0 %v9365
  %9571 = vmatpush.bf16.msra.mxu0 %v9361
  %9572 = vmatmul.bf16.gmra.mxu0 %v9408
  %v9573 = vpop.f32.mrf.mxu0
  %v9574 = vadd.f32 %v9545, %v9573
  %v9575 = vpop.f32.mrf.mxu0
  %v9576 = vadd.f32 %v9547, %v9575
  %9577 = vmatmul.bf16.gmra.mxu0 %v9411
  %v9578 = vpop.f32.mrf.mxu0
  %v9579 = vadd.f32 %v9550, %v9578
  %v9580 = vpop.f32.mrf.mxu0
  %v9581 = vadd.f32 %v9552, %v9580
  %9582 = vmatmul.bf16.gmra.mxu0 %v9414
  %v9583 = vpop.f32.mrf.mxu0
  %v9584 = vadd.f32 %v9555, %v9583
  %v9585 = vpop.f32.mrf.mxu0
  %v9586 = vadd.f32 %v9557, %v9585
  %9587 = vmatmul.bf16.gmra.mxu0 %v9417
  %v9588 = vpop.f32.mrf.mxu0
  %v9589 = vadd.f32 %v9560, %v9588
  %v9590 = vpop.f32.mrf.mxu0
  %v9591 = vadd.f32 %v9562, %v9590
  %9592 = vdwg.mxu0
  %9593 = vmatpush.bf16.msra.mxu0 %v9358
  %9594 = vmatpush.bf16.msra.mxu0 %v9354
  %9595 = vmatpush.bf16.msra.mxu0 %v9350
  %9596 = vmatpush.bf16.msra.mxu0 %v9346
  %9597 = vmatpush.bf16.msra.mxu0 %v9342
  %9598 = vmatpush.bf16.msra.mxu0 %v9338
  %9599 = vmatpush.bf16.msra.mxu0 %v9334
  %9600 = vmatpush.bf16.msra.mxu0 %v9330
  %9601 = vmatmul.bf16.gmra.mxu0 %v9195
  %v9602 = vpop.f32.mrf.mxu0
  %v9603 = vadd.f32 %v9142, %v9602
  %v9604 = vpop.f32.mrf.mxu0
  %v9605 = vadd.f32 %v9146, %v9604
  %9606 = vmatmul.bf16.gmra.mxu0 %v9197
  %v9607 = vpop.f32.mrf.mxu0
  %v9608 = vadd.f32 %v9150, %v9607
  %v9609 = vpop.f32.mrf.mxu0
  %v9610 = vadd.f32 %v9154, %v9609
  %9611 = vmatmul.bf16.gmra.mxu0 %v9199
  %v9612 = vpop.f32.mrf.mxu0
  %v9613 = vadd.f32 %v9158, %v9612
  %v9614 = vpop.f32.mrf.mxu0
  %v9615 = vadd.f32 %v9162, %v9614
  %9616 = vmatmul.bf16.gmra.mxu0 %v9201
  %v9617 = vpop.f32.mrf.mxu0
  %v9618 = vadd.f32 %v9166, %v9617
  %v9619 = vpop.f32.mrf.mxu0
  %v9620 = vadd.f32 %v9170, %v9619
  %9621 = vdwg.mxu0
  %9622 = vmatpush.bf16.msra.mxu0 0
  %9623 = vmatpush.bf16.msra.mxu0 0
  %9624 = vmatpush.bf16.msra.mxu0 0
  %9625 = vmatpush.bf16.msra.mxu0 0
  %9626 = vmatpush.bf16.msra.mxu0 0
  %9627 = vmatpush.bf16.msra.mxu0 0
  %9628 = vmatpush.bf16.msra.mxu0 %v9366
  %9629 = vmatpush.bf16.msra.mxu0 %v9362
  %9630 = vmatmul.bf16.gmra.mxu0 %v9408
  %v9631 = vpop.f32.mrf.mxu0
  %v9632 = vadd.f32 %v9603, %v9631
  %v9633 = vpop.f32.mrf.mxu0
  %v9634 = vadd.f32 %v9605, %v9633
  %9635 = vmatmul.bf16.gmra.mxu0 %v9411
  %v9636 = vpop.f32.mrf.mxu0
  %v9637 = vadd.f32 %v9608, %v9636
  %v9638 = vpop.f32.mrf.mxu0
  %v9639 = vadd.f32 %v9610, %v9638
  %9640 = vmatmul.bf16.gmra.mxu0 %v9414
  %v9641 = vpop.f32.mrf.mxu0
  %v9642 = vadd.f32 %v9613, %v9641
  %v9643 = vpop.f32.mrf.mxu0
  %v9644 = vadd.f32 %v9615, %v9643
  %9645 = vmatmul.bf16.gmra.mxu0 %v9417
  %v9646 = vpop.f32.mrf.mxu0
  %v9647 = vadd.f32 %v9618, %v9646
  %v9648 = vpop.f32.mrf.mxu0
  %v9649 = vadd.f32 %v9620, %v9648
  %9650 = vdwg.mxu0
  %v9651 = vtanh.pop %v9458
  %v9652 = vtanh.pop %v9516
  %v9653 = vtanh.pop %v9574
  %v9654 = vtanh.pop %v9632
  %v9655 = vtanh.pop %v9460
  %v9656 = vtanh.pop %v9518
  %v9657 = vtanh.pop %v9576
  %v9658 = vtanh.pop %v9634
  %v9659 = vtanh.pop %v9463
  %v9660 = vtanh.pop %v9521
  %v9661 = vtanh.pop %v9579
  %v9662 = vtanh.pop %v9637
  %v9663 = vtanh.pop %v9465
  %v9664 = vtanh.pop %v9523
  %v9665 = vtanh.pop %v9581
  %v9666 = vtanh.pop %v9639
  %v9667 = vxor.u32 %v9468, 2147483648
  %v9668 = vxor.u32 %v9526, 2147483648
  %v9669 = vxor.u32 %v9584, 2147483648
  %v9670 = vxor.u32 %v9642, 2147483648
  %v9671 = vxor.u32 %v9470, 2147483648
  %v9672 = vxor.u32 %v9528, 2147483648
  %v9673 = vxor.u32 %v9586, 2147483648
  %v9674 = vxor.u32 %v9644, 2147483648
  %v9675 = vxor.u32 %v9473, 2147483648
  %v9676 = vxor.u32 %v9531, 2147483648
  %v9677 = vxor.u32 %v9589, 2147483648
  %v9678 = vxor.u32 %v9647, 2147483648
  %v9679 = vxor.u32 %v9475, 2147483648
  %v9680 = vxor.u32 %v9533, 2147483648
  %v9681 = vxor.u32 %v9591, 2147483648
  %v9682 = vxor.u32 %v9649, 2147483648
  %v9683 = vmul.f32 %v9667, 1.442695
  %v9684 = vpow.pop %v9683
  %v9685 = vmul.f32 %v9668, 1.442695
  %v9686 = vpow.pop %v9685
  %v9687 = vmul.f32 %v9669, 1.442695
  %v9688 = vpow.pop %v9687
  %v9689 = vmul.f32 %v9670, 1.442695
  %v9690 = vpow.pop %v9689
  %v9691 = vmul.f32 %v9671, 1.442695
  %v9692 = vpow.pop %v9691
  %v9693 = vmul.f32 %v9672, 1.442695
  %v9694 = vpow.pop %v9693
  %v9695 = vmul.f32 %v9673, 1.442695
  %v9696 = vpow.pop %v9695
  %v9697 = vmul.f32 %v9674, 1.442695
  %v9698 = vpow.pop %v9697
  %v9699 = vmul.f32 %v9675, 1.442695
  %v9700 = vpow.pop %v9699
  %v9701 = vmul.f32 %v9676, 1.442695
  %v9702 = vpow.pop %v9701
  %v9703 = vmul.f32 %v9677, 1.442695
  %v9704 = vpow.pop %v9703
  %v9705 = vmul.f32 %v9678, 1.442695
  %v9706 = vpow.pop %v9705
  %v9707 = vmul.f32 %v9679, 1.442695
  %v9708 = vpow.pop %v9707
  %v9709 = vmul.f32 %v9680, 1.442695
  %v9710 = vpow.pop %v9709
  %v9711 = vmul.f32 %v9681, 1.442695
  %v9712 = vpow.pop %v9711
  %v9713 = vmul.f32 %v9682, 1.442695
  %v9714 = vpow.pop %v9713
  %v9715 = vadd.f32 %v9684, 1.0
  %v9716 = vadd.f32 %v9686, 1.0
  %v9717 = vadd.f32 %v9688, 1.0
  %v9718 = vadd.f32 %v9690, 1.0
  %v9719 = vadd.f32 %v9692, 1.0
  %v9720 = vadd.f32 %v9694, 1.0
  %v9721 = vadd.f32 %v9696, 1.0
  %v9722 = vadd.f32 %v9698, 1.0
  %v9723 = vadd.f32 %v9700, 1.0
  %v9724 = vadd.f32 %v9702, 1.0
  %v9725 = vadd.f32 %v9704, 1.0
  %v9726 = vadd.f32 %v9706, 1.0
  %v9727 = vadd.f32 %v9708, 1.0
  %v9728 = vadd.f32 %v9710, 1.0
  %v9729 = vadd.f32 %v9712, 1.0
  %v9730 = vadd.f32 %v9714, 1.0
  %v9731 = vrcp.pop %v9715
  %v9732 = vmul.f32 %v9715, %v9731
  %v9733 = vsub.f32 1.0, %v9732
  %v9734 = vmul.f32 %v9731, %v9733
  %v9735 = vadd.f32 %v9731, %v9734
  %vm9736 = vweird.f32 %v9715
  %vm9737 = vweird.f32 %v9731
  %vm9738 = vmor %vm9736, %vm9737
  %v9739 = vsel %vm9738, %v9731, %v9735
  %v9740 = vand.u32 2147483647, %v9715
  %vm9741 = vcmp.eq.f32.partialorder %v9740, 8.507059e+37
  %v9742 = vand.u32 %v9715, 2147483648
  %v9743 = vor.u32 1.1754944e-38, %v9742
  %v9744 = vsel %vm9741, %v9743, %v9739
  %v9745 = vmul.f32 1.0, %v9744
  %v9746 = vrcp.pop %v9716
  %v9747 = vmul.f32 %v9716, %v9746
  %v9748 = vsub.f32 1.0, %v9747
  %v9749 = vmul.f32 %v9746, %v9748
  %v9750 = vadd.f32 %v9746, %v9749
  %vm9751 = vweird.f32 %v9716
  %vm9752 = vweird.f32 %v9746
  %vm9753 = vmor %vm9751, %vm9752
  %v9754 = vsel %vm9753, %v9746, %v9750
  %v9755 = vand.u32 2147483647, %v9716
  %vm9756 = vcmp.eq.f32.partialorder %v9755, 8.507059e+37
  %v9757 = vand.u32 %v9716, 2147483648
  %v9758 = vor.u32 1.1754944e-38, %v9757
  %v9759 = vsel %vm9756, %v9758, %v9754
  %v9760 = vmul.f32 1.0, %v9759
  %v9761 = vrcp.pop %v9717
  %v9762 = vmul.f32 %v9717, %v9761
  %v9763 = vsub.f32 1.0, %v9762
  %v9764 = vmul.f32 %v9761, %v9763
  %v9765 = vadd.f32 %v9761, %v9764
  %vm9766 = vweird.f32 %v9717
  %vm9767 = vweird.f32 %v9761
  %vm9768 = vmor %vm9766, %vm9767
  %v9769 = vsel %vm9768, %v9761, %v9765
  %v9770 = vand.u32 2147483647, %v9717
  %vm9771 = vcmp.eq.f32.partialorder %v9770, 8.507059e+37
  %v9772 = vand.u32 %v9717, 2147483648
  %v9773 = vor.u32 1.1754944e-38, %v9772
  %v9774 = vsel %vm9771, %v9773, %v9769
  %v9775 = vmul.f32 1.0, %v9774
  %v9776 = vrcp.pop %v9718
  %v9777 = vmul.f32 %v9718, %v9776
  %v9778 = vsub.f32 1.0, %v9777
  %v9779 = vmul.f32 %v9776, %v9778
  %v9780 = vadd.f32 %v9776, %v9779
  %vm9781 = vweird.f32 %v9718
  %vm9782 = vweird.f32 %v9776
  %vm9783 = vmor %vm9781, %vm9782
  %v9784 = vsel %vm9783, %v9776, %v9780
  %v9785 = vand.u32 2147483647, %v9718
  %vm9786 = vcmp.eq.f32.partialorder %v9785, 8.507059e+37
  %v9787 = vand.u32 %v9718, 2147483648
  %v9788 = vor.u32 1.1754944e-38, %v9787
  %v9789 = vsel %vm9786, %v9788, %v9784
  %v9790 = vmul.f32 1.0, %v9789
  %v9791 = vrcp.pop %v9719
  %v9792 = vmul.f32 %v9719, %v9791
  %v9793 = vsub.f32 1.0, %v9792
  %v9794 = vmul.f32 %v9791, %v9793
  %v9795 = vadd.f32 %v9791, %v9794
  %vm9796 = vweird.f32 %v9719
  %vm9797 = vweird.f32 %v9791
  %vm9798 = vmor %vm9796, %vm9797
  %v9799 = vsel %vm9798, %v9791, %v9795
  %v9800 = vand.u32 2147483647, %v9719
  %vm9801 = vcmp.eq.f32.partialorder %v9800, 8.507059e+37
  %v9802 = vand.u32 %v9719, 2147483648
  %v9803 = vor.u32 1.1754944e-38, %v9802
  %v9804 = vsel %vm9801, %v9803, %v9799
  %v9805 = vmul.f32 1.0, %v9804
  %v9806 = vrcp.pop %v9720
  %v9807 = vmul.f32 %v9720, %v9806
  %v9808 = vsub.f32 1.0, %v9807
  %v9809 = vmul.f32 %v9806, %v9808
  %v9810 = vadd.f32 %v9806, %v9809
  %vm9811 = vweird.f32 %v9720
  %vm9812 = vweird.f32 %v9806
  %vm9813 = vmor %vm9811, %vm9812
  %v9814 = vsel %vm9813, %v9806, %v9810
  %v9815 = vand.u32 2147483647, %v9720
  %vm9816 = vcmp.eq.f32.partialorder %v9815, 8.507059e+37
  %v9817 = vand.u32 %v9720, 2147483648
  %v9818 = vor.u32 1.1754944e-38, %v9817
  %v9819 = vsel %vm9816, %v9818, %v9814
  %v9820 = vmul.f32 1.0, %v9819
  %v9821 = vrcp.pop %v9721
  %v9822 = vmul.f32 %v9721, %v9821
  %v9823 = vsub.f32 1.0, %v9822
  %v9824 = vmul.f32 %v9821, %v9823
  %v9825 = vadd.f32 %v9821, %v9824
  %vm9826 = vweird.f32 %v9721
  %vm9827 = vweird.f32 %v9821
  %vm9828 = vmor %vm9826, %vm9827
  %v9829 = vsel %vm9828, %v9821, %v9825
  %v9830 = vand.u32 2147483647, %v9721
  %vm9831 = vcmp.eq.f32.partialorder %v9830, 8.507059e+37
  %v9832 = vand.u32 %v9721, 2147483648
  %v9833 = vor.u32 1.1754944e-38, %v9832
  %v9834 = vsel %vm9831, %v9833, %v9829
  %v9835 = vmul.f32 1.0, %v9834
  %v9836 = vrcp.pop %v9722
  %v9837 = vmul.f32 %v9722, %v9836
  %v9838 = vsub.f32 1.0, %v9837
  %v9839 = vmul.f32 %v9836, %v9838
  %v9840 = vadd.f32 %v9836, %v9839
  %vm9841 = vweird.f32 %v9722
  %vm9842 = vweird.f32 %v9836
  %vm9843 = vmor %vm9841, %vm9842
  %v9844 = vsel %vm9843, %v9836, %v9840
  %v9845 = vand.u32 2147483647, %v9722
  %vm9846 = vcmp.eq.f32.partialorder %v9845, 8.507059e+37
  %v9847 = vand.u32 %v9722, 2147483648
  %v9848 = vor.u32 1.1754944e-38, %v9847
  %v9849 = vsel %vm9846, %v9848, %v9844
  %v9850 = vmul.f32 1.0, %v9849
  %v9851 = vrcp.pop %v9723
  %v9852 = vmul.f32 %v9723, %v9851
  %v9853 = vsub.f32 1.0, %v9852
  %v9854 = vmul.f32 %v9851, %v9853
  %v9855 = vadd.f32 %v9851, %v9854
  %vm9856 = vweird.f32 %v9723
  %vm9857 = vweird.f32 %v9851
  %vm9858 = vmor %vm9856, %vm9857
  %v9859 = vsel %vm9858, %v9851, %v9855
  %v9860 = vand.u32 2147483647, %v9723
  %vm9861 = vcmp.eq.f32.partialorder %v9860, 8.507059e+37
  %v9862 = vand.u32 %v9723, 2147483648
  %v9863 = vor.u32 1.1754944e-38, %v9862
  %v9864 = vsel %vm9861, %v9863, %v9859
  %v9865 = vmul.f32 1.0, %v9864
  %v9866 = vrcp.pop %v9724
  %v9867 = vmul.f32 %v9724, %v9866
  %v9868 = vsub.f32 1.0, %v9867
  %v9869 = vmul.f32 %v9866, %v9868
  %v9870 = vadd.f32 %v9866, %v9869
  %vm9871 = vweird.f32 %v9724
  %vm9872 = vweird.f32 %v9866
  %vm9873 = vmor %vm9871, %vm9872
  %v9874 = vsel %vm9873, %v9866, %v9870
  %v9875 = vand.u32 2147483647, %v9724
  %vm9876 = vcmp.eq.f32.partialorder %v9875, 8.507059e+37
  %v9877 = vand.u32 %v9724, 2147483648
  %v9878 = vor.u32 1.1754944e-38, %v9877
  %v9879 = vsel %vm9876, %v9878, %v9874
  %v9880 = vmul.f32 1.0, %v9879
  %v9881 = vrcp.pop %v9725
  %v9882 = vmul.f32 %v9725, %v9881
  %v9883 = vsub.f32 1.0, %v9882
  %v9884 = vmul.f32 %v9881, %v9883
  %v9885 = vadd.f32 %v9881, %v9884
  %vm9886 = vweird.f32 %v9725
  %vm9887 = vweird.f32 %v9881
  %vm9888 = vmor %vm9886, %vm9887
  %v9889 = vsel %vm9888, %v9881, %v9885
  %v9890 = vand.u32 2147483647, %v9725
  %vm9891 = vcmp.eq.f32.partialorder %v9890, 8.507059e+37
  %v9892 = vand.u32 %v9725, 2147483648
  %v9893 = vor.u32 1.1754944e-38, %v9892
  %v9894 = vsel %vm9891, %v9893, %v9889
  %v9895 = vmul.f32 1.0, %v9894
  %v9896 = vrcp.pop %v9726
  %v9897 = vmul.f32 %v9726, %v9896
  %v9898 = vsub.f32 1.0, %v9897
  %v9899 = vmul.f32 %v9896, %v9898
  %v9900 = vadd.f32 %v9896, %v9899
  %vm9901 = vweird.f32 %v9726
  %vm9902 = vweird.f32 %v9896
  %vm9903 = vmor %vm9901, %vm9902
  %v9904 = vsel %vm9903, %v9896, %v9900
  %v9905 = vand.u32 2147483647, %v9726
  %vm9906 = vcmp.eq.f32.partialorder %v9905, 8.507059e+37
  %v9907 = vand.u32 %v9726, 2147483648
  %v9908 = vor.u32 1.1754944e-38, %v9907
  %v9909 = vsel %vm9906, %v9908, %v9904
  %v9910 = vmul.f32 1.0, %v9909
  %v9911 = vrcp.pop %v9727
  %v9912 = vmul.f32 %v9727, %v9911
  %v9913 = vsub.f32 1.0, %v9912
  %v9914 = vmul.f32 %v9911, %v9913
  %v9915 = vadd.f32 %v9911, %v9914
  %vm9916 = vweird.f32 %v9727
  %vm9917 = vweird.f32 %v9911
  %vm9918 = vmor %vm9916, %vm9917
  %v9919 = vsel %vm9918, %v9911, %v9915
  %v9920 = vand.u32 2147483647, %v9727
  %vm9921 = vcmp.eq.f32.partialorder %v9920, 8.507059e+37
  %v9922 = vand.u32 %v9727, 2147483648
  %v9923 = vor.u32 1.1754944e-38, %v9922
  %v9924 = vsel %vm9921, %v9923, %v9919
  %v9925 = vmul.f32 1.0, %v9924
  %v9926 = vrcp.pop %v9728
  %v9927 = vmul.f32 %v9728, %v9926
  %v9928 = vsub.f32 1.0, %v9927
  %v9929 = vmul.f32 %v9926, %v9928
  %v9930 = vadd.f32 %v9926, %v9929
  %vm9931 = vweird.f32 %v9728
  %vm9932 = vweird.f32 %v9926
  %vm9933 = vmor %vm9931, %vm9932
  %v9934 = vsel %vm9933, %v9926, %v9930
  %v9935 = vand.u32 2147483647, %v9728
  %vm9936 = vcmp.eq.f32.partialorder %v9935, 8.507059e+37
  %v9937 = vand.u32 %v9728, 2147483648
  %v9938 = vor.u32 1.1754944e-38, %v9937
  %v9939 = vsel %vm9936, %v9938, %v9934
  %v9940 = vmul.f32 1.0, %v9939
  %v9941 = vrcp.pop %v9729
  %v9942 = vmul.f32 %v9729, %v9941
  %v9943 = vsub.f32 1.0, %v9942
  %v9944 = vmul.f32 %v9941, %v9943
  %v9945 = vadd.f32 %v9941, %v9944
  %vm9946 = vweird.f32 %v9729
  %vm9947 = vweird.f32 %v9941
  %vm9948 = vmor %vm9946, %vm9947
  %v9949 = vsel %vm9948, %v9941, %v9945
  %v9950 = vand.u32 2147483647, %v9729
  %vm9951 = vcmp.eq.f32.partialorder %v9950, 8.507059e+37
  %v9952 = vand.u32 %v9729, 2147483648
  %v9953 = vor.u32 1.1754944e-38, %v9952
  %v9954 = vsel %vm9951, %v9953, %v9949
  %v9955 = vmul.f32 1.0, %v9954
  %v9956 = vrcp.pop %v9730
  %v9957 = vmul.f32 %v9730, %v9956
  %v9958 = vsub.f32 1.0, %v9957
  %v9959 = vmul.f32 %v9956, %v9958
  %v9960 = vadd.f32 %v9956, %v9959
  %vm9961 = vweird.f32 %v9730
  %vm9962 = vweird.f32 %v9956
  %vm9963 = vmor %vm9961, %vm9962
  %v9964 = vsel %vm9963, %v9956, %v9960
  %v9965 = vand.u32 2147483647, %v9730
  %vm9966 = vcmp.eq.f32.partialorder %v9965, 8.507059e+37
  %v9967 = vand.u32 %v9730, 2147483648
  %v9968 = vor.u32 1.1754944e-38, %v9967
  %v9969 = vsel %vm9966, %v9968, %v9964
  %v9970 = vmul.f32 1.0, %v9969
  %v9971 = vmul.f32 %v9651, %v9745
  %v9972 = vmul.f32 %v9652, %v9760
  %v9973 = vmul.f32 %v9653, %v9775
  %v9974 = vmul.f32 %v9654, %v9790
  %v9975 = vmul.f32 %v9655, %v9805
  %v9976 = vmul.f32 %v9656, %v9820
  %v9977 = vmul.f32 %v9657, %v9835
  %v9978 = vmul.f32 %v9658, %v9850
  %v9979 = vmul.f32 %v9659, %v9865
  %v9980 = vmul.f32 %v9660, %v9880
  %v9981 = vmul.f32 %v9661, %v9895
  %v9982 = vmul.f32 %v9662, %v9910
  %v9983 = vmul.f32 %v9663, %v9925
  %v9984 = vmul.f32 %v9664, %v9940
  %v9985 = vmul.f32 %v9665, %v9955
  %v9986 = vmul.f32 %v9666, %v9970
  %v9987 = vpack.c.bf16 %v9975, %v9971
  %v9988 = vpack.c.bf16 %v9976, %v9972
  %v9989 = vpack.c.bf16 %v9977, %v9973
  %v9990 = vpack.c.bf16 %v9978, %v9974
  %v9991 = vpack.c.bf16 %v9983, %v9979
  %v9992 = vpack.c.bf16 %v9984, %v9980
  %v9993 = vpack.c.bf16 %v9985, %v9981
  %v9994 = vpack.c.bf16 %v9986, %v9982
  %s9995 = scalar_lea.vmem %s6, 192
  %v9996 = vld [vmem:[%s9995] sm:$0xf]
  %v9997 = vld [vmem:[%s9995 + $0x4] sm:$0xf]
  %v9998 = vld [vmem:[%s9995 + $0x8] sm:$0xf]
  %v9999 = vld [vmem:[%s9995 + $0xc] sm:$0xf]
  %v10000 = vld [vmem:[%s9995 + $0x10] sm:$0xf]
  %v10001 = vld [vmem:[%s9995 + $0x14] sm:$0xf]
  %v10002 = vld [vmem:[%s9995 + $0x18] sm:$0xf]
  %v10003 = vld [vmem:[%s9995 + $0x1c] sm:$0xf]
  %s10004 = scalar_lea.vmem %s7, 384
  %v10005 = vld [vmem:[%s10004] sm:$0xff]
  %v10006 = vld [vmem:[%s10004 + $0x8] sm:$0xff]
  %v10007 = vld [vmem:[%s10004 + $0x10] sm:$0xff]
  %v10008 = vld [vmem:[%s10004 + $0x18] sm:$0xff]
  %v10009 = vld [vmem:[%s10004 + $0x20] sm:$0xff]
  %v10010 = vld [vmem:[%s10004 + $0x28] sm:$0xff]
  %v10011 = vld [vmem:[%s10004 + $0x30] sm:$0xff]
  %v10012 = vld [vmem:[%s10004 + $0x38] sm:$0xff]
  %10014 = vset.pattern.permute.xlu0 0
  %10015 = vperm.xlu0 %10014, %v10005
  %v10016 = vpop.permute.xlu0 %10015
  %10019 = vset.pattern.permute.xlu0 0
  %10020 = vperm.xlu0 %10019, %v10006
  %v10021 = vpop.permute.xlu0 %10020
  %10024 = vset.pattern.permute.xlu0 0
  %10025 = vperm.xlu0 %10024, %v10007
  %v10026 = vpop.permute.xlu0 %10025
  %10029 = vset.pattern.permute.xlu0 0
  %10030 = vperm.xlu0 %10029, %v10008
  %v10031 = vpop.permute.xlu0 %10030
  %10034 = vset.pattern.permute.xlu0 0
  %10035 = vperm.xlu0 %10034, %v10009
  %v10036 = vpop.permute.xlu0 %10035
  %10039 = vset.pattern.permute.xlu0 0
  %10040 = vperm.xlu0 %10039, %v10010
  %v10041 = vpop.permute.xlu0 %10040
  %10044 = vset.pattern.permute.xlu0 0
  %10045 = vperm.xlu0 %10044, %v10011
  %v10046 = vpop.permute.xlu0 %10045
  %10049 = vset.pattern.permute.xlu0 0
  %10050 = vperm.xlu0 %10049, %v10012
  %v10051 = vpop.permute.xlu0 %10050
  %v10061 = vunpack.c.l.b16 %v9996
  %v10062 = vunpack.c.l.b16 %v9997
  %v10063 = vunpack.c.l.b16 %v9998
  %v10064 = vunpack.c.l.b16 %v9999
  %v10065 = vunpack.c.l.b16 %v10000
  %v10066 = vunpack.c.l.b16 %v10001
  %v10067 = vunpack.c.l.b16 %v10002
  %v10068 = vunpack.c.l.b16 %v10003
  %v10069 = vpack.c.b16 %v10062, %v10061
  %v10070 = vpack.c.b16 %v10064, %v10063
  %v10071 = vpack.c.b16 %v10066, %v10065
  %v10072 = vpack.c.b16 %v10068, %v10067
  %v10074 = vsel %vm124, %v10069, 0
  %v10077 = vsel %vm124, %v10070, 0
  %v10080 = vsel %vm124, %v10071, 0
  %v10083 = vsel %vm124, %v10072, 0
  %10085 = vmatpush.bf16.msra.mxu0 0
  %10086 = vmatpush.bf16.msra.mxu0 0
  %10087 = vmatpush.bf16.msra.mxu0 0
  %10088 = vmatpush.bf16.msra.mxu0 0
  %10089 = vmatpush.bf16.msra.mxu0 0
  %10090 = vmatpush.bf16.msra.mxu0 0
  %10091 = vmatpush.bf16.msra.mxu0 %v9991
  %10092 = vmatpush.bf16.msra.mxu0 %v9987
  %10093 = vmatmul.bf16.gmra.mxu0 %v10074
  %v10094 = vpop.f32.mrf.mxu0
  %v10095 = vadd.f32 %v10016, %v10094
  %v10096 = vpop.f32.mrf.mxu0
  %v10097 = vadd.f32 %v10021, %v10096
  %10098 = vmatmul.bf16.gmra.mxu0 %v10077
  %v10099 = vpop.f32.mrf.mxu0
  %v10100 = vadd.f32 %v10026, %v10099
  %v10101 = vpop.f32.mrf.mxu0
  %v10102 = vadd.f32 %v10031, %v10101
  %10103 = vmatmul.bf16.gmra.mxu0 %v10080
  %v10104 = vpop.f32.mrf.mxu0
  %v10105 = vadd.f32 %v10036, %v10104
  %v10106 = vpop.f32.mrf.mxu0
  %v10107 = vadd.f32 %v10041, %v10106
  %10108 = vmatmul.bf16.gmra.mxu0 %v10083
  %v10109 = vpop.f32.mrf.mxu0
  %v10110 = vadd.f32 %v10046, %v10109
  %v10111 = vpop.f32.mrf.mxu0
  %v10112 = vadd.f32 %v10051, %v10111
  %10113 = vdwg.mxu0
  %10114 = vmatpush.bf16.msra.mxu0 0
  %10115 = vmatpush.bf16.msra.mxu0 0
  %10116 = vmatpush.bf16.msra.mxu0 0
  %10117 = vmatpush.bf16.msra.mxu0 0
  %10118 = vmatpush.bf16.msra.mxu0 0
  %10119 = vmatpush.bf16.msra.mxu0 0
  %10120 = vmatpush.bf16.msra.mxu0 %v9992
  %10121 = vmatpush.bf16.msra.mxu0 %v9988
  %10122 = vmatmul.bf16.gmra.mxu0 %v10074
  %v10123 = vpop.f32.mrf.mxu0
  %v10124 = vadd.f32 %v10016, %v10123
  %v10125 = vpop.f32.mrf.mxu0
  %v10126 = vadd.f32 %v10021, %v10125
  %10127 = vmatmul.bf16.gmra.mxu0 %v10077
  %v10128 = vpop.f32.mrf.mxu0
  %v10129 = vadd.f32 %v10026, %v10128
  %v10130 = vpop.f32.mrf.mxu0
  %v10131 = vadd.f32 %v10031, %v10130
  %10132 = vmatmul.bf16.gmra.mxu0 %v10080
  %v10133 = vpop.f32.mrf.mxu0
  %v10134 = vadd.f32 %v10036, %v10133
  %v10135 = vpop.f32.mrf.mxu0
  %v10136 = vadd.f32 %v10041, %v10135
  %10137 = vmatmul.bf16.gmra.mxu0 %v10083
  %v10138 = vpop.f32.mrf.mxu0
  %v10139 = vadd.f32 %v10046, %v10138
  %v10140 = vpop.f32.mrf.mxu0
  %v10141 = vadd.f32 %v10051, %v10140
  %10142 = vdwg.mxu0
  %10143 = vmatpush.bf16.msra.mxu0 0
  %10144 = vmatpush.bf16.msra.mxu0 0
  %10145 = vmatpush.bf16.msra.mxu0 0
  %10146 = vmatpush.bf16.msra.mxu0 0
  %10147 = vmatpush.bf16.msra.mxu0 0
  %10148 = vmatpush.bf16.msra.mxu0 0
  %10149 = vmatpush.bf16.msra.mxu0 %v9993
  %10150 = vmatpush.bf16.msra.mxu0 %v9989
  %10151 = vmatmul.bf16.gmra.mxu0 %v10074
  %v10152 = vpop.f32.mrf.mxu0
  %v10153 = vadd.f32 %v10016, %v10152
  %v10154 = vpop.f32.mrf.mxu0
  %v10155 = vadd.f32 %v10021, %v10154
  %10156 = vmatmul.bf16.gmra.mxu0 %v10077
  %v10157 = vpop.f32.mrf.mxu0
  %v10158 = vadd.f32 %v10026, %v10157
  %v10159 = vpop.f32.mrf.mxu0
  %v10160 = vadd.f32 %v10031, %v10159
  %10161 = vmatmul.bf16.gmra.mxu0 %v10080
  %v10162 = vpop.f32.mrf.mxu0
  %v10163 = vadd.f32 %v10036, %v10162
  %v10164 = vpop.f32.mrf.mxu0
  %v10165 = vadd.f32 %v10041, %v10164
  %10166 = vmatmul.bf16.gmra.mxu0 %v10083
  %v10167 = vpop.f32.mrf.mxu0
  %v10168 = vadd.f32 %v10046, %v10167
  %v10169 = vpop.f32.mrf.mxu0
  %v10170 = vadd.f32 %v10051, %v10169
  %10171 = vdwg.mxu0
  %10172 = vmatpush.bf16.msra.mxu0 0
  %10173 = vmatpush.bf16.msra.mxu0 0
  %10174 = vmatpush.bf16.msra.mxu0 0
  %10175 = vmatpush.bf16.msra.mxu0 0
  %10176 = vmatpush.bf16.msra.mxu0 0
  %10177 = vmatpush.bf16.msra.mxu0 0
  %10178 = vmatpush.bf16.msra.mxu0 %v9994
  %10179 = vmatpush.bf16.msra.mxu0 %v9990
  %10180 = vmatmul.bf16.gmra.mxu0 %v10074
  %v10181 = vpop.f32.mrf.mxu0
  %v10182 = vadd.f32 %v10016, %v10181
  %v10183 = vpop.f32.mrf.mxu0
  %v10184 = vadd.f32 %v10021, %v10183
  %10185 = vmatmul.bf16.gmra.mxu0 %v10077
  %v10186 = vpop.f32.mrf.mxu0
  %v10187 = vadd.f32 %v10026, %v10186
  %v10188 = vpop.f32.mrf.mxu0
  %v10189 = vadd.f32 %v10031, %v10188
  %10190 = vmatmul.bf16.gmra.mxu0 %v10080
  %v10191 = vpop.f32.mrf.mxu0
  %v10192 = vadd.f32 %v10036, %v10191
  %v10193 = vpop.f32.mrf.mxu0
  %v10194 = vadd.f32 %v10041, %v10193
  %10195 = vmatmul.bf16.gmra.mxu0 %v10083
  %v10196 = vpop.f32.mrf.mxu0
  %v10197 = vadd.f32 %v10046, %v10196
  %v10198 = vpop.f32.mrf.mxu0
  %v10199 = vadd.f32 %v10051, %v10198
  %10200 = vdwg.mxu0
  %v10201 = vadd.f32 %v8785, %v10095
  %v10202 = vadd.f32 %v8786, %v10124
  %v10203 = vadd.f32 %v8787, %v10153
  %v10204 = vadd.f32 %v8788, %v10182
  %v10205 = vadd.f32 %v8789, %v10097
  %v10206 = vadd.f32 %v8790, %v10126
  %v10207 = vadd.f32 %v8791, %v10155
  %v10208 = vadd.f32 %v8792, %v10184
  %v10209 = vadd.f32 %v8793, %v10100
  %v10210 = vadd.f32 %v8794, %v10129
  %v10211 = vadd.f32 %v8795, %v10158
  %v10212 = vadd.f32 %v8796, %v10187
  %v10213 = vadd.f32 %v8797, %v10102
  %v10214 = vadd.f32 %v8798, %v10131
  %v10215 = vadd.f32 %v8799, %v10160
  %v10216 = vadd.f32 %v8800, %v10189
  %v10217 = vmul.f32 %v10201, %v58
  %v10218 = vmul.f32 %v10202, %v59
  %v10219 = vmul.f32 %v10203, %v60
  %v10220 = vmul.f32 %v10204, %v61
  %v10221 = vmul.f32 %v10205, %v58
  %v10222 = vmul.f32 %v10206, %v59
  %v10223 = vmul.f32 %v10207, %v60
  %v10224 = vmul.f32 %v10208, %v61
  %v10225 = vmul.f32 %v10209, %v58
  %v10226 = vmul.f32 %v10210, %v59
  %v10227 = vmul.f32 %v10211, %v60
  %v10228 = vmul.f32 %v10212, %v61
  %v10229 = vmul.f32 %v10213, %v58
  %v10230 = vmul.f32 %v10214, %v59
  %v10231 = vmul.f32 %v10215, %v60
  %v10232 = vmul.f32 %v10216, %v61
  %v10233 = vadd.f32 %v8801, %v10105
  %v10234 = vadd.f32 %v8802, %v10134
  %v10235 = vadd.f32 %v8803, %v10163
  %v10236 = vadd.f32 %v8804, %v10192
  %v10237 = vadd.f32 %v8805, %v10107
  %v10238 = vadd.f32 %v8806, %v10136
  %v10239 = vadd.f32 %v8807, %v10165
  %v10240 = vadd.f32 %v8808, %v10194
  %v10241 = vadd.f32 %v8809, %v10110
  %v10242 = vadd.f32 %v8810, %v10139
  %v10243 = vadd.f32 %v8811, %v10168
  %v10244 = vadd.f32 %v8812, %v10197
  %v10245 = vadd.f32 %v8813, %v10112
  %v10246 = vadd.f32 %v8814, %v10141
  %v10247 = vadd.f32 %v8815, %v10170
  %v10248 = vadd.f32 %v8816, %v10199
  %10249 = vrot.lane.b32.xlu0 %v10217, 2
  %v10250 = vpop.permute.xlu0 %10249
  %10251 = vrot.lane.b32.xlu0 %v10221, 2
  %v10252 = vpop.permute.xlu0 %10251
  %10253 = vrot.lane.b32.xlu0 %v10225, 2
  %v10254 = vpop.permute.xlu0 %10253
  %10255 = vrot.lane.b32.xlu0 %v10229, 2
  %v10256 = vpop.permute.xlu0 %10255
  %10257 = vrot.lane.b32.xlu0 %v10218, 2
  %v10258 = vpop.permute.xlu0 %10257
  %10259 = vrot.lane.b32.xlu0 %v10222, 2
  %v10260 = vpop.permute.xlu0 %10259
  %10261 = vrot.lane.b32.xlu0 %v10226, 2
  %v10262 = vpop.permute.xlu0 %10261
  %10263 = vrot.lane.b32.xlu0 %v10230, 2
  %v10264 = vpop.permute.xlu0 %10263
  %10265 = vrot.lane.b32.xlu0 %v10219, 2
  %v10266 = vpop.permute.xlu0 %10265
  %10267 = vrot.lane.b32.xlu0 %v10223, 2
  %v10268 = vpop.permute.xlu0 %10267
  %10269 = vrot.lane.b32.xlu0 %v10227, 2
  %v10270 = vpop.permute.xlu0 %10269
  %10271 = vrot.lane.b32.xlu0 %v10231, 2
  %v10272 = vpop.permute.xlu0 %10271
  %10273 = vrot.lane.b32.xlu0 %v10220, 2
  %v10274 = vpop.permute.xlu0 %10273
  %10275 = vrot.lane.b32.xlu0 %v10224, 2
  %v10276 = vpop.permute.xlu0 %10275
  %10277 = vrot.lane.b32.xlu0 %v10228, 2
  %v10278 = vpop.permute.xlu0 %10277
  %10279 = vrot.lane.b32.xlu0 %v10232, 2
  %v10280 = vpop.permute.xlu0 %10279
  %v10281 = vsel %vm257, %v10266, %v10274
  %v10282 = vsel %vm257, %v10268, %v10276
  %v10283 = vsel %vm257, %v10270, %v10278
  %v10284 = vsel %vm257, %v10272, %v10280
  %v10285 = vsel %vm257, %v10258, %v10266
  %v10286 = vsel %vm257, %v10260, %v10268
  %v10287 = vsel %vm257, %v10262, %v10270
  %v10288 = vsel %vm257, %v10264, %v10272
  %v10289 = vsel %vm257, %v10250, %v10258
  %v10290 = vsel %vm257, %v10252, %v10260
  %v10291 = vsel %vm257, %v10254, %v10262
  %v10292 = vsel %vm257, %v10256, %v10264
  %v10293 = vsel %vm257, %v10274, %v10250
  %v10294 = vsel %vm257, %v10276, %v10252
  %v10295 = vsel %vm257, %v10278, %v10254
  %v10296 = vsel %vm257, %v10280, %v10256
  %v10297 = vpack.c.bf16 %v10289, %v10293
  %v10298 = vpack.c.bf16 %v10281, %v10285
  %v10299 = vpack.c.bf16 %v10290, %v10294
  %v10300 = vpack.c.bf16 %v10282, %v10286
  %v10301 = vpack.c.bf16 %v10291, %v10295
  %v10302 = vpack.c.bf16 %v10283, %v10287
  %v10303 = vpack.c.bf16 %v10292, %v10296
  %v10304 = vpack.c.bf16 %v10284, %v10288
  %10305 = vst [vmem:[#allocation2] sm:$0xff] %v10297
  %10306 = vst [vmem:[#allocation2 + $0x8] sm:$0xff] %v10298
  %10307 = vst [vmem:[#allocation2 + $0x10] sm:$0xff] %v10299
  %10308 = vst [vmem:[#allocation2 + $0x18] sm:$0xff] %v10300
  %10309 = vst [vmem:[#allocation2 + $0x20] sm:$0xff] %v10301
  %10310 = vst [vmem:[#allocation2 + $0x28] sm:$0xff] %v10302
  %10311 = vst [vmem:[#allocation2 + $0x30] sm:$0xff] %v10303
  %10312 = vst [vmem:[#allocation2 + $0x38] sm:$0xff] %v10304
  %10313 = vrot.lane.b32.xlu0 %v10217, 1
  %v10314 = vpop.permute.xlu0 %10313
  %10315 = vrot.lane.b32.xlu0 %v10221, 1
  %v10316 = vpop.permute.xlu0 %10315
  %10317 = vrot.lane.b32.xlu0 %v10225, 1
  %v10318 = vpop.permute.xlu0 %10317
  %10319 = vrot.lane.b32.xlu0 %v10229, 1
  %v10320 = vpop.permute.xlu0 %10319
  %10321 = vrot.lane.b32.xlu0 %v10218, 1
  %v10322 = vpop.permute.xlu0 %10321
  %10323 = vrot.lane.b32.xlu0 %v10222, 1
  %v10324 = vpop.permute.xlu0 %10323
  %10325 = vrot.lane.b32.xlu0 %v10226, 1
  %v10326 = vpop.permute.xlu0 %10325
  %10327 = vrot.lane.b32.xlu0 %v10230, 1
  %v10328 = vpop.permute.xlu0 %10327
  %10329 = vrot.lane.b32.xlu0 %v10219, 1
  %v10330 = vpop.permute.xlu0 %10329
  %10331 = vrot.lane.b32.xlu0 %v10223, 1
  %v10332 = vpop.permute.xlu0 %10331
  %10333 = vrot.lane.b32.xlu0 %v10227, 1
  %v10334 = vpop.permute.xlu0 %10333
  %10335 = vrot.lane.b32.xlu0 %v10231, 1
  %v10336 = vpop.permute.xlu0 %10335
  %10337 = vrot.lane.b32.xlu0 %v10220, 1
  %v10338 = vpop.permute.xlu0 %10337
  %10339 = vrot.lane.b32.xlu0 %v10224, 1
  %v10340 = vpop.permute.xlu0 %10339
  %10341 = vrot.lane.b32.xlu0 %v10228, 1
  %v10342 = vpop.permute.xlu0 %10341
  %10343 = vrot.lane.b32.xlu0 %v10232, 1
  %v10344 = vpop.permute.xlu0 %10343
  %v10345 = vsel %vm322, %v10330, %v10338
  %v10346 = vsel %vm322, %v10332, %v10340
  %v10347 = vsel %vm322, %v10334, %v10342
  %v10348 = vsel %vm322, %v10336, %v10344
  %v10349 = vsel %vm322, %v10322, %v10330
  %v10350 = vsel %vm322, %v10324, %v10332
  %v10351 = vsel %vm322, %v10326, %v10334
  %v10352 = vsel %vm322, %v10328, %v10336
  %v10353 = vsel %vm322, %v10314, %v10322
  %v10354 = vsel %vm322, %v10316, %v10324
  %v10355 = vsel %vm322, %v10318, %v10326
  %v10356 = vsel %vm322, %v10320, %v10328
  %v10357 = vsel %vm322, %v10338, %v10314
  %v10358 = vsel %vm322, %v10340, %v10316
  %v10359 = vsel %vm322, %v10342, %v10318
  %v10360 = vsel %vm322, %v10344, %v10320
  %v10361 = vpack.c.bf16 %v10353, %v10357
  %v10362 = vpack.c.bf16 %v10345, %v10349
  %v10363 = vpack.c.bf16 %v10354, %v10358
  %v10364 = vpack.c.bf16 %v10346, %v10350
  %v10365 = vpack.c.bf16 %v10355, %v10359
  %v10366 = vpack.c.bf16 %v10347, %v10351
  %v10367 = vpack.c.bf16 %v10356, %v10360
  %v10368 = vpack.c.bf16 %v10348, %v10352
  %10369 = vst [vmem:[#allocation2 + $0x40] sm:$0xff] %v10361
  %10370 = vst [vmem:[#allocation2 + $0x48] sm:$0xff] %v10362
  %10371 = vst [vmem:[#allocation2 + $0x50] sm:$0xff] %v10363
  %10372 = vst [vmem:[#allocation2 + $0x58] sm:$0xff] %v10364
  %10373 = vst [vmem:[#allocation2 + $0x60] sm:$0xff] %v10365
  %10374 = vst [vmem:[#allocation2 + $0x68] sm:$0xff] %v10366
  %10375 = vst [vmem:[#allocation2 + $0x70] sm:$0xff] %v10367
  %10376 = vst [vmem:[#allocation2 + $0x78] sm:$0xff] %v10368
  %v10377 = vpack.c.bf16 %v10218, %v10217
  %v10378 = vpack.c.bf16 %v10220, %v10219
  %v10379 = vpack.c.bf16 %v10222, %v10221
  %v10380 = vpack.c.bf16 %v10224, %v10223
  %v10381 = vpack.c.bf16 %v10226, %v10225
  %v10382 = vpack.c.bf16 %v10228, %v10227
  %v10383 = vpack.c.bf16 %v10230, %v10229
  %v10384 = vpack.c.bf16 %v10232, %v10231
  %10385 = vst [vmem:[#allocation2 + $0x80] sm:$0xff] %v10377
  %10386 = vst [vmem:[#allocation2 + $0x88] sm:$0xff] %v10378
  %10387 = vst [vmem:[#allocation2 + $0x90] sm:$0xff] %v10379
  %10388 = vst [vmem:[#allocation2 + $0x98] sm:$0xff] %v10380
  %10389 = vst [vmem:[#allocation2 + $0xa0] sm:$0xff] %v10381
  %10390 = vst [vmem:[#allocation2 + $0xa8] sm:$0xff] %v10382
  %10391 = vst [vmem:[#allocation2 + $0xb0] sm:$0xff] %v10383
  %10392 = vst [vmem:[#allocation2 + $0xb8] sm:$0xff] %v10384
  %10393 = vrot.lane.b32.xlu0 %v10217, 127
  %v10394 = vpop.permute.xlu0 %10393
  %10395 = vrot.lane.b32.xlu0 %v10221, 127
  %v10396 = vpop.permute.xlu0 %10395
  %10397 = vrot.lane.b32.xlu0 %v10225, 127
  %v10398 = vpop.permute.xlu0 %10397
  %10399 = vrot.lane.b32.xlu0 %v10229, 127
  %v10400 = vpop.permute.xlu0 %10399
  %10401 = vrot.lane.b32.xlu0 %v10218, 127
  %v10402 = vpop.permute.xlu0 %10401
  %10403 = vrot.lane.b32.xlu0 %v10222, 127
  %v10404 = vpop.permute.xlu0 %10403
  %10405 = vrot.lane.b32.xlu0 %v10226, 127
  %v10406 = vpop.permute.xlu0 %10405
  %10407 = vrot.lane.b32.xlu0 %v10230, 127
  %v10408 = vpop.permute.xlu0 %10407
  %10409 = vrot.lane.b32.xlu0 %v10219, 127
  %v10410 = vpop.permute.xlu0 %10409
  %10411 = vrot.lane.b32.xlu0 %v10223, 127
  %v10412 = vpop.permute.xlu0 %10411
  %10413 = vrot.lane.b32.xlu0 %v10227, 127
  %v10414 = vpop.permute.xlu0 %10413
  %10415 = vrot.lane.b32.xlu0 %v10231, 127
  %v10416 = vpop.permute.xlu0 %10415
  %10417 = vrot.lane.b32.xlu0 %v10220, 127
  %v10418 = vpop.permute.xlu0 %10417
  %10419 = vrot.lane.b32.xlu0 %v10224, 127
  %v10420 = vpop.permute.xlu0 %10419
  %10421 = vrot.lane.b32.xlu0 %v10228, 127
  %v10422 = vpop.permute.xlu0 %10421
  %10423 = vrot.lane.b32.xlu0 %v10232, 127
  %v10424 = vpop.permute.xlu0 %10423
  %v10425 = vsel %vm403, %v10410, %v10418
  %v10426 = vsel %vm403, %v10412, %v10420
  %v10427 = vsel %vm403, %v10414, %v10422
  %v10428 = vsel %vm403, %v10416, %v10424
  %v10429 = vsel %vm403, %v10402, %v10410
  %v10430 = vsel %vm403, %v10404, %v10412
  %v10431 = vsel %vm403, %v10406, %v10414
  %v10432 = vsel %vm403, %v10408, %v10416
  %v10433 = vsel %vm403, %v10394, %v10402
  %v10434 = vsel %vm403, %v10396, %v10404
  %v10435 = vsel %vm403, %v10398, %v10406
  %v10436 = vsel %vm403, %v10400, %v10408
  %v10437 = vsel %vm403, %v10418, %v10394
  %v10438 = vsel %vm403, %v10420, %v10396
  %v10439 = vsel %vm403, %v10422, %v10398
  %v10440 = vsel %vm403, %v10424, %v10400
  %v10441 = vpack.c.bf16 %v10429, %v10433
  %v10442 = vpack.c.bf16 %v10437, %v10425
  %v10443 = vpack.c.bf16 %v10430, %v10434
  %v10444 = vpack.c.bf16 %v10438, %v10426
  %v10445 = vpack.c.bf16 %v10431, %v10435
  %v10446 = vpack.c.bf16 %v10439, %v10427
  %v10447 = vpack.c.bf16 %v10432, %v10436
  %v10448 = vpack.c.bf16 %v10440, %v10428
  %10449 = vst [vmem:[#allocation2 + $0xc0] sm:$0xff] %v10441
  %10450 = vst [vmem:[#allocation2 + $0xc8] sm:$0xff] %v10442
  %10451 = vst [vmem:[#allocation2 + $0xd0] sm:$0xff] %v10443
  %10452 = vst [vmem:[#allocation2 + $0xd8] sm:$0xff] %v10444
  %10453 = vst [vmem:[#allocation2 + $0xe0] sm:$0xff] %v10445
  %10454 = vst [vmem:[#allocation2 + $0xe8] sm:$0xff] %v10446
  %10455 = vst [vmem:[#allocation2 + $0xf0] sm:$0xff] %v10447
  %10456 = vst [vmem:[#allocation2 + $0xf8] sm:$0xff] %v10448
  %10457 = vrot.lane.b32.xlu0 %v10217, 126
  %v10458 = vpop.permute.xlu0 %10457
  %10459 = vrot.lane.b32.xlu0 %v10221, 126
  %v10460 = vpop.permute.xlu0 %10459
  %10461 = vrot.lane.b32.xlu0 %v10225, 126
  %v10462 = vpop.permute.xlu0 %10461
  %10463 = vrot.lane.b32.xlu0 %v10229, 126
  %v10464 = vpop.permute.xlu0 %10463
  %10465 = vrot.lane.b32.xlu0 %v10218, 126
  %v10466 = vpop.permute.xlu0 %10465
  %10467 = vrot.lane.b32.xlu0 %v10222, 126
  %v10468 = vpop.permute.xlu0 %10467
  %10469 = vrot.lane.b32.xlu0 %v10226, 126
  %v10470 = vpop.permute.xlu0 %10469
  %10471 = vrot.lane.b32.xlu0 %v10230, 126
  %v10472 = vpop.permute.xlu0 %10471
  %10473 = vrot.lane.b32.xlu0 %v10219, 126
  %v10474 = vpop.permute.xlu0 %10473
  %10475 = vrot.lane.b32.xlu0 %v10223, 126
  %v10476 = vpop.permute.xlu0 %10475
  %10477 = vrot.lane.b32.xlu0 %v10227, 126
  %v10478 = vpop.permute.xlu0 %10477
  %10479 = vrot.lane.b32.xlu0 %v10231, 126
  %v10480 = vpop.permute.xlu0 %10479
  %10481 = vrot.lane.b32.xlu0 %v10220, 126
  %v10482 = vpop.permute.xlu0 %10481
  %10483 = vrot.lane.b32.xlu0 %v10224, 126
  %v10484 = vpop.permute.xlu0 %10483
  %10485 = vrot.lane.b32.xlu0 %v10228, 126
  %v10486 = vpop.permute.xlu0 %10485
  %10487 = vrot.lane.b32.xlu0 %v10232, 126
  %v10488 = vpop.permute.xlu0 %10487
  %v10489 = vsel %vm468, %v10474, %v10482
  %v10490 = vsel %vm468, %v10476, %v10484
  %v10491 = vsel %vm468, %v10478, %v10486
  %v10492 = vsel %vm468, %v10480, %v10488
  %v10493 = vsel %vm468, %v10466, %v10474
  %v10494 = vsel %vm468, %v10468, %v10476
  %v10495 = vsel %vm468, %v10470, %v10478
  %v10496 = vsel %vm468, %v10472, %v10480
  %v10497 = vsel %vm468, %v10458, %v10466
  %v10498 = vsel %vm468, %v10460, %v10468
  %v10499 = vsel %vm468, %v10462, %v10470
  %v10500 = vsel %vm468, %v10464, %v10472
  %v10501 = vsel %vm468, %v10482, %v10458
  %v10502 = vsel %vm468, %v10484, %v10460
  %v10503 = vsel %vm468, %v10486, %v10462
  %v10504 = vsel %vm468, %v10488, %v10464
  %v10505 = vpack.c.bf16 %v10493, %v10497
  %v10506 = vpack.c.bf16 %v10501, %v10489
  %v10507 = vpack.c.bf16 %v10494, %v10498
  %v10508 = vpack.c.bf16 %v10502, %v10490
  %v10509 = vpack.c.bf16 %v10495, %v10499
  %v10510 = vpack.c.bf16 %v10503, %v10491
  %v10511 = vpack.c.bf16 %v10496, %v10500
  %v10512 = vpack.c.bf16 %v10504, %v10492
  %10513 = vst [vmem:[#allocation2 + $0x100] sm:$0xff] %v10505
  %10514 = vst [vmem:[#allocation2 + $0x108] sm:$0xff] %v10506
  %10515 = vst [vmem:[#allocation2 + $0x110] sm:$0xff] %v10507
  %10516 = vst [vmem:[#allocation2 + $0x118] sm:$0xff] %v10508
  %10517 = vst [vmem:[#allocation2 + $0x120] sm:$0xff] %v10509
  %10518 = vst [vmem:[#allocation2 + $0x128] sm:$0xff] %v10510
  %10519 = vst [vmem:[#allocation2 + $0x130] sm:$0xff] %v10511
  %10520 = vst [vmem:[#allocation2 + $0x138] sm:$0xff] %v10512
  %s10521 = scalar_lea.vmem %s5, 448
  %v10522 = vld [vmem:[%s10521] sm:$0xff]
  %v10523 = vld [vmem:[%s10521 + $0x8] sm:$0xff]
  %v10524 = vld [vmem:[%s10521 + $0x10] sm:$0xff]
  %v10525 = vld [vmem:[%s10521 + $0x18] sm:$0xff]
  %v10526 = vld [vmem:[%s10521 + $0x20] sm:$0xff]
  %v10527 = vld [vmem:[%s10521 + $0x28] sm:$0xff]
  %v10528 = vld [vmem:[%s10521 + $0x30] sm:$0xff]
  %v10529 = vld [vmem:[%s10521 + $0x38] sm:$0xff]
  %v10530 = vld [vmem:[#allocation2] sm:$0xff]
  %v10531 = vld [vmem:[#allocation2 + $0x8] sm:$0xff]
  %v10532 = vld [vmem:[#allocation2 + $0x10] sm:$0xff]
  %v10533 = vld [vmem:[#allocation2 + $0x18] sm:$0xff]
  %v10534 = vld [vmem:[#allocation2 + $0x20] sm:$0xff]
  %v10535 = vld [vmem:[#allocation2 + $0x28] sm:$0xff]
  %v10536 = vld [vmem:[#allocation2 + $0x30] sm:$0xff]
  %v10537 = vld [vmem:[#allocation2 + $0x38] sm:$0xff]
  %v10538 = vld [vmem:[#allocation2 + $0x40] sm:$0xff]
  %v10539 = vld [vmem:[#allocation2 + $0x48] sm:$0xff]
  %v10540 = vld [vmem:[#allocation2 + $0x50] sm:$0xff]
  %v10541 = vld [vmem:[#allocation2 + $0x58] sm:$0xff]
  %v10542 = vld [vmem:[#allocation2 + $0x60] sm:$0xff]
  %v10543 = vld [vmem:[#allocation2 + $0x68] sm:$0xff]
  %v10544 = vld [vmem:[#allocation2 + $0x70] sm:$0xff]
  %v10545 = vld [vmem:[#allocation2 + $0x78] sm:$0xff]
  %v10546 = vld [vmem:[#allocation2 + $0x80] sm:$0xff]
  %v10547 = vld [vmem:[#allocation2 + $0x88] sm:$0xff]
  %v10548 = vld [vmem:[#allocation2 + $0x90] sm:$0xff]
  %v10549 = vld [vmem:[#allocation2 + $0x98] sm:$0xff]
  %v10550 = vld [vmem:[#allocation2 + $0xa0] sm:$0xff]
  %v10551 = vld [vmem:[#allocation2 + $0xa8] sm:$0xff]
  %v10552 = vld [vmem:[#allocation2 + $0xb0] sm:$0xff]
  %v10553 = vld [vmem:[#allocation2 + $0xb8] sm:$0xff]
  %v10554 = vld [vmem:[#allocation2 + $0xc0] sm:$0xff]
  %v10555 = vld [vmem:[#allocation2 + $0xc8] sm:$0xff]
  %v10556 = vld [vmem:[#allocation2 + $0xd0] sm:$0xff]
  %v10557 = vld [vmem:[#allocation2 + $0xd8] sm:$0xff]
  %v10558 = vld [vmem:[#allocation2 + $0xe0] sm:$0xff]
  %v10559 = vld [vmem:[#allocation2 + $0xe8] sm:$0xff]
  %v10560 = vld [vmem:[#allocation2 + $0xf0] sm:$0xff]
  %v10561 = vld [vmem:[#allocation2 + $0xf8] sm:$0xff]
  %v10562 = vld [vmem:[#allocation2 + $0x100] sm:$0xff]
  %v10563 = vld [vmem:[#allocation2 + $0x108] sm:$0xff]
  %v10564 = vld [vmem:[#allocation2 + $0x110] sm:$0xff]
  %v10565 = vld [vmem:[#allocation2 + $0x118] sm:$0xff]
  %v10566 = vld [vmem:[#allocation2 + $0x120] sm:$0xff]
  %v10567 = vld [vmem:[#allocation2 + $0x128] sm:$0xff]
  %v10568 = vld [vmem:[#allocation2 + $0x130] sm:$0xff]
  %v10569 = vld [vmem:[#allocation2 + $0x138] sm:$0xff]
  %s10570 = scalar_lea.vmem %s2, 1792
  %v10571 = vld [vmem:[%s10570] sm:$0xff]
  %v10572 = vld [vmem:[%s10570 + $0x8] sm:$0xff]
  %v10573 = vld [vmem:[%s10570 + $0x10] sm:$0xff]
  %v10574 = vld [vmem:[%s10570 + $0x18] sm:$0xff]
  %v10575 = vld [vmem:[%s10570 + $0x20] sm:$0xff]
  %v10576 = vld [vmem:[%s10570 + $0x28] sm:$0xff]
  %v10577 = vld [vmem:[%s10570 + $0x30] sm:$0xff]
  %v10578 = vld [vmem:[%s10570 + $0x38] sm:$0xff]
  %v10579 = vld [vmem:[%s10570 + $0x40] sm:$0xff]
  %v10580 = vld [vmem:[%s10570 + $0x48] sm:$0xff]
  %v10581 = vld [vmem:[%s10570 + $0x50] sm:$0xff]
  %v10582 = vld [vmem:[%s10570 + $0x58] sm:$0xff]
  %v10583 = vld [vmem:[%s10570 + $0x60] sm:$0xff]
  %v10584 = vld [vmem:[%s10570 + $0x68] sm:$0xff]
  %v10585 = vld [vmem:[%s10570 + $0x70] sm:$0xff]
  %v10586 = vld [vmem:[%s10570 + $0x78] sm:$0xff]
  %v10587 = vld [vmem:[%s10570 + $0x80] sm:$0xff]
  %v10588 = vld [vmem:[%s10570 + $0x88] sm:$0xff]
  %v10589 = vld [vmem:[%s10570 + $0x90] sm:$0xff]
  %v10590 = vld [vmem:[%s10570 + $0x98] sm:$0xff]
  %v10591 = vld [vmem:[%s10570 + $0xa0] sm:$0xff]
  %v10592 = vld [vmem:[%s10570 + $0xa8] sm:$0xff]
  %v10593 = vld [vmem:[%s10570 + $0xb0] sm:$0xff]
  %v10594 = vld [vmem:[%s10570 + $0xb8] sm:$0xff]
  %v10595 = vld [vmem:[%s10570 + $0xc0] sm:$0xff]
  %v10596 = vld [vmem:[%s10570 + $0xc8] sm:$0xff]
  %v10597 = vld [vmem:[%s10570 + $0xd0] sm:$0xff]
  %v10598 = vld [vmem:[%s10570 + $0xd8] sm:$0xff]
  %v10599 = vld [vmem:[%s10570 + $0xe0] sm:$0xff]
  %v10600 = vld [vmem:[%s10570 + $0xe8] sm:$0xff]
  %v10601 = vld [vmem:[%s10570 + $0xf0] sm:$0xff]
  %v10602 = vld [vmem:[%s10570 + $0xf8] sm:$0xff]
  %v10611 = vunpack.c.l.b16 %v10522
  %v10612 = vunpack.c.h.b16 %v10522
  %v10613 = vunpack.c.l.b16 %v10523
  %v10614 = vunpack.c.h.b16 %v10523
  %v10615 = vunpack.c.l.b16 %v10524
  %v10616 = vunpack.c.h.b16 %v10524
  %v10617 = vunpack.c.l.b16 %v10525
  %v10618 = vunpack.c.h.b16 %v10525
  %v10619 = vunpack.c.l.b16 %v10526
  %v10620 = vunpack.c.h.b16 %v10526
  %v10621 = vunpack.c.l.b16 %v10527
  %v10622 = vunpack.c.h.b16 %v10527
  %v10623 = vunpack.c.l.b16 %v10528
  %v10624 = vunpack.c.h.b16 %v10528
  %v10625 = vunpack.c.l.b16 %v10529
  %v10626 = vunpack.c.h.b16 %v10529
  %v10627 = vpack.c.b16 %v10613, %v10611
  %v10628 = vpack.c.b16 %v10614, %v10612
  %v10629 = vpack.c.b16 %v10617, %v10615
  %v10630 = vpack.c.b16 %v10618, %v10616
  %v10631 = vpack.c.b16 %v10621, %v10619
  %v10632 = vpack.c.b16 %v10622, %v10620
  %v10633 = vpack.c.b16 %v10625, %v10623
  %v10634 = vpack.c.b16 %v10626, %v10624
  %v10679 = vunpack.c.l.b16 %v10530
  %v10680 = vunpack.c.h.b16 %v10530
  %v10681 = vunpack.c.l.b16 %v10531
  %v10682 = vunpack.c.h.b16 %v10531
  %v10683 = vunpack.c.l.b16 %v10532
  %v10684 = vunpack.c.h.b16 %v10532
  %v10685 = vunpack.c.l.b16 %v10533
  %v10686 = vunpack.c.h.b16 %v10533
  %v10687 = vunpack.c.l.b16 %v10534
  %v10688 = vunpack.c.h.b16 %v10534
  %v10689 = vunpack.c.l.b16 %v10535
  %v10690 = vunpack.c.h.b16 %v10535
  %v10691 = vunpack.c.l.b16 %v10536
  %v10692 = vunpack.c.h.b16 %v10536
  %v10693 = vunpack.c.l.b16 %v10537
  %v10694 = vunpack.c.h.b16 %v10537
  %v10695 = vunpack.c.l.b16 %v10538
  %v10696 = vunpack.c.h.b16 %v10538
  %v10697 = vunpack.c.l.b16 %v10539
  %v10698 = vunpack.c.h.b16 %v10539
  %v10699 = vunpack.c.l.b16 %v10540
  %v10700 = vunpack.c.h.b16 %v10540
  %v10701 = vunpack.c.l.b16 %v10541
  %v10702 = vunpack.c.h.b16 %v10541
  %v10703 = vunpack.c.l.b16 %v10542
  %v10704 = vunpack.c.h.b16 %v10542
  %v10705 = vunpack.c.l.b16 %v10543
  %v10706 = vunpack.c.h.b16 %v10543
  %v10707 = vunpack.c.l.b16 %v10544
  %v10708 = vunpack.c.h.b16 %v10544
  %v10709 = vunpack.c.l.b16 %v10545
  %v10710 = vunpack.c.h.b16 %v10545
  %v10711 = vunpack.c.l.b16 %v10546
  %v10712 = vunpack.c.h.b16 %v10546
  %v10713 = vunpack.c.l.b16 %v10547
  %v10714 = vunpack.c.h.b16 %v10547
  %v10715 = vunpack.c.l.b16 %v10548
  %v10716 = vunpack.c.h.b16 %v10548
  %v10717 = vunpack.c.l.b16 %v10549
  %v10718 = vunpack.c.h.b16 %v10549
  %v10719 = vunpack.c.l.b16 %v10550
  %v10720 = vunpack.c.h.b16 %v10550
  %v10721 = vunpack.c.l.b16 %v10551
  %v10722 = vunpack.c.h.b16 %v10551
  %v10723 = vunpack.c.l.b16 %v10552
  %v10724 = vunpack.c.h.b16 %v10552
  %v10725 = vunpack.c.l.b16 %v10553
  %v10726 = vunpack.c.h.b16 %v10553
  %v10727 = vunpack.c.l.b16 %v10554
  %v10728 = vunpack.c.h.b16 %v10554
  %v10729 = vunpack.c.l.b16 %v10555
  %v10730 = vunpack.c.h.b16 %v10555
  %v10731 = vunpack.c.l.b16 %v10556
  %v10732 = vunpack.c.h.b16 %v10556
  %v10733 = vunpack.c.l.b16 %v10557
  %v10734 = vunpack.c.h.b16 %v10557
  %v10735 = vunpack.c.l.b16 %v10558
  %v10736 = vunpack.c.h.b16 %v10558
  %v10737 = vunpack.c.l.b16 %v10559
  %v10738 = vunpack.c.h.b16 %v10559
  %v10739 = vunpack.c.l.b16 %v10560
  %v10740 = vunpack.c.h.b16 %v10560
  %v10741 = vunpack.c.l.b16 %v10561
  %v10742 = vunpack.c.h.b16 %v10561
  %v10743 = vunpack.c.l.b16 %v10562
  %v10744 = vunpack.c.h.b16 %v10562
  %v10745 = vunpack.c.l.b16 %v10563
  %v10746 = vunpack.c.h.b16 %v10563
  %v10747 = vunpack.c.l.b16 %v10564
  %v10748 = vunpack.c.h.b16 %v10564
  %v10749 = vunpack.c.l.b16 %v10565
  %v10750 = vunpack.c.h.b16 %v10565
  %v10751 = vunpack.c.l.b16 %v10566
  %v10752 = vunpack.c.h.b16 %v10566
  %v10753 = vunpack.c.l.b16 %v10567
  %v10754 = vunpack.c.h.b16 %v10567
  %v10755 = vunpack.c.l.b16 %v10568
  %v10756 = vunpack.c.h.b16 %v10568
  %v10757 = vunpack.c.l.b16 %v10569
  %v10758 = vunpack.c.h.b16 %v10569
  %v10759 = vpack.c.b16 %v10683, %v10679
  %v10760 = vpack.c.b16 %v10684, %v10680
  %v10761 = vpack.c.b16 %v10685, %v10681
  %v10762 = vpack.c.b16 %v10686, %v10682
  %v10763 = vpack.c.b16 %v10691, %v10687
  %v10764 = vpack.c.b16 %v10692, %v10688
  %v10765 = vpack.c.b16 %v10693, %v10689
  %v10766 = vpack.c.b16 %v10694, %v10690
  %v10767 = vpack.c.b16 %v10699, %v10695
  %v10768 = vpack.c.b16 %v10700, %v10696
  %v10769 = vpack.c.b16 %v10701, %v10697
  %v10770 = vpack.c.b16 %v10702, %v10698
  %v10771 = vpack.c.b16 %v10707, %v10703
  %v10772 = vpack.c.b16 %v10708, %v10704
  %v10773 = vpack.c.b16 %v10709, %v10705
  %v10774 = vpack.c.b16 %v10710, %v10706
  %v10775 = vpack.c.b16 %v10715, %v10711
  %v10776 = vpack.c.b16 %v10716, %v10712
  %v10777 = vpack.c.b16 %v10717, %v10713
  %v10778 = vpack.c.b16 %v10718, %v10714
  %v10779 = vpack.c.b16 %v10723, %v10719
  %v10780 = vpack.c.b16 %v10724, %v10720
  %v10781 = vpack.c.b16 %v10725, %v10721
  %v10782 = vpack.c.b16 %v10726, %v10722
  %v10783 = vpack.c.b16 %v10731, %v10727
  %v10784 = vpack.c.b16 %v10732, %v10728
  %v10785 = vpack.c.b16 %v10733, %v10729
  %v10786 = vpack.c.b16 %v10734, %v10730
  %v10787 = vpack.c.b16 %v10739, %v10735
  %v10788 = vpack.c.b16 %v10740, %v10736
  %v10789 = vpack.c.b16 %v10741, %v10737
  %v10790 = vpack.c.b16 %v10742, %v10738
  %v10791 = vpack.c.b16 %v10747, %v10743
  %v10792 = vpack.c.b16 %v10748, %v10744
  %v10793 = vpack.c.b16 %v10749, %v10745
  %v10794 = vpack.c.b16 %v10750, %v10746
  %v10795 = vpack.c.b16 %v10755, %v10751
  %v10796 = vpack.c.b16 %v10756, %v10752
  %v10797 = vpack.c.b16 %v10757, %v10753
  %v10798 = vpack.c.b16 %v10758, %v10754
  %v10840 = vsel %vm124, %v10628, 0
  %v10843 = vsel %vm124, %v10630, 0
  %v10846 = vsel %vm124, %v10632, 0
  %v10849 = vsel %vm124, %v10634, 0
  %10851 = vmatpush.bf16.msra.mxu0 %v10787
  %10852 = vmatpush.bf16.msra.mxu0 %v10783
  %10853 = vmatpush.bf16.msra.mxu0 %v10779
  %10854 = vmatpush.bf16.msra.mxu0 %v10775
  %10855 = vmatpush.bf16.msra.mxu0 %v10771
  %10856 = vmatpush.bf16.msra.mxu0 %v10767
  %10857 = vmatpush.bf16.msra.mxu0 %v10763
  %10858 = vmatpush.bf16.msra.mxu0 %v10759
  %10859 = vmatmul.bf16.gmra.mxu0 %v10627
  %v10860 = vpop.f32.mrf.mxu0
  %v10861 = vadd.f32 %v10571, %v10860
  %v10862 = vpop.f32.mrf.mxu0
  %v10863 = vadd.f32 %v10575, %v10862
  %10864 = vmatmul.bf16.gmra.mxu0 %v10629
  %v10865 = vpop.f32.mrf.mxu0
  %v10866 = vadd.f32 %v10579, %v10865
  %v10867 = vpop.f32.mrf.mxu0
  %v10868 = vadd.f32 %v10583, %v10867
  %10869 = vmatmul.bf16.gmra.mxu0 %v10631
  %v10870 = vpop.f32.mrf.mxu0
  %v10871 = vadd.f32 %v10587, %v10870
  %v10872 = vpop.f32.mrf.mxu0
  %v10873 = vadd.f32 %v10591, %v10872
  %10874 = vmatmul.bf16.gmra.mxu0 %v10633
  %v10875 = vpop.f32.mrf.mxu0
  %v10876 = vadd.f32 %v10595, %v10875
  %v10877 = vpop.f32.mrf.mxu0
  %v10878 = vadd.f32 %v10599, %v10877
  %10879 = vdwg.mxu0
  %10880 = vmatpush.bf16.msra.mxu0 0
  %10881 = vmatpush.bf16.msra.mxu0 0
  %10882 = vmatpush.bf16.msra.mxu0 0
  %10883 = vmatpush.bf16.msra.mxu0 0
  %10884 = vmatpush.bf16.msra.mxu0 0
  %10885 = vmatpush.bf16.msra.mxu0 0
  %10886 = vmatpush.bf16.msra.mxu0 %v10795
  %10887 = vmatpush.bf16.msra.mxu0 %v10791
  %10888 = vmatmul.bf16.gmra.mxu0 %v10840
  %v10889 = vpop.f32.mrf.mxu0
  %v10890 = vadd.f32 %v10861, %v10889
  %v10891 = vpop.f32.mrf.mxu0
  %v10892 = vadd.f32 %v10863, %v10891
  %10893 = vmatmul.bf16.gmra.mxu0 %v10843
  %v10894 = vpop.f32.mrf.mxu0
  %v10895 = vadd.f32 %v10866, %v10894
  %v10896 = vpop.f32.mrf.mxu0
  %v10897 = vadd.f32 %v10868, %v10896
  %10898 = vmatmul.bf16.gmra.mxu0 %v10846
  %v10899 = vpop.f32.mrf.mxu0
  %v10900 = vadd.f32 %v10871, %v10899
  %v10901 = vpop.f32.mrf.mxu0
  %v10902 = vadd.f32 %v10873, %v10901
  %10903 = vmatmul.bf16.gmra.mxu0 %v10849
  %v10904 = vpop.f32.mrf.mxu0
  %v10905 = vadd.f32 %v10876, %v10904
  %v10906 = vpop.f32.mrf.mxu0
  %v10907 = vadd.f32 %v10878, %v10906
  %10908 = vdwg.mxu0
  %10909 = vmatpush.bf16.msra.mxu0 %v10788
  %10910 = vmatpush.bf16.msra.mxu0 %v10784
  %10911 = vmatpush.bf16.msra.mxu0 %v10780
  %10912 = vmatpush.bf16.msra.mxu0 %v10776
  %10913 = vmatpush.bf16.msra.mxu0 %v10772
  %10914 = vmatpush.bf16.msra.mxu0 %v10768
  %10915 = vmatpush.bf16.msra.mxu0 %v10764
  %10916 = vmatpush.bf16.msra.mxu0 %v10760
  %10917 = vmatmul.bf16.gmra.mxu0 %v10627
  %v10918 = vpop.f32.mrf.mxu0
  %v10919 = vadd.f32 %v10572, %v10918
  %v10920 = vpop.f32.mrf.mxu0
  %v10921 = vadd.f32 %v10576, %v10920
  %10922 = vmatmul.bf16.gmra.mxu0 %v10629
  %v10923 = vpop.f32.mrf.mxu0
  %v10924 = vadd.f32 %v10580, %v10923
  %v10925 = vpop.f32.mrf.mxu0
  %v10926 = vadd.f32 %v10584, %v10925
  %10927 = vmatmul.bf16.gmra.mxu0 %v10631
  %v10928 = vpop.f32.mrf.mxu0
  %v10929 = vadd.f32 %v10588, %v10928
  %v10930 = vpop.f32.mrf.mxu0
  %v10931 = vadd.f32 %v10592, %v10930
  %10932 = vmatmul.bf16.gmra.mxu0 %v10633
  %v10933 = vpop.f32.mrf.mxu0
  %v10934 = vadd.f32 %v10596, %v10933
  %v10935 = vpop.f32.mrf.mxu0
  %v10936 = vadd.f32 %v10600, %v10935
  %10937 = vdwg.mxu0
  %10938 = vmatpush.bf16.msra.mxu0 0
  %10939 = vmatpush.bf16.msra.mxu0 0
  %10940 = vmatpush.bf16.msra.mxu0 0
  %10941 = vmatpush.bf16.msra.mxu0 0
  %10942 = vmatpush.bf16.msra.mxu0 0
  %10943 = vmatpush.bf16.msra.mxu0 0
  %10944 = vmatpush.bf16.msra.mxu0 %v10796
  %10945 = vmatpush.bf16.msra.mxu0 %v10792
  %10946 = vmatmul.bf16.gmra.mxu0 %v10840
  %v10947 = vpop.f32.mrf.mxu0
  %v10948 = vadd.f32 %v10919, %v10947
  %v10949 = vpop.f32.mrf.mxu0
  %v10950 = vadd.f32 %v10921, %v10949
  %10951 = vmatmul.bf16.gmra.mxu0 %v10843
  %v10952 = vpop.f32.mrf.mxu0
  %v10953 = vadd.f32 %v10924, %v10952
  %v10954 = vpop.f32.mrf.mxu0
  %v10955 = vadd.f32 %v10926, %v10954
  %10956 = vmatmul.bf16.gmra.mxu0 %v10846
  %v10957 = vpop.f32.mrf.mxu0
  %v10958 = vadd.f32 %v10929, %v10957
  %v10959 = vpop.f32.mrf.mxu0
  %v10960 = vadd.f32 %v10931, %v10959
  %10961 = vmatmul.bf16.gmra.mxu0 %v10849
  %v10962 = vpop.f32.mrf.mxu0
  %v10963 = vadd.f32 %v10934, %v10962
  %v10964 = vpop.f32.mrf.mxu0
  %v10965 = vadd.f32 %v10936, %v10964
  %10966 = vdwg.mxu0
  %10967 = vmatpush.bf16.msra.mxu0 %v10789
  %10968 = vmatpush.bf16.msra.mxu0 %v10785
  %10969 = vmatpush.bf16.msra.mxu0 %v10781
  %10970 = vmatpush.bf16.msra.mxu0 %v10777
  %10971 = vmatpush.bf16.msra.mxu0 %v10773
  %10972 = vmatpush.bf16.msra.mxu0 %v10769
  %10973 = vmatpush.bf16.msra.mxu0 %v10765
  %10974 = vmatpush.bf16.msra.mxu0 %v10761
  %10975 = vmatmul.bf16.gmra.mxu0 %v10627
  %v10976 = vpop.f32.mrf.mxu0
  %v10977 = vadd.f32 %v10573, %v10976
  %v10978 = vpop.f32.mrf.mxu0
  %v10979 = vadd.f32 %v10577, %v10978
  %10980 = vmatmul.bf16.gmra.mxu0 %v10629
  %v10981 = vpop.f32.mrf.mxu0
  %v10982 = vadd.f32 %v10581, %v10981
  %v10983 = vpop.f32.mrf.mxu0
  %v10984 = vadd.f32 %v10585, %v10983
  %10985 = vmatmul.bf16.gmra.mxu0 %v10631
  %v10986 = vpop.f32.mrf.mxu0
  %v10987 = vadd.f32 %v10589, %v10986
  %v10988 = vpop.f32.mrf.mxu0
  %v10989 = vadd.f32 %v10593, %v10988
  %10990 = vmatmul.bf16.gmra.mxu0 %v10633
  %v10991 = vpop.f32.mrf.mxu0
  %v10992 = vadd.f32 %v10597, %v10991
  %v10993 = vpop.f32.mrf.mxu0
  %v10994 = vadd.f32 %v10601, %v10993
  %10995 = vdwg.mxu0
  %10996 = vmatpush.bf16.msra.mxu0 0
  %10997 = vmatpush.bf16.msra.mxu0 0
  %10998 = vmatpush.bf16.msra.mxu0 0
  %10999 = vmatpush.bf16.msra.mxu0 0
  %11000 = vmatpush.bf16.msra.mxu0 0
  %11001 = vmatpush.bf16.msra.mxu0 0
  %11002 = vmatpush.bf16.msra.mxu0 %v10797
  %11003 = vmatpush.bf16.msra.mxu0 %v10793
  %11004 = vmatmul.bf16.gmra.mxu0 %v10840
  %v11005 = vpop.f32.mrf.mxu0
  %v11006 = vadd.f32 %v10977, %v11005
  %v11007 = vpop.f32.mrf.mxu0
  %v11008 = vadd.f32 %v10979, %v11007
  %11009 = vmatmul.bf16.gmra.mxu0 %v10843
  %v11010 = vpop.f32.mrf.mxu0
  %v11011 = vadd.f32 %v10982, %v11010
  %v11012 = vpop.f32.mrf.mxu0
  %v11013 = vadd.f32 %v10984, %v11012
  %11014 = vmatmul.bf16.gmra.mxu0 %v10846
  %v11015 = vpop.f32.mrf.mxu0
  %v11016 = vadd.f32 %v10987, %v11015
  %v11017 = vpop.f32.mrf.mxu0
  %v11018 = vadd.f32 %v10989, %v11017
  %11019 = vmatmul.bf16.gmra.mxu0 %v10849
  %v11020 = vpop.f32.mrf.mxu0
  %v11021 = vadd.f32 %v10992, %v11020
  %v11022 = vpop.f32.mrf.mxu0
  %v11023 = vadd.f32 %v10994, %v11022
  %11024 = vdwg.mxu0
  %11025 = vmatpush.bf16.msra.mxu0 %v10790
  %11026 = vmatpush.bf16.msra.mxu0 %v10786
  %11027 = vmatpush.bf16.msra.mxu0 %v10782
  %11028 = vmatpush.bf16.msra.mxu0 %v10778
  %11029 = vmatpush.bf16.msra.mxu0 %v10774
  %11030 = vmatpush.bf16.msra.mxu0 %v10770
  %11031 = vmatpush.bf16.msra.mxu0 %v10766
  %11032 = vmatpush.bf16.msra.mxu0 %v10762
  %11033 = vmatmul.bf16.gmra.mxu0 %v10627
  %v11034 = vpop.f32.mrf.mxu0
  %v11035 = vadd.f32 %v10574, %v11034
  %v11036 = vpop.f32.mrf.mxu0
  %v11037 = vadd.f32 %v10578, %v11036
  %11038 = vmatmul.bf16.gmra.mxu0 %v10629
  %v11039 = vpop.f32.mrf.mxu0
  %v11040 = vadd.f32 %v10582, %v11039
  %v11041 = vpop.f32.mrf.mxu0
  %v11042 = vadd.f32 %v10586, %v11041
  %11043 = vmatmul.bf16.gmra.mxu0 %v10631
  %v11044 = vpop.f32.mrf.mxu0
  %v11045 = vadd.f32 %v10590, %v11044
  %v11046 = vpop.f32.mrf.mxu0
  %v11047 = vadd.f32 %v10594, %v11046
  %11048 = vmatmul.bf16.gmra.mxu0 %v10633
  %v11049 = vpop.f32.mrf.mxu0
  %v11050 = vadd.f32 %v10598, %v11049
  %v11051 = vpop.f32.mrf.mxu0
  %v11052 = vadd.f32 %v10602, %v11051
  %11053 = vdwg.mxu0
  %11054 = vmatpush.bf16.msra.mxu0 0
  %11055 = vmatpush.bf16.msra.mxu0 0
  %11056 = vmatpush.bf16.msra.mxu0 0
  %11057 = vmatpush.bf16.msra.mxu0 0
  %11058 = vmatpush.bf16.msra.mxu0 0
  %11059 = vmatpush.bf16.msra.mxu0 0
  %11060 = vmatpush.bf16.msra.mxu0 %v10798
  %11061 = vmatpush.bf16.msra.mxu0 %v10794
  %11062 = vmatmul.bf16.gmra.mxu0 %v10840
  %v11063 = vpop.f32.mrf.mxu0
  %v11064 = vadd.f32 %v11035, %v11063
  %v11065 = vpop.f32.mrf.mxu0
  %v11066 = vadd.f32 %v11037, %v11065
  %11067 = vmatmul.bf16.gmra.mxu0 %v10843
  %v11068 = vpop.f32.mrf.mxu0
  %v11069 = vadd.f32 %v11040, %v11068
  %v11070 = vpop.f32.mrf.mxu0
  %v11071 = vadd.f32 %v11042, %v11070
  %11072 = vmatmul.bf16.gmra.mxu0 %v10846
  %v11073 = vpop.f32.mrf.mxu0
  %v11074 = vadd.f32 %v11045, %v11073
  %v11075 = vpop.f32.mrf.mxu0
  %v11076 = vadd.f32 %v11047, %v11075
  %11077 = vmatmul.bf16.gmra.mxu0 %v10849
  %v11078 = vpop.f32.mrf.mxu0
  %v11079 = vadd.f32 %v11050, %v11078
  %v11080 = vpop.f32.mrf.mxu0
  %v11081 = vadd.f32 %v11052, %v11080
  %11082 = vdwg.mxu0
  %v11083 = vtanh.pop %v10890
  %v11084 = vtanh.pop %v10948
  %v11085 = vtanh.pop %v11006
  %v11086 = vtanh.pop %v11064
  %v11087 = vtanh.pop %v10892
  %v11088 = vtanh.pop %v10950
  %v11089 = vtanh.pop %v11008
  %v11090 = vtanh.pop %v11066
  %v11091 = vtanh.pop %v10895
  %v11092 = vtanh.pop %v10953
  %v11093 = vtanh.pop %v11011
  %v11094 = vtanh.pop %v11069
  %v11095 = vtanh.pop %v10897
  %v11096 = vtanh.pop %v10955
  %v11097 = vtanh.pop %v11013
  %v11098 = vtanh.pop %v11071
  %v11099 = vxor.u32 %v10900, 2147483648
  %v11100 = vxor.u32 %v10958, 2147483648
  %v11101 = vxor.u32 %v11016, 2147483648
  %v11102 = vxor.u32 %v11074, 2147483648
  %v11103 = vxor.u32 %v10902, 2147483648
  %v11104 = vxor.u32 %v10960, 2147483648
  %v11105 = vxor.u32 %v11018, 2147483648
  %v11106 = vxor.u32 %v11076, 2147483648
  %v11107 = vxor.u32 %v10905, 2147483648
  %v11108 = vxor.u32 %v10963, 2147483648
  %v11109 = vxor.u32 %v11021, 2147483648
  %v11110 = vxor.u32 %v11079, 2147483648
  %v11111 = vxor.u32 %v10907, 2147483648
  %v11112 = vxor.u32 %v10965, 2147483648
  %v11113 = vxor.u32 %v11023, 2147483648
  %v11114 = vxor.u32 %v11081, 2147483648
  %v11115 = vmul.f32 %v11099, 1.442695
  %v11116 = vpow.pop %v11115
  %v11117 = vmul.f32 %v11100, 1.442695
  %v11118 = vpow.pop %v11117
  %v11119 = vmul.f32 %v11101, 1.442695
  %v11120 = vpow.pop %v11119
  %v11121 = vmul.f32 %v11102, 1.442695
  %v11122 = vpow.pop %v11121
  %v11123 = vmul.f32 %v11103, 1.442695
  %v11124 = vpow.pop %v11123
  %v11125 = vmul.f32 %v11104, 1.442695
  %v11126 = vpow.pop %v11125
  %v11127 = vmul.f32 %v11105, 1.442695
  %v11128 = vpow.pop %v11127
  %v11129 = vmul.f32 %v11106, 1.442695
  %v11130 = vpow.pop %v11129
  %v11131 = vmul.f32 %v11107, 1.442695
  %v11132 = vpow.pop %v11131
  %v11133 = vmul.f32 %v11108, 1.442695
  %v11134 = vpow.pop %v11133
  %v11135 = vmul.f32 %v11109, 1.442695
  %v11136 = vpow.pop %v11135
  %v11137 = vmul.f32 %v11110, 1.442695
  %v11138 = vpow.pop %v11137
  %v11139 = vmul.f32 %v11111, 1.442695
  %v11140 = vpow.pop %v11139
  %v11141 = vmul.f32 %v11112, 1.442695
  %v11142 = vpow.pop %v11141
  %v11143 = vmul.f32 %v11113, 1.442695
  %v11144 = vpow.pop %v11143
  %v11145 = vmul.f32 %v11114, 1.442695
  %v11146 = vpow.pop %v11145
  %v11147 = vadd.f32 %v11116, 1.0
  %v11148 = vadd.f32 %v11118, 1.0
  %v11149 = vadd.f32 %v11120, 1.0
  %v11150 = vadd.f32 %v11122, 1.0
  %v11151 = vadd.f32 %v11124, 1.0
  %v11152 = vadd.f32 %v11126, 1.0
  %v11153 = vadd.f32 %v11128, 1.0
  %v11154 = vadd.f32 %v11130, 1.0
  %v11155 = vadd.f32 %v11132, 1.0
  %v11156 = vadd.f32 %v11134, 1.0
  %v11157 = vadd.f32 %v11136, 1.0
  %v11158 = vadd.f32 %v11138, 1.0
  %v11159 = vadd.f32 %v11140, 1.0
  %v11160 = vadd.f32 %v11142, 1.0
  %v11161 = vadd.f32 %v11144, 1.0
  %v11162 = vadd.f32 %v11146, 1.0
  %v11163 = vrcp.pop %v11147
  %v11164 = vmul.f32 %v11147, %v11163
  %v11165 = vsub.f32 1.0, %v11164
  %v11166 = vmul.f32 %v11163, %v11165
  %v11167 = vadd.f32 %v11163, %v11166
  %vm11168 = vweird.f32 %v11147
  %vm11169 = vweird.f32 %v11163
  %vm11170 = vmor %vm11168, %vm11169
  %v11171 = vsel %vm11170, %v11163, %v11167
  %v11172 = vand.u32 2147483647, %v11147
  %vm11173 = vcmp.eq.f32.partialorder %v11172, 8.507059e+37
  %v11174 = vand.u32 %v11147, 2147483648
  %v11175 = vor.u32 1.1754944e-38, %v11174
  %v11176 = vsel %vm11173, %v11175, %v11171
  %v11177 = vmul.f32 1.0, %v11176
  %v11178 = vrcp.pop %v11148
  %v11179 = vmul.f32 %v11148, %v11178
  %v11180 = vsub.f32 1.0, %v11179
  %v11181 = vmul.f32 %v11178, %v11180
  %v11182 = vadd.f32 %v11178, %v11181
  %vm11183 = vweird.f32 %v11148
  %vm11184 = vweird.f32 %v11178
  %vm11185 = vmor %vm11183, %vm11184
  %v11186 = vsel %vm11185, %v11178, %v11182
  %v11187 = vand.u32 2147483647, %v11148
  %vm11188 = vcmp.eq.f32.partialorder %v11187, 8.507059e+37
  %v11189 = vand.u32 %v11148, 2147483648
  %v11190 = vor.u32 1.1754944e-38, %v11189
  %v11191 = vsel %vm11188, %v11190, %v11186
  %v11192 = vmul.f32 1.0, %v11191
  %v11193 = vrcp.pop %v11149
  %v11194 = vmul.f32 %v11149, %v11193
  %v11195 = vsub.f32 1.0, %v11194
  %v11196 = vmul.f32 %v11193, %v11195
  %v11197 = vadd.f32 %v11193, %v11196
  %vm11198 = vweird.f32 %v11149
  %vm11199 = vweird.f32 %v11193
  %vm11200 = vmor %vm11198, %vm11199
  %v11201 = vsel %vm11200, %v11193, %v11197
  %v11202 = vand.u32 2147483647, %v11149
  %vm11203 = vcmp.eq.f32.partialorder %v11202, 8.507059e+37
  %v11204 = vand.u32 %v11149, 2147483648
  %v11205 = vor.u32 1.1754944e-38, %v11204
  %v11206 = vsel %vm11203, %v11205, %v11201
  %v11207 = vmul.f32 1.0, %v11206
  %v11208 = vrcp.pop %v11150
  %v11209 = vmul.f32 %v11150, %v11208
  %v11210 = vsub.f32 1.0, %v11209
  %v11211 = vmul.f32 %v11208, %v11210
  %v11212 = vadd.f32 %v11208, %v11211
  %vm11213 = vweird.f32 %v11150
  %vm11214 = vweird.f32 %v11208
  %vm11215 = vmor %vm11213, %vm11214
  %v11216 = vsel %vm11215, %v11208, %v11212
  %v11217 = vand.u32 2147483647, %v11150
  %vm11218 = vcmp.eq.f32.partialorder %v11217, 8.507059e+37
  %v11219 = vand.u32 %v11150, 2147483648
  %v11220 = vor.u32 1.1754944e-38, %v11219
  %v11221 = vsel %vm11218, %v11220, %v11216
  %v11222 = vmul.f32 1.0, %v11221
  %v11223 = vrcp.pop %v11151
  %v11224 = vmul.f32 %v11151, %v11223
  %v11225 = vsub.f32 1.0, %v11224
  %v11226 = vmul.f32 %v11223, %v11225
  %v11227 = vadd.f32 %v11223, %v11226
  %vm11228 = vweird.f32 %v11151
  %vm11229 = vweird.f32 %v11223
  %vm11230 = vmor %vm11228, %vm11229
  %v11231 = vsel %vm11230, %v11223, %v11227
  %v11232 = vand.u32 2147483647, %v11151
  %vm11233 = vcmp.eq.f32.partialorder %v11232, 8.507059e+37
  %v11234 = vand.u32 %v11151, 2147483648
  %v11235 = vor.u32 1.1754944e-38, %v11234
  %v11236 = vsel %vm11233, %v11235, %v11231
  %v11237 = vmul.f32 1.0, %v11236
  %v11238 = vrcp.pop %v11152
  %v11239 = vmul.f32 %v11152, %v11238
  %v11240 = vsub.f32 1.0, %v11239
  %v11241 = vmul.f32 %v11238, %v11240
  %v11242 = vadd.f32 %v11238, %v11241
  %vm11243 = vweird.f32 %v11152
  %vm11244 = vweird.f32 %v11238
  %vm11245 = vmor %vm11243, %vm11244
  %v11246 = vsel %vm11245, %v11238, %v11242
  %v11247 = vand.u32 2147483647, %v11152
  %vm11248 = vcmp.eq.f32.partialorder %v11247, 8.507059e+37
  %v11249 = vand.u32 %v11152, 2147483648
  %v11250 = vor.u32 1.1754944e-38, %v11249
  %v11251 = vsel %vm11248, %v11250, %v11246
  %v11252 = vmul.f32 1.0, %v11251
  %v11253 = vrcp.pop %v11153
  %v11254 = vmul.f32 %v11153, %v11253
  %v11255 = vsub.f32 1.0, %v11254
  %v11256 = vmul.f32 %v11253, %v11255
  %v11257 = vadd.f32 %v11253, %v11256
  %vm11258 = vweird.f32 %v11153
  %vm11259 = vweird.f32 %v11253
  %vm11260 = vmor %vm11258, %vm11259
  %v11261 = vsel %vm11260, %v11253, %v11257
  %v11262 = vand.u32 2147483647, %v11153
  %vm11263 = vcmp.eq.f32.partialorder %v11262, 8.507059e+37
  %v11264 = vand.u32 %v11153, 2147483648
  %v11265 = vor.u32 1.1754944e-38, %v11264
  %v11266 = vsel %vm11263, %v11265, %v11261
  %v11267 = vmul.f32 1.0, %v11266
  %v11268 = vrcp.pop %v11154
  %v11269 = vmul.f32 %v11154, %v11268
  %v11270 = vsub.f32 1.0, %v11269
  %v11271 = vmul.f32 %v11268, %v11270
  %v11272 = vadd.f32 %v11268, %v11271
  %vm11273 = vweird.f32 %v11154
  %vm11274 = vweird.f32 %v11268
  %vm11275 = vmor %vm11273, %vm11274
  %v11276 = vsel %vm11275, %v11268, %v11272
  %v11277 = vand.u32 2147483647, %v11154
  %vm11278 = vcmp.eq.f32.partialorder %v11277, 8.507059e+37
  %v11279 = vand.u32 %v11154, 2147483648
  %v11280 = vor.u32 1.1754944e-38, %v11279
  %v11281 = vsel %vm11278, %v11280, %v11276
  %v11282 = vmul.f32 1.0, %v11281
  %v11283 = vrcp.pop %v11155
  %v11284 = vmul.f32 %v11155, %v11283
  %v11285 = vsub.f32 1.0, %v11284
  %v11286 = vmul.f32 %v11283, %v11285
  %v11287 = vadd.f32 %v11283, %v11286
  %vm11288 = vweird.f32 %v11155
  %vm11289 = vweird.f32 %v11283
  %vm11290 = vmor %vm11288, %vm11289
  %v11291 = vsel %vm11290, %v11283, %v11287
  %v11292 = vand.u32 2147483647, %v11155
  %vm11293 = vcmp.eq.f32.partialorder %v11292, 8.507059e+37
  %v11294 = vand.u32 %v11155, 2147483648
  %v11295 = vor.u32 1.1754944e-38, %v11294
  %v11296 = vsel %vm11293, %v11295, %v11291
  %v11297 = vmul.f32 1.0, %v11296
  %v11298 = vrcp.pop %v11156
  %v11299 = vmul.f32 %v11156, %v11298
  %v11300 = vsub.f32 1.0, %v11299
  %v11301 = vmul.f32 %v11298, %v11300
  %v11302 = vadd.f32 %v11298, %v11301
  %vm11303 = vweird.f32 %v11156
  %vm11304 = vweird.f32 %v11298
  %vm11305 = vmor %vm11303, %vm11304
  %v11306 = vsel %vm11305, %v11298, %v11302
  %v11307 = vand.u32 2147483647, %v11156
  %vm11308 = vcmp.eq.f32.partialorder %v11307, 8.507059e+37
  %v11309 = vand.u32 %v11156, 2147483648
  %v11310 = vor.u32 1.1754944e-38, %v11309
  %v11311 = vsel %vm11308, %v11310, %v11306
  %v11312 = vmul.f32 1.0, %v11311
  %v11313 = vrcp.pop %v11157
  %v11314 = vmul.f32 %v11157, %v11313
  %v11315 = vsub.f32 1.0, %v11314
  %v11316 = vmul.f32 %v11313, %v11315
  %v11317 = vadd.f32 %v11313, %v11316
  %vm11318 = vweird.f32 %v11157
  %vm11319 = vweird.f32 %v11313
  %vm11320 = vmor %vm11318, %vm11319
  %v11321 = vsel %vm11320, %v11313, %v11317
  %v11322 = vand.u32 2147483647, %v11157
  %vm11323 = vcmp.eq.f32.partialorder %v11322, 8.507059e+37
  %v11324 = vand.u32 %v11157, 2147483648
  %v11325 = vor.u32 1.1754944e-38, %v11324
  %v11326 = vsel %vm11323, %v11325, %v11321
  %v11327 = vmul.f32 1.0, %v11326
  %v11328 = vrcp.pop %v11158
  %v11329 = vmul.f32 %v11158, %v11328
  %v11330 = vsub.f32 1.0, %v11329
  %v11331 = vmul.f32 %v11328, %v11330
  %v11332 = vadd.f32 %v11328, %v11331
  %vm11333 = vweird.f32 %v11158
  %vm11334 = vweird.f32 %v11328
  %vm11335 = vmor %vm11333, %vm11334
  %v11336 = vsel %vm11335, %v11328, %v11332
  %v11337 = vand.u32 2147483647, %v11158
  %vm11338 = vcmp.eq.f32.partialorder %v11337, 8.507059e+37
  %v11339 = vand.u32 %v11158, 2147483648
  %v11340 = vor.u32 1.1754944e-38, %v11339
  %v11341 = vsel %vm11338, %v11340, %v11336
  %v11342 = vmul.f32 1.0, %v11341
  %v11343 = vrcp.pop %v11159
  %v11344 = vmul.f32 %v11159, %v11343
  %v11345 = vsub.f32 1.0, %v11344
  %v11346 = vmul.f32 %v11343, %v11345
  %v11347 = vadd.f32 %v11343, %v11346
  %vm11348 = vweird.f32 %v11159
  %vm11349 = vweird.f32 %v11343
  %vm11350 = vmor %vm11348, %vm11349
  %v11351 = vsel %vm11350, %v11343, %v11347
  %v11352 = vand.u32 2147483647, %v11159
  %vm11353 = vcmp.eq.f32.partialorder %v11352, 8.507059e+37
  %v11354 = vand.u32 %v11159, 2147483648
  %v11355 = vor.u32 1.1754944e-38, %v11354
  %v11356 = vsel %vm11353, %v11355, %v11351
  %v11357 = vmul.f32 1.0, %v11356
  %v11358 = vrcp.pop %v11160
  %v11359 = vmul.f32 %v11160, %v11358
  %v11360 = vsub.f32 1.0, %v11359
  %v11361 = vmul.f32 %v11358, %v11360
  %v11362 = vadd.f32 %v11358, %v11361
  %vm11363 = vweird.f32 %v11160
  %vm11364 = vweird.f32 %v11358
  %vm11365 = vmor %vm11363, %vm11364
  %v11366 = vsel %vm11365, %v11358, %v11362
  %v11367 = vand.u32 2147483647, %v11160
  %vm11368 = vcmp.eq.f32.partialorder %v11367, 8.507059e+37
  %v11369 = vand.u32 %v11160, 2147483648
  %v11370 = vor.u32 1.1754944e-38, %v11369
  %v11371 = vsel %vm11368, %v11370, %v11366
  %v11372 = vmul.f32 1.0, %v11371
  %v11373 = vrcp.pop %v11161
  %v11374 = vmul.f32 %v11161, %v11373
  %v11375 = vsub.f32 1.0, %v11374
  %v11376 = vmul.f32 %v11373, %v11375
  %v11377 = vadd.f32 %v11373, %v11376
  %vm11378 = vweird.f32 %v11161
  %vm11379 = vweird.f32 %v11373
  %vm11380 = vmor %vm11378, %vm11379
  %v11381 = vsel %vm11380, %v11373, %v11377
  %v11382 = vand.u32 2147483647, %v11161
  %vm11383 = vcmp.eq.f32.partialorder %v11382, 8.507059e+37
  %v11384 = vand.u32 %v11161, 2147483648
  %v11385 = vor.u32 1.1754944e-38, %v11384
  %v11386 = vsel %vm11383, %v11385, %v11381
  %v11387 = vmul.f32 1.0, %v11386
  %v11388 = vrcp.pop %v11162
  %v11389 = vmul.f32 %v11162, %v11388
  %v11390 = vsub.f32 1.0, %v11389
  %v11391 = vmul.f32 %v11388, %v11390
  %v11392 = vadd.f32 %v11388, %v11391
  %vm11393 = vweird.f32 %v11162
  %vm11394 = vweird.f32 %v11388
  %vm11395 = vmor %vm11393, %vm11394
  %v11396 = vsel %vm11395, %v11388, %v11392
  %v11397 = vand.u32 2147483647, %v11162
  %vm11398 = vcmp.eq.f32.partialorder %v11397, 8.507059e+37
  %v11399 = vand.u32 %v11162, 2147483648
  %v11400 = vor.u32 1.1754944e-38, %v11399
  %v11401 = vsel %vm11398, %v11400, %v11396
  %v11402 = vmul.f32 1.0, %v11401
  %v11403 = vmul.f32 %v11083, %v11177
  %v11404 = vmul.f32 %v11084, %v11192
  %v11405 = vmul.f32 %v11085, %v11207
  %v11406 = vmul.f32 %v11086, %v11222
  %v11407 = vmul.f32 %v11087, %v11237
  %v11408 = vmul.f32 %v11088, %v11252
  %v11409 = vmul.f32 %v11089, %v11267
  %v11410 = vmul.f32 %v11090, %v11282
  %v11411 = vmul.f32 %v11091, %v11297
  %v11412 = vmul.f32 %v11092, %v11312
  %v11413 = vmul.f32 %v11093, %v11327
  %v11414 = vmul.f32 %v11094, %v11342
  %v11415 = vmul.f32 %v11095, %v11357
  %v11416 = vmul.f32 %v11096, %v11372
  %v11417 = vmul.f32 %v11097, %v11387
  %v11418 = vmul.f32 %v11098, %v11402
  %v11419 = vpack.c.bf16 %v11407, %v11403
  %v11420 = vpack.c.bf16 %v11408, %v11404
  %v11421 = vpack.c.bf16 %v11409, %v11405
  %v11422 = vpack.c.bf16 %v11410, %v11406
  %v11423 = vpack.c.bf16 %v11415, %v11411
  %v11424 = vpack.c.bf16 %v11416, %v11412
  %v11425 = vpack.c.bf16 %v11417, %v11413
  %v11426 = vpack.c.bf16 %v11418, %v11414
  %s11427 = scalar_lea.vmem %s6, 224
  %v11428 = vld [vmem:[%s11427] sm:$0xf]
  %v11429 = vld [vmem:[%s11427 + $0x4] sm:$0xf]
  %v11430 = vld [vmem:[%s11427 + $0x8] sm:$0xf]
  %v11431 = vld [vmem:[%s11427 + $0xc] sm:$0xf]
  %s11432 = scalar_lea.vmem %s7, 448
  %v11433 = vld [vmem:[%s11432] sm:$0xff]
  %v11434 = vld [vmem:[%s11432 + $0x8] sm:$0xff]
  %v11435 = vld [vmem:[%s11432 + $0x10] sm:$0xff]
  %v11436 = vld [vmem:[%s11432 + $0x18] sm:$0xff]
  %11438 = vset.pattern.permute.xlu0 0
  %11439 = vperm.xlu0 %11438, %v11433
  %v11440 = vpop.permute.xlu0 %11439
  %11443 = vset.pattern.permute.xlu0 0
  %11444 = vperm.xlu0 %11443, %v11434
  %v11445 = vpop.permute.xlu0 %11444
  %11448 = vset.pattern.permute.xlu0 0
  %11449 = vperm.xlu0 %11448, %v11435
  %v11450 = vpop.permute.xlu0 %11449
  %11453 = vset.pattern.permute.xlu0 0
  %11454 = vperm.xlu0 %11453, %v11436
  %v11455 = vpop.permute.xlu0 %11454
  %v11461 = vunpack.c.l.b16 %v11428
  %v11462 = vunpack.c.l.b16 %v11429
  %v11463 = vunpack.c.l.b16 %v11430
  %v11464 = vunpack.c.l.b16 %v11431
  %v11465 = vpack.c.b16 %v11462, %v11461
  %v11466 = vpack.c.b16 %v11464, %v11463
  %v11468 = vsel %vm124, %v11465, 0
  %v11471 = vsel %vm124, %v11466, 0
  %11473 = vmatpush.bf16.msra.mxu0 0
  %11474 = vmatpush.bf16.msra.mxu0 0
  %11475 = vmatpush.bf16.msra.mxu0 0
  %11476 = vmatpush.bf16.msra.mxu0 0
  %11477 = vmatpush.bf16.msra.mxu0 0
  %11478 = vmatpush.bf16.msra.mxu0 0
  %11479 = vmatpush.bf16.msra.mxu0 %v11423
  %11480 = vmatpush.bf16.msra.mxu0 %v11419
  %11481 = vmatmul.bf16.gmra.mxu0 %v11468
  %v11482 = vpop.f32.mrf.mxu0
  %v11483 = vadd.f32 %v11440, %v11482
  %v11484 = vpop.f32.mrf.mxu0
  %v11485 = vadd.f32 %v11445, %v11484
  %11486 = vmatmul.bf16.gmra.mxu0 %v11471
  %v11487 = vpop.f32.mrf.mxu0
  %v11488 = vadd.f32 %v11450, %v11487
  %v11489 = vpop.f32.mrf.mxu0
  %v11490 = vadd.f32 %v11455, %v11489
  %11491 = vdwg.mxu0
  %11492 = vmatpush.bf16.msra.mxu0 0
  %11493 = vmatpush.bf16.msra.mxu0 0
  %11494 = vmatpush.bf16.msra.mxu0 0
  %11495 = vmatpush.bf16.msra.mxu0 0
  %11496 = vmatpush.bf16.msra.mxu0 0
  %11497 = vmatpush.bf16.msra.mxu0 0
  %11498 = vmatpush.bf16.msra.mxu0 %v11424
  %11499 = vmatpush.bf16.msra.mxu0 %v11420
  %11500 = vmatmul.bf16.gmra.mxu0 %v11468
  %v11501 = vpop.f32.mrf.mxu0
  %v11502 = vadd.f32 %v11440, %v11501
  %v11503 = vpop.f32.mrf.mxu0
  %v11504 = vadd.f32 %v11445, %v11503
  %11505 = vmatmul.bf16.gmra.mxu0 %v11471
  %v11506 = vpop.f32.mrf.mxu0
  %v11507 = vadd.f32 %v11450, %v11506
  %v11508 = vpop.f32.mrf.mxu0
  %v11509 = vadd.f32 %v11455, %v11508
  %11510 = vdwg.mxu0
  %11511 = vmatpush.bf16.msra.mxu0 0
  %11512 = vmatpush.bf16.msra.mxu0 0
  %11513 = vmatpush.bf16.msra.mxu0 0
  %11514 = vmatpush.bf16.msra.mxu0 0
  %11515 = vmatpush.bf16.msra.mxu0 0
  %11516 = vmatpush.bf16.msra.mxu0 0
  %11517 = vmatpush.bf16.msra.mxu0 %v11425
  %11518 = vmatpush.bf16.msra.mxu0 %v11421
  %11519 = vmatmul.bf16.gmra.mxu0 %v11468
  %v11520 = vpop.f32.mrf.mxu0
  %v11521 = vadd.f32 %v11440, %v11520
  %v11522 = vpop.f32.mrf.mxu0
  %v11523 = vadd.f32 %v11445, %v11522
  %11524 = vmatmul.bf16.gmra.mxu0 %v11471
  %v11525 = vpop.f32.mrf.mxu0
  %v11526 = vadd.f32 %v11450, %v11525
  %v11527 = vpop.f32.mrf.mxu0
  %v11528 = vadd.f32 %v11455, %v11527
  %11529 = vdwg.mxu0
  %11530 = vmatpush.bf16.msra.mxu0 0
  %11531 = vmatpush.bf16.msra.mxu0 0
  %11532 = vmatpush.bf16.msra.mxu0 0
  %11533 = vmatpush.bf16.msra.mxu0 0
  %11534 = vmatpush.bf16.msra.mxu0 0
  %11535 = vmatpush.bf16.msra.mxu0 0
  %11536 = vmatpush.bf16.msra.mxu0 %v11426
  %11537 = vmatpush.bf16.msra.mxu0 %v11422
  %11538 = vmatmul.bf16.gmra.mxu0 %v11468
  %v11539 = vpop.f32.mrf.mxu0
  %v11540 = vadd.f32 %v11440, %v11539
  %v11541 = vpop.f32.mrf.mxu0
  %v11542 = vadd.f32 %v11445, %v11541
  %11543 = vmatmul.bf16.gmra.mxu0 %v11471
  %v11544 = vpop.f32.mrf.mxu0
  %v11545 = vadd.f32 %v11450, %v11544
  %v11546 = vpop.f32.mrf.mxu0
  %v11547 = vadd.f32 %v11455, %v11546
  %11548 = vdwg.mxu0
  %v11549 = vadd.f32 %v10233, %v11483
  %v11550 = vadd.f32 %v10234, %v11502
  %v11551 = vadd.f32 %v10235, %v11521
  %v11552 = vadd.f32 %v10236, %v11540
  %v11553 = vadd.f32 %v10237, %v11485
  %v11554 = vadd.f32 %v10238, %v11504
  %v11555 = vadd.f32 %v10239, %v11523
  %v11556 = vadd.f32 %v10240, %v11542
  %v11557 = vadd.f32 %v10241, %v11488
  %v11558 = vadd.f32 %v10242, %v11507
  %v11559 = vadd.f32 %v10243, %v11526
  %v11560 = vadd.f32 %v10244, %v11545
  %v11561 = vadd.f32 %v10245, %v11490
  %v11562 = vadd.f32 %v10246, %v11509
  %v11563 = vadd.f32 %v10247, %v11528
  %v11564 = vadd.f32 %v10248, %v11547
  %v11565 = vmul.f32 %v11549, %v58
  %v11566 = vmul.f32 %v11550, %v59
  %v11567 = vmul.f32 %v11551, %v60
  %v11568 = vmul.f32 %v11552, %v61
  %v11569 = vmul.f32 %v11553, %v58
  %v11570 = vmul.f32 %v11554, %v59
  %v11571 = vmul.f32 %v11555, %v60
  %v11572 = vmul.f32 %v11556, %v61
  %v11573 = vmul.f32 %v11557, %v58
  %v11574 = vmul.f32 %v11558, %v59
  %v11575 = vmul.f32 %v11559, %v60
  %v11576 = vmul.f32 %v11560, %v61
  %v11577 = vmul.f32 %v11561, %v58
  %v11578 = vmul.f32 %v11562, %v59
  %v11579 = vmul.f32 %v11563, %v60
  %v11580 = vmul.f32 %v11564, %v61
  %v11581 = vld [vmem:[%s8] sm:$0xf]
  %v11582 = vld [vmem:[%s8 + $0x4] sm:$0xf]
  %v11583 = vld [vmem:[%s8 + $0x8] sm:$0xf]
  %v11584 = vld [vmem:[%s8 + $0xc] sm:$0xf]
  %v11585 = vld [vmem:[%s8 + $0x10] sm:$0xf]
  %v11586 = vld [vmem:[%s8 + $0x14] sm:$0xf]
  %v11587 = vld [vmem:[%s8 + $0x18] sm:$0xf]
  %v11588 = vld [vmem:[%s8 + $0x1c] sm:$0xf]
  %v11589 = vld [vmem:[%s8 + $0x20] sm:$0xf]
  %v11590 = vld [vmem:[%s8 + $0x24] sm:$0xf]
  %v11591 = vpack.c.bf16 %v11569, %v11565
  %v11592 = vpack.c.bf16 %v11570, %v11566
  %v11593 = vpack.c.bf16 %v11571, %v11567
  %v11594 = vpack.c.bf16 %v11572, %v11568
  %v11595 = vpack.c.bf16 %v11577, %v11573
  %v11596 = vpack.c.bf16 %v11578, %v11574
  %v11597 = vpack.c.bf16 %v11579, %v11575
  %v11598 = vpack.c.bf16 %v11580, %v11576
  %v11599 = vld [vmem:[%s9] sm:$0xff]
  %v11600 = vld [vmem:[%s9 + $0x8] sm:$0xff]
  %v11601 = vld [vmem:[%s9 + $0x10] sm:$0xff]
  %v11602 = vld [vmem:[%s9 + $0x18] sm:$0xff]
  %v11603 = vld [vmem:[%s9 + $0x20] sm:$0xff]
  %v11604 = vld [vmem:[%s9 + $0x28] sm:$0xff]
  %v11605 = vld [vmem:[%s9 + $0x30] sm:$0xff]
  %v11606 = vld [vmem:[%s9 + $0x38] sm:$0xff]
  %v11607 = vld [vmem:[%s9 + $0x40] sm:$0xff]
  %v11608 = vld [vmem:[%s9 + $0x48] sm:$0xff]
  %11610 = vset.pattern.permute.xlu0 0
  %11611 = vperm.xlu0 %11610, %v11599
  %v11612 = vpop.permute.xlu0 %11611
  %11615 = vset.pattern.permute.xlu0 0
  %11616 = vperm.xlu0 %11615, %v11600
  %v11617 = vpop.permute.xlu0 %11616
  %11620 = vset.pattern.permute.xlu0 0
  %11621 = vperm.xlu0 %11620, %v11601
  %v11622 = vpop.permute.xlu0 %11621
  %11625 = vset.pattern.permute.xlu0 0
  %11626 = vperm.xlu0 %11625, %v11602
  %v11627 = vpop.permute.xlu0 %11626
  %11630 = vset.pattern.permute.xlu0 0
  %11631 = vperm.xlu0 %11630, %v11603
  %v11632 = vpop.permute.xlu0 %11631
  %11635 = vset.pattern.permute.xlu0 0
  %11636 = vperm.xlu0 %11635, %v11604
  %v11637 = vpop.permute.xlu0 %11636
  %11640 = vset.pattern.permute.xlu0 0
  %11641 = vperm.xlu0 %11640, %v11605
  %v11642 = vpop.permute.xlu0 %11641
  %11645 = vset.pattern.permute.xlu0 0
  %11646 = vperm.xlu0 %11645, %v11606
  %v11647 = vpop.permute.xlu0 %11646
  %11650 = vset.pattern.permute.xlu0 0
  %11651 = vperm.xlu0 %11650, %v11607
  %v11652 = vpop.permute.xlu0 %11651
  %11655 = vset.pattern.permute.xlu0 0
  %11656 = vperm.xlu0 %11655, %v11608
  %v11657 = vpop.permute.xlu0 %11656
  %v11669 = vunpack.c.l.b16 %v11581
  %v11670 = vunpack.c.l.b16 %v11582
  %v11671 = vunpack.c.l.b16 %v11583
  %v11672 = vunpack.c.l.b16 %v11584
  %v11673 = vunpack.c.l.b16 %v11585
  %v11674 = vunpack.c.l.b16 %v11586
  %v11675 = vunpack.c.l.b16 %v11587
  %v11676 = vunpack.c.l.b16 %v11588
  %v11677 = vunpack.c.l.b16 %v11589
  %v11678 = vunpack.c.l.b16 %v11590
  %v11679 = vpack.c.b16 %v11670, %v11669
  %v11680 = vpack.c.b16 %v11672, %v11671
  %v11681 = vpack.c.b16 %v11674, %v11673
  %v11682 = vpack.c.b16 %v11676, %v11675
  %v11683 = vpack.c.b16 %v11678, %v11677
  %v11685 = vsel %vm124, %v11679, 0
  %v11688 = vsel %vm124, %v11680, 0
  %v11691 = vsel %vm124, %v11681, 0
  %v11694 = vsel %vm124, %v11682, 0
  %v11697 = vsel %vm124, %v11683, 0
  %11699 = vmatpush.bf16.msra.mxu0 0
  %11700 = vmatpush.bf16.msra.mxu0 0
  %11701 = vmatpush.bf16.msra.mxu0 0
  %11702 = vmatpush.bf16.msra.mxu0 0
  %11703 = vmatpush.bf16.msra.mxu0 0
  %11704 = vmatpush.bf16.msra.mxu0 0
  %11705 = vmatpush.bf16.msra.mxu0 %v11595
  %11706 = vmatpush.bf16.msra.mxu0 %v11591
  %11707 = vmatmul.bf16.gmra.mxu0 %v11685
  %v11708 = vpop.f32.mrf.mxu0
  %v11709 = vadd.f32 %v11612, %v11708
  %v11710 = vpop.f32.mrf.mxu0
  %v11711 = vadd.f32 %v11617, %v11710
  %11712 = vmatmul.bf16.gmra.mxu0 %v11688
  %v11713 = vpop.f32.mrf.mxu0
  %v11714 = vadd.f32 %v11622, %v11713
  %v11715 = vpop.f32.mrf.mxu0
  %v11716 = vadd.f32 %v11627, %v11715
  %11717 = vmatmul.bf16.gmra.mxu0 %v11691
  %v11718 = vpop.f32.mrf.mxu0
  %v11719 = vadd.f32 %v11632, %v11718
  %v11720 = vpop.f32.mrf.mxu0
  %v11721 = vadd.f32 %v11637, %v11720
  %11722 = vmatmul.bf16.gmra.mxu0 %v11694
  %v11723 = vpop.f32.mrf.mxu0
  %v11724 = vadd.f32 %v11642, %v11723
  %v11725 = vpop.f32.mrf.mxu0
  %v11726 = vadd.f32 %v11647, %v11725
  %11727 = vmatmul.bf16.gmra.mxu0 %v11697
  %v11728 = vpop.f32.mrf.mxu0
  %v11729 = vadd.f32 %v11652, %v11728
  %v11730 = vpop.f32.mrf.mxu0
  %v11731 = vadd.f32 %v11657, %v11730
  %11732 = vdwg.mxu0
  %11733 = vmatpush.bf16.msra.mxu0 0
  %11734 = vmatpush.bf16.msra.mxu0 0
  %11735 = vmatpush.bf16.msra.mxu0 0
  %11736 = vmatpush.bf16.msra.mxu0 0
  %11737 = vmatpush.bf16.msra.mxu0 0
  %11738 = vmatpush.bf16.msra.mxu0 0
  %11739 = vmatpush.bf16.msra.mxu0 %v11596
  %11740 = vmatpush.bf16.msra.mxu0 %v11592
  %11741 = vmatmul.bf16.gmra.mxu0 %v11685
  %v11742 = vpop.f32.mrf.mxu0
  %v11743 = vadd.f32 %v11612, %v11742
  %v11744 = vpop.f32.mrf.mxu0
  %v11745 = vadd.f32 %v11617, %v11744
  %11746 = vmatmul.bf16.gmra.mxu0 %v11688
  %v11747 = vpop.f32.mrf.mxu0
  %v11748 = vadd.f32 %v11622, %v11747
  %v11749 = vpop.f32.mrf.mxu0
  %v11750 = vadd.f32 %v11627, %v11749
  %11751 = vmatmul.bf16.gmra.mxu0 %v11691
  %v11752 = vpop.f32.mrf.mxu0
  %v11753 = vadd.f32 %v11632, %v11752
  %v11754 = vpop.f32.mrf.mxu0
  %v11755 = vadd.f32 %v11637, %v11754
  %11756 = vmatmul.bf16.gmra.mxu0 %v11694
  %v11757 = vpop.f32.mrf.mxu0
  %v11758 = vadd.f32 %v11642, %v11757
  %v11759 = vpop.f32.mrf.mxu0
  %v11760 = vadd.f32 %v11647, %v11759
  %11761 = vmatmul.bf16.gmra.mxu0 %v11697
  %v11762 = vpop.f32.mrf.mxu0
  %v11763 = vadd.f32 %v11652, %v11762
  %v11764 = vpop.f32.mrf.mxu0
  %v11765 = vadd.f32 %v11657, %v11764
  %11766 = vdwg.mxu0
  %11767 = vmatpush.bf16.msra.mxu0 0
  %11768 = vmatpush.bf16.msra.mxu0 0
  %11769 = vmatpush.bf16.msra.mxu0 0
  %11770 = vmatpush.bf16.msra.mxu0 0
  %11771 = vmatpush.bf16.msra.mxu0 0
  %11772 = vmatpush.bf16.msra.mxu0 0
  %11773 = vmatpush.bf16.msra.mxu0 %v11597
  %11774 = vmatpush.bf16.msra.mxu0 %v11593
  %11775 = vmatmul.bf16.gmra.mxu0 %v11685
  %v11776 = vpop.f32.mrf.mxu0
  %v11777 = vadd.f32 %v11612, %v11776
  %v11778 = vpop.f32.mrf.mxu0
  %v11779 = vadd.f32 %v11617, %v11778
  %11780 = vmatmul.bf16.gmra.mxu0 %v11688
  %v11781 = vpop.f32.mrf.mxu0
  %v11782 = vadd.f32 %v11622, %v11781
  %v11783 = vpop.f32.mrf.mxu0
  %v11784 = vadd.f32 %v11627, %v11783
  %11785 = vmatmul.bf16.gmra.mxu0 %v11691
  %v11786 = vpop.f32.mrf.mxu0
  %v11787 = vadd.f32 %v11632, %v11786
  %v11788 = vpop.f32.mrf.mxu0
  %v11789 = vadd.f32 %v11637, %v11788
  %11790 = vmatmul.bf16.gmra.mxu0 %v11694
  %v11791 = vpop.f32.mrf.mxu0
  %v11792 = vadd.f32 %v11642, %v11791
  %v11793 = vpop.f32.mrf.mxu0
  %v11794 = vadd.f32 %v11647, %v11793
  %11795 = vmatmul.bf16.gmra.mxu0 %v11697
  %v11796 = vpop.f32.mrf.mxu0
  %v11797 = vadd.f32 %v11652, %v11796
  %v11798 = vpop.f32.mrf.mxu0
  %v11799 = vadd.f32 %v11657, %v11798
  %11800 = vdwg.mxu0
  %11801 = vmatpush.bf16.msra.mxu0 0
  %11802 = vmatpush.bf16.msra.mxu0 0
  %11803 = vmatpush.bf16.msra.mxu0 0
  %11804 = vmatpush.bf16.msra.mxu0 0
  %11805 = vmatpush.bf16.msra.mxu0 0
  %11806 = vmatpush.bf16.msra.mxu0 0
  %11807 = vmatpush.bf16.msra.mxu0 %v11598
  %11808 = vmatpush.bf16.msra.mxu0 %v11594
  %11809 = vmatmul.bf16.gmra.mxu0 %v11685
  %v11810 = vpop.f32.mrf.mxu0
  %v11811 = vadd.f32 %v11612, %v11810
  %v11812 = vpop.f32.mrf.mxu0
  %v11813 = vadd.f32 %v11617, %v11812
  %11814 = vmatmul.bf16.gmra.mxu0 %v11688
  %v11815 = vpop.f32.mrf.mxu0
  %v11816 = vadd.f32 %v11622, %v11815
  %v11817 = vpop.f32.mrf.mxu0
  %v11818 = vadd.f32 %v11627, %v11817
  %11819 = vmatmul.bf16.gmra.mxu0 %v11691
  %v11820 = vpop.f32.mrf.mxu0
  %v11821 = vadd.f32 %v11632, %v11820
  %v11822 = vpop.f32.mrf.mxu0
  %v11823 = vadd.f32 %v11637, %v11822
  %11824 = vmatmul.bf16.gmra.mxu0 %v11694
  %v11825 = vpop.f32.mrf.mxu0
  %v11826 = vadd.f32 %v11642, %v11825
  %v11827 = vpop.f32.mrf.mxu0
  %v11828 = vadd.f32 %v11647, %v11827
  %11829 = vmatmul.bf16.gmra.mxu0 %v11697
  %v11830 = vpop.f32.mrf.mxu0
  %v11831 = vadd.f32 %v11652, %v11830
  %v11832 = vpop.f32.mrf.mxu0
  %v11833 = vadd.f32 %v11657, %v11832
  %11834 = vdwg.mxu0
  %v11835 = vmul.f32 %v11709, %v58
  %v11836 = vmul.f32 %v11743, %v59
  %v11837 = vmul.f32 %v11777, %v60
  %v11838 = vmul.f32 %v11811, %v61
  %v11839 = vmul.f32 %v11711, %v58
  %v11840 = vmul.f32 %v11745, %v59
  %v11841 = vmul.f32 %v11779, %v60
  %v11842 = vmul.f32 %v11813, %v61
  %v11843 = vmul.f32 %v11714, %v58
  %v11844 = vmul.f32 %v11748, %v59
  %v11845 = vmul.f32 %v11782, %v60
  %v11846 = vmul.f32 %v11816, %v61
  %v11847 = vmul.f32 %v11716, %v58
  %v11848 = vmul.f32 %v11750, %v59
  %v11849 = vmul.f32 %v11784, %v60
  %v11850 = vmul.f32 %v11818, %v61
  %v11851 = vmul.f32 %v11719, %v58
  %v11852 = vmul.f32 %v11753, %v59
  %v11853 = vmul.f32 %v11787, %v60
  %v11854 = vmul.f32 %v11821, %v61
  %v11855 = vmul.f32 %v11721, %v58
  %v11856 = vmul.f32 %v11755, %v59
  %v11857 = vmul.f32 %v11789, %v60
  %v11858 = vmul.f32 %v11823, %v61
  %v11859 = vmul.f32 %v11724, %v58
  %v11860 = vmul.f32 %v11758, %v59
  %v11861 = vmul.f32 %v11792, %v60
  %v11862 = vmul.f32 %v11826, %v61
  %v11863 = vmul.f32 %v11726, %v58
  %v11864 = vmul.f32 %v11760, %v59
  %v11865 = vmul.f32 %v11794, %v60
  %v11866 = vmul.f32 %v11828, %v61
  %v11867 = vmul.f32 %v11729, %v58
  %v11868 = vmul.f32 %v11763, %v59
  %v11869 = vmul.f32 %v11797, %v60
  %v11870 = vmul.f32 %v11831, %v61
  %v11871 = vmul.f32 %v11731, %v58
  %v11872 = vmul.f32 %v11765, %v59
  %v11873 = vmul.f32 %v11799, %v60
  %v11874 = vmul.f32 %v11833, %v61
  %11875 = vst [vmem:[%s10] sm:$0xff] %v11835
  %11876 = vst [vmem:[%s10 + $0x8] sm:$0xff] %v11836
  %11877 = vst [vmem:[%s10 + $0x10] sm:$0xff] %v11837
  %11878 = vst [vmem:[%s10 + $0x18] sm:$0xff] %v11838
  %11879 = vst [vmem:[%s10 + $0x20] sm:$0xff] %v11839
  %11880 = vst [vmem:[%s10 + $0x28] sm:$0xff] %v11840
  %11881 = vst [vmem:[%s10 + $0x30] sm:$0xff] %v11841
  %11882 = vst [vmem:[%s10 + $0x38] sm:$0xff] %v11842
  %11883 = vst [vmem:[%s10 + $0x40] sm:$0xff] %v11843
  %11884 = vst [vmem:[%s10 + $0x48] sm:$0xff] %v11844
  %11885 = vst [vmem:[%s10 + $0x50] sm:$0xff] %v11845
  %11886 = vst [vmem:[%s10 + $0x58] sm:$0xff] %v11846
  %11887 = vst [vmem:[%s10 + $0x60] sm:$0xff] %v11847
  %11888 = vst [vmem:[%s10 + $0x68] sm:$0xff] %v11848
  %11889 = vst [vmem:[%s10 + $0x70] sm:$0xff] %v11849
  %11890 = vst [vmem:[%s10 + $0x78] sm:$0xff] %v11850
  %11891 = vst [vmem:[%s10 + $0x80] sm:$0xff] %v11851
  %11892 = vst [vmem:[%s10 + $0x88] sm:$0xff] %v11852
  %11893 = vst [vmem:[%s10 + $0x90] sm:$0xff] %v11853
  %11894 = vst [vmem:[%s10 + $0x98] sm:$0xff] %v11854
  %11895 = vst [vmem:[%s10 + $0xa0] sm:$0xff] %v11855
  %11896 = vst [vmem:[%s10 + $0xa8] sm:$0xff] %v11856
  %11897 = vst [vmem:[%s10 + $0xb0] sm:$0xff] %v11857
  %11898 = vst [vmem:[%s10 + $0xb8] sm:$0xff] %v11858
  %11899 = vst [vmem:[%s10 + $0xc0] sm:$0xff] %v11859
  %11900 = vst [vmem:[%s10 + $0xc8] sm:$0xff] %v11860
  %11901 = vst [vmem:[%s10 + $0xd0] sm:$0xff] %v11861
  %11902 = vst [vmem:[%s10 + $0xd8] sm:$0xff] %v11862
  %11903 = vst [vmem:[%s10 + $0xe0] sm:$0xff] %v11863
  %11904 = vst [vmem:[%s10 + $0xe8] sm:$0xff] %v11864
  %11905 = vst [vmem:[%s10 + $0xf0] sm:$0xff] %v11865
  %11906 = vst [vmem:[%s10 + $0xf8] sm:$0xff] %v11866
  %11907 = vst [vmem:[%s10 + $0x100] sm:$0xff] %v11867
  %11908 = vst [vmem:[%s10 + $0x108] sm:$0xff] %v11868
  %11909 = vst [vmem:[%s10 + $0x110] sm:$0xff] %v11869
  %11910 = vst [vmem:[%s10 + $0x118] sm:$0xff] %v11870
  %11911 = vst [vmem:[%s10 + $0x120] sm:$0xff] %v11871
  %11912 = vst [vmem:[%s10 + $0x128] sm:$0xff] %v11872
  %11913 = vst [vmem:[%s10 + $0x130] sm:$0xff] %v11873
  %11914 = vst [vmem:[%s10 + $0x138] sm:$0xff] %v11874
  // Predicated region
  $region42: #{synthesizer_trn_forward.1} parent=0 // pred_check
    _
  $region43: #{synthesizer_trn_forward.1} parent=0 // pred_check_branch
    %11916 = sbr.rel (0) target = $region45
  $region44: #{synthesizer_trn_forward.1} parent=0 // pred_region
    _
  $region45: #{synthesizer_trn_forward.1} parent=0 // pred_fallthru
    _
  // Predicated region
  $region46: #{synthesizer_trn_forward.1} parent=0 // pred_check
    _
  $region47: #{synthesizer_trn_forward.1} parent=0 // pred_check_branch
    %11918 = sbr.rel (0) target = $region49
  $region48: #{synthesizer_trn_forward.1} parent=0 // pred_region
    _
  $region49: #{synthesizer_trn_forward.1} parent=0 // pred_fallthru
    _

</llo_original>
